<compile_context>
chip_gen: v7x
topology: tpu7x:2x2x1
jax: 0.10.0
libtpu: 0.0.40
codegen_flags: <defaults>
</compile_context>

<pallas_src>
import functools

import jax
import jax.numpy as jnp
import numpy as np
from jax import lax
from jax.experimental import pallas as pl
from jax.experimental.pallas import tpu as pltpu

_EPS = 1e-5
_MM_DTYPE = jnp.bfloat16      # MXU input dtype (f32 accumulation)
_ACT_DTYPE = jnp.bfloat16     # inter-stage HBM activation dtype
_VMEM_LIMIT = 32 * 1024 * 1024


def _cparams(n_axes):
    return pltpu.CompilerParams(
        dimension_semantics=("parallel",) * n_axes,
        vmem_limit_bytes=_VMEM_LIMIT,
    )


def _largest_divisor_leq(n, cap):
    t = max(1, min(n, cap))
    while n % t:
        t -= 1
    return t


# ----------------------------------------------------------------------------
# shared math helpers (used inside the Pallas kernels and by the reference)
# ----------------------------------------------------------------------------
def _ln(x, axis):
    """layer_norm_process: biased variance, gamma=1, beta=0, eps=1e-5 (f32)."""
    mean = jnp.mean(x, axis=axis, keepdims=True)
    var = jnp.mean((x - mean) ** 2, axis=axis, keepdims=True)
    return (x - mean) * lax.rsqrt(var + _EPS)


def _gelu(x):
    """Exact (erf) GELU, matching torch.nn.GELU()."""
    return 0.5 * x * (1.0 + lax.erf(x * (1.0 / np.sqrt(2.0))))


def _mm(a, w):
    """(rows, cin) @ (cin, cout): bf16 MXU inputs, f32 accumulation (w is pre-cast)."""
    return jnp.dot(a.astype(_MM_DTYPE), w.astype(_MM_DTYPE),
                   preferred_element_type=jnp.float32)


def _linear(a, w, b):
    return _mm(a, w) + b


# ----------------------------------------------------------------------------
# Pallas kernels
# ----------------------------------------------------------------------------
def _entry_kernel(x_ref, w1u_ref, w1v_ref, b1u_ref, b1v_ref, u_ref, v_ref):
    """shortcut LN (over the width axis) -> fc1 (C->2C) -> GELU -> channel split.

    x_ref: (TH, W, C) row-tile of the NHWC image.  The torch module layer-norms the
    NCHW tensor over its last dim (= W) -> axis=1 here.  The C->2C conv is done as two
    column-split C->C matmuls so u and v are written straight to their own (bf16)
    outputs: no concat / slice ever reaches HBM.
    """
    x = x_ref[...]                                   # f32
    TH, W, C = x.shape
    xln = _ln(x, axis=1).reshape(TH * W, C)
    u_ref[...] = _gelu(_linear(xln, w1u_ref[...], b1u_ref[...])
                       ).reshape(TH, W, C).astype(u_ref.dtype)
    v_ref[...] = _gelu(_linear(xln, w1v_ref[...], b1v_ref[...])
                       ).reshape(TH, W, C).astype(v_ref.dtype)


def _grid_gmlp_kernel(x_ref,
                      fc1_w_ref, fc1_b_ref,
                      gfc_wp_ref, gfc_b_ref,
                      sfc_w_ref, sfc_b_ref,
                      sfc2_w_ref, sfc2_b_ref,
                      fc2_w_ref, fc2_b_ref,
                      o_ref):
    """Fused GridGmlpLayer on a tile of paired grid cells.

    x_ref: (2, TG, P, C) bf16 — [0] holds cells g, [1] holds their partners g+G/2, so the
    gating unit's spatial split over the grid axis stays local to the tile.
    """
    x = x_ref[...].astype(jnp.float32)               # (2, TG, P, C)
    _, TG, P, C = x.shape
    rows = TG * P

    # LN over channels -> fc1 (C -> 2C) -> GELU
    y = _gelu(_linear(_ln(x, axis=-1).reshape(2 * rows, C), fc1_w_ref[...], fc1_b_ref[...]))
    y = y.reshape(2, TG, P, 2 * C)

    # LN over the within-cell axis P (torch last dim); per (cell, channel) so it serves
    # both the channel branch and (because the grid split is over cells) the spatial branch.
    z = _ln(y, axis=2)

    # channel branch: catt = u * (fc(LN_P(v)) + 1); channel select folded into the
    # zero-padded (2C, C) weight so no non-aligned lane slice is needed.
    vfc = _linear(z.reshape(2 * rows, 2 * C), gfc_wp_ref[...], gfc_b_ref[...]
                  ).reshape(2, TG, P, C)
    catt = y[..., :C] * (vfc + 1.0)

    # spatial branch + fc2 + residual, one half at a time (keeps live intermediates low).
    def half(i, j):
        sj = _linear(z[j].reshape(rows, 2 * C), sfc_w_ref[...], sfc_b_ref[...]
                     ).reshape(TG, P, 2 * C)
        satt = z[i] * (sj + 1.0)                      # torch: su*(sv1+1) / sv*(su1+1)
        g = catt[i] + _linear(satt.reshape(rows, 2 * C), sfc2_w_ref[...], sfc2_b_ref[...]
                              ).reshape(TG, P, C)
        return x[i] + _linear(g.reshape(rows, C), fc2_w_ref[...], fc2_b_ref[...]
                              ).reshape(TG, P, C)

    o_ref[0] = half(0, 1).astype(o_ref.dtype)
    o_ref[1] = half(1, 0).astype(o_ref.dtype)


def _block_gmlp_kernel(x_ref,
                       fc1_w_ref, fc1_b_ref,
                       gfc_wp_ref, gfc_b_ref,
                       sfc_w_ref, sfc_b_ref,
                       sfc2_w_ref, sfc2_b_ref,
                       fc2_w_ref, fc2_b_ref,
                       o_ref):
    """Fused BlockGmlpLayer on a single (fh, fw) patch taken straight from NHWC.

    The block gMLP never mixes across patches, so one patch (P = fh*fw positions) per
    grid step is exact; block_images/unblock_images never materialise in HBM.
    """
    fh, fw, C = x_ref.shape
    P = fh * fw
    half = P // 2
    x = x_ref[...].astype(jnp.float32).reshape(P, C)

    # LN over channels -> fc1 -> GELU
    y = _gelu(_linear(_ln(x, axis=-1), fc1_w_ref[...], fc1_b_ref[...]))   # (P, 2C)

    # channel branch (LN over P per channel; select folded into zero-padded weight)
    vfc = _linear(_ln(y, axis=0), gfc_wp_ref[...], gfc_b_ref[...])        # (P, C)
    catt = y[:, :C] * (vfc + 1.0)

    # spatial branch: split over P, LN each half over its own positions
    za = _ln(y[:half], axis=0)
    zb = _ln(y[half:], axis=0)
    sa = _linear(za, sfc_w_ref[...], sfc_b_ref[...])
    sb = _linear(zb, sfc_w_ref[...], sfc_b_ref[...])
    satt = jnp.concatenate([za * (sb + 1.0), zb * (sa + 1.0)], axis=0)    # (P, 2C)
    g = catt + _linear(satt, sfc2_w_ref[...], sfc2_b_ref[...])

    # fc2 + residual with the (pre-LN) patch input
    out = x + _linear(g, fc2_w_ref[...], fc2_b_ref[...])
    o_ref[...] = out.reshape(fh, fw, C).astype(o_ref.dtype)


def _head_kernel(u_ref, v_ref, sc_ref, w2u_ref, w2v_ref, b2_ref, o_ref):
    """Final fc2 on cat([u, v], channel) as a split-weight matmul, fused with the
    residual add against the module shortcut.  Blocks arrive as (rows, C): no reshapes."""
    # TODO(synk): the module's trailing nn.Dropout() (p=0.5) is eval-mode identity here.
    y = _mm(u_ref[...], w2u_ref[...]) + _mm(v_ref[...], w2v_ref[...]) + b2_ref[...]
    o_ref[...] = (y + sc_ref[...]).astype(o_ref.dtype)


# ----------------------------------------------------------------------------
# pallas_call wrappers
# ----------------------------------------------------------------------------
def _full_spec(shape):
    zeros = (0,) * len(shape)
    return pl.BlockSpec(tuple(shape), lambda *_: zeros)


def _gmlp_weights(p, C):
    """bf16 weight matrices (pre-cast once), f32 row-biases, padded gating weight."""
    gfc_wp = jnp.concatenate(
        [jnp.zeros((C, C), _MM_DTYPE), p["gu_fc_w"].astype(_MM_DTYPE)], axis=0)
    return (
        p["fc1_w"].astype(_MM_DTYPE), p["fc1_b"].reshape(1, -1),
        gfc_wp, p["gu_fc_b"].reshape(1, -1),
        p["gu_sfc_w"].astype(_MM_DTYPE), p["gu_sfc_b"].reshape(1, -1),
        p["gu_sfc2_w"].astype(_MM_DTYPE), p["gu_sfc2_b"].reshape(1, -1),
        p["fc2_w"].astype(_MM_DTYPE), p["fc2_b"].reshape(1, -1),
    )


def entry_stage(x_nhwc, w1, b1):
    N, H, W, C = x_nhwc.shape
    TH = _largest_divisor_leq(H, max(1, 2048 // W))      # row tiles -> more parallel steps
    weights = (w1[:, :C].astype(_MM_DTYPE), w1[:, C:].astype(_MM_DTYPE),
               b1[:C].reshape(1, C), b1[C:].reshape(1, C))
    spec = pl.BlockSpec((None, TH, W, C), lambda n, h: (n, h, 0, 0))
    out_sd = jax.ShapeDtypeStruct((N, H, W, C), _ACT_DTYPE)
    return pl.pallas_call(
        _entry_kernel,
        out_shape=(out_sd, out_sd),
        grid=(N, H // TH),
        in_specs=[spec] + [_full_spec(w.shape) for w in weights],
        out_specs=(spec, spec),
        compiler_params=_cparams(2),
    )(x_nhwc, *weights)


def grid_gmlp_stage(u_blk, p):
    """u_blk: (N, G, P, C) blocked tensor (grid cells on axis 1)."""
    N, G, P, C = u_blk.shape
    Gh = G // 2
    x = u_blk.reshape(N, 2, Gh, P, C)                    # free view: pairs (g, g+G/2)
    TG = _largest_divisor_leq(Gh, max(1, 2048 // (2 * P)))
    weights = _gmlp_weights(p, C)
    spec = pl.BlockSpec((None, 2, TG, P, C), lambda n, t: (n, 0, t, 0, 0))
    out = pl.pallas_call(
        _grid_gmlp_kernel,
        out_shape=jax.ShapeDtypeStruct((N, 2, Gh, P, C), _ACT_DTYPE),
        grid=(N, Gh // TG),
        in_specs=[spec] + [_full_spec(w.shape) for w in weights],
        out_specs=spec,
        compiler_params=_cparams(2),
    )(x, *weights)
    return out.reshape(N, G, P, C)


def block_gmlp_stage(v_nhwc, p, block_size):
    """Block gMLP straight on the NHWC tensor: block/unblock fused into the BlockSpec."""
    N, H, W, C = v_nhwc.shape
    fh, fw = block_size
    gh, gw = H // fh, W // fw
    x = v_nhwc.reshape(N, gh, fh, gw, fw, C)             # free view (no transpose)
    weights = _gmlp_weights(p, C)
    spec = pl.BlockSpec((None, None, fh, None, fw, C),
                        lambda n, i, j: (n, i, 0, j, 0, 0))
    out = pl.pallas_call(
        _block_gmlp_kernel,
        out_shape=jax.ShapeDtypeStruct((N, gh, fh, gw, fw, C), _ACT_DTYPE),
        grid=(N, gh, gw),
        in_specs=[spec] + [_full_spec(w.shape) for w in weights],
        out_specs=spec,
        compiler_params=_cparams(3),
    )(x, *weights)
    return out.reshape(N, H, W, C)


def head_stage(u_img, v_img, shortcut_nhwc, w2, b2):
    N, H, W, C = shortcut_nhwc.shape
    rows = H * W
    TR = _largest_divisor_leq(rows, 2048)
    u = u_img.reshape(N, rows, C)
    v = v_img.reshape(N, rows, C)
    sc = shortcut_nhwc.reshape(N, rows, C)
    w2u = w2[:C].astype(_MM_DTYPE)
    w2v = w2[C:].astype(_MM_DTYPE)
    b2r = b2.reshape(1, C)
    spec = pl.BlockSpec((None, TR, C), lambda n, r: (n, r, 0))
    out = pl.pallas_call(
        _head_kernel,
        out_shape=jax.ShapeDtypeStruct((N, rows, C), shortcut_nhwc.dtype),
        grid=(N, rows // TR),
        in_specs=[spec, spec, spec,
                  _full_spec(w2u.shape), _full_spec(w2v.shape), _full_spec(b2r.shape)],
        out_specs=spec,
        input_output_aliases={2: 0},       # residual writes back into the shortcut buffer
        compiler_params=_cparams(2),
    )(u, v, sc, w2u, w2v, b2r)
    return out.reshape(N, H, W, C)


# ----------------------------------------------------------------------------
# glue reshuffles (grid branch only; block branch is fused into the BlockSpec)
# ----------------------------------------------------------------------------
def block_images(x, patch_size):
    """(n, h, w, c) -> (n, gh*gw, fh*fw, c)   (block_images_einops)."""
    n, h, w, c = x.shape
    fh, fw = patch_size
    gh, gw = h // fh, w // fw
    x = x.reshape(n, gh, fh, gw, fw, c)
    x = jnp.transpose(x, (0, 1, 3, 2, 4, 5))
    return x.reshape(n, gh * gw, fh * fw, c)


def unblock_images(x, grid_size, patch_size):
    n, _, _, c = x.shape
    gh, gw = grid_size
    fh, fw = patch_size
    x = x.reshape(n, gh, gw, fh, fw, c)
    x = jnp.transpose(x, (0, 1, 3, 2, 4, 5))
    return x.reshape(n, gh * fh, gw * fw, c)


# ----------------------------------------------------------------------------
# module forward (Pallas path)
# ----------------------------------------------------------------------------
def residual_split_head_multi_axis_gmlp(x, params, *, block_size, grid_size):
    """Forward of ResidualSplitHeadMultiAxisGmlpLayer.  x: (N, C, H, W) -> (N, C, H, W)."""
    _, _, H, W = x.shape
    x_nhwc = jnp.transpose(x, (0, 2, 3, 1))      # single entry transpose; also the shortcut

    # LN(over W) -> fc1 -> GELU -> channel split (one fused kernel, bf16 outputs)
    u, v = entry_stage(x_nhwc, params["fc1_w"], params["fc1_b"])

    # grid gMLP on u (global mixing): blocked layout kept, tiled over (g, g+G/2) pairs
    gh, gw = grid_size
    fh_g, fw_g = H // gh, W // gw
    ub = block_images(u, (fh_g, fw_g))           # bf16 XLA shuffle (half the old traffic)
    ub = grid_gmlp_stage(ub, params["grid"])
    u = unblock_images(ub, (gh, gw), (fh_g, fw_g))

    # block gMLP on v (local mixing): per-patch BlockSpec, no HBM block/unblock
    v = block_gmlp_stage(v, params["block"], block_size)

    # cat([u, v], channel) -> fc2 -> + shortcut  (one fused kernel, f32 output)
    out_nhwc = head_stage(u, v, x_nhwc, params["fc2_w"], params["fc2_b"])
    return jnp.transpose(out_nhwc, (0, 3, 1, 2))  # single exit transpose


# ----------------------------------------------------------------------------
# pure-JAX reference (direct transcription of the PyTorch module, NCHW), with the
# same bf16 stage boundaries / bf16 matmul inputs so the check is apples-to-apples.
# ----------------------------------------------------------------------------
def _round_act(x):
    return x.astype(_ACT_DTYPE).astype(jnp.float32)


def _ref_conv1x1(x, w, b):
    n, cin, d2, d3 = x.shape
    xl = jnp.transpose(x, (0, 2, 3, 1)).reshape(-1, cin)
    y = _linear(xl, w, b)
    return jnp.transpose(y.reshape(n, d2, d3, -1), (0, 3, 1, 2))


def _ref_grid_gating_unit(x, p):
    c = x.shape[1] // 2
    w2 = x.shape[2] // 2
    u, v = x[:, :c], x[:, c:]
    v = _ref_conv1x1(_ln(v, axis=-1), p["gu_fc_w"], p["gu_fc_b"])
    catt = u * (v + 1.0)
    su = _ln(x[:, :, :w2], axis=-1)
    sv = _ln(x[:, :, w2:], axis=-1)
    su1 = _ref_conv1x1(su, p["gu_sfc_w"], p["gu_sfc_b"])
    sv1 = _ref_conv1x1(sv, p["gu_sfc_w"], p["gu_sfc_b"])
    satt = jnp.concatenate([su * (sv1 + 1.0), sv * (su1 + 1.0)], axis=2)
    return catt + _ref_conv1x1(satt, p["gu_sfc2_w"], p["gu_sfc2_b"])


def _ref_block_gating_unit(x, p):
    c = x.shape[1] // 2
    h2 = x.shape[3] // 2
    u, v = x[:, :c], x[:, c:]
    v = _ref_conv1x1(_ln(v, axis=-1), p["gu_fc_w"], p["gu_fc_b"])
    catt = u * (v + 1.0)
    su = _ln(x[:, :, :, :h2], axis=-1)
    sv = _ln(x[:, :, :, h2:], axis=-1)
    sv1 = _ref_conv1x1(sv, p["gu_sfc_w"], p["gu_sfc_b"])
    su1 = _ref_conv1x1(su, p["gu_sfc_w"], p["gu_sfc_b"])
    satt = jnp.concatenate([su * (sv1 + 1.0), sv * (su1 + 1.0)], axis=3)
    return catt + _ref_conv1x1(satt, p["gu_sfc2_w"], p["gu_sfc2_b"])


def _ref_gmlp_layer(x, p, patch, grid, gating):
    fh, fw = patch
    x = jnp.transpose(x, (0, 2, 3, 1))
    x = block_images(x, (fh, fw))
    y = _ln(x, axis=-1)
    y = jnp.transpose(y, (0, 3, 1, 2))
    y = _gelu(_ref_conv1x1(y, p["fc1_w"], p["fc1_b"]))
    y = gating(y, p)
    y = _ref_conv1x1(y, p["fc2_w"], p["fc2_b"])
    y = jnp.transpose(y, (0, 2, 3, 1))
    x = x + y
    return unblock_images(x, grid, (fh, fw))


def ref_forward(x, params, block_size, grid_size):
    n, c, h, w = x.shape
    shortcut = x
    y = _gelu(_ref_conv1x1(_ln(x, axis=-1), params["fc1_w"], params["fc1_b"]))
    u, v = _round_act(y[:, :c]), _round_act(y[:, c:])          # entry-stage bf16 boundary
    gh, gw = grid_size
    u = _ref_gmlp_layer(u, params["grid"], (h // gh, w // gw), (gh, gw), _ref_grid_gating_unit)
    fh, fw = block_size
    v = _ref_gmlp_layer(v, params["block"], (fh, fw), (h // fh, w // fw), _ref_block_gating_unit)
    u, v = _round_act(u), _round_act(v)                        # gmlp-stage bf16 boundary
    y = jnp.concatenate([u, v], axis=-1)
    y = jnp.transpose(y, (0, 3, 1, 2))
    y = _ref_conv1x1(y, params["fc2_w"], params["fc2_b"])
    return y + shortcut


# ----------------------------------------------------------------------------
# deterministic parameter init (1x1-conv weights stored as (Cin, Cout))
# ----------------------------------------------------------------------------
def init_params(key, C):
    def conv_p(k, cin, cout):
        kw, kb = jax.random.split(k)
        w = (jax.random.normal(kw, (cin, cout), jnp.float32) / np.sqrt(cin)).astype(jnp.float32)
        b = (0.02 * jax.random.normal(kb, (cout,), jnp.float32)).astype(jnp.float32)
        return w, b

    ks = jax.random.split(key, 12)
    p = {}
    p["fc1_w"], p["fc1_b"] = conv_p(ks[0], C, 2 * C)
    p["fc2_w"], p["fc2_b"] = conv_p(ks[1], 2 * C, C)

    def gmlp_params(kk):
        q = {}
        q["fc1_w"], q["fc1_b"] = conv_p(kk[0], C, 2 * C)
        q["fc2_w"], q["fc2_b"] = conv_p(kk[1], C, C)
        q["gu_fc_w"], q["gu_fc_b"] = conv_p(kk[2], C, C)            # n1/n2 == num_channels
        q["gu_sfc_w"], q["gu_sfc_b"] = conv_p(kk[3], 2 * C, 2 * C)
        q["gu_sfc2_w"], q["gu_sfc2_b"] = conv_p(kk[4], 2 * C, C)
        return q

    p["grid"] = gmlp_params(ks[2:7])
    p["block"] = gmlp_params(ks[7:12])
    return p


if __name__ == "__main__":
    N, C, H, W = 2, 4, 16, 16
    block_size = (4, 4)     # (fh, fw) for the block gMLP; fh*fw must be even
    grid_size = (4, 4)      # (gh, gw) for the grid gMLP; gh*gw must be even

    key = jax.random.PRNGKey(0)
    kx, kp = jax.random.split(key)
    x = jax.random.normal(kx, (N, C, H, W), jnp.float32)
    params = init_params(kp, C)

    fwd = jax.jit(functools.partial(residual_split_head_multi_axis_gmlp,
                                    block_size=block_size, grid_size=grid_size))
    out = fwd(x, params)
    jax.block_until_ready(out)
    assert out.shape == (N, C, H, W)

    # correctness check against a pure-JAX transcription of the PyTorch module with the
    # same bf16 matmul inputs and the same bf16 inter-stage boundaries.
    ref = ref_forward(x, params, block_size, grid_size)
    np.testing.assert_allclose(np.asarray(out), np.asarray(ref), rtol=5e-3, atol=5e-3)

    print("KERNEL_OK")
</pallas_src>

<mosaic_0001>
module attributes {stable_mosaic.version = 11 : i64} {
  func.func @_entry_kernel(%arg0: i32, %arg1: i32, %arg2: memref<1x16x16x4xf32, #tpu.memory_space<vmem>>, %arg3: memref<4x4xbf16, #tpu.memory_space<vmem>>, %arg4: memref<4x4xbf16, #tpu.memory_space<vmem>>, %arg5: memref<1x4xf32, #tpu.memory_space<vmem>>, %arg6: memref<1x4xf32, #tpu.memory_space<vmem>>, %arg7: memref<1x16x16x4xbf16, #tpu.memory_space<vmem>>, %arg8: memref<1x16x16x4xbf16, #tpu.memory_space<vmem>>) attributes {dimension_semantics = [#tpu.dimension_semantics<parallel>, #tpu.dimension_semantics<parallel>], iteration_bounds = array<i64: 2, 1>, scalar_prefetch = 0 : i64, scratch_operands = 0 : i64, tpu.core_type = #tpu.core_type<tc>, window_params = [{transform_indices = @transform_0, window_bounds = array<i64: 1, 16, 16, 4>}, {pipeline_mode = #tpu.pipeline_mode<synchronous>, transform_indices = @transform_1, window_bounds = array<i64: 4, 4>}, {pipeline_mode = #tpu.pipeline_mode<synchronous>, transform_indices = @transform_2, window_bounds = array<i64: 4, 4>}, {pipeline_mode = #tpu.pipeline_mode<synchronous>, transform_indices = @transform_3, window_bounds = array<i64: 1, 4>}, {pipeline_mode = #tpu.pipeline_mode<synchronous>, transform_indices = @transform_4, window_bounds = array<i64: 1, 4>}, {transform_indices = @transform_5, window_bounds = array<i64: 1, 16, 16, 4>}, {transform_indices = @transform_6, window_bounds = array<i64: 1, 16, 16, 4>}]} {
    %c0 = arith.constant 0 : index
    %c0_0 = arith.constant 0 : index
    %c0_1 = arith.constant 0 : index
    %c0_2 = arith.constant 0 : index
    %0 = vector.load %arg2[%c0, %c0_0, %c0_1, %c0_2] : memref<1x16x16x4xf32, #tpu.memory_space<vmem>>, vector<1x16x16x4xf32>
    %1 = vector.shape_cast %0 : vector<1x16x16x4xf32> to vector<16x16x4xf32>
    %cst = arith.constant dense<0.000000e+00> : vector<16x4xf32>
    %2 = vector.multi_reduction <add>, %1, %cst [1] : vector<16x16x4xf32> to vector<16x4xf32>
    %3 = vector.shape_cast %2 : vector<16x4xf32> to vector<16x1x4xf32>
    %cst_3 = arith.constant 1.600000e+01 : f32
    %4 = vector.broadcast %cst_3 : f32 to vector<16x1x4xf32>
    %5 = arith.divf %3, %4 : vector<16x1x4xf32>
    %6 = vector.broadcast %5 : vector<16x1x4xf32> to vector<16x16x4xf32>
    %7 = arith.subf %1, %6 : vector<16x16x4xf32>
    %8 = arith.mulf %7, %7 : vector<16x16x4xf32>
    %cst_4 = arith.constant dense<0.000000e+00> : vector<16x4xf32>
    %9 = vector.multi_reduction <add>, %8, %cst_4 [1] : vector<16x16x4xf32> to vector<16x4xf32>
    %10 = vector.shape_cast %9 : vector<16x4xf32> to vector<16x1x4xf32>
    %cst_5 = arith.constant 1.600000e+01 : f32
    %11 = vector.broadcast %cst_5 : f32 to vector<16x1x4xf32>
    %12 = arith.divf %10, %11 : vector<16x1x4xf32>
    %13 = vector.broadcast %5 : vector<16x1x4xf32> to vector<16x16x4xf32>
    %14 = arith.subf %1, %13 : vector<16x16x4xf32>
    %cst_6 = arith.constant 9.99999974E-6 : f32
    %15 = vector.broadcast %cst_6 : f32 to vector<16x1x4xf32>
    %16 = arith.addf %12, %15 : vector<16x1x4xf32>
    %17 = math.rsqrt %16 : vector<16x1x4xf32>
    %18 = vector.broadcast %17 : vector<16x1x4xf32> to vector<16x16x4xf32>
    %19 = arith.mulf %14, %18 : vector<16x16x4xf32>
    %20 = vector.shape_cast %19 : vector<16x16x4xf32> to vector<256x4xf32>
    %c0_7 = arith.constant 0 : index
    %c0_8 = arith.constant 0 : index
    %21 = vector.load %arg3[%c0_7, %c0_8] : memref<4x4xbf16, #tpu.memory_space<vmem>>, vector<4x4xbf16>
    %c0_9 = arith.constant 0 : index
    %c0_10 = arith.constant 0 : index
    %22 = vector.load %arg5[%c0_9, %c0_10] : memref<1x4xf32, #tpu.memory_space<vmem>>, vector<1x4xf32>
    %23 = arith.truncf %20 : vector<256x4xf32> to vector<256x4xbf16>
    %cst_11 = arith.constant dense<0.000000e+00> : vector<256x4xf32>
    %24 = tpu.matmul %23, %21, %cst_11 {dimension_numbers = #tpu.dot_dimension_numbers<[1], [0], [0], [1], [0, 0, 1, 1], [], []>} : vector<256x4xbf16>, vector<4x4xbf16>, vector<256x4xf32> -> vector<256x4xf32>
    %25 = vector.broadcast %22 : vector<1x4xf32> to vector<256x4xf32>
    %26 = arith.addf %24, %25 : vector<256x4xf32>
    %cst_12 = arith.constant 5.000000e-01 : f32
    %27 = vector.broadcast %cst_12 : f32 to vector<256x4xf32>
    %28 = arith.mulf %27, %26 : vector<256x4xf32>
    %cst_13 = arith.constant 0.707106769 : f32
    %29 = vector.broadcast %cst_13 : f32 to vector<256x4xf32>
    %30 = arith.mulf %26, %29 : vector<256x4xf32>
    %31 = math.erf %30 : vector<256x4xf32>
    %cst_14 = arith.constant 1.000000e+00 : f32
    %32 = vector.broadcast %cst_14 : f32 to vector<256x4xf32>
    %33 = arith.addf %32, %31 : vector<256x4xf32>
    %34 = arith.mulf %28, %33 : vector<256x4xf32>
    %35 = vector.shape_cast %34 : vector<256x4xf32> to vector<16x16x4xf32>
    %36 = arith.truncf %35 : vector<16x16x4xf32> to vector<16x16x4xbf16>
    %c0_15 = arith.constant 0 : index
    %c0_16 = arith.constant 0 : index
    %c0_17 = arith.constant 0 : index
    %c0_18 = arith.constant 0 : index
    %37 = vector.load %arg7[%c0_15, %c0_16, %c0_17, %c0_18] : memref<1x16x16x4xbf16, #tpu.memory_space<vmem>>, vector<1x16x16x4xbf16>
    %38 = vector.shape_cast %37 : vector<1x16x16x4xbf16> to vector<16x16x4xbf16>
    %39 = vector.shape_cast %36 : vector<16x16x4xbf16> to vector<1x16x16x4xbf16>
    tpu.vector_store %arg7[%c0_15, %c0_16, %c0_17, %c0_18], %39 {strides = array<i32>} : memref<1x16x16x4xbf16, #tpu.memory_space<vmem>>, vector<1x16x16x4xbf16>,
    %c0_19 = arith.constant 0 : index
    %c0_20 = arith.constant 0 : index
    %40 = vector.load %arg4[%c0_19, %c0_20] : memref<4x4xbf16, #tpu.memory_space<vmem>>, vector<4x4xbf16>
    %c0_21 = arith.constant 0 : index
    %c0_22 = arith.constant 0 : index
    %41 = vector.load %arg6[%c0_21, %c0_22] : memref<1x4xf32, #tpu.memory_space<vmem>>, vector<1x4xf32>
    %42 = arith.truncf %20 : vector<256x4xf32> to vector<256x4xbf16>
    %cst_23 = arith.constant dense<0.000000e+00> : vector<256x4xf32>
    %43 = tpu.matmul %42, %40, %cst_23 {dimension_numbers = #tpu.dot_dimension_numbers<[1], [0], [0], [1], [0, 0, 1, 1], [], []>} : vector<256x4xbf16>, vector<4x4xbf16>, vector<256x4xf32> -> vector<256x4xf32>
    %44 = vector.broadcast %41 : vector<1x4xf32> to vector<256x4xf32>
    %45 = arith.addf %43, %44 : vector<256x4xf32>
    %cst_24 = arith.constant 5.000000e-01 : f32
    %46 = vector.broadcast %cst_24 : f32 to vector<256x4xf32>
    %47 = arith.mulf %46, %45 : vector<256x4xf32>
    %cst_25 = arith.constant 0.707106769 : f32
    %48 = vector.broadcast %cst_25 : f32 to vector<256x4xf32>
    %49 = arith.mulf %45, %48 : vector<256x4xf32>
    %50 = math.erf %49 : vector<256x4xf32>
    %cst_26 = arith.constant 1.000000e+00 : f32
    %51 = vector.broadcast %cst_26 : f32 to vector<256x4xf32>
    %52 = arith.addf %51, %50 : vector<256x4xf32>
    %53 = arith.mulf %47, %52 : vector<256x4xf32>
    %54 = vector.shape_cast %53 : vector<256x4xf32> to vector<16x16x4xf32>
    %55 = arith.truncf %54 : vector<16x16x4xf32> to vector<16x16x4xbf16>
    %c0_27 = arith.constant 0 : index
    %c0_28 = arith.constant 0 : index
    %c0_29 = arith.constant 0 : index
    %c0_30 = arith.constant 0 : index
    %56 = vector.load %arg8[%c0_27, %c0_28, %c0_29, %c0_30] : memref<1x16x16x4xbf16, #tpu.memory_space<vmem>>, vector<1x16x16x4xbf16>
    %57 = vector.shape_cast %56 : vector<1x16x16x4xbf16> to vector<16x16x4xbf16>
    %58 = vector.shape_cast %55 : vector<16x16x4xbf16> to vector<1x16x16x4xbf16>
    tpu.vector_store %arg8[%c0_27, %c0_28, %c0_29, %c0_30], %58 {strides = array<i32>} : memref<1x16x16x4xbf16, #tpu.memory_space<vmem>>, vector<1x16x16x4xbf16>,
    return
  }
  func.func @transform_0(%arg0: i32, %arg1: i32) -> (i32, i32, i32, i32) {
    %c0_i32 = arith.constant 0 : i32
    %c0_i32_0 = arith.constant 0 : i32
    %c0_i32_1 = arith.constant 0 : i32
    return %arg0, %arg1, %c0_i32, %c0_i32_0 : i32, i32, i32, i32
  }
  func.func @transform_1(%arg0: i32, %arg1: i32) -> (i32, i32) {
    %c0_i32 = arith.constant 0 : i32
    %c0_i32_0 = arith.constant 0 : i32
    %c0_i32_1 = arith.constant 0 : i32
    return %c0_i32, %c0_i32_0 : i32, i32
  }
  func.func @transform_2(%arg0: i32, %arg1: i32) -> (i32, i32) {
    %c0_i32 = arith.constant 0 : i32
    %c0_i32_0 = arith.constant 0 : i32
    %c0_i32_1 = arith.constant 0 : i32
    return %c0_i32, %c0_i32_0 : i32, i32
  }
  func.func @transform_3(%arg0: i32, %arg1: i32) -> (i32, i32) {
    %c0_i32 = arith.constant 0 : i32
    %c0_i32_0 = arith.constant 0 : i32
    %c0_i32_1 = arith.constant 0 : i32
    return %c0_i32, %c0_i32_0 : i32, i32
  }
  func.func @transform_4(%arg0: i32, %arg1: i32) -> (i32, i32) {
    %c0_i32 = arith.constant 0 : i32
    %c0_i32_0 = arith.constant 0 : i32
    %c0_i32_1 = arith.constant 0 : i32
    return %c0_i32, %c0_i32_0 : i32, i32
  }
  func.func @transform_5(%arg0: i32, %arg1: i32) -> (i32, i32, i32, i32) {
    %c0_i32 = arith.constant 0 : i32
    %c0_i32_0 = arith.constant 0 : i32
    %c0_i32_1 = arith.constant 0 : i32
    return %arg0, %arg1, %c0_i32, %c0_i32_0 : i32, i32, i32, i32
  }
  func.func @transform_6(%arg0: i32, %arg1: i32) -> (i32, i32, i32, i32) {
    %c0_i32 = arith.constant 0 : i32
    %c0_i32_0 = arith.constant 0 : i32
    %c0_i32_1 = arith.constant 0 : i32
    return %arg0, %arg1, %c0_i32, %c0_i32_0 : i32, i32, i32, i32
  }
}

module attributes {stable_mosaic.version = 11 : i64} {
  func.func @_grid_gmlp_kernel(%arg0: i32, %arg1: i32, %arg2: memref<1x2x8x16x4xbf16, #tpu.memory_space<vmem>>, %arg3: memref<4x8xbf16, #tpu.memory_space<vmem>>, %arg4: memref<1x8xf32, #tpu.memory_space<vmem>>, %arg5: memref<8x4xbf16, #tpu.memory_space<vmem>>, %arg6: memref<1x4xf32, #tpu.memory_space<vmem>>, %arg7: memref<8x8xbf16, #tpu.memory_space<vmem>>, %arg8: memref<1x8xf32, #tpu.memory_space<vmem>>, %arg9: memref<8x4xbf16, #tpu.memory_space<vmem>>, %arg10: memref<1x4xf32, #tpu.memory_space<vmem>>, %arg11: memref<4x4xbf16, #tpu.memory_space<vmem>>, %arg12: memref<1x4xf32, #tpu.memory_space<vmem>>, %arg13: memref<1x2x8x16x4xbf16, #tpu.memory_space<vmem>>) attributes {dimension_semantics = [#tpu.dimension_semantics<parallel>, #tpu.dimension_semantics<parallel>], iteration_bounds = array<i64: 2, 1>, scalar_prefetch = 0 : i64, scratch_operands = 0 : i64, tpu.core_type = #tpu.core_type<tc>, window_params = [{transform_indices = @transform_0, window_bounds = array<i64: 1, 2, 8, 16, 4>}, {pipeline_mode = #tpu.pipeline_mode<synchronous>, transform_indices = @transform_1, window_bounds = array<i64: 4, 8>}, {pipeline_mode = #tpu.pipeline_mode<synchronous>, transform_indices = @transform_2, window_bounds = array<i64: 1, 8>}, {pipeline_mode = #tpu.pipeline_mode<synchronous>, transform_indices = @transform_3, window_bounds = array<i64: 8, 4>}, {pipeline_mode = #tpu.pipeline_mode<synchronous>, transform_indices = @transform_4, window_bounds = array<i64: 1, 4>}, {pipeline_mode = #tpu.pipeline_mode<synchronous>, transform_indices = @transform_5, window_bounds = array<i64: 8, 8>}, {pipeline_mode = #tpu.pipeline_mode<synchronous>, transform_indices = @transform_6, window_bounds = array<i64: 1, 8>}, {pipeline_mode = #tpu.pipeline_mode<synchronous>, transform_indices = @transform_7, window_bounds = array<i64: 8, 4>}, {pipeline_mode = #tpu.pipeline_mode<synchronous>, transform_indices = @transform_8, window_bounds = array<i64: 1, 4>}, {pipeline_mode = #tpu.pipeline_mode<synchronous>, transform_indices = @transform_9, window_bounds = array<i64: 4, 4>}, {pipeline_mode = #tpu.pipeline_mode<synchronous>, transform_indices = @transform_10, window_bounds = array<i64: 1, 4>}, {transform_indices = @transform_11, window_bounds = array<i64: 1, 2, 8, 16, 4>}]} {
    %c0 = arith.constant 0 : index
    %c0_0 = arith.constant 0 : index
    %c0_1 = arith.constant 0 : index
    %c0_2 = arith.constant 0 : index
    %c0_3 = arith.constant 0 : index
    %0 = vector.load %arg2[%c0, %c0_0, %c0_1, %c0_2, %c0_3] : memref<1x2x8x16x4xbf16, #tpu.memory_space<vmem>>, vector<1x2x8x16x4xbf16>
    %1 = vector.shape_cast %0 : vector<1x2x8x16x4xbf16> to vector<2x8x16x4xbf16>
    %2 = arith.extf %1 : vector<2x8x16x4xbf16> to vector<2x8x16x4xf32>
    %cst = arith.constant dense<0.000000e+00> : vector<2x8x16xf32>
    %3 = vector.multi_reduction <add>, %2, %cst [3] : vector<2x8x16x4xf32> to vector<2x8x16xf32>
    %4 = vector.shape_cast %3 : vector<2x8x16xf32> to vector<2x8x16x1xf32>
    %cst_4 = arith.constant 4.000000e+00 : f32
    %5 = vector.broadcast %cst_4 : f32 to vector<2x8x16x1xf32>
    %6 = arith.divf %4, %5 : vector<2x8x16x1xf32>
    %7 = vector.broadcast %6 : vector<2x8x16x1xf32> to vector<2x8x16x4xf32>
    %8 = arith.subf %2, %7 : vector<2x8x16x4xf32>
    %9 = arith.mulf %8, %8 : vector<2x8x16x4xf32>
    %cst_5 = arith.constant dense<0.000000e+00> : vector<2x8x16xf32>
    %10 = vector.multi_reduction <add>, %9, %cst_5 [3] : vector<2x8x16x4xf32> to vector<2x8x16xf32>
    %11 = vector.shape_cast %10 : vector<2x8x16xf32> to vector<2x8x16x1xf32>
    %cst_6 = arith.constant 4.000000e+00 : f32
    %12 = vector.broadcast %cst_6 : f32 to vector<2x8x16x1xf32>
    %13 = arith.divf %11, %12 : vector<2x8x16x1xf32>
    %14 = vector.broadcast %6 : vector<2x8x16x1xf32> to vector<2x8x16x4xf32>
    %15 = arith.subf %2, %14 : vector<2x8x16x4xf32>
    %cst_7 = arith.constant 9.99999974E-6 : f32
    %16 = vector.broadcast %cst_7 : f32 to vector<2x8x16x1xf32>
    %17 = arith.addf %13, %16 : vector<2x8x16x1xf32>
    %18 = math.rsqrt %17 : vector<2x8x16x1xf32>
    %19 = vector.broadcast %18 : vector<2x8x16x1xf32> to vector<2x8x16x4xf32>
    %20 = arith.mulf %15, %19 : vector<2x8x16x4xf32>
    %21 = vector.shape_cast %20 : vector<2x8x16x4xf32> to vector<256x4xf32>
    %c0_8 = arith.constant 0 : index
    %c0_9 = arith.constant 0 : index
    %22 = vector.load %arg3[%c0_8, %c0_9] : memref<4x8xbf16, #tpu.memory_space<vmem>>, vector<4x8xbf16>
    %c0_10 = arith.constant 0 : index
    %c0_11 = arith.constant 0 : index
    %23 = vector.load %arg4[%c0_10, %c0_11] : memref<1x8xf32, #tpu.memory_space<vmem>>, vector<1x8xf32>
    %24 = arith.truncf %21 : vector<256x4xf32> to vector<256x4xbf16>
    %cst_12 = arith.constant dense<0.000000e+00> : vector<256x8xf32>
    %25 = tpu.matmul %24, %22, %cst_12 {dimension_numbers = #tpu.dot_dimension_numbers<[1], [0], [0], [1], [0, 0, 1, 1], [], []>} : vector<256x4xbf16>, vector<4x8xbf16>, vector<256x8xf32> -> vector<256x8xf32>
    %26 = vector.broadcast %23 : vector<1x8xf32> to vector<256x8xf32>
    %27 = arith.addf %25, %26 : vector<256x8xf32>
    %cst_13 = arith.constant 5.000000e-01 : f32
    %28 = vector.broadcast %cst_13 : f32 to vector<256x8xf32>
    %29 = arith.mulf %28, %27 : vector<256x8xf32>
    %cst_14 = arith.constant 0.707106769 : f32
    %30 = vector.broadcast %cst_14 : f32 to vector<256x8xf32>
    %31 = arith.mulf %27, %30 : vector<256x8xf32>
    %32 = math.erf %31 : vector<256x8xf32>
    %cst_15 = arith.constant 1.000000e+00 : f32
    %33 = vector.broadcast %cst_15 : f32 to vector<256x8xf32>
    %34 = arith.addf %33, %32 : vector<256x8xf32>
    %35 = arith.mulf %29, %34 : vector<256x8xf32>
    %36 = vector.shape_cast %35 : vector<256x8xf32> to vector<2x8x16x8xf32>
    %cst_16 = arith.constant dense<0.000000e+00> : vector<2x8x8xf32>
    %37 = vector.multi_reduction <add>, %36, %cst_16 [2] : vector<2x8x16x8xf32> to vector<2x8x8xf32>
    %38 = vector.shape_cast %37 : vector<2x8x8xf32> to vector<2x8x1x8xf32>
    %cst_17 = arith.constant 1.600000e+01 : f32
    %39 = vector.broadcast %cst_17 : f32 to vector<2x8x1x8xf32>
    %40 = arith.divf %38, %39 : vector<2x8x1x8xf32>
    %41 = vector.broadcast %40 : vector<2x8x1x8xf32> to vector<2x8x16x8xf32>
    %42 = arith.subf %36, %41 : vector<2x8x16x8xf32>
    %43 = arith.mulf %42, %42 : vector<2x8x16x8xf32>
    %cst_18 = arith.constant dense<0.000000e+00> : vector<2x8x8xf32>
    %44 = vector.multi_reduction <add>, %43, %cst_18 [2] : vector<2x8x16x8xf32> to vector<2x8x8xf32>
    %45 = vector.shape_cast %44 : vector<2x8x8xf32> to vector<2x8x1x8xf32>
    %cst_19 = arith.constant 1.600000e+01 : f32
    %46 = vector.broadcast %cst_19 : f32 to vector<2x8x1x8xf32>
    %47 = arith.divf %45, %46 : vector<2x8x1x8xf32>
    %48 = vector.broadcast %40 : vector<2x8x1x8xf32> to vector<2x8x16x8xf32>
    %49 = arith.subf %36, %48 : vector<2x8x16x8xf32>
    %cst_20 = arith.constant 9.99999974E-6 : f32
    %50 = vector.broadcast %cst_20 : f32 to vector<2x8x1x8xf32>
    %51 = arith.addf %47, %50 : vector<2x8x1x8xf32>
    %52 = math.rsqrt %51 : vector<2x8x1x8xf32>
    %53 = vector.broadcast %52 : vector<2x8x1x8xf32> to vector<2x8x16x8xf32>
    %54 = arith.mulf %49, %53 : vector<2x8x16x8xf32>
    %55 = vector.shape_cast %54 : vector<2x8x16x8xf32> to vector<256x8xf32>
    %c0_21 = arith.constant 0 : index
    %c0_22 = arith.constant 0 : index
    %56 = vector.load %arg5[%c0_21, %c0_22] : memref<8x4xbf16, #tpu.memory_space<vmem>>, vector<8x4xbf16>
    %c0_23 = arith.constant 0 : index
    %c0_24 = arith.constant 0 : index
    %57 = vector.load %arg6[%c0_23, %c0_24] : memref<1x4xf32, #tpu.memory_space<vmem>>, vector<1x4xf32>
    %58 = arith.truncf %55 : vector<256x8xf32> to vector<256x8xbf16>
    %cst_25 = arith.constant dense<0.000000e+00> : vector<256x4xf32>
    %59 = tpu.matmul %58, %56, %cst_25 {dimension_numbers = #tpu.dot_dimension_numbers<[1], [0], [0], [1], [0, 0, 1, 1], [], []>} : vector<256x8xbf16>, vector<8x4xbf16>, vector<256x4xf32> -> vector<256x4xf32>
    %60 = vector.broadcast %57 : vector<1x4xf32> to vector<256x4xf32>
    %61 = arith.addf %59, %60 : vector<256x4xf32>
    %62 = vector.shape_cast %61 : vector<256x4xf32> to vector<2x8x16x4xf32>
    %63 = vector.extract_strided_slice %36 {offsets = [0, 0, 0, 0], sizes = [2, 8, 16, 4], strides = [1, 1, 1, 1]} : vector<2x8x16x8xf32> to vector<2x8x16x4xf32>
    %cst_26 = arith.constant 1.000000e+00 : f32
    %64 = vector.broadcast %cst_26 : f32 to vector<2x8x16x4xf32>
    %65 = arith.addf %62, %64 : vector<2x8x16x4xf32>
    %66 = arith.mulf %63, %65 : vector<2x8x16x4xf32>
    %67 = vector.extract_strided_slice %54 {offsets = [1, 0, 0, 0], sizes = [1, 8, 16, 8], strides = [1, 1, 1, 1]} : vector<2x8x16x8xf32> to vector<1x8x16x8xf32>
    %68 = vector.shape_cast %67 : vector<1x8x16x8xf32> to vector<8x16x8xf32>
    %69 = vector.shape_cast %68 : vector<8x16x8xf32> to vector<128x8xf32>
    %c0_27 = arith.constant 0 : index
    %c0_28 = arith.constant 0 : index
    %70 = vector.load %arg7[%c0_27, %c0_28] : memref<8x8xbf16, #tpu.memory_space<vmem>>, vector<8x8xbf16>
    %c0_29 = arith.constant 0 : index
    %c0_30 = arith.constant 0 : index
    %71 = vector.load %arg8[%c0_29, %c0_30] : memref<1x8xf32, #tpu.memory_space<vmem>>, vector<1x8xf32>
    %72 = arith.truncf %69 : vector<128x8xf32> to vector<128x8xbf16>
    %cst_31 = arith.constant dense<0.000000e+00> : vector<128x8xf32>
    %73 = tpu.matmul %72, %70, %cst_31 {dimension_numbers = #tpu.dot_dimension_numbers<[1], [0], [0], [1], [0, 0, 1, 1], [], []>} : vector<128x8xbf16>, vector<8x8xbf16>, vector<128x8xf32> -> vector<128x8xf32>
    %74 = vector.broadcast %71 : vector<1x8xf32> to vector<128x8xf32>
    %75 = arith.addf %73, %74 : vector<128x8xf32>
    %76 = vector.shape_cast %75 : vector<128x8xf32> to vector<8x16x8xf32>
    %77 = vector.extract_strided_slice %54 {offsets = [0, 0, 0, 0], sizes = [1, 8, 16, 8], strides = [1, 1, 1, 1]} : vector<2x8x16x8xf32> to vector<1x8x16x8xf32>
    %78 = vector.shape_cast %77 : vector<1x8x16x8xf32> to vector<8x16x8xf32>
    %cst_32 = arith.constant 1.000000e+00 : f32
    %79 = vector.broadcast %cst_32 : f32 to vector<8x16x8xf32>
    %80 = arith.addf %76, %79 : vector<8x16x8xf32>
    %81 = arith.mulf %78, %80 : vector<8x16x8xf32>
    %82 = vector.extract_strided_slice %66 {offsets = [0, 0, 0, 0], sizes = [1, 8, 16, 4], strides = [1, 1, 1, 1]} : vector<2x8x16x4xf32> to vector<1x8x16x4xf32>
    %83 = vector.shape_cast %82 : vector<1x8x16x4xf32> to vector<8x16x4xf32>
    %84 = vector.shape_cast %81 : vector<8x16x8xf32> to vector<128x8xf32>
    %c0_33 = arith.constant 0 : index
    %c0_34 = arith.constant 0 : index
    %85 = vector.load %arg9[%c0_33, %c0_34] : memref<8x4xbf16, #tpu.memory_space<vmem>>, vector<8x4xbf16>
    %c0_35 = arith.constant 0 : index
    %c0_36 = arith.constant 0 : index
    %86 = vector.load %arg10[%c0_35, %c0_36] : memref<1x4xf32, #tpu.memory_space<vmem>>, vector<1x4xf32>
    %87 = arith.truncf %84 : vector<128x8xf32> to vector<128x8xbf16>
    %cst_37 = arith.constant dense<0.000000e+00> : vector<128x4xf32>
    %88 = tpu.matmul %87, %85, %cst_37 {dimension_numbers = #tpu.dot_dimension_numbers<[1], [0], [0], [1], [0, 0, 1, 1], [], []>} : vector<128x8xbf16>, vector<8x4xbf16>, vector<128x4xf32> -> vector<128x4xf32>
    %89 = vector.broadcast %86 : vector<1x4xf32> to vector<128x4xf32>
    %90 = arith.addf %88, %89 : vector<128x4xf32>
    %91 = vector.shape_cast %90 : vector<128x4xf32> to vector<8x16x4xf32>
    %92 = arith.addf %83, %91 : vector<8x16x4xf32>
    %93 = vector.extract_strided_slice %2 {offsets = [0, 0, 0, 0], sizes = [1, 8, 16, 4], strides = [1, 1, 1, 1]} : vector<2x8x16x4xf32> to vector<1x8x16x4xf32>
    %94 = vector.shape_cast %93 : vector<1x8x16x4xf32> to vector<8x16x4xf32>
    %95 = vector.shape_cast %92 : vector<8x16x4xf32> to vector<128x4xf32>
    %c0_38 = arith.constant 0 : index
    %c0_39 = arith.constant 0 : index
    %96 = vector.load %arg11[%c0_38, %c0_39] : memref<4x4xbf16, #tpu.memory_space<vmem>>, vector<4x4xbf16>
    %c0_40 = arith.constant 0 : index
    %c0_41 = arith.constant 0 : index
    %97 = vector.load %arg12[%c0_40, %c0_41] : memref<1x4xf32, #tpu.memory_space<vmem>>, vector<1x4xf32>
    %98 = arith.truncf %95 : vector<128x4xf32> to vector<128x4xbf16>
    %cst_42 = arith.constant dense<0.000000e+00> : vector<128x4xf32>
    %99 = tpu.matmul %98, %96, %cst_42 {dimension_numbers = #tpu.dot_dimension_numbers<[1], [0], [0], [1], [0, 0, 1, 1], [], []>} : vector<128x4xbf16>, vector<4x4xbf16>, vector<128x4xf32> -> vector<128x4xf32>
    %100 = vector.broadcast %97 : vector<1x4xf32> to vector<128x4xf32>
    %101 = arith.addf %99, %100 : vector<128x4xf32>
    %102 = vector.shape_cast %101 : vector<128x4xf32> to vector<8x16x4xf32>
    %103 = arith.addf %94, %102 : vector<8x16x4xf32>
    %104 = arith.truncf %103 : vector<8x16x4xf32> to vector<8x16x4xbf16>
    %c0_43 = arith.constant 0 : index
    %c0_44 = arith.constant 0 : index
    %c0_45 = arith.constant 0 : index
    %c0_46 = arith.constant 0 : index
    %c0_47 = arith.constant 0 : index
    %105 = vector.load %arg13[%c0_43, %c0_44, %c0_45, %c0_46, %c0_47] : memref<1x2x8x16x4xbf16, #tpu.memory_space<vmem>>, vector<1x1x8x16x4xbf16>
    %106 = vector.shape_cast %105 : vector<1x1x8x16x4xbf16> to vector<8x16x4xbf16>
    %107 = vector.shape_cast %104 : vector<8x16x4xbf16> to vector<1x1x8x16x4xbf16>
    tpu.vector_store %arg13[%c0_43, %c0_44, %c0_45, %c0_46, %c0_47], %107 {strides = array<i32>} : memref<1x2x8x16x4xbf16, #tpu.memory_space<vmem>>, vector<1x1x8x16x4xbf16>,
    %108 = vector.extract_strided_slice %54 {offsets = [0, 0, 0, 0], sizes = [1, 8, 16, 8], strides = [1, 1, 1, 1]} : vector<2x8x16x8xf32> to vector<1x8x16x8xf32>
    %109 = vector.shape_cast %108 : vector<1x8x16x8xf32> to vector<8x16x8xf32>
    %110 = vector.shape_cast %109 : vector<8x16x8xf32> to vector<128x8xf32>
    %c0_48 = arith.constant 0 : index
    %c0_49 = arith.constant 0 : index
    %111 = vector.load %arg7[%c0_48, %c0_49] : memref<8x8xbf16, #tpu.memory_space<vmem>>, vector<8x8xbf16>
    %c0_50 = arith.constant 0 : index
    %c0_51 = arith.constant 0 : index
    %112 = vector.load %arg8[%c0_50, %c0_51] : memref<1x8xf32, #tpu.memory_space<vmem>>, vector<1x8xf32>
    %113 = arith.truncf %110 : vector<128x8xf32> to vector<128x8xbf16>
    %cst_52 = arith.constant dense<0.000000e+00> : vector<128x8xf32>
    %114 = tpu.matmul %113, %111, %cst_52 {dimension_numbers = #tpu.dot_dimension_numbers<[1], [0], [0], [1], [0, 0, 1, 1], [], []>} : vector<128x8xbf16>, vector<8x8xbf16>, vector<128x8xf32> -> vector<128x8xf32>
    %115 = vector.broadcast %112 : vector<1x8xf32> to vector<128x8xf32>
    %116 = arith.addf %114, %115 : vector<128x8xf32>
    %117 = vector.shape_cast %116 : vector<128x8xf32> to vector<8x16x8xf32>
    %118 = vector.extract_strided_slice %54 {offsets = [1, 0, 0, 0], sizes = [1, 8, 16, 8], strides = [1, 1, 1, 1]} : vector<2x8x16x8xf32> to vector<1x8x16x8xf32>
    %119 = vector.shape_cast %118 : vector<1x8x16x8xf32> to vector<8x16x8xf32>
    %cst_53 = arith.constant 1.000000e+00 : f32
    %120 = vector.broadcast %cst_53 : f32 to vector<8x16x8xf32>
    %121 = arith.addf %117, %120 : vector<8x16x8xf32>
    %122 = arith.mulf %119, %121 : vector<8x16x8xf32>
    %123 = vector.extract_strided_slice %66 {offsets = [1, 0, 0, 0], sizes = [1, 8, 16, 4], strides = [1, 1, 1, 1]} : vector<2x8x16x4xf32> to vector<1x8x16x4xf32>
    %124 = vector.shape_cast %123 : vector<1x8x16x4xf32> to vector<8x16x4xf32>
    %125 = vector.shape_cast %122 : vector<8x16x8xf32> to vector<128x8xf32>
    %c0_54 = arith.constant 0 : index
    %c0_55 = arith.constant 0 : index
    %126 = vector.load %arg9[%c0_54, %c0_55] : memref<8x4xbf16, #tpu.memory_space<vmem>>, vector<8x4xbf16>
    %c0_56 = arith.constant 0 : index
    %c0_57 = arith.constant 0 : index
    %127 = vector.load %arg10[%c0_56, %c0_57] : memref<1x4xf32, #tpu.memory_space<vmem>>, vector<1x4xf32>
    %128 = arith.truncf %125 : vector<128x8xf32> to vector<128x8xbf16>
    %cst_58 = arith.constant dense<0.000000e+00> : vector<128x4xf32>
    %129 = tpu.matmul %128, %126, %cst_58 {dimension_numbers = #tpu.dot_dimension_numbers<[1], [0], [0], [1], [0, 0, 1, 1], [], []>} : vector<128x8xbf16>, vector<8x4xbf16>, vector<128x4xf32> -> vector<128x4xf32>
    %130 = vector.broadcast %127 : vector<1x4xf32> to vector<128x4xf32>
    %131 = arith.addf %129, %130 : vector<128x4xf32>
    %132 = vector.shape_cast %131 : vector<128x4xf32> to vector<8x16x4xf32>
    %133 = arith.addf %124, %132 : vector<8x16x4xf32>
    %134 = vector.extract_strided_slice %2 {offsets = [1, 0, 0, 0], sizes = [1, 8, 16, 4], strides = [1, 1, 1, 1]} : vector<2x8x16x4xf32> to vector<1x8x16x4xf32>
    %135 = vector.shape_cast %134 : vector<1x8x16x4xf32> to vector<8x16x4xf32>
    %136 = vector.shape_cast %133 : vector<8x16x4xf32> to vector<128x4xf32>
    %c0_59 = arith.constant 0 : index
    %c0_60 = arith.constant 0 : index
    %137 = vector.load %arg11[%c0_59, %c0_60] : memref<4x4xbf16, #tpu.memory_space<vmem>>, vector<4x4xbf16>
    %c0_61 = arith.constant 0 : index
    %c0_62 = arith.constant 0 : index
    %138 = vector.load %arg12[%c0_61, %c0_62] : memref<1x4xf32, #tpu.memory_space<vmem>>, vector<1x4xf32>
    %139 = arith.truncf %136 : vector<128x4xf32> to vector<128x4xbf16>
    %cst_63 = arith.constant dense<0.000000e+00> : vector<128x4xf32>
    %140 = tpu.matmul %139, %137, %cst_63 {dimension_numbers = #tpu.dot_dimension_numbers<[1], [0], [0], [1], [0, 0, 1, 1], [], []>} : vector<128x4xbf16>, vector<4x4xbf16>, vector<128x4xf32> -> vector<128x4xf32>
    %141 = vector.broadcast %138 : vector<1x4xf32> to vector<128x4xf32>
    %142 = arith.addf %140, %141 : vector<128x4xf32>
    %143 = vector.shape_cast %142 : vector<128x4xf32> to vector<8x16x4xf32>
    %144 = arith.addf %135, %143 : vector<8x16x4xf32>
    %145 = arith.truncf %144 : vector<8x16x4xf32> to vector<8x16x4xbf16>
    %c0_64 = arith.constant 0 : index
    %c1 = arith.constant 1 : index
    %c0_65 = arith.constant 0 : index
    %c0_66 = arith.constant 0 : index
    %c0_67 = arith.constant 0 : index
    %146 = vector.load %arg13[%c0_64, %c1, %c0_65, %c0_66, %c0_67] : memref<1x2x8x16x4xbf16, #tpu.memory_space<vmem>>, vector<1x1x8x16x4xbf16>
    %147 = vector.shape_cast %146 : vector<1x1x8x16x4xbf16> to vector<8x16x4xbf16>
    %148 = vector.shape_cast %145 : vector<8x16x4xbf16> to vector<1x1x8x16x4xbf16>
    tpu.vector_store %arg13[%c0_64, %c1, %c0_65, %c0_66, %c0_67], %148 {strides = array<i32>} : memref<1x2x8x16x4xbf16, #tpu.memory_space<vmem>>, vector<1x1x8x16x4xbf16>,
    return
  }
  func.func @transform_0(%arg0: i32, %arg1: i32) -> (i32, i32, i32, i32, i32) {
    %c0_i32 = arith.constant 0 : i32
    %c0_i32_0 = arith.constant 0 : i32
    %c0_i32_1 = arith.constant 0 : i32
    %c0_i32_2 = arith.constant 0 : i32
    return %arg0, %c0_i32, %arg1, %c0_i32_0, %c0_i32_1 : i32, i32, i32, i32, i32
  }
  func.func @transform_1(%arg0: i32, %arg1: i32) -> (i32, i32) {
    %c0_i32 = arith.constant 0 : i32
    %c0_i32_0 = arith.constant 0 : i32
    %c0_i32_1 = arith.constant 0 : i32
    return %c0_i32, %c0_i32_0 : i32, i32
  }
  func.func @transform_2(%arg0: i32, %arg1: i32) -> (i32, i32) {
    %c0_i32 = arith.constant 0 : i32
    %c0_i32_0 = arith.constant 0 : i32
    %c0_i32_1 = arith.constant 0 : i32
    return %c0_i32, %c0_i32_0 : i32, i32
  }
  func.func @transform_3(%arg0: i32, %arg1: i32) -> (i32, i32) {
    %c0_i32 = arith.constant 0 : i32
    %c0_i32_0 = arith.constant 0 : i32
    %c0_i32_1 = arith.constant 0 : i32
    return %c0_i32, %c0_i32_0 : i32, i32
  }
  func.func @transform_4(%arg0: i32, %arg1: i32) -> (i32, i32) {
    %c0_i32 = arith.constant 0 : i32
    %c0_i32_0 = arith.constant 0 : i32
    %c0_i32_1 = arith.constant 0 : i32
    return %c0_i32, %c0_i32_0 : i32, i32
  }
  func.func @transform_5(%arg0: i32, %arg1: i32) -> (i32, i32) {
    %c0_i32 = arith.constant 0 : i32
    %c0_i32_0 = arith.constant 0 : i32
    %c0_i32_1 = arith.constant 0 : i32
    return %c0_i32, %c0_i32_0 : i32, i32
  }
  func.func @transform_6(%arg0: i32, %arg1: i32) -> (i32, i32) {
    %c0_i32 = arith.constant 0 : i32
    %c0_i32_0 = arith.constant 0 : i32
    %c0_i32_1 = arith.constant 0 : i32
    return %c0_i32, %c0_i32_0 : i32, i32
  }
  func.func @transform_7(%arg0: i32, %arg1: i32) -> (i32, i32) {
    %c0_i32 = arith.constant 0 : i32
    %c0_i32_0 = arith.constant 0 : i32
    %c0_i32_1 = arith.constant 0 : i32
    return %c0_i32, %c0_i32_0 : i32, i32
  }
  func.func @transform_8(%arg0: i32, %arg1: i32) -> (i32, i32) {
    %c0_i32 = arith.constant 0 : i32
    %c0_i32_0 = arith.constant 0 : i32
    %c0_i32_1 = arith.constant 0 : i32
    return %c0_i32, %c0_i32_0 : i32, i32
  }
  func.func @transform_9(%arg0: i32, %arg1: i32) -> (i32, i32) {
    %c0_i32 = arith.constant 0 : i32
    %c0_i32_0 = arith.constant 0 : i32
    %c0_i32_1 = arith.constant 0 : i32
    return %c0_i32, %c0_i32_0 : i32, i32
  }
  func.func @transform_10(%arg0: i32, %arg1: i32) -> (i32, i32) {
    %c0_i32 = arith.constant 0 : i32
    %c0_i32_0 = arith.constant 0 : i32
    %c0_i32_1 = arith.constant 0 : i32
    return %c0_i32, %c0_i32_0 : i32, i32
  }
  func.func @transform_11(%arg0: i32, %arg1: i32) -> (i32, i32, i32, i32, i32) {
    %c0_i32 = arith.constant 0 : i32
    %c0_i32_0 = arith.constant 0 : i32
    %c0_i32_1 = arith.constant 0 : i32
    %c0_i32_2 = arith.constant 0 : i32
    return %arg0, %c0_i32, %arg1, %c0_i32_0, %c0_i32_1 : i32, i32, i32, i32, i32
  }
}

module attributes {stable_mosaic.version = 11 : i64} {
  func.func @_block_gmlp_kernel(%arg0: i32, %arg1: i32, %arg2: i32, %arg3: memref<1x1x4x1x4x4xbf16, #tpu.memory_space<vmem>>, %arg4: memref<4x8xbf16, #tpu.memory_space<vmem>>, %arg5: memref<1x8xf32, #tpu.memory_space<vmem>>, %arg6: memref<8x4xbf16, #tpu.memory_space<vmem>>, %arg7: memref<1x4xf32, #tpu.memory_space<vmem>>, %arg8: memref<8x8xbf16, #tpu.memory_space<vmem>>, %arg9: memref<1x8xf32, #tpu.memory_space<vmem>>, %arg10: memref<8x4xbf16, #tpu.memory_space<vmem>>, %arg11: memref<1x4xf32, #tpu.memory_space<vmem>>, %arg12: memref<4x4xbf16, #tpu.memory_space<vmem>>, %arg13: memref<1x4xf32, #tpu.memory_space<vmem>>, %arg14: memref<1x1x4x1x4x4xbf16, #tpu.memory_space<vmem>>) attributes {dimension_semantics = [#tpu.dimension_semantics<parallel>, #tpu.dimension_semantics<parallel>, #tpu.dimension_semantics<parallel>], iteration_bounds = array<i64: 2, 4, 4>, scalar_prefetch = 0 : i64, scratch_operands = 0 : i64, tpu.core_type = #tpu.core_type<tc>, window_params = [{transform_indices = @transform_0, window_bounds = array<i64: 1, 1, 4, 1, 4, 4>}, {pipeline_mode = #tpu.pipeline_mode<synchronous>, transform_indices = @transform_1, window_bounds = array<i64: 4, 8>}, {pipeline_mode = #tpu.pipeline_mode<synchronous>, transform_indices = @transform_2, window_bounds = array<i64: 1, 8>}, {pipeline_mode = #tpu.pipeline_mode<synchronous>, transform_indices = @transform_3, window_bounds = array<i64: 8, 4>}, {pipeline_mode = #tpu.pipeline_mode<synchronous>, transform_indices = @transform_4, window_bounds = array<i64: 1, 4>}, {pipeline_mode = #tpu.pipeline_mode<synchronous>, transform_indices = @transform_5, window_bounds = array<i64: 8, 8>}, {pipeline_mode = #tpu.pipeline_mode<synchronous>, transform_indices = @transform_6, window_bounds = array<i64: 1, 8>}, {pipeline_mode = #tpu.pipeline_mode<synchronous>, transform_indices = @transform_7, window_bounds = array<i64: 8, 4>}, {pipeline_mode = #tpu.pipeline_mode<synchronous>, transform_indices = @transform_8, window_bounds = array<i64: 1, 4>}, {pipeline_mode = #tpu.pipeline_mode<synchronous>, transform_indices = @transform_9, window_bounds = array<i64: 4, 4>}, {pipeline_mode = #tpu.pipeline_mode<synchronous>, transform_indices = @transform_10, window_bounds = array<i64: 1, 4>}, {transform_indices = @transform_11, window_bounds = array<i64: 1, 1, 4, 1, 4, 4>}]} {
    %c0 = arith.constant 0 : index
    %c0_0 = arith.constant 0 : index
    %c0_1 = arith.constant 0 : index
    %c0_2 = arith.constant 0 : index
    %c0_3 = arith.constant 0 : index
    %c0_4 = arith.constant 0 : index
    %0 = vector.load %arg3[%c0, %c0_0, %c0_1, %c0_2, %c0_3, %c0_4] : memref<1x1x4x1x4x4xbf16, #tpu.memory_space<vmem>>, vector<1x1x4x1x4x4xbf16>
    %1 = vector.shape_cast %0 : vector<1x1x4x1x4x4xbf16> to vector<4x4x4xbf16>
    %2 = arith.extf %1 : vector<4x4x4xbf16> to vector<4x4x4xf32>
    %3 = vector.shape_cast %2 : vector<4x4x4xf32> to vector<16x4xf32>
    %cst = arith.constant dense<0.000000e+00> : vector<16xf32>
    %4 = vector.multi_reduction <add>, %3, %cst [1] : vector<16x4xf32> to vector<16xf32>
    %5 = vector.shape_cast %4 : vector<16xf32> to vector<16x1xf32>
    %cst_5 = arith.constant 4.000000e+00 : f32
    %6 = vector.broadcast %cst_5 : f32 to vector<16x1xf32>
    %7 = arith.divf %5, %6 : vector<16x1xf32>
    %8 = vector.broadcast %7 : vector<16x1xf32> to vector<16x4xf32>
    %9 = arith.subf %3, %8 : vector<16x4xf32>
    %10 = arith.mulf %9, %9 : vector<16x4xf32>
    %cst_6 = arith.constant dense<0.000000e+00> : vector<16xf32>
    %11 = vector.multi_reduction <add>, %10, %cst_6 [1] : vector<16x4xf32> to vector<16xf32>
    %12 = vector.shape_cast %11 : vector<16xf32> to vector<16x1xf32>
    %cst_7 = arith.constant 4.000000e+00 : f32
    %13 = vector.broadcast %cst_7 : f32 to vector<16x1xf32>
    %14 = arith.divf %12, %13 : vector<16x1xf32>
    %15 = vector.broadcast %7 : vector<16x1xf32> to vector<16x4xf32>
    %16 = arith.subf %3, %15 : vector<16x4xf32>
    %cst_8 = arith.constant 9.99999974E-6 : f32
    %17 = vector.broadcast %cst_8 : f32 to vector<16x1xf32>
    %18 = arith.addf %14, %17 : vector<16x1xf32>
    %19 = math.rsqrt %18 : vector<16x1xf32>
    %20 = vector.broadcast %19 : vector<16x1xf32> to vector<16x4xf32>
    %21 = arith.mulf %16, %20 : vector<16x4xf32>
    %c0_9 = arith.constant 0 : index
    %c0_10 = arith.constant 0 : index
    %22 = vector.load %arg4[%c0_9, %c0_10] : memref<4x8xbf16, #tpu.memory_space<vmem>>, vector<4x8xbf16>
    %c0_11 = arith.constant 0 : index
    %c0_12 = arith.constant 0 : index
    %23 = vector.load %arg5[%c0_11, %c0_12] : memref<1x8xf32, #tpu.memory_space<vmem>>, vector<1x8xf32>
    %24 = arith.truncf %21 : vector<16x4xf32> to vector<16x4xbf16>
    %cst_13 = arith.constant dense<0.000000e+00> : vector<16x8xf32>
    %25 = tpu.matmul %24, %22, %cst_13 {dimension_numbers = #tpu.dot_dimension_numbers<[1], [0], [0], [1], [0, 0, 1, 1], [], []>} : vector<16x4xbf16>, vector<4x8xbf16>, vector<16x8xf32> -> vector<16x8xf32>
    %26 = vector.broadcast %23 : vector<1x8xf32> to vector<16x8xf32>
    %27 = arith.addf %25, %26 : vector<16x8xf32>
    %cst_14 = arith.constant 5.000000e-01 : f32
    %28 = vector.broadcast %cst_14 : f32 to vector<16x8xf32>
    %29 = arith.mulf %28, %27 : vector<16x8xf32>
    %cst_15 = arith.constant 0.707106769 : f32
    %30 = vector.broadcast %cst_15 : f32 to vector<16x8xf32>
    %31 = arith.mulf %27, %30 : vector<16x8xf32>
    %32 = math.erf %31 : vector<16x8xf32>
    %cst_16 = arith.constant 1.000000e+00 : f32
    %33 = vector.broadcast %cst_16 : f32 to vector<16x8xf32>
    %34 = arith.addf %33, %32 : vector<16x8xf32>
    %35 = arith.mulf %29, %34 : vector<16x8xf32>
    %cst_17 = arith.constant dense<0.000000e+00> : vector<8xf32>
    %36 = vector.multi_reduction <add>, %35, %cst_17 [0] : vector<16x8xf32> to vector<8xf32>
    %37 = vector.shape_cast %36 : vector<8xf32> to vector<1x8xf32>
    %cst_18 = arith.constant 1.600000e+01 : f32
    %38 = vector.broadcast %cst_18 : f32 to vector<1x8xf32>
    %39 = arith.divf %37, %38 : vector<1x8xf32>
    %40 = vector.broadcast %39 : vector<1x8xf32> to vector<16x8xf32>
    %41 = arith.subf %35, %40 : vector<16x8xf32>
    %42 = arith.mulf %41, %41 : vector<16x8xf32>
    %cst_19 = arith.constant dense<0.000000e+00> : vector<8xf32>
    %43 = vector.multi_reduction <add>, %42, %cst_19 [0] : vector<16x8xf32> to vector<8xf32>
    %44 = vector.shape_cast %43 : vector<8xf32> to vector<1x8xf32>
    %cst_20 = arith.constant 1.600000e+01 : f32
    %45 = vector.broadcast %cst_20 : f32 to vector<1x8xf32>
    %46 = arith.divf %44, %45 : vector<1x8xf32>
    %47 = vector.broadcast %39 : vector<1x8xf32> to vector<16x8xf32>
    %48 = arith.subf %35, %47 : vector<16x8xf32>
    %cst_21 = arith.constant 9.99999974E-6 : f32
    %49 = vector.broadcast %cst_21 : f32 to vector<1x8xf32>
    %50 = arith.addf %46, %49 : vector<1x8xf32>
    %51 = math.rsqrt %50 : vector<1x8xf32>
    %52 = vector.broadcast %51 : vector<1x8xf32> to vector<16x8xf32>
    %53 = arith.mulf %48, %52 : vector<16x8xf32>
    %c0_22 = arith.constant 0 : index
    %c0_23 = arith.constant 0 : index
    %54 = vector.load %arg6[%c0_22, %c0_23] : memref<8x4xbf16, #tpu.memory_space<vmem>>, vector<8x4xbf16>
    %c0_24 = arith.constant 0 : index
    %c0_25 = arith.constant 0 : index
    %55 = vector.load %arg7[%c0_24, %c0_25] : memref<1x4xf32, #tpu.memory_space<vmem>>, vector<1x4xf32>
    %56 = arith.truncf %53 : vector<16x8xf32> to vector<16x8xbf16>
    %cst_26 = arith.constant dense<0.000000e+00> : vector<16x4xf32>
    %57 = tpu.matmul %56, %54, %cst_26 {dimension_numbers = #tpu.dot_dimension_numbers<[1], [0], [0], [1], [0, 0, 1, 1], [], []>} : vector<16x8xbf16>, vector<8x4xbf16>, vector<16x4xf32> -> vector<16x4xf32>
    %58 = vector.broadcast %55 : vector<1x4xf32> to vector<16x4xf32>
    %59 = arith.addf %57, %58 : vector<16x4xf32>
    %60 = vector.extract_strided_slice %35 {offsets = [0, 0], sizes = [16, 4], strides = [1, 1]} : vector<16x8xf32> to vector<16x4xf32>
    %cst_27 = arith.constant 1.000000e+00 : f32
    %61 = vector.broadcast %cst_27 : f32 to vector<16x4xf32>
    %62 = arith.addf %59, %61 : vector<16x4xf32>
    %63 = arith.mulf %60, %62 : vector<16x4xf32>
    %64 = vector.extract_strided_slice %35 {offsets = [0, 0], sizes = [8, 8], strides = [1, 1]} : vector<16x8xf32> to vector<8x8xf32>
    %cst_28 = arith.constant dense<0.000000e+00> : vector<8xf32>
    %65 = vector.multi_reduction <add>, %64, %cst_28 [0] : vector<8x8xf32> to vector<8xf32>
    %66 = vector.shape_cast %65 : vector<8xf32> to vector<1x8xf32>
    %cst_29 = arith.constant 8.000000e+00 : f32
    %67 = vector.broadcast %cst_29 : f32 to vector<1x8xf32>
    %68 = arith.divf %66, %67 : vector<1x8xf32>
    %69 = vector.broadcast %68 : vector<1x8xf32> to vector<8x8xf32>
    %70 = arith.subf %64, %69 : vector<8x8xf32>
    %71 = arith.mulf %70, %70 : vector<8x8xf32>
    %cst_30 = arith.constant dense<0.000000e+00> : vector<8xf32>
    %72 = vector.multi_reduction <add>, %71, %cst_30 [0] : vector<8x8xf32> to vector<8xf32>
    %73 = vector.shape_cast %72 : vector<8xf32> to vector<1x8xf32>
    %cst_31 = arith.constant 8.000000e+00 : f32
    %74 = vector.broadcast %cst_31 : f32 to vector<1x8xf32>
    %75 = arith.divf %73, %74 : vector<1x8xf32>
    %76 = vector.broadcast %68 : vector<1x8xf32> to vector<8x8xf32>
    %77 = arith.subf %64, %76 : vector<8x8xf32>
    %cst_32 = arith.constant 9.99999974E-6 : f32
    %78 = vector.broadcast %cst_32 : f32 to vector<1x8xf32>
    %79 = arith.addf %75, %78 : vector<1x8xf32>
    %80 = math.rsqrt %79 : vector<1x8xf32>
    %81 = vector.broadcast %80 : vector<1x8xf32> to vector<8x8xf32>
    %82 = arith.mulf %77, %81 : vector<8x8xf32>
    %83 = vector.extract_strided_slice %35 {offsets = [8, 0], sizes = [8, 8], strides = [1, 1]} : vector<16x8xf32> to vector<8x8xf32>
    %cst_33 = arith.constant dense<0.000000e+00> : vector<8xf32>
    %84 = vector.multi_reduction <add>, %83, %cst_33 [0] : vector<8x8xf32> to vector<8xf32>
    %85 = vector.shape_cast %84 : vector<8xf32> to vector<1x8xf32>
    %cst_34 = arith.constant 8.000000e+00 : f32
    %86 = vector.broadcast %cst_34 : f32 to vector<1x8xf32>
    %87 = arith.divf %85, %86 : vector<1x8xf32>
    %88 = vector.broadcast %87 : vector<1x8xf32> to vector<8x8xf32>
    %89 = arith.subf %83, %88 : vector<8x8xf32>
    %90 = arith.mulf %89, %89 : vector<8x8xf32>
    %cst_35 = arith.constant dense<0.000000e+00> : vector<8xf32>
    %91 = vector.multi_reduction <add>, %90, %cst_35 [0] : vector<8x8xf32> to vector<8xf32>
    %92 = vector.shape_cast %91 : vector<8xf32> to vector<1x8xf32>
    %cst_36 = arith.constant 8.000000e+00 : f32
    %93 = vector.broadcast %cst_36 : f32 to vector<1x8xf32>
    %94 = arith.divf %92, %93 : vector<1x8xf32>
    %95 = vector.broadcast %87 : vector<1x8xf32> to vector<8x8xf32>
    %96 = arith.subf %83, %95 : vector<8x8xf32>
    %cst_37 = arith.constant 9.99999974E-6 : f32
    %97 = vector.broadcast %cst_37 : f32 to vector<1x8xf32>
    %98 = arith.addf %94, %97 : vector<1x8xf32>
    %99 = math.rsqrt %98 : vector<1x8xf32>
    %100 = vector.broadcast %99 : vector<1x8xf32> to vector<8x8xf32>
    %101 = arith.mulf %96, %100 : vector<8x8xf32>
    %c0_38 = arith.constant 0 : index
    %c0_39 = arith.constant 0 : index
    %102 = vector.load %arg8[%c0_38, %c0_39] : memref<8x8xbf16, #tpu.memory_space<vmem>>, vector<8x8xbf16>
    %c0_40 = arith.constant 0 : index
    %c0_41 = arith.constant 0 : index
    %103 = vector.load %arg9[%c0_40, %c0_41] : memref<1x8xf32, #tpu.memory_space<vmem>>, vector<1x8xf32>
    %104 = arith.truncf %82 : vector<8x8xf32> to vector<8x8xbf16>
    %cst_42 = arith.constant dense<0.000000e+00> : vector<8x8xf32>
    %105 = tpu.matmul %104, %102, %cst_42 {dimension_numbers = #tpu.dot_dimension_numbers<[1], [0], [0], [1], [0, 0, 1, 1], [], []>} : vector<8x8xbf16>, vector<8x8xbf16>, vector<8x8xf32> -> vector<8x8xf32>
    %106 = vector.broadcast %103 : vector<1x8xf32> to vector<8x8xf32>
    %107 = arith.addf %105, %106 : vector<8x8xf32>
    %c0_43 = arith.constant 0 : index
    %c0_44 = arith.constant 0 : index
    %108 = vector.load %arg8[%c0_43, %c0_44] : memref<8x8xbf16, #tpu.memory_space<vmem>>, vector<8x8xbf16>
    %c0_45 = arith.constant 0 : index
    %c0_46 = arith.constant 0 : index
    %109 = vector.load %arg9[%c0_45, %c0_46] : memref<1x8xf32, #tpu.memory_space<vmem>>, vector<1x8xf32>
    %110 = arith.truncf %101 : vector<8x8xf32> to vector<8x8xbf16>
    %cst_47 = arith.constant dense<0.000000e+00> : vector<8x8xf32>
    %111 = tpu.matmul %110, %108, %cst_47 {dimension_numbers = #tpu.dot_dimension_numbers<[1], [0], [0], [1], [0, 0, 1, 1], [], []>} : vector<8x8xbf16>, vector<8x8xbf16>, vector<8x8xf32> -> vector<8x8xf32>
    %112 = vector.broadcast %109 : vector<1x8xf32> to vector<8x8xf32>
    %113 = arith.addf %111, %112 : vector<8x8xf32>
    %cst_48 = arith.constant 1.000000e+00 : f32
    %114 = vector.broadcast %cst_48 : f32 to vector<8x8xf32>
    %115 = arith.addf %113, %114 : vector<8x8xf32>
    %116 = arith.mulf %82, %115 : vector<8x8xf32>
    %cst_49 = arith.constant 1.000000e+00 : f32
    %117 = vector.broadcast %cst_49 : f32 to vector<8x8xf32>
    %118 = arith.addf %107, %117 : vector<8x8xf32>
    %119 = arith.mulf %101, %118 : vector<8x8xf32>
    %120 = tpu.concatenate %116, %119 in 0 : vector<8x8xf32>, vector<8x8xf32> -> vector<16x8xf32>
    %c0_50 = arith.constant 0 : index
    %c0_51 = arith.constant 0 : index
    %121 = vector.load %arg10[%c0_50, %c0_51] : memref<8x4xbf16, #tpu.memory_space<vmem>>, vector<8x4xbf16>
    %c0_52 = arith.constant 0 : index
    %c0_53 = arith.constant 0 : index
    %122 = vector.load %arg11[%c0_52, %c0_53] : memref<1x4xf32, #tpu.memory_space<vmem>>, vector<1x4xf32>
    %123 = arith.truncf %120 : vector<16x8xf32> to vector<16x8xbf16>
    %cst_54 = arith.constant dense<0.000000e+00> : vector<16x4xf32>
    %124 = tpu.matmul %123, %121, %cst_54 {dimension_numbers = #tpu.dot_dimension_numbers<[1], [0], [0], [1], [0, 0, 1, 1], [], []>} : vector<16x8xbf16>, vector<8x4xbf16>, vector<16x4xf32> -> vector<16x4xf32>
    %125 = vector.broadcast %122 : vector<1x4xf32> to vector<16x4xf32>
    %126 = arith.addf %124, %125 : vector<16x4xf32>
    %127 = arith.addf %63, %126 : vector<16x4xf32>
    %c0_55 = arith.constant 0 : index
    %c0_56 = arith.constant 0 : index
    %128 = vector.load %arg12[%c0_55, %c0_56] : memref<4x4xbf16, #tpu.memory_space<vmem>>, vector<4x4xbf16>
    %c0_57 = arith.constant 0 : index
    %c0_58 = arith.constant 0 : index
    %129 = vector.load %arg13[%c0_57, %c0_58] : memref<1x4xf32, #tpu.memory_space<vmem>>, vector<1x4xf32>
    %130 = arith.truncf %127 : vector<16x4xf32> to vector<16x4xbf16>
    %cst_59 = arith.constant dense<0.000000e+00> : vector<16x4xf32>
    %131 = tpu.matmul %130, %128, %cst_59 {dimension_numbers = #tpu.dot_dimension_numbers<[1], [0], [0], [1], [0, 0, 1, 1], [], []>} : vector<16x4xbf16>, vector<4x4xbf16>, vector<16x4xf32> -> vector<16x4xf32>
    %132 = vector.broadcast %129 : vector<1x4xf32> to vector<16x4xf32>
    %133 = arith.addf %131, %132 : vector<16x4xf32>
    %134 = arith.addf %3, %133 : vector<16x4xf32>
    %135 = vector.shape_cast %134 : vector<16x4xf32> to vector<4x4x4xf32>
    %136 = arith.truncf %135 : vector<4x4x4xf32> to vector<4x4x4xbf16>
    %c0_60 = arith.constant 0 : index
    %c0_61 = arith.constant 0 : index
    %c0_62 = arith.constant 0 : index
    %c0_63 = arith.constant 0 : index
    %c0_64 = arith.constant 0 : index
    %c0_65 = arith.constant 0 : index
    %137 = vector.load %arg14[%c0_60, %c0_61, %c0_62, %c0_63, %c0_64, %c0_65] : memref<1x1x4x1x4x4xbf16, #tpu.memory_space<vmem>>, vector<1x1x4x1x4x4xbf16>
    %138 = vector.shape_cast %137 : vector<1x1x4x1x4x4xbf16> to vector<4x4x4xbf16>
    %139 = vector.shape_cast %136 : vector<4x4x4xbf16> to vector<1x1x4x1x4x4xbf16>
    tpu.vector_store %arg14[%c0_60, %c0_61, %c0_62, %c0_63, %c0_64, %c0_65], %139 {strides = array<i32>} : memref<1x1x4x1x4x4xbf16, #tpu.memory_space<vmem>>, vector<1x1x4x1x4x4xbf16>,
    return
  }
  func.func @transform_0(%arg0: i32, %arg1: i32, %arg2: i32) -> (i32, i32, i32, i32, i32, i32) {
    %c0_i32 = arith.constant 0 : i32
    %c0_i32_0 = arith.constant 0 : i32
    %c0_i32_1 = arith.constant 0 : i32
    %c0_i32_2 = arith.constant 0 : i32
    return %arg0, %arg1, %c0_i32, %arg2, %c0_i32_0, %c0_i32_1 : i32, i32, i32, i32, i32, i32
  }
  func.func @transform_1(%arg0: i32, %arg1: i32, %arg2: i32) -> (i32, i32) {
    %c0_i32 = arith.constant 0 : i32
    %c0_i32_0 = arith.constant 0 : i32
    %c0_i32_1 = arith.constant 0 : i32
    return %c0_i32, %c0_i32_0 : i32, i32
  }
  func.func @transform_2(%arg0: i32, %arg1: i32, %arg2: i32) -> (i32, i32) {
    %c0_i32 = arith.constant 0 : i32
    %c0_i32_0 = arith.constant 0 : i32
    %c0_i32_1 = arith.constant 0 : i32
    return %c0_i32, %c0_i32_0 : i32, i32
  }
  func.func @transform_3(%arg0: i32, %arg1: i32, %arg2: i32) -> (i32, i32) {
    %c0_i32 = arith.constant 0 : i32
    %c0_i32_0 = arith.constant 0 : i32
    %c0_i32_1 = arith.constant 0 : i32
    return %c0_i32, %c0_i32_0 : i32, i32
  }
  func.func @transform_4(%arg0: i32, %arg1: i32, %arg2: i32) -> (i32, i32) {
    %c0_i32 = arith.constant 0 : i32
    %c0_i32_0 = arith.constant 0 : i32
    %c0_i32_1 = arith.constant 0 : i32
    return %c0_i32, %c0_i32_0 : i32, i32
  }
  func.func @transform_5(%arg0: i32, %arg1: i32, %arg2: i32) -> (i32, i32) {
    %c0_i32 = arith.constant 0 : i32
    %c0_i32_0 = arith.constant 0 : i32
    %c0_i32_1 = arith.constant 0 : i32
    return %c0_i32, %c0_i32_0 : i32, i32
  }
  func.func @transform_6(%arg0: i32, %arg1: i32, %arg2: i32) -> (i32, i32) {
    %c0_i32 = arith.constant 0 : i32
    %c0_i32_0 = arith.constant 0 : i32
    %c0_i32_1 = arith.constant 0 : i32
    return %c0_i32, %c0_i32_0 : i32, i32
  }
  func.func @transform_7(%arg0: i32, %arg1: i32, %arg2: i32) -> (i32, i32) {
    %c0_i32 = arith.constant 0 : i32
    %c0_i32_0 = arith.constant 0 : i32
    %c0_i32_1 = arith.constant 0 : i32
    return %c0_i32, %c0_i32_0 : i32, i32
  }
  func.func @transform_8(%arg0: i32, %arg1: i32, %arg2: i32) -> (i32, i32) {
    %c0_i32 = arith.constant 0 : i32
    %c0_i32_0 = arith.constant 0 : i32
    %c0_i32_1 = arith.constant 0 : i32
    return %c0_i32, %c0_i32_0 : i32, i32
  }
  func.func @transform_9(%arg0: i32, %arg1: i32, %arg2: i32) -> (i32, i32) {
    %c0_i32 = arith.constant 0 : i32
    %c0_i32_0 = arith.constant 0 : i32
    %c0_i32_1 = arith.constant 0 : i32
    return %c0_i32, %c0_i32_0 : i32, i32
  }
  func.func @transform_10(%arg0: i32, %arg1: i32, %arg2: i32) -> (i32, i32) {
    %c0_i32 = arith.constant 0 : i32
    %c0_i32_0 = arith.constant 0 : i32
    %c0_i32_1 = arith.constant 0 : i32
    return %c0_i32, %c0_i32_0 : i32, i32
  }
  func.func @transform_11(%arg0: i32, %arg1: i32, %arg2: i32) -> (i32, i32, i32, i32, i32, i32) {
    %c0_i32 = arith.constant 0 : i32
    %c0_i32_0 = arith.constant 0 : i32
    %c0_i32_1 = arith.constant 0 : i32
    %c0_i32_2 = arith.constant 0 : i32
    return %arg0, %arg1, %c0_i32, %arg2, %c0_i32_0, %c0_i32_1 : i32, i32, i32, i32, i32, i32
  }
}

module attributes {stable_mosaic.version = 11 : i64} {
  func.func @_head_kernel(%arg0: i32, %arg1: i32, %arg2: memref<1x256x4xbf16, #tpu.memory_space<vmem>>, %arg3: memref<1x256x4xbf16, #tpu.memory_space<vmem>>, %arg4: memref<1x256x4xf32, #tpu.memory_space<vmem>>, %arg5: memref<4x4xbf16, #tpu.memory_space<vmem>>, %arg6: memref<4x4xbf16, #tpu.memory_space<vmem>>, %arg7: memref<1x4xf32, #tpu.memory_space<vmem>>, %arg8: memref<1x256x4xf32, #tpu.memory_space<vmem>>) attributes {dimension_semantics = [#tpu.dimension_semantics<parallel>, #tpu.dimension_semantics<parallel>], iteration_bounds = array<i64: 2, 1>, scalar_prefetch = 0 : i64, scratch_operands = 0 : i64, tpu.core_type = #tpu.core_type<tc>, window_params = [{transform_indices = @transform_0, window_bounds = array<i64: 1, 256, 4>}, {transform_indices = @transform_1, window_bounds = array<i64: 1, 256, 4>}, {transform_indices = @transform_2, window_bounds = array<i64: 1, 256, 4>}, {pipeline_mode = #tpu.pipeline_mode<synchronous>, transform_indices = @transform_3, window_bounds = array<i64: 4, 4>}, {pipeline_mode = #tpu.pipeline_mode<synchronous>, transform_indices = @transform_4, window_bounds = array<i64: 4, 4>}, {pipeline_mode = #tpu.pipeline_mode<synchronous>, transform_indices = @transform_5, window_bounds = array<i64: 1, 4>}, {transform_indices = @transform_6, window_bounds = array<i64: 1, 256, 4>}]} {
    %c0 = arith.constant 0 : index
    %c0_0 = arith.constant 0 : index
    %c0_1 = arith.constant 0 : index
    %0 = vector.load %arg2[%c0, %c0_0, %c0_1] : memref<1x256x4xbf16, #tpu.memory_space<vmem>>, vector<1x256x4xbf16>
    %1 = vector.shape_cast %0 : vector<1x256x4xbf16> to vector<256x4xbf16>
    %c0_2 = arith.constant 0 : index
    %c0_3 = arith.constant 0 : index
    %2 = vector.load %arg5[%c0_2, %c0_3] : memref<4x4xbf16, #tpu.memory_space<vmem>>, vector<4x4xbf16>
    %cst = arith.constant dense<0.000000e+00> : vector<256x4xf32>
    %3 = tpu.matmul %1, %2, %cst {dimension_numbers = #tpu.dot_dimension_numbers<[1], [0], [0], [1], [0, 0, 1, 1], [], []>} : vector<256x4xbf16>, vector<4x4xbf16>, vector<256x4xf32> -> vector<256x4xf32>
    %c0_4 = arith.constant 0 : index
    %c0_5 = arith.constant 0 : index
    %c0_6 = arith.constant 0 : index
    %4 = vector.load %arg3[%c0_4, %c0_5, %c0_6] : memref<1x256x4xbf16, #tpu.memory_space<vmem>>, vector<1x256x4xbf16>
    %5 = vector.shape_cast %4 : vector<1x256x4xbf16> to vector<256x4xbf16>
    %c0_7 = arith.constant 0 : index
    %c0_8 = arith.constant 0 : index
    %6 = vector.load %arg6[%c0_7, %c0_8] : memref<4x4xbf16, #tpu.memory_space<vmem>>, vector<4x4xbf16>
    %cst_9 = arith.constant dense<0.000000e+00> : vector<256x4xf32>
    %7 = tpu.matmul %5, %6, %cst_9 {dimension_numbers = #tpu.dot_dimension_numbers<[1], [0], [0], [1], [0, 0, 1, 1], [], []>} : vector<256x4xbf16>, vector<4x4xbf16>, vector<256x4xf32> -> vector<256x4xf32>
    %8 = arith.addf %3, %7 : vector<256x4xf32>
    %c0_10 = arith.constant 0 : index
    %c0_11 = arith.constant 0 : index
    %9 = vector.load %arg7[%c0_10, %c0_11] : memref<1x4xf32, #tpu.memory_space<vmem>>, vector<1x4xf32>
    %10 = vector.broadcast %9 : vector<1x4xf32> to vector<256x4xf32>
    %11 = arith.addf %8, %10 : vector<256x4xf32>
    %c0_12 = arith.constant 0 : index
    %c0_13 = arith.constant 0 : index
    %c0_14 = arith.constant 0 : index
    %12 = vector.load %arg4[%c0_12, %c0_13, %c0_14] : memref<1x256x4xf32, #tpu.memory_space<vmem>>, vector<1x256x4xf32>
    %13 = vector.shape_cast %12 : vector<1x256x4xf32> to vector<256x4xf32>
    %14 = arith.addf %11, %13 : vector<256x4xf32>
    %c0_15 = arith.constant 0 : index
    %c0_16 = arith.constant 0 : index
    %c0_17 = arith.constant 0 : index
    %15 = vector.load %arg8[%c0_15, %c0_16, %c0_17] : memref<1x256x4xf32, #tpu.memory_space<vmem>>, vector<1x256x4xf32>
    %16 = vector.shape_cast %15 : vector<1x256x4xf32> to vector<256x4xf32>
    %17 = vector.shape_cast %14 : vector<256x4xf32> to vector<1x256x4xf32>
    tpu.vector_store %arg8[%c0_15, %c0_16, %c0_17], %17 {strides = array<i32>} : memref<1x256x4xf32, #tpu.memory_space<vmem>>, vector<1x256x4xf32>,
    return
  }
  func.func @transform_0(%arg0: i32, %arg1: i32) -> (i32, i32, i32) {
    %c0_i32 = arith.constant 0 : i32
    %c0_i32_0 = arith.constant 0 : i32
    return %arg0, %arg1, %c0_i32 : i32, i32, i32
  }
  func.func @transform_1(%arg0: i32, %arg1: i32) -> (i32, i32, i32) {
    %c0_i32 = arith.constant 0 : i32
    %c0_i32_0 = arith.constant 0 : i32
    return %arg0, %arg1, %c0_i32 : i32, i32, i32
  }
  func.func @transform_2(%arg0: i32, %arg1: i32) -> (i32, i32, i32) {
    %c0_i32 = arith.constant 0 : i32
    %c0_i32_0 = arith.constant 0 : i32
    return %arg0, %arg1, %c0_i32 : i32, i32, i32
  }
  func.func @transform_3(%arg0: i32, %arg1: i32) -> (i32, i32) {
    %c0_i32 = arith.constant 0 : i32
    %c0_i32_0 = arith.constant 0 : i32
    %c0_i32_1 = arith.constant 0 : i32
    return %c0_i32, %c0_i32_0 : i32, i32
  }
  func.func @transform_4(%arg0: i32, %arg1: i32) -> (i32, i32) {
    %c0_i32 = arith.constant 0 : i32
    %c0_i32_0 = arith.constant 0 : i32
    %c0_i32_1 = arith.constant 0 : i32
    return %c0_i32, %c0_i32_0 : i32, i32
  }
  func.func @transform_5(%arg0: i32, %arg1: i32) -> (i32, i32) {
    %c0_i32 = arith.constant 0 : i32
    %c0_i32_0 = arith.constant 0 : i32
    %c0_i32_1 = arith.constant 0 : i32
    return %c0_i32, %c0_i32_0 : i32, i32
  }
  func.func @transform_6(%arg0: i32, %arg1: i32) -> (i32, i32, i32) {
    %c0_i32 = arith.constant 0 : i32
    %c0_i32_0 = arith.constant 0 : i32
    return %arg0, %arg1, %c0_i32 : i32, i32, i32
  }
}

</mosaic_0001>

<llo_original>
// kernel: residual_split_head_multi_axis_gmlp.7
$region0: #{residual_split_head_multi_axis_gmlp.7}
  #allocation0 [shape = 'u32[]', space=smem, size = 0x4, offset = 0x4, fixed_abs, tag = 'smem constant byte address 0x4 - core index']
  #allocation1 [shape = 'u32[144,128]{1,0:T(1,128)}', space=vmem, size = 0x12000, scoped, tag = 'internal scratch']
  %s0 = inlined_call_operand.vmem [shape: bf16[2,256,4], index: 0, kind: input, shape index: {}]
  %s1 = inlined_call_operand.vmem [shape: bf16[2,256,4], index: 1, kind: input, shape index: {}]
  %s2 = inlined_call_operand.vmem [shape: f32[2,256,4], index: 2, kind: input, shape index: {}, may-alias: {2,6}]
  %s3 = inlined_call_operand.vmem [shape: bf16[4,4], index: 3, kind: input, shape index: {}]
  %s4 = inlined_call_operand.vmem [shape: bf16[4,4], index: 4, kind: input, shape index: {}]
  %s5 = inlined_call_operand.vmem [shape: f32[1,4], index: 5, kind: input, shape index: {}]
  %s6 = inlined_call_operand.vmem [shape: f32[2,256,4], index: 6, kind: output, shape index: {}, may-alias: {2,6}]
  %s7 = sld [smem:[#allocation0]]
  $region57: #{residual_split_head_multi_axis_gmlp.7} parent=0
    _
  %s9 = ssub.s32 1, %s7
  %s10 = scalar_select 0, %s9, %s7
  loop: start=0, step=1, limit=4
  $region2: #{residual_split_head_multi_axis_gmlp.7} parent=0 // loop_pre_header
    _
  $region3: #{residual_split_head_multi_axis_gmlp.7} parent=0 // loop_header
    %s12 = sphi 0, %s16
    %p13 = scmp.ge.s32.totalorder %s12, 4
    %s19 = sphi 0, %s31
    %s20 = sphi 0, %s27
    %s21 = sphi 0, %s19
    %s22 = sphi 0, %s20
    %s23 = sphi 0, %s21
    %s24 = sphi 0, %s22
    %s36 = sphi 0, %s38
    %s39 = sphi 0, %s36
    %s40 = sphi 0, %s39
    %s56 = sphi 0, %s40
    %s64 = sphi 0, %s66
    %s67 = sphi 0, %s64
    %s68 = sphi 0, %s67
    %s84 = sphi 0, %s68
    %s92 = sphi 0, %s94
    %s95 = sphi 0, %s92
    %s96 = sphi 0, %s95
    %s112 = sphi 0, %s96
    %s116 = sphi 0, %s116
    %s118 = sphi 0, %s116
    %s119 = sphi 0, %s118
    %s133 = sphi 0, %s119
    %s137 = sphi 0, %s137
    %s139 = sphi 0, %s137
    %s140 = sphi 0, %s139
    %s154 = sphi 0, %s140
    %s158 = sphi 0, %s158
    %s160 = sphi 0, %s158
    %s161 = sphi 0, %s160
    %s175 = sphi 0, %s161
    %s183 = sphi 0, %s185
    %s186 = sphi 0, %s183
    %s187 = sphi 0, %s186
    %s203 = sphi 0, %s187
  $region4: #{residual_split_head_multi_axis_gmlp.7} parent=0 // loop_header_branch
    %15 = sbr.rel (%p13) target = $region8
  $region5: #{residual_split_head_multi_axis_gmlp.7} parent=0 // loop_body
    %s17 = ssub.s32 %s12, 1
    %s18 = ssub.s32 %s12, 2
    %s25 = sadd.s32 1, %s20
    %p26 = scmp.ge.s32.totalorder %s25, 1
    %s27 = scalar_select %p26, 0, %s25
    %s28 = sadd.s32 1, %s19
    %s29 = scalar_select %p26, %s28, %s19
    %p30 = scmp.ge.s32.totalorder %s29, 2
    %s31 = scalar_select %p30, 0, %s29
    %s32 = ssub.s32 %s19, %s31
    %s33 = ssub.s32 %s20, %s27
    %s34 = sor.u32 %s32, %s33
    %p35 = scmp.eq.s32.totalorder %s34, 0
    %s37 = sadd.s32 %s36, 1
    %s38 = scalar_select %p35, %s36, %s37
    %p41 = pneg %p35
    %p42 = scmp.eq.s32.totalorder %s12, 1
    %p43 = por %p41, %p42
    %p44 = scmp.ne.s32.totalorder %s36, %s39
    %p45 = scmp.eq.s32.totalorder %s12, 0
    %p46 = por %p44, %p45
    %p47 = scmp.ne.s32.totalorder %s36, %s39
    %p48 = scmp.eq.s32.totalorder %s17, 1
    %p49 = por %p47, %p48
    %p50 = scmp.ne.s32.totalorder %s39, %s40
    %p51 = scmp.eq.s32.totalorder %s17, 0
    %p52 = por %p50, %p51
    %p53 = scmp.ne.s32.totalorder %s39, %s40
    %p54 = scmp.eq.s32.totalorder %s18, 1
    %p55 = por %p53, %p54
    %p57 = scmp.ne.s32.totalorder %s40, %s56
    %p58 = scmp.eq.s32.totalorder %s18, 0
    %p59 = por %p57, %p58
    %s60 = ssub.s32 %s19, %s31
    %s61 = ssub.s32 %s20, %s27
    %s62 = sor.u32 %s60, %s61
    %p63 = scmp.eq.s32.totalorder %s62, 0
    %s65 = sadd.s32 %s64, 1
    %s66 = scalar_select %p63, %s64, %s65
    %p69 = pneg %p63
    %p70 = scmp.eq.s32.totalorder %s12, 1
    %p71 = por %p69, %p70
    %p72 = scmp.ne.s32.totalorder %s64, %s67
    %p73 = scmp.eq.s32.totalorder %s12, 0
    %p74 = por %p72, %p73
    %p75 = scmp.ne.s32.totalorder %s64, %s67
    %p76 = scmp.eq.s32.totalorder %s17, 1
    %p77 = por %p75, %p76
    %p78 = scmp.ne.s32.totalorder %s67, %s68
    %p79 = scmp.eq.s32.totalorder %s17, 0
    %p80 = por %p78, %p79
    %p81 = scmp.ne.s32.totalorder %s67, %s68
    %p82 = scmp.eq.s32.totalorder %s18, 1
    %p83 = por %p81, %p82
    %p85 = scmp.ne.s32.totalorder %s68, %s84
    %p86 = scmp.eq.s32.totalorder %s18, 0
    %p87 = por %p85, %p86
    %s88 = ssub.s32 %s19, %s31
    %s89 = ssub.s32 %s20, %s27
    %s90 = sor.u32 %s88, %s89
    %p91 = scmp.eq.s32.totalorder %s90, 0
    %s93 = sadd.s32 %s92, 1
    %s94 = scalar_select %p91, %s92, %s93
    %p97 = pneg %p91
    %p98 = scmp.eq.s32.totalorder %s12, 1
    %p99 = por %p97, %p98
    %p100 = scmp.ne.s32.totalorder %s92, %s95
    %p101 = scmp.eq.s32.totalorder %s12, 0
    %p102 = por %p100, %p101
    %p103 = scmp.ne.s32.totalorder %s92, %s95
    %p104 = scmp.eq.s32.totalorder %s17, 1
    %p105 = por %p103, %p104
    %p106 = scmp.ne.s32.totalorder %s95, %s96
    %p107 = scmp.eq.s32.totalorder %s17, 0
    %p108 = por %p106, %p107
    %p109 = scmp.ne.s32.totalorder %s95, %s96
    %p110 = scmp.eq.s32.totalorder %s18, 1
    %p111 = por %p109, %p110
    %p113 = scmp.ne.s32.totalorder %s96, %s112
    %p114 = scmp.eq.s32.totalorder %s18, 0
    %p115 = por %p113, %p114
    %s117 = sadd.s32 %s116, 1
    %p120 = scmp.eq.s32.totalorder %s12, 1
    %p121 = scmp.ne.s32.totalorder %s116, %s118
    %p122 = scmp.eq.s32.totalorder %s12, 0
    %p123 = por %p121, %p122
    %p124 = scmp.ne.s32.totalorder %s116, %s118
    %p125 = scmp.eq.s32.totalorder %s17, 1
    %p126 = por %p124, %p125
    %p127 = scmp.ne.s32.totalorder %s118, %s119
    %p128 = scmp.eq.s32.totalorder %s17, 0
    %p129 = por %p127, %p128
    %p130 = scmp.ne.s32.totalorder %s118, %s119
    %p131 = scmp.eq.s32.totalorder %s18, 1
    %p132 = por %p130, %p131
    %p134 = scmp.ne.s32.totalorder %s119, %s133
    %p135 = scmp.eq.s32.totalorder %s18, 0
    %p136 = por %p134, %p135
    %s138 = sadd.s32 %s137, 1
    %p141 = scmp.eq.s32.totalorder %s12, 1
    %p142 = scmp.ne.s32.totalorder %s137, %s139
    %p143 = scmp.eq.s32.totalorder %s12, 0
    %p144 = por %p142, %p143
    %p145 = scmp.ne.s32.totalorder %s137, %s139
    %p146 = scmp.eq.s32.totalorder %s17, 1
    %p147 = por %p145, %p146
    %p148 = scmp.ne.s32.totalorder %s139, %s140
    %p149 = scmp.eq.s32.totalorder %s17, 0
    %p150 = por %p148, %p149
    %p151 = scmp.ne.s32.totalorder %s139, %s140
    %p152 = scmp.eq.s32.totalorder %s18, 1
    %p153 = por %p151, %p152
    %p155 = scmp.ne.s32.totalorder %s140, %s154
    %p156 = scmp.eq.s32.totalorder %s18, 0
    %p157 = por %p155, %p156
    %s159 = sadd.s32 %s158, 1
    %p162 = scmp.eq.s32.totalorder %s12, 1
    %p163 = scmp.ne.s32.totalorder %s158, %s160
    %p164 = scmp.eq.s32.totalorder %s12, 0
    %p165 = por %p163, %p164
    %p166 = scmp.ne.s32.totalorder %s158, %s160
    %p167 = scmp.eq.s32.totalorder %s17, 1
    %p168 = por %p166, %p167
    %p169 = scmp.ne.s32.totalorder %s160, %s161
    %p170 = scmp.eq.s32.totalorder %s17, 0
    %p171 = por %p169, %p170
    %p172 = scmp.ne.s32.totalorder %s160, %s161
    %p173 = scmp.eq.s32.totalorder %s18, 1
    %p174 = por %p172, %p173
    %p176 = scmp.ne.s32.totalorder %s161, %s175
    %p177 = scmp.eq.s32.totalorder %s18, 0
    %p178 = por %p176, %p177
    %s179 = ssub.s32 %s19, %s31
    %s180 = ssub.s32 %s20, %s27
    %s181 = sor.u32 %s179, %s180
    %p182 = scmp.eq.s32.totalorder %s181, 0
    %s184 = sadd.s32 %s183, 1
    %s185 = scalar_select %p182, %s183, %s184
    %p188 = pneg %p182
    %p189 = scmp.eq.s32.totalorder %s12, 1
    %p190 = por %p188, %p189
    %p191 = scmp.ne.s32.totalorder %s183, %s186
    %p192 = scmp.eq.s32.totalorder %s12, 0
    %p193 = por %p191, %p192
    %p194 = scmp.ne.s32.totalorder %s183, %s186
    %p195 = scmp.eq.s32.totalorder %s17, 1
    %p196 = por %p194, %p195
    %p197 = scmp.ne.s32.totalorder %s186, %s187
    %p198 = scmp.eq.s32.totalorder %s17, 0
    %p199 = por %p197, %p198
    %p200 = scmp.ne.s32.totalorder %s186, %s187
    %p201 = scmp.eq.s32.totalorder %s18, 1
    %p202 = por %p200, %p201
    %p204 = scmp.ne.s32.totalorder %s187, %s203
    %p205 = scmp.eq.s32.totalorder %s18, 0
    %p206 = por %p204, %p205
    %p207 = scmp.le.s32.totalorder 1, %s12
    %p208 = scmp.lt.s32.totalorder %s12, 3
    %p209 = pnand %p207, %p208
    %p210 = pneg %p209
    // Predicated region
    $region9: #{residual_split_head_multi_axis_gmlp.7} parent=5 // pred_check
      _
    $region10: #{residual_split_head_multi_axis_gmlp.7} parent=5 // pred_check_branch
      %212 = sbr.rel (%p209) target = $region12
    $region11: #{residual_split_head_multi_axis_gmlp.7} parent=5 // pred_region
      %s213 = ssub.s32 %s12, 1
      // Predicated region
      $region13: #{residual_split_head_multi_axis_gmlp.7} parent=11 // pred_check
        %p214 = pneg %p129
      $region14: #{residual_split_head_multi_axis_gmlp.7} parent=11 // pred_check_branch
        %216 = sbr.rel (%p214) target = $region16
      $region15: #{residual_split_head_multi_axis_gmlp.7} parent=11 // pred_region
        _
      $region16: #{residual_split_head_multi_axis_gmlp.7} parent=11 // pred_fallthru
        _
      // Predicated region
      $region17: #{residual_split_head_multi_axis_gmlp.7} parent=11 // pred_check
        %p217 = pneg %p150
      $region18: #{residual_split_head_multi_axis_gmlp.7} parent=11 // pred_check_branch
        %219 = sbr.rel (%p217) target = $region20
      $region19: #{residual_split_head_multi_axis_gmlp.7} parent=11 // pred_region
        _
      $region20: #{residual_split_head_multi_axis_gmlp.7} parent=11 // pred_fallthru
        _
      // Predicated region
      $region21: #{residual_split_head_multi_axis_gmlp.7} parent=11 // pred_check
        %p220 = pneg %p171
      $region22: #{residual_split_head_multi_axis_gmlp.7} parent=11 // pred_check_branch
        %222 = sbr.rel (%p220) target = $region24
      $region23: #{residual_split_head_multi_axis_gmlp.7} parent=11 // pred_region
        _
      $region24: #{residual_split_head_multi_axis_gmlp.7} parent=11 // pred_fallthru
        _
    $region12: #{residual_split_head_multi_axis_gmlp.7} parent=5 // pred_fallthru
      _
    %p223 = scmp.lt.s32.totalorder %s12, 2
    // Predicated region
    $region25: #{residual_split_head_multi_axis_gmlp.7} parent=5 // pred_check
      %p224 = pneg %p223
    $region26: #{residual_split_head_multi_axis_gmlp.7} parent=5 // pred_check_branch
      %226 = sbr.rel (%p224) target = $region28
    $region27: #{residual_split_head_multi_axis_gmlp.7} parent=5 // pred_region
      // Predicated region
      $region29: #{residual_split_head_multi_axis_gmlp.7} parent=27 // pred_check
        %p227 = pneg %p46
      $region30: #{residual_split_head_multi_axis_gmlp.7} parent=27 // pred_check_branch
        %229 = sbr.rel (%p227) target = $region32
      $region31: #{residual_split_head_multi_axis_gmlp.7} parent=27 // pred_region
        %s230 = smul.u32 32, %s20
        %p231 = scmp.lt.s32.totalorder %s19, 1
        %s232 = scalar_select %p231, %s19, 1
        %p233 = scmp.lt.s32.totalorder %s230, 31
        %s234 = scalar_select %p233, %s230, 31
        %s235 = smul.addr %s232, 32
        %s236 = sadd.s32 %s234, %s235
        %s237 = smul.addr %s236, 4
        %s238 = scalar_lea.vmem %s0, %s237
        %s239 = smul.u32 32, %s20
      $region32: #{residual_split_head_multi_axis_gmlp.7} parent=27 // pred_fallthru
        _
      // Predicated region
      $region33: #{residual_split_head_multi_axis_gmlp.7} parent=27 // pred_check
        %p240 = pneg %p74
      $region34: #{residual_split_head_multi_axis_gmlp.7} parent=27 // pred_check_branch
        %242 = sbr.rel (%p240) target = $region36
      $region35: #{residual_split_head_multi_axis_gmlp.7} parent=27 // pred_region
        %s243 = smul.u32 32, %s20
        %p244 = scmp.lt.s32.totalorder %s19, 1
        %s245 = scalar_select %p244, %s19, 1
        %p246 = scmp.lt.s32.totalorder %s243, 31
        %s247 = scalar_select %p246, %s243, 31
        %s248 = smul.addr %s245, 32
        %s249 = sadd.s32 %s247, %s248
        %s250 = smul.addr %s249, 4
        %s251 = scalar_lea.vmem %s1, %s250
        %s252 = smul.u32 32, %s20
      $region36: #{residual_split_head_multi_axis_gmlp.7} parent=27 // pred_fallthru
        _
      // Predicated region
      $region37: #{residual_split_head_multi_axis_gmlp.7} parent=27 // pred_check
        %p253 = pneg %p102
      $region38: #{residual_split_head_multi_axis_gmlp.7} parent=27 // pred_check_branch
        %255 = sbr.rel (%p253) target = $region40
      $region39: #{residual_split_head_multi_axis_gmlp.7} parent=27 // pred_region
        %s256 = smul.u32 32, %s20
        %p257 = scmp.lt.s32.totalorder %s19, 1
        %s258 = scalar_select %p257, %s19, 1
        %p259 = scmp.lt.s32.totalorder %s256, 31
        %s260 = scalar_select %p259, %s256, 31
        %s261 = smul.addr %s258, 32
        %s262 = sadd.s32 %s260, %s261
        %s263 = smul.addr %s262, 8
        %s264 = scalar_lea.vmem %s2, %s263
        %s265 = smul.u32 32, %s20
      $region40: #{residual_split_head_multi_axis_gmlp.7} parent=27 // pred_fallthru
        _
    $region28: #{residual_split_head_multi_axis_gmlp.7} parent=5 // pred_fallthru
      _
    %p266 = scmp.le.s32.totalorder 1, %s12
    %p267 = scmp.lt.s32.totalorder %s12, 3
    %p268 = pnand %p266, %p267
    %p269 = pneg %p268
    // Predicated region
    $region41: #{residual_split_head_multi_axis_gmlp.7} parent=5 // pred_check
      _
    $region42: #{residual_split_head_multi_axis_gmlp.7} parent=5 // pred_check_branch
      %271 = sbr.rel (%p268) target = $region44
    $region43: #{residual_split_head_multi_axis_gmlp.7} parent=5 // pred_region
      %s272 = ssub.s32 %s12, 1
      %s273 = smul.u32 32, %s22
      %p274 = scmp.lt.s32.totalorder %s21, 1
      %s275 = scalar_select %p274, %s21, 1
      %p276 = scmp.lt.s32.totalorder %s273, 31
      %s277 = scalar_select %p276, %s273, 31
      %s278 = smul.addr %s275, 32
      %s279 = sadd.s32 %s277, %s278
      %s280 = smul.addr %s279, 4
      %s281 = scalar_lea.vmem %s0, %s280
      %p282 = pneg %p52
      %p283 = pneg %p49
      %s284 = smul.u32 32, %s22
      %p285 = scmp.lt.s32.totalorder %s21, 1
      %s286 = scalar_select %p285, %s21, 1
      %p287 = scmp.lt.s32.totalorder %s284, 31
      %s288 = scalar_select %p287, %s284, 31
      %s289 = smul.addr %s286, 32
      %s290 = sadd.s32 %s288, %s289
      %s291 = smul.addr %s290, 4
      %s292 = scalar_lea.vmem %s1, %s291
      %p293 = pneg %p80
      %p294 = pneg %p77
      %s295 = smul.u32 32, %s22
      %p296 = scmp.lt.s32.totalorder %s21, 1
      %s297 = scalar_select %p296, %s21, 1
      %p298 = scmp.lt.s32.totalorder %s295, 31
      %s299 = scalar_select %p298, %s295, 31
      %s300 = smul.addr %s297, 32
      %s301 = sadd.s32 %s299, %s300
      %s302 = smul.addr %s301, 8
      %s303 = scalar_lea.vmem %s2, %s302
      %p304 = pneg %p108
      %p305 = pneg %p105
      %p306 = pneg %p129
      %p307 = pneg %p126
      %p308 = pneg %p150
      %p309 = pneg %p147
      %p310 = pneg %p171
      %p311 = pneg %p168
      %p312 = pneg %p199
      %p313 = pneg %p196
      %s314 = smul.u32 32, %s22
      %p315 = scmp.lt.s32.totalorder %s21, 1
      %s316 = scalar_select %p315, %s21, 1
      %p317 = scmp.lt.s32.totalorder %s314, 31
      %s318 = scalar_select %p317, %s314, 31
      %s319 = smul.addr %s316, 32
      %s320 = sadd.s32 %s318, %s319
      %s321 = smul.addr %s320, 8
      %s322 = scalar_lea.vmem %s6, %s321
      %s323 = smul.u32 32, %s22
      %p324 = scmp.lt.s32.totalorder %s21, 1
      %s325 = scalar_select %p324, %s21, 1
      %p326 = scmp.lt.s32.totalorder %s323, 31
      %s327 = scalar_select %p326, %s323, 31
      %s328 = smul.addr %s325, 32
      %s329 = sadd.s32 %s327, %s328
      %s330 = smul.addr %s329, 4
      %s331 = scalar_lea.vmem %s0, %s330
      %s332 = smul.u32 32, %s22
      %s333 = smul.u32 32, %s22
      %p334 = scmp.lt.s32.totalorder %s21, 1
      %s335 = scalar_select %p334, %s21, 1
      %p336 = scmp.lt.s32.totalorder %s333, 31
      %s337 = scalar_select %p336, %s333, 31
      %s338 = smul.addr %s335, 32
      %s339 = sadd.s32 %s337, %s338
      %s340 = smul.addr %s339, 4
      %s341 = scalar_lea.vmem %s1, %s340
      %s342 = smul.u32 32, %s22
      %s343 = smul.u32 32, %s22
      %p344 = scmp.lt.s32.totalorder %s21, 1
      %s345 = scalar_select %p344, %s21, 1
      %p346 = scmp.lt.s32.totalorder %s343, 31
      %s347 = scalar_select %p346, %s343, 31
      %s348 = smul.addr %s345, 32
      %s349 = sadd.s32 %s347, %s348
      %s350 = smul.addr %s349, 8
      %s351 = scalar_lea.vmem %s2, %s350
      %s352 = smul.u32 32, %s22
      %s353 = smul.u32 32, %s22
      %p354 = scmp.lt.s32.totalorder %s21, 1
      %s355 = scalar_select %p354, %s21, 1
      %p356 = scmp.lt.s32.totalorder %s353, 31
      %s357 = scalar_select %p356, %s353, 31
      %s358 = smul.addr %s355, 32
      %s359 = sadd.s32 %s357, %s358
      %s360 = smul.addr %s359, 8
      %s361 = scalar_lea.vmem %s6, %s360
      %s362 = smul.u32 32, %s22
      %v364 = vld [vmem:[%s331] sm:$0xf]
      %v365 = vld [vmem:[%s331 + $0x4] sm:$0xf]
      %v366 = vld [vmem:[%s331 + $0x8] sm:$0xf]
      %v367 = vld [vmem:[%s331 + $0xc] sm:$0xf]
      %v368 = vld [vmem:[%s331 + $0x10] sm:$0xf]
      %v369 = vld [vmem:[%s331 + $0x14] sm:$0xf]
      %v370 = vld [vmem:[%s331 + $0x18] sm:$0xf]
      %v371 = vld [vmem:[%s331 + $0x1c] sm:$0xf]
      %v372 = vld [vmem:[%s331 + $0x20] sm:$0xf]
      %v373 = vld [vmem:[%s331 + $0x24] sm:$0xf]
      %v374 = vld [vmem:[%s331 + $0x28] sm:$0xf]
      %v375 = vld [vmem:[%s331 + $0x2c] sm:$0xf]
      %v376 = vld [vmem:[%s331 + $0x30] sm:$0xf]
      %v377 = vld [vmem:[%s331 + $0x34] sm:$0xf]
      %v378 = vld [vmem:[%s331 + $0x38] sm:$0xf]
      %v379 = vld [vmem:[%s331 + $0x3c] sm:$0xf]
      %v380 = vld [vmem:[%s331 + $0x40] sm:$0xf]
      %v381 = vld [vmem:[%s331 + $0x44] sm:$0xf]
      %v382 = vld [vmem:[%s331 + $0x48] sm:$0xf]
      %v383 = vld [vmem:[%s331 + $0x4c] sm:$0xf]
      %v384 = vld [vmem:[%s331 + $0x50] sm:$0xf]
      %v385 = vld [vmem:[%s331 + $0x54] sm:$0xf]
      %v386 = vld [vmem:[%s331 + $0x58] sm:$0xf]
      %v387 = vld [vmem:[%s331 + $0x5c] sm:$0xf]
      %v388 = vld [vmem:[%s331 + $0x60] sm:$0xf]
      %v389 = vld [vmem:[%s331 + $0x64] sm:$0xf]
      %v390 = vld [vmem:[%s331 + $0x68] sm:$0xf]
      %v391 = vld [vmem:[%s331 + $0x6c] sm:$0xf]
      %v392 = vld [vmem:[%s331 + $0x70] sm:$0xf]
      %v393 = vld [vmem:[%s331 + $0x74] sm:$0xf]
      %v394 = vld [vmem:[%s331 + $0x78] sm:$0xf]
      %v395 = vld [vmem:[%s331 + $0x7c] sm:$0xf]
      %v396 = vld [vmem:[%s3] sm:$0x3]
      %v397 = vld [vmem:[%s341] sm:$0xf]
      %v398 = vld [vmem:[%s341 + $0x4] sm:$0xf]
      %v399 = vld [vmem:[%s341 + $0x8] sm:$0xf]
      %v400 = vld [vmem:[%s341 + $0xc] sm:$0xf]
      %v401 = vld [vmem:[%s341 + $0x10] sm:$0xf]
      %v402 = vld [vmem:[%s341 + $0x14] sm:$0xf]
      %v403 = vld [vmem:[%s341 + $0x18] sm:$0xf]
      %v404 = vld [vmem:[%s341 + $0x1c] sm:$0xf]
      %v405 = vld [vmem:[%s341 + $0x20] sm:$0xf]
      %v406 = vld [vmem:[%s341 + $0x24] sm:$0xf]
      %v407 = vld [vmem:[%s341 + $0x28] sm:$0xf]
      %v408 = vld [vmem:[%s341 + $0x2c] sm:$0xf]
      %v409 = vld [vmem:[%s341 + $0x30] sm:$0xf]
      %v410 = vld [vmem:[%s341 + $0x34] sm:$0xf]
      %v411 = vld [vmem:[%s341 + $0x38] sm:$0xf]
      %v412 = vld [vmem:[%s341 + $0x3c] sm:$0xf]
      %v413 = vld [vmem:[%s341 + $0x40] sm:$0xf]
      %v414 = vld [vmem:[%s341 + $0x44] sm:$0xf]
      %v415 = vld [vmem:[%s341 + $0x48] sm:$0xf]
      %v416 = vld [vmem:[%s341 + $0x4c] sm:$0xf]
      %v417 = vld [vmem:[%s341 + $0x50] sm:$0xf]
      %v418 = vld [vmem:[%s341 + $0x54] sm:$0xf]
      %v419 = vld [vmem:[%s341 + $0x58] sm:$0xf]
      %v420 = vld [vmem:[%s341 + $0x5c] sm:$0xf]
      %v421 = vld [vmem:[%s341 + $0x60] sm:$0xf]
      %v422 = vld [vmem:[%s341 + $0x64] sm:$0xf]
      %v423 = vld [vmem:[%s341 + $0x68] sm:$0xf]
      %v424 = vld [vmem:[%s341 + $0x6c] sm:$0xf]
      %v425 = vld [vmem:[%s341 + $0x70] sm:$0xf]
      %v426 = vld [vmem:[%s341 + $0x74] sm:$0xf]
      %v427 = vld [vmem:[%s341 + $0x78] sm:$0xf]
      %v428 = vld [vmem:[%s341 + $0x7c] sm:$0xf]
      %v429 = vld [vmem:[%s4] sm:$0x3]
      %v462 = vunpack.c.l.b16 %v397
      %v463 = vunpack.c.l.b16 %v398
      %v464 = vunpack.c.l.b16 %v399
      %v465 = vunpack.c.l.b16 %v400
      %v466 = vunpack.c.l.b16 %v401
      %v467 = vunpack.c.l.b16 %v402
      %v468 = vunpack.c.l.b16 %v403
      %v469 = vunpack.c.l.b16 %v404
      %v470 = vunpack.c.l.b16 %v405
      %v471 = vunpack.c.l.b16 %v406
      %v472 = vunpack.c.l.b16 %v407
      %v473 = vunpack.c.l.b16 %v408
      %v474 = vunpack.c.l.b16 %v409
      %v475 = vunpack.c.l.b16 %v410
      %v476 = vunpack.c.l.b16 %v411
      %v477 = vunpack.c.l.b16 %v412
      %v478 = vunpack.c.l.b16 %v413
      %v479 = vunpack.c.l.b16 %v414
      %v480 = vunpack.c.l.b16 %v415
      %v481 = vunpack.c.l.b16 %v416
      %v482 = vunpack.c.l.b16 %v417
      %v483 = vunpack.c.l.b16 %v418
      %v484 = vunpack.c.l.b16 %v419
      %v485 = vunpack.c.l.b16 %v420
      %v486 = vunpack.c.l.b16 %v421
      %v487 = vunpack.c.l.b16 %v422
      %v488 = vunpack.c.l.b16 %v423
      %v489 = vunpack.c.l.b16 %v424
      %v490 = vunpack.c.l.b16 %v425
      %v491 = vunpack.c.l.b16 %v426
      %v492 = vunpack.c.l.b16 %v427
      %v493 = vunpack.c.l.b16 %v428
      %v494 = vpack.c.b16 %v463, %v462
      %v495 = vpack.c.b16 %v465, %v464
      %v496 = vpack.c.b16 %v467, %v466
      %v497 = vpack.c.b16 %v469, %v468
      %v498 = vpack.c.b16 %v471, %v470
      %v499 = vpack.c.b16 %v473, %v472
      %v500 = vpack.c.b16 %v475, %v474
      %v501 = vpack.c.b16 %v477, %v476
      %v502 = vpack.c.b16 %v479, %v478
      %v503 = vpack.c.b16 %v481, %v480
      %v504 = vpack.c.b16 %v483, %v482
      %v505 = vpack.c.b16 %v485, %v484
      %v506 = vpack.c.b16 %v487, %v486
      %v507 = vpack.c.b16 %v489, %v488
      %v508 = vpack.c.b16 %v491, %v490
      %v509 = vpack.c.b16 %v493, %v492
      %vm510 = vcmask 31744
      %v512 = vsel %vm510, %v494, 0
      %v515 = vsel %vm510, %v495, 0
      %v518 = vsel %vm510, %v496, 0
      %v521 = vsel %vm510, %v497, 0
      %v524 = vsel %vm510, %v498, 0
      %v527 = vsel %vm510, %v499, 0
      %v530 = vsel %vm510, %v500, 0
      %v533 = vsel %vm510, %v501, 0
      %v536 = vsel %vm510, %v502, 0
      %v539 = vsel %vm510, %v503, 0
      %v542 = vsel %vm510, %v504, 0
      %v545 = vsel %vm510, %v505, 0
      %v548 = vsel %vm510, %v506, 0
      %v551 = vsel %vm510, %v507, 0
      %v554 = vsel %vm510, %v508, 0
      %v557 = vsel %vm510, %v509, 0
      %vm559 = vcmask 1041408
      %v561 = vsel %vm559, %v429, 0
      %563 = vmatprep.subr.bf16.mxu0 0
      %564 = vmatpush1.bf16.msra.mxu0 %v561
      %565 = vmatprep.subr.bf16.mxu0 0
      %566 = vmatpush1.bf16.msra.mxu0 0
      %567 = vmatprep.subr.bf16.mxu0 0
      %568 = vmatpush1.bf16.msra.mxu0 0
      %569 = vmatprep.subr.bf16.mxu0 0
      %570 = vmatpush1.bf16.msra.mxu0 0
      %571 = vmatprep.subr.bf16.mxu0 0
      %572 = vmatpush1.bf16.msra.mxu0 0
      %573 = vmatprep.subr.bf16.mxu0 0
      %574 = vmatpush1.bf16.msra.mxu0 0
      %575 = vmatprep.subr.bf16.mxu0 0
      %576 = vmatpush1.bf16.msra.mxu0 0
      %577 = vmatprep.subr.bf16.mxu0 0
      %578 = vmatpush1.bf16.msra.mxu0 0
      %579 = vmatprep.subr.bf16.mxu0 0
      %580 = vmatpush1.bf16.msra.mxu0 0
      %581 = vmatprep.subr.bf16.mxu0 0
      %582 = vmatpush1.bf16.msra.mxu0 0
      %583 = vmatprep.subr.bf16.mxu0 0
      %584 = vmatpush1.bf16.msra.mxu0 0
      %585 = vmatprep.subr.bf16.mxu0 0
      %586 = vmatpush1.bf16.msra.mxu0 0
      %587 = vmatprep.subr.bf16.mxu0 0
      %588 = vmatpush1.bf16.msra.mxu0 0
      %589 = vmatprep.subr.bf16.mxu0 0
      %590 = vmatpush1.bf16.msra.mxu0 0
      %591 = vmatprep.subr.bf16.mxu0 0
      %592 = vmatpush1.bf16.msra.mxu0 0
      %593 = vmatprep.subr.bf16.mxu0 0
      %594 = vmatpush1.bf16.msra.mxu0 0
      %595 = vmatprep.mubr.bf16.mxu0 0
      %596 = vmatmul.mubr.bf16.gmra.mrb[0].mxu0 %v512
      %v597 = vpop.f32.mrb[0].mxu0
      %v598 = vadd.f32 0.0, %v597
      %v599 = vpop.f32.mrb[0].mxu0
      %v600 = vpop.f32.mrb[0].mxu0
      %v601 = vadd.f32 0.0, %v600
      %v602 = vpop.f32.mrb[0].mxu0
      %603 = vmatprep.mubr.bf16.mxu0 0
      %604 = vmatmul.mubr.bf16.gmra.mrb[0].mxu0 %v515
      %v605 = vpop.f32.mrb[0].mxu0
      %v606 = vadd.f32 0.0, %v605
      %v607 = vpop.f32.mrb[0].mxu0
      %v608 = vpop.f32.mrb[0].mxu0
      %v609 = vadd.f32 0.0, %v608
      %v610 = vpop.f32.mrb[0].mxu0
      %611 = vmatprep.mubr.bf16.mxu0 0
      %612 = vmatmul.mubr.bf16.gmra.mrb[0].mxu0 %v518
      %v613 = vpop.f32.mrb[0].mxu0
      %v614 = vadd.f32 0.0, %v613
      %v615 = vpop.f32.mrb[0].mxu0
      %v616 = vpop.f32.mrb[0].mxu0
      %v617 = vadd.f32 0.0, %v616
      %v618 = vpop.f32.mrb[0].mxu0
      %619 = vmatprep.mubr.bf16.mxu0 0
      %620 = vmatmul.mubr.bf16.gmra.mrb[0].mxu0 %v521
      %v621 = vpop.f32.mrb[0].mxu0
      %v622 = vadd.f32 0.0, %v621
      %v623 = vpop.f32.mrb[0].mxu0
      %v624 = vpop.f32.mrb[0].mxu0
      %v625 = vadd.f32 0.0, %v624
      %v626 = vpop.f32.mrb[0].mxu0
      %627 = vmatprep.mubr.bf16.mxu0 0
      %628 = vmatmul.mubr.bf16.gmra.mrb[0].mxu0 %v524
      %v629 = vpop.f32.mrb[0].mxu0
      %v630 = vadd.f32 0.0, %v629
      %v631 = vpop.f32.mrb[0].mxu0
      %v632 = vpop.f32.mrb[0].mxu0
      %v633 = vadd.f32 0.0, %v632
      %v634 = vpop.f32.mrb[0].mxu0
      %635 = vmatprep.mubr.bf16.mxu0 0
      %636 = vmatmul.mubr.bf16.gmra.mrb[0].mxu0 %v527
      %v637 = vpop.f32.mrb[0].mxu0
      %v638 = vadd.f32 0.0, %v637
      %v639 = vpop.f32.mrb[0].mxu0
      %v640 = vpop.f32.mrb[0].mxu0
      %v641 = vadd.f32 0.0, %v640
      %v642 = vpop.f32.mrb[0].mxu0
      %643 = vmatprep.mubr.bf16.mxu0 0
      %644 = vmatmul.mubr.bf16.gmra.mrb[0].mxu0 %v530
      %v645 = vpop.f32.mrb[0].mxu0
      %v646 = vadd.f32 0.0, %v645
      %v647 = vpop.f32.mrb[0].mxu0
      %v648 = vpop.f32.mrb[0].mxu0
      %v649 = vadd.f32 0.0, %v648
      %v650 = vpop.f32.mrb[0].mxu0
      %651 = vmatprep.mubr.bf16.mxu0 0
      %652 = vmatmul.mubr.bf16.gmra.mrb[0].mxu0 %v533
      %v653 = vpop.f32.mrb[0].mxu0
      %v654 = vadd.f32 0.0, %v653
      %v655 = vpop.f32.mrb[0].mxu0
      %v656 = vpop.f32.mrb[0].mxu0
      %v657 = vadd.f32 0.0, %v656
      %v658 = vpop.f32.mrb[0].mxu0
      %659 = vmatprep.mubr.bf16.mxu0 0
      %660 = vmatmul.mubr.bf16.gmra.mrb[0].mxu0 %v536
      %v661 = vpop.f32.mrb[0].mxu0
      %v662 = vadd.f32 0.0, %v661
      %v663 = vpop.f32.mrb[0].mxu0
      %v664 = vpop.f32.mrb[0].mxu0
      %v665 = vadd.f32 0.0, %v664
      %v666 = vpop.f32.mrb[0].mxu0
      %667 = vmatprep.mubr.bf16.mxu0 0
      %668 = vmatmul.mubr.bf16.gmra.mrb[0].mxu0 %v539
      %v669 = vpop.f32.mrb[0].mxu0
      %v670 = vadd.f32 0.0, %v669
      %v671 = vpop.f32.mrb[0].mxu0
      %v672 = vpop.f32.mrb[0].mxu0
      %v673 = vadd.f32 0.0, %v672
      %v674 = vpop.f32.mrb[0].mxu0
      %675 = vmatprep.mubr.bf16.mxu0 0
      %676 = vmatmul.mubr.bf16.gmra.mrb[0].mxu0 %v542
      %v677 = vpop.f32.mrb[0].mxu0
      %v678 = vadd.f32 0.0, %v677
      %v679 = vpop.f32.mrb[0].mxu0
      %v680 = vpop.f32.mrb[0].mxu0
      %v681 = vadd.f32 0.0, %v680
      %v682 = vpop.f32.mrb[0].mxu0
      %683 = vmatprep.mubr.bf16.mxu0 0
      %684 = vmatmul.mubr.bf16.gmra.mrb[0].mxu0 %v545
      %v685 = vpop.f32.mrb[0].mxu0
      %v686 = vadd.f32 0.0, %v685
      %v687 = vpop.f32.mrb[0].mxu0
      %v688 = vpop.f32.mrb[0].mxu0
      %v689 = vadd.f32 0.0, %v688
      %v690 = vpop.f32.mrb[0].mxu0
      %691 = vmatprep.mubr.bf16.mxu0 0
      %692 = vmatmul.mubr.bf16.gmra.mrb[0].mxu0 %v548
      %v693 = vpop.f32.mrb[0].mxu0
      %v694 = vadd.f32 0.0, %v693
      %v695 = vpop.f32.mrb[0].mxu0
      %v696 = vpop.f32.mrb[0].mxu0
      %v697 = vadd.f32 0.0, %v696
      %v698 = vpop.f32.mrb[0].mxu0
      %699 = vmatprep.mubr.bf16.mxu0 0
      %700 = vmatmul.mubr.bf16.gmra.mrb[0].mxu0 %v551
      %v701 = vpop.f32.mrb[0].mxu0
      %v702 = vadd.f32 0.0, %v701
      %v703 = vpop.f32.mrb[0].mxu0
      %v704 = vpop.f32.mrb[0].mxu0
      %v705 = vadd.f32 0.0, %v704
      %v706 = vpop.f32.mrb[0].mxu0
      %707 = vmatprep.mubr.bf16.mxu0 0
      %708 = vmatmul.mubr.bf16.gmra.mrb[0].mxu0 %v554
      %v709 = vpop.f32.mrb[0].mxu0
      %v710 = vadd.f32 0.0, %v709
      %v711 = vpop.f32.mrb[0].mxu0
      %v712 = vpop.f32.mrb[0].mxu0
      %v713 = vadd.f32 0.0, %v712
      %v714 = vpop.f32.mrb[0].mxu0
      %715 = vmatprep.mubr.bf16.mxu0 0
      %716 = vmatmul.mubr.bf16.gmra.mrb[0].mxu0 %v557
      %v717 = vpop.f32.mrb[0].mxu0
      %v718 = vadd.f32 0.0, %v717
      %v719 = vpop.f32.mrb[0].mxu0
      %v720 = vpop.f32.mrb[0].mxu0
      %v721 = vadd.f32 0.0, %v720
      %v722 = vpop.f32.mrb[0].mxu0
      %723 = vdwg.mxu0
      %v756 = vunpack.c.l.b16 %v364
      %v757 = vunpack.c.l.b16 %v365
      %v758 = vunpack.c.l.b16 %v366
      %v759 = vunpack.c.l.b16 %v367
      %v760 = vunpack.c.l.b16 %v368
      %v761 = vunpack.c.l.b16 %v369
      %v762 = vunpack.c.l.b16 %v370
      %v763 = vunpack.c.l.b16 %v371
      %v764 = vunpack.c.l.b16 %v372
      %v765 = vunpack.c.l.b16 %v373
      %v766 = vunpack.c.l.b16 %v374
      %v767 = vunpack.c.l.b16 %v375
      %v768 = vunpack.c.l.b16 %v376
      %v769 = vunpack.c.l.b16 %v377
      %v770 = vunpack.c.l.b16 %v378
      %v771 = vunpack.c.l.b16 %v379
      %v772 = vunpack.c.l.b16 %v380
      %v773 = vunpack.c.l.b16 %v381
      %v774 = vunpack.c.l.b16 %v382
      %v775 = vunpack.c.l.b16 %v383
      %v776 = vunpack.c.l.b16 %v384
      %v777 = vunpack.c.l.b16 %v385
      %v778 = vunpack.c.l.b16 %v386
      %v779 = vunpack.c.l.b16 %v387
      %v780 = vunpack.c.l.b16 %v388
      %v781 = vunpack.c.l.b16 %v389
      %v782 = vunpack.c.l.b16 %v390
      %v783 = vunpack.c.l.b16 %v391
      %v784 = vunpack.c.l.b16 %v392
      %v785 = vunpack.c.l.b16 %v393
      %v786 = vunpack.c.l.b16 %v394
      %v787 = vunpack.c.l.b16 %v395
      %v788 = vpack.c.b16 %v757, %v756
      %v789 = vpack.c.b16 %v759, %v758
      %v790 = vpack.c.b16 %v761, %v760
      %v791 = vpack.c.b16 %v763, %v762
      %v792 = vpack.c.b16 %v765, %v764
      %v793 = vpack.c.b16 %v767, %v766
      %v794 = vpack.c.b16 %v769, %v768
      %v795 = vpack.c.b16 %v771, %v770
      %v796 = vpack.c.b16 %v773, %v772
      %v797 = vpack.c.b16 %v775, %v774
      %v798 = vpack.c.b16 %v777, %v776
      %v799 = vpack.c.b16 %v779, %v778
      %v800 = vpack.c.b16 %v781, %v780
      %v801 = vpack.c.b16 %v783, %v782
      %v802 = vpack.c.b16 %v785, %v784
      %v803 = vpack.c.b16 %v787, %v786
      %v805 = vsel %vm510, %v788, 0
      %v808 = vsel %vm510, %v789, 0
      %v811 = vsel %vm510, %v790, 0
      %v814 = vsel %vm510, %v791, 0
      %v817 = vsel %vm510, %v792, 0
      %v820 = vsel %vm510, %v793, 0
      %v823 = vsel %vm510, %v794, 0
      %v826 = vsel %vm510, %v795, 0
      %v829 = vsel %vm510, %v796, 0
      %v832 = vsel %vm510, %v797, 0
      %v835 = vsel %vm510, %v798, 0
      %v838 = vsel %vm510, %v799, 0
      %v841 = vsel %vm510, %v800, 0
      %v844 = vsel %vm510, %v801, 0
      %v847 = vsel %vm510, %v802, 0
      %v850 = vsel %vm510, %v803, 0
      %v853 = vsel %vm559, %v396, 0
      %855 = vmatprep.subr.bf16.mxu0 0
      %856 = vmatpush1.bf16.msra.mxu0 %v853
      %857 = vmatprep.subr.bf16.mxu0 0
      %858 = vmatpush1.bf16.msra.mxu0 0
      %859 = vmatprep.subr.bf16.mxu0 0
      %860 = vmatpush1.bf16.msra.mxu0 0
      %861 = vmatprep.subr.bf16.mxu0 0
      %862 = vmatpush1.bf16.msra.mxu0 0
      %863 = vmatprep.subr.bf16.mxu0 0
      %864 = vmatpush1.bf16.msra.mxu0 0
      %865 = vmatprep.subr.bf16.mxu0 0
      %866 = vmatpush1.bf16.msra.mxu0 0
      %867 = vmatprep.subr.bf16.mxu0 0
      %868 = vmatpush1.bf16.msra.mxu0 0
      %869 = vmatprep.subr.bf16.mxu0 0
      %870 = vmatpush1.bf16.msra.mxu0 0
      %871 = vmatprep.subr.bf16.mxu0 0
      %872 = vmatpush1.bf16.msra.mxu0 0
      %873 = vmatprep.subr.bf16.mxu0 0
      %874 = vmatpush1.bf16.msra.mxu0 0
      %875 = vmatprep.subr.bf16.mxu0 0
      %876 = vmatpush1.bf16.msra.mxu0 0
      %877 = vmatprep.subr.bf16.mxu0 0
      %878 = vmatpush1.bf16.msra.mxu0 0
      %879 = vmatprep.subr.bf16.mxu0 0
      %880 = vmatpush1.bf16.msra.mxu0 0
      %881 = vmatprep.subr.bf16.mxu0 0
      %882 = vmatpush1.bf16.msra.mxu0 0
      %883 = vmatprep.subr.bf16.mxu0 0
      %884 = vmatpush1.bf16.msra.mxu0 0
      %885 = vmatprep.subr.bf16.mxu0 0
      %886 = vmatpush1.bf16.msra.mxu0 0
      %887 = vmatprep.mubr.bf16.mxu0 0
      %888 = vmatmul.mubr.bf16.gmra.mrb[0].mxu0 %v805
      %v889 = vpop.f32.mrb[0].mxu0
      %v890 = vadd.f32 %v598, %v889
      %v891 = vpop.f32.mrb[0].mxu0
      %v892 = vpop.f32.mrb[0].mxu0
      %v893 = vadd.f32 %v601, %v892
      %v894 = vpop.f32.mrb[0].mxu0
      %895 = vmatprep.mubr.bf16.mxu0 0
      %896 = vmatmul.mubr.bf16.gmra.mrb[0].mxu0 %v808
      %v897 = vpop.f32.mrb[0].mxu0
      %v898 = vadd.f32 %v606, %v897
      %v899 = vpop.f32.mrb[0].mxu0
      %v900 = vpop.f32.mrb[0].mxu0
      %v901 = vadd.f32 %v609, %v900
      %v902 = vpop.f32.mrb[0].mxu0
      %903 = vmatprep.mubr.bf16.mxu0 0
      %904 = vmatmul.mubr.bf16.gmra.mrb[0].mxu0 %v811
      %v905 = vpop.f32.mrb[0].mxu0
      %v906 = vadd.f32 %v614, %v905
      %v907 = vpop.f32.mrb[0].mxu0
      %v908 = vpop.f32.mrb[0].mxu0
      %v909 = vadd.f32 %v617, %v908
      %v910 = vpop.f32.mrb[0].mxu0
      %911 = vmatprep.mubr.bf16.mxu0 0
      %912 = vmatmul.mubr.bf16.gmra.mrb[0].mxu0 %v814
      %v913 = vpop.f32.mrb[0].mxu0
      %v914 = vadd.f32 %v622, %v913
      %v915 = vpop.f32.mrb[0].mxu0
      %v916 = vpop.f32.mrb[0].mxu0
      %v917 = vadd.f32 %v625, %v916
      %v918 = vpop.f32.mrb[0].mxu0
      %919 = vmatprep.mubr.bf16.mxu0 0
      %920 = vmatmul.mubr.bf16.gmra.mrb[0].mxu0 %v817
      %v921 = vpop.f32.mrb[0].mxu0
      %v922 = vadd.f32 %v630, %v921
      %v923 = vpop.f32.mrb[0].mxu0
      %v924 = vpop.f32.mrb[0].mxu0
      %v925 = vadd.f32 %v633, %v924
      %v926 = vpop.f32.mrb[0].mxu0
      %927 = vmatprep.mubr.bf16.mxu0 0
      %928 = vmatmul.mubr.bf16.gmra.mrb[0].mxu0 %v820
      %v929 = vpop.f32.mrb[0].mxu0
      %v930 = vadd.f32 %v638, %v929
      %v931 = vpop.f32.mrb[0].mxu0
      %v932 = vpop.f32.mrb[0].mxu0
      %v933 = vadd.f32 %v641, %v932
      %v934 = vpop.f32.mrb[0].mxu0
      %935 = vmatprep.mubr.bf16.mxu0 0
      %936 = vmatmul.mubr.bf16.gmra.mrb[0].mxu0 %v823
      %v937 = vpop.f32.mrb[0].mxu0
      %v938 = vadd.f32 %v646, %v937
      %v939 = vpop.f32.mrb[0].mxu0
      %v940 = vpop.f32.mrb[0].mxu0
      %v941 = vadd.f32 %v649, %v940
      %v942 = vpop.f32.mrb[0].mxu0
      %943 = vmatprep.mubr.bf16.mxu0 0
      %944 = vmatmul.mubr.bf16.gmra.mrb[0].mxu0 %v826
      %v945 = vpop.f32.mrb[0].mxu0
      %v946 = vadd.f32 %v654, %v945
      %v947 = vpop.f32.mrb[0].mxu0
      %v948 = vpop.f32.mrb[0].mxu0
      %v949 = vadd.f32 %v657, %v948
      %v950 = vpop.f32.mrb[0].mxu0
      %951 = vmatprep.mubr.bf16.mxu0 0
      %952 = vmatmul.mubr.bf16.gmra.mrb[0].mxu0 %v829
      %v953 = vpop.f32.mrb[0].mxu0
      %v954 = vadd.f32 %v662, %v953
      %v955 = vpop.f32.mrb[0].mxu0
      %v956 = vpop.f32.mrb[0].mxu0
      %v957 = vadd.f32 %v665, %v956
      %v958 = vpop.f32.mrb[0].mxu0
      %959 = vmatprep.mubr.bf16.mxu0 0
      %960 = vmatmul.mubr.bf16.gmra.mrb[0].mxu0 %v832
      %v961 = vpop.f32.mrb[0].mxu0
      %v962 = vadd.f32 %v670, %v961
      %v963 = vpop.f32.mrb[0].mxu0
      %v964 = vpop.f32.mrb[0].mxu0
      %v965 = vadd.f32 %v673, %v964
      %v966 = vpop.f32.mrb[0].mxu0
      %967 = vmatprep.mubr.bf16.mxu0 0
      %968 = vmatmul.mubr.bf16.gmra.mrb[0].mxu0 %v835
      %v969 = vpop.f32.mrb[0].mxu0
      %v970 = vadd.f32 %v678, %v969
      %v971 = vpop.f32.mrb[0].mxu0
      %v972 = vpop.f32.mrb[0].mxu0
      %v973 = vadd.f32 %v681, %v972
      %v974 = vpop.f32.mrb[0].mxu0
      %975 = vmatprep.mubr.bf16.mxu0 0
      %976 = vmatmul.mubr.bf16.gmra.mrb[0].mxu0 %v838
      %v977 = vpop.f32.mrb[0].mxu0
      %v978 = vadd.f32 %v686, %v977
      %v979 = vpop.f32.mrb[0].mxu0
      %v980 = vpop.f32.mrb[0].mxu0
      %v981 = vadd.f32 %v689, %v980
      %v982 = vpop.f32.mrb[0].mxu0
      %983 = vmatprep.mubr.bf16.mxu0 0
      %984 = vmatmul.mubr.bf16.gmra.mrb[0].mxu0 %v841
      %v985 = vpop.f32.mrb[0].mxu0
      %v986 = vadd.f32 %v694, %v985
      %v987 = vpop.f32.mrb[0].mxu0
      %v988 = vpop.f32.mrb[0].mxu0
      %v989 = vadd.f32 %v697, %v988
      %v990 = vpop.f32.mrb[0].mxu0
      %991 = vmatprep.mubr.bf16.mxu0 0
      %992 = vmatmul.mubr.bf16.gmra.mrb[0].mxu0 %v844
      %v993 = vpop.f32.mrb[0].mxu0
      %v994 = vadd.f32 %v702, %v993
      %v995 = vpop.f32.mrb[0].mxu0
      %v996 = vpop.f32.mrb[0].mxu0
      %v997 = vadd.f32 %v705, %v996
      %v998 = vpop.f32.mrb[0].mxu0
      %999 = vmatprep.mubr.bf16.mxu0 0
      %1000 = vmatmul.mubr.bf16.gmra.mrb[0].mxu0 %v847
      %v1001 = vpop.f32.mrb[0].mxu0
      %v1002 = vadd.f32 %v710, %v1001
      %v1003 = vpop.f32.mrb[0].mxu0
      %v1004 = vpop.f32.mrb[0].mxu0
      %v1005 = vadd.f32 %v713, %v1004
      %v1006 = vpop.f32.mrb[0].mxu0
      %1007 = vmatprep.mubr.bf16.mxu0 0
      %1008 = vmatmul.mubr.bf16.gmra.mrb[0].mxu0 %v850
      %v1009 = vpop.f32.mrb[0].mxu0
      %v1010 = vadd.f32 %v718, %v1009
      %v1011 = vpop.f32.mrb[0].mxu0
      %v1012 = vpop.f32.mrb[0].mxu0
      %v1013 = vadd.f32 %v721, %v1012
      %v1014 = vpop.f32.mrb[0].mxu0
      %1015 = vdwg.mxu0
      %v1016 = vld [vmem:[%s5] sm:$0x1]
      %v1018 = vlaneseq
      %v1019 = vshrl.u32 %v1018, 7
      %v1020 = vsub.s32 0, %v1019
      %v1021 = vrot.slane %v1016, %v1020
      %v1023 = vadd.f32 %v890, %v1021
      %v1024 = vadd.f32 %v893, %v1021
      %v1025 = vadd.f32 %v898, %v1021
      %v1026 = vadd.f32 %v901, %v1021
      %v1027 = vadd.f32 %v906, %v1021
      %v1028 = vadd.f32 %v909, %v1021
      %v1029 = vadd.f32 %v914, %v1021
      %v1030 = vadd.f32 %v917, %v1021
      %v1031 = vadd.f32 %v922, %v1021
      %v1032 = vadd.f32 %v925, %v1021
      %v1033 = vadd.f32 %v930, %v1021
      %v1034 = vadd.f32 %v933, %v1021
      %v1035 = vadd.f32 %v938, %v1021
      %v1036 = vadd.f32 %v941, %v1021
      %v1037 = vadd.f32 %v946, %v1021
      %v1038 = vadd.f32 %v949, %v1021
      %v1039 = vadd.f32 %v954, %v1021
      %v1040 = vadd.f32 %v957, %v1021
      %v1041 = vadd.f32 %v962, %v1021
      %v1042 = vadd.f32 %v965, %v1021
      %v1043 = vadd.f32 %v970, %v1021
      %v1044 = vadd.f32 %v973, %v1021
      %v1045 = vadd.f32 %v978, %v1021
      %v1046 = vadd.f32 %v981, %v1021
      %v1047 = vadd.f32 %v986, %v1021
      %v1048 = vadd.f32 %v989, %v1021
      %v1049 = vadd.f32 %v994, %v1021
      %v1050 = vadd.f32 %v997, %v1021
      %v1051 = vadd.f32 %v1002, %v1021
      %v1052 = vadd.f32 %v1005, %v1021
      %v1053 = vadd.f32 %v1010, %v1021
      %v1054 = vadd.f32 %v1013, %v1021
      %v1055 = vld [vmem:[%s351] sm:$0xff]
      %v1056 = vld [vmem:[%s351 + $0x8] sm:$0xff]
      %v1057 = vld [vmem:[%s351 + $0x10] sm:$0xff]
      %v1058 = vld [vmem:[%s351 + $0x18] sm:$0xff]
      %v1059 = vld [vmem:[%s351 + $0x20] sm:$0xff]
      %v1060 = vld [vmem:[%s351 + $0x28] sm:$0xff]
      %v1061 = vld [vmem:[%s351 + $0x30] sm:$0xff]
      %v1062 = vld [vmem:[%s351 + $0x38] sm:$0xff]
      %v1063 = vld [vmem:[%s351 + $0x40] sm:$0xff]
      %v1064 = vld [vmem:[%s351 + $0x48] sm:$0xff]
      %v1065 = vld [vmem:[%s351 + $0x50] sm:$0xff]
      %v1066 = vld [vmem:[%s351 + $0x58] sm:$0xff]
      %v1067 = vld [vmem:[%s351 + $0x60] sm:$0xff]
      %v1068 = vld [vmem:[%s351 + $0x68] sm:$0xff]
      %v1069 = vld [vmem:[%s351 + $0x70] sm:$0xff]
      %v1070 = vld [vmem:[%s351 + $0x78] sm:$0xff]
      %v1071 = vld [vmem:[%s351 + $0x80] sm:$0xff]
      %v1072 = vld [vmem:[%s351 + $0x88] sm:$0xff]
      %v1073 = vld [vmem:[%s351 + $0x90] sm:$0xff]
      %v1074 = vld [vmem:[%s351 + $0x98] sm:$0xff]
      %v1075 = vld [vmem:[%s351 + $0xa0] sm:$0xff]
      %v1076 = vld [vmem:[%s351 + $0xa8] sm:$0xff]
      %v1077 = vld [vmem:[%s351 + $0xb0] sm:$0xff]
      %v1078 = vld [vmem:[%s351 + $0xb8] sm:$0xff]
      %v1079 = vld [vmem:[%s351 + $0xc0] sm:$0xff]
      %v1080 = vld [vmem:[%s351 + $0xc8] sm:$0xff]
      %v1081 = vld [vmem:[%s351 + $0xd0] sm:$0xff]
      %v1082 = vld [vmem:[%s351 + $0xd8] sm:$0xff]
      %v1083 = vld [vmem:[%s351 + $0xe0] sm:$0xff]
      %v1084 = vld [vmem:[%s351 + $0xe8] sm:$0xff]
      %v1085 = vld [vmem:[%s351 + $0xf0] sm:$0xff]
      %v1086 = vld [vmem:[%s351 + $0xf8] sm:$0xff]
      %v1087 = vadd.f32 %v1023, %v1055
      %v1088 = vadd.f32 %v1024, %v1056
      %v1089 = vadd.f32 %v1025, %v1057
      %v1090 = vadd.f32 %v1026, %v1058
      %v1091 = vadd.f32 %v1027, %v1059
      %v1092 = vadd.f32 %v1028, %v1060
      %v1093 = vadd.f32 %v1029, %v1061
      %v1094 = vadd.f32 %v1030, %v1062
      %v1095 = vadd.f32 %v1031, %v1063
      %v1096 = vadd.f32 %v1032, %v1064
      %v1097 = vadd.f32 %v1033, %v1065
      %v1098 = vadd.f32 %v1034, %v1066
      %v1099 = vadd.f32 %v1035, %v1067
      %v1100 = vadd.f32 %v1036, %v1068
      %v1101 = vadd.f32 %v1037, %v1069
      %v1102 = vadd.f32 %v1038, %v1070
      %v1103 = vadd.f32 %v1039, %v1071
      %v1104 = vadd.f32 %v1040, %v1072
      %v1105 = vadd.f32 %v1041, %v1073
      %v1106 = vadd.f32 %v1042, %v1074
      %v1107 = vadd.f32 %v1043, %v1075
      %v1108 = vadd.f32 %v1044, %v1076
      %v1109 = vadd.f32 %v1045, %v1077
      %v1110 = vadd.f32 %v1046, %v1078
      %v1111 = vadd.f32 %v1047, %v1079
      %v1112 = vadd.f32 %v1048, %v1080
      %v1113 = vadd.f32 %v1049, %v1081
      %v1114 = vadd.f32 %v1050, %v1082
      %v1115 = vadd.f32 %v1051, %v1083
      %v1116 = vadd.f32 %v1052, %v1084
      %v1117 = vadd.f32 %v1053, %v1085
      %v1118 = vadd.f32 %v1054, %v1086
      %1119 = vst.msk [vmem:[%s361] sm:$0xff] %vm510, %v1087
      %1120 = vst.msk [vmem:[%s361 + $0x8] sm:$0xff] %vm510, %v1088
      %1121 = vst.msk [vmem:[%s361 + $0x10] sm:$0xff] %vm510, %v1089
      %1122 = vst.msk [vmem:[%s361 + $0x18] sm:$0xff] %vm510, %v1090
      %1123 = vst.msk [vmem:[%s361 + $0x20] sm:$0xff] %vm510, %v1091
      %1124 = vst.msk [vmem:[%s361 + $0x28] sm:$0xff] %vm510, %v1092
      %1125 = vst.msk [vmem:[%s361 + $0x30] sm:$0xff] %vm510, %v1093
      %1126 = vst.msk [vmem:[%s361 + $0x38] sm:$0xff] %vm510, %v1094
      %1127 = vst.msk [vmem:[%s361 + $0x40] sm:$0xff] %vm510, %v1095
      %1128 = vst.msk [vmem:[%s361 + $0x48] sm:$0xff] %vm510, %v1096
      %1129 = vst.msk [vmem:[%s361 + $0x50] sm:$0xff] %vm510, %v1097
      %1130 = vst.msk [vmem:[%s361 + $0x58] sm:$0xff] %vm510, %v1098
      %1131 = vst.msk [vmem:[%s361 + $0x60] sm:$0xff] %vm510, %v1099
      %1132 = vst.msk [vmem:[%s361 + $0x68] sm:$0xff] %vm510, %v1100
      %1133 = vst.msk [vmem:[%s361 + $0x70] sm:$0xff] %vm510, %v1101
      %1134 = vst.msk [vmem:[%s361 + $0x78] sm:$0xff] %vm510, %v1102
      %1135 = vst.msk [vmem:[%s361 + $0x80] sm:$0xff] %vm510, %v1103
      %1136 = vst.msk [vmem:[%s361 + $0x88] sm:$0xff] %vm510, %v1104
      %1137 = vst.msk [vmem:[%s361 + $0x90] sm:$0xff] %vm510, %v1105
      %1138 = vst.msk [vmem:[%s361 + $0x98] sm:$0xff] %vm510, %v1106
      %1139 = vst.msk [vmem:[%s361 + $0xa0] sm:$0xff] %vm510, %v1107
      %1140 = vst.msk [vmem:[%s361 + $0xa8] sm:$0xff] %vm510, %v1108
      %1141 = vst.msk [vmem:[%s361 + $0xb0] sm:$0xff] %vm510, %v1109
      %1142 = vst.msk [vmem:[%s361 + $0xb8] sm:$0xff] %vm510, %v1110
      %1143 = vst.msk [vmem:[%s361 + $0xc0] sm:$0xff] %vm510, %v1111
      %1144 = vst.msk [vmem:[%s361 + $0xc8] sm:$0xff] %vm510, %v1112
      %1145 = vst.msk [vmem:[%s361 + $0xd0] sm:$0xff] %vm510, %v1113
      %1146 = vst.msk [vmem:[%s361 + $0xd8] sm:$0xff] %vm510, %v1114
      %1147 = vst.msk [vmem:[%s361 + $0xe0] sm:$0xff] %vm510, %v1115
      %1148 = vst.msk [vmem:[%s361 + $0xe8] sm:$0xff] %vm510, %v1116
      %1149 = vst.msk [vmem:[%s361 + $0xf0] sm:$0xff] %vm510, %v1117
      %1150 = vst.msk [vmem:[%s361 + $0xf8] sm:$0xff] %vm510, %v1118
      %s1151 = smul.u32 32, %s22
      %p1152 = scmp.lt.s32.totalorder %s21, 1
      %s1153 = scalar_select %p1152, %s21, 1
      %p1154 = scmp.lt.s32.totalorder %s1151, 31
      %s1155 = scalar_select %p1154, %s1151, 31
      %s1156 = smul.addr %s1153, 32
      %s1157 = sadd.s32 %s1155, %s1156
      %s1158 = smul.addr %s1157, 8
      %s1159 = scalar_lea.vmem %s6, %s1158
      // Predicated region
      $region45: #{residual_split_head_multi_axis_gmlp.7} parent=43 // pred_check
        %p1160 = pneg %p196
      $region46: #{residual_split_head_multi_axis_gmlp.7} parent=43 // pred_check_branch
        %1162 = sbr.rel (%p1160) target = $region48
      $region47: #{residual_split_head_multi_axis_gmlp.7} parent=43 // pred_region
        %s1163 = smul.u32 32, %s22
      $region48: #{residual_split_head_multi_axis_gmlp.7} parent=43 // pred_fallthru
        _
    $region44: #{residual_split_head_multi_axis_gmlp.7} parent=5 // pred_fallthru
      _
    %p1164 = scmp.le.s32.totalorder 2, %s12
    // Predicated region
    $region49: #{residual_split_head_multi_axis_gmlp.7} parent=5 // pred_check
      %p1165 = pneg %p1164
    $region50: #{residual_split_head_multi_axis_gmlp.7} parent=5 // pred_check_branch
      %1167 = sbr.rel (%p1165) target = $region52
    $region51: #{residual_split_head_multi_axis_gmlp.7} parent=5 // pred_region
      %s1168 = ssub.s32 %s12, 2
      // Predicated region
      $region53: #{residual_split_head_multi_axis_gmlp.7} parent=51 // pred_check
        %p1169 = pneg %p202
      $region54: #{residual_split_head_multi_axis_gmlp.7} parent=51 // pred_check_branch
        %1171 = sbr.rel (%p1169) target = $region56
      $region55: #{residual_split_head_multi_axis_gmlp.7} parent=51 // pred_region
        %s1172 = smul.u32 32, %s24
        %p1173 = scmp.lt.s32.totalorder %s23, 1
        %s1174 = scalar_select %p1173, %s23, 1
        %p1175 = scmp.lt.s32.totalorder %s1172, 31
        %s1176 = scalar_select %p1175, %s1172, 31
        %s1177 = smul.addr %s1174, 32
        %s1178 = sadd.s32 %s1176, %s1177
        %s1179 = smul.addr %s1178, 8
        %s1180 = scalar_lea.vmem %s6, %s1179
      $region56: #{residual_split_head_multi_axis_gmlp.7} parent=51 // pred_fallthru
        _
    $region52: #{residual_split_head_multi_axis_gmlp.7} parent=5 // pred_fallthru
      _
  $region6: #{residual_split_head_multi_axis_gmlp.7} parent=0 // loop_footer
    %s16 = sadd.s32 1, %s12
  $region7: #{residual_split_head_multi_axis_gmlp.7} parent=0 // loop_footer_branch
    %11 = sbr.rel target = $region3
  $region8: #{residual_split_head_multi_axis_gmlp.7} parent=0 // loop_exit
    _

// kernel: residual_split_head_multi_axis_gmlp.6
$region0: #{residual_split_head_multi_axis_gmlp.6}
  #allocation0 [shape = 'u32[]', space=smem, size = 0x4, offset = 0x4, fixed_abs, tag = 'smem constant byte address 0x4 - core index']
  #allocation1 [shape = 'u32[144,128]{1,0:T(1,128)}', space=vmem, size = 0x12000, scoped, tag = 'internal scratch']
  %s0 = inlined_call_operand.vmem [shape: bf16[2,4,4,4,4,4], index: 0, kind: input, shape index: {}]
  %s1 = inlined_call_operand.vmem [shape: bf16[4,8], index: 1, kind: input, shape index: {}]
  %s2 = inlined_call_operand.vmem [shape: f32[1,8], index: 2, kind: input, shape index: {}]
  %s3 = inlined_call_operand.vmem [shape: bf16[8,4], index: 3, kind: input, shape index: {}]
  %s4 = inlined_call_operand.vmem [shape: f32[1,4], index: 4, kind: input, shape index: {}]
  %s5 = inlined_call_operand.vmem [shape: bf16[8,8], index: 5, kind: input, shape index: {}]
  %s6 = inlined_call_operand.vmem [shape: f32[1,8], index: 6, kind: input, shape index: {}]
  %s7 = inlined_call_operand.vmem [shape: bf16[8,4], index: 7, kind: input, shape index: {}]
  %s8 = inlined_call_operand.vmem [shape: f32[1,4], index: 8, kind: input, shape index: {}]
  %s9 = inlined_call_operand.vmem [shape: bf16[4,4], index: 9, kind: input, shape index: {}]
  %s10 = inlined_call_operand.vmem [shape: f32[1,4], index: 10, kind: input, shape index: {}]
  %s11 = inlined_call_operand.vmem [shape: bf16[2,4,4,4,4,4], index: 11, kind: output, shape index: {}]
  %s12 = sld [smem:[#allocation0]]
  $region155: #{residual_split_head_multi_axis_gmlp.6} parent=0
    _
  %s14 = ssub.s32 1, %s12
  %s15 = scalar_select 0, %s14, %s12
  $region1: #{residual_split_head_multi_axis_gmlp.6} parent=0
    #allocation2 [shape = 'u8[8192]{0}', space=vmem, size = 0x2000, scoped, tag = 'input window, operand 0']
    #allocation3 [shape = 'u8[8192]{0}', space=vmem, size = 0x2000, scoped, tag = 'output window, operand 0']
    loop: start=0, step=1, limit=34
    $region2: #{residual_split_head_multi_axis_gmlp.6} parent=1 // loop_pre_header
      _
    $region3: #{residual_split_head_multi_axis_gmlp.6} parent=1 // loop_header
      %s17 = sphi 0, %s21
      %p18 = scmp.ge.s32.totalorder %s17, 34
      %s24 = sphi 0, %s43
      %s25 = sphi 0, %s39
      %s26 = sphi 0, %s35
      %s27 = sphi 0, %s24
      %s28 = sphi 0, %s25
      %s29 = sphi 0, %s26
      %s30 = sphi 0, %s27
      %s31 = sphi 0, %s28
      %s32 = sphi 0, %s29
      %s50 = sphi 0, %s52
      %s53 = sphi 0, %s50
      %s54 = sphi 0, %s53
      %s70 = sphi 0, %s54
      %s74 = sphi 0, %s74
      %s76 = sphi 0, %s74
      %s77 = sphi 0, %s76
      %s91 = sphi 0, %s77
      %s95 = sphi 0, %s95
      %s97 = sphi 0, %s95
      %s98 = sphi 0, %s97
      %s112 = sphi 0, %s98
      %s116 = sphi 0, %s116
      %s118 = sphi 0, %s116
      %s119 = sphi 0, %s118
      %s133 = sphi 0, %s119
      %s137 = sphi 0, %s137
      %s139 = sphi 0, %s137
      %s140 = sphi 0, %s139
      %s154 = sphi 0, %s140
      %s158 = sphi 0, %s158
      %s160 = sphi 0, %s158
      %s161 = sphi 0, %s160
      %s175 = sphi 0, %s161
      %s179 = sphi 0, %s179
      %s181 = sphi 0, %s179
      %s182 = sphi 0, %s181
      %s196 = sphi 0, %s182
      %s200 = sphi 0, %s200
      %s202 = sphi 0, %s200
      %s203 = sphi 0, %s202
      %s217 = sphi 0, %s203
      %s221 = sphi 0, %s221
      %s223 = sphi 0, %s221
      %s224 = sphi 0, %s223
      %s238 = sphi 0, %s224
      %s242 = sphi 0, %s242
      %s244 = sphi 0, %s242
      %s245 = sphi 0, %s244
      %s259 = sphi 0, %s245
      %s263 = sphi 0, %s263
      %s265 = sphi 0, %s263
      %s266 = sphi 0, %s265
      %s280 = sphi 0, %s266
      %s290 = sphi 0, %s292
      %s293 = sphi 0, %s290
      %s294 = sphi 0, %s293
      %s310 = sphi 0, %s294
    $region4: #{residual_split_head_multi_axis_gmlp.6} parent=1 // loop_header_branch
      %20 = sbr.rel (%p18) target = $region8
    $region5: #{residual_split_head_multi_axis_gmlp.6} parent=1 // loop_body
      %s22 = ssub.s32 %s17, 1
      %s23 = ssub.s32 %s17, 2
      %s33 = sadd.s32 1, %s26
      %p34 = scmp.ge.s32.totalorder %s33, 4
      %s35 = scalar_select %p34, 0, %s33
      %s36 = sadd.s32 1, %s25
      %s37 = scalar_select %p34, %s36, %s25
      %p38 = scmp.ge.s32.totalorder %s37, 4
      %s39 = scalar_select %p38, 0, %s37
      %s40 = sadd.s32 1, %s24
      %s41 = scalar_select %p38, %s40, %s24
      %p42 = scmp.ge.s32.totalorder %s41, 2
      %s43 = scalar_select %p42, 0, %s41
      %s44 = ssub.s32 %s24, %s43
      %s45 = ssub.s32 %s25, %s39
      %s46 = sor.u32 %s44, %s45
      %s47 = ssub.s32 %s26, %s35
      %s48 = sor.u32 %s46, %s47
      %p49 = scmp.eq.s32.totalorder %s48, 0
      %s51 = sadd.s32 %s50, 1
      %s52 = scalar_select %p49, %s50, %s51
      %p55 = pneg %p49
      %p56 = scmp.eq.s32.totalorder %s17, 31
      %p57 = por %p55, %p56
      %p58 = scmp.ne.s32.totalorder %s50, %s53
      %p59 = scmp.eq.s32.totalorder %s17, 0
      %p60 = por %p58, %p59
      %p61 = scmp.ne.s32.totalorder %s50, %s53
      %p62 = scmp.eq.s32.totalorder %s22, 31
      %p63 = por %p61, %p62
      %p64 = scmp.ne.s32.totalorder %s53, %s54
      %p65 = scmp.eq.s32.totalorder %s22, 0
      %p66 = por %p64, %p65
      %p67 = scmp.ne.s32.totalorder %s53, %s54
      %p68 = scmp.eq.s32.totalorder %s23, 31
      %p69 = por %p67, %p68
      %p71 = scmp.ne.s32.totalorder %s54, %s70
      %p72 = scmp.eq.s32.totalorder %s23, 0
      %p73 = por %p71, %p72
      %s75 = sadd.s32 %s74, 1
      %p78 = scmp.eq.s32.totalorder %s17, 31
      %p79 = scmp.ne.s32.totalorder %s74, %s76
      %p80 = scmp.eq.s32.totalorder %s17, 0
      %p81 = por %p79, %p80
      %p82 = scmp.ne.s32.totalorder %s74, %s76
      %p83 = scmp.eq.s32.totalorder %s22, 31
      %p84 = por %p82, %p83
      %p85 = scmp.ne.s32.totalorder %s76, %s77
      %p86 = scmp.eq.s32.totalorder %s22, 0
      %p87 = por %p85, %p86
      %p88 = scmp.ne.s32.totalorder %s76, %s77
      %p89 = scmp.eq.s32.totalorder %s23, 31
      %p90 = por %p88, %p89
      %p92 = scmp.ne.s32.totalorder %s77, %s91
      %p93 = scmp.eq.s32.totalorder %s23, 0
      %p94 = por %p92, %p93
      %s96 = sadd.s32 %s95, 1
      %p99 = scmp.eq.s32.totalorder %s17, 31
      %p100 = scmp.ne.s32.totalorder %s95, %s97
      %p101 = scmp.eq.s32.totalorder %s17, 0
      %p102 = por %p100, %p101
      %p103 = scmp.ne.s32.totalorder %s95, %s97
      %p104 = scmp.eq.s32.totalorder %s22, 31
      %p105 = por %p103, %p104
      %p106 = scmp.ne.s32.totalorder %s97, %s98
      %p107 = scmp.eq.s32.totalorder %s22, 0
      %p108 = por %p106, %p107
      %p109 = scmp.ne.s32.totalorder %s97, %s98
      %p110 = scmp.eq.s32.totalorder %s23, 31
      %p111 = por %p109, %p110
      %p113 = scmp.ne.s32.totalorder %s98, %s112
      %p114 = scmp.eq.s32.totalorder %s23, 0
      %p115 = por %p113, %p114
      %s117 = sadd.s32 %s116, 1
      %p120 = scmp.eq.s32.totalorder %s17, 31
      %p121 = scmp.ne.s32.totalorder %s116, %s118
      %p122 = scmp.eq.s32.totalorder %s17, 0
      %p123 = por %p121, %p122
      %p124 = scmp.ne.s32.totalorder %s116, %s118
      %p125 = scmp.eq.s32.totalorder %s22, 31
      %p126 = por %p124, %p125
      %p127 = scmp.ne.s32.totalorder %s118, %s119
      %p128 = scmp.eq.s32.totalorder %s22, 0
      %p129 = por %p127, %p128
      %p130 = scmp.ne.s32.totalorder %s118, %s119
      %p131 = scmp.eq.s32.totalorder %s23, 31
      %p132 = por %p130, %p131
      %p134 = scmp.ne.s32.totalorder %s119, %s133
      %p135 = scmp.eq.s32.totalorder %s23, 0
      %p136 = por %p134, %p135
      %s138 = sadd.s32 %s137, 1
      %p141 = scmp.eq.s32.totalorder %s17, 31
      %p142 = scmp.ne.s32.totalorder %s137, %s139
      %p143 = scmp.eq.s32.totalorder %s17, 0
      %p144 = por %p142, %p143
      %p145 = scmp.ne.s32.totalorder %s137, %s139
      %p146 = scmp.eq.s32.totalorder %s22, 31
      %p147 = por %p145, %p146
      %p148 = scmp.ne.s32.totalorder %s139, %s140
      %p149 = scmp.eq.s32.totalorder %s22, 0
      %p150 = por %p148, %p149
      %p151 = scmp.ne.s32.totalorder %s139, %s140
      %p152 = scmp.eq.s32.totalorder %s23, 31
      %p153 = por %p151, %p152
      %p155 = scmp.ne.s32.totalorder %s140, %s154
      %p156 = scmp.eq.s32.totalorder %s23, 0
      %p157 = por %p155, %p156
      %s159 = sadd.s32 %s158, 1
      %p162 = scmp.eq.s32.totalorder %s17, 31
      %p163 = scmp.ne.s32.totalorder %s158, %s160
      %p164 = scmp.eq.s32.totalorder %s17, 0
      %p165 = por %p163, %p164
      %p166 = scmp.ne.s32.totalorder %s158, %s160
      %p167 = scmp.eq.s32.totalorder %s22, 31
      %p168 = por %p166, %p167
      %p169 = scmp.ne.s32.totalorder %s160, %s161
      %p170 = scmp.eq.s32.totalorder %s22, 0
      %p171 = por %p169, %p170
      %p172 = scmp.ne.s32.totalorder %s160, %s161
      %p173 = scmp.eq.s32.totalorder %s23, 31
      %p174 = por %p172, %p173
      %p176 = scmp.ne.s32.totalorder %s161, %s175
      %p177 = scmp.eq.s32.totalorder %s23, 0
      %p178 = por %p176, %p177
      %s180 = sadd.s32 %s179, 1
      %p183 = scmp.eq.s32.totalorder %s17, 31
      %p184 = scmp.ne.s32.totalorder %s179, %s181
      %p185 = scmp.eq.s32.totalorder %s17, 0
      %p186 = por %p184, %p185
      %p187 = scmp.ne.s32.totalorder %s179, %s181
      %p188 = scmp.eq.s32.totalorder %s22, 31
      %p189 = por %p187, %p188
      %p190 = scmp.ne.s32.totalorder %s181, %s182
      %p191 = scmp.eq.s32.totalorder %s22, 0
      %p192 = por %p190, %p191
      %p193 = scmp.ne.s32.totalorder %s181, %s182
      %p194 = scmp.eq.s32.totalorder %s23, 31
      %p195 = por %p193, %p194
      %p197 = scmp.ne.s32.totalorder %s182, %s196
      %p198 = scmp.eq.s32.totalorder %s23, 0
      %p199 = por %p197, %p198
      %s201 = sadd.s32 %s200, 1
      %p204 = scmp.eq.s32.totalorder %s17, 31
      %p205 = scmp.ne.s32.totalorder %s200, %s202
      %p206 = scmp.eq.s32.totalorder %s17, 0
      %p207 = por %p205, %p206
      %p208 = scmp.ne.s32.totalorder %s200, %s202
      %p209 = scmp.eq.s32.totalorder %s22, 31
      %p210 = por %p208, %p209
      %p211 = scmp.ne.s32.totalorder %s202, %s203
      %p212 = scmp.eq.s32.totalorder %s22, 0
      %p213 = por %p211, %p212
      %p214 = scmp.ne.s32.totalorder %s202, %s203
      %p215 = scmp.eq.s32.totalorder %s23, 31
      %p216 = por %p214, %p215
      %p218 = scmp.ne.s32.totalorder %s203, %s217
      %p219 = scmp.eq.s32.totalorder %s23, 0
      %p220 = por %p218, %p219
      %s222 = sadd.s32 %s221, 1
      %p225 = scmp.eq.s32.totalorder %s17, 31
      %p226 = scmp.ne.s32.totalorder %s221, %s223
      %p227 = scmp.eq.s32.totalorder %s17, 0
      %p228 = por %p226, %p227
      %p229 = scmp.ne.s32.totalorder %s221, %s223
      %p230 = scmp.eq.s32.totalorder %s22, 31
      %p231 = por %p229, %p230
      %p232 = scmp.ne.s32.totalorder %s223, %s224
      %p233 = scmp.eq.s32.totalorder %s22, 0
      %p234 = por %p232, %p233
      %p235 = scmp.ne.s32.totalorder %s223, %s224
      %p236 = scmp.eq.s32.totalorder %s23, 31
      %p237 = por %p235, %p236
      %p239 = scmp.ne.s32.totalorder %s224, %s238
      %p240 = scmp.eq.s32.totalorder %s23, 0
      %p241 = por %p239, %p240
      %s243 = sadd.s32 %s242, 1
      %p246 = scmp.eq.s32.totalorder %s17, 31
      %p247 = scmp.ne.s32.totalorder %s242, %s244
      %p248 = scmp.eq.s32.totalorder %s17, 0
      %p249 = por %p247, %p248
      %p250 = scmp.ne.s32.totalorder %s242, %s244
      %p251 = scmp.eq.s32.totalorder %s22, 31
      %p252 = por %p250, %p251
      %p253 = scmp.ne.s32.totalorder %s244, %s245
      %p254 = scmp.eq.s32.totalorder %s22, 0
      %p255 = por %p253, %p254
      %p256 = scmp.ne.s32.totalorder %s244, %s245
      %p257 = scmp.eq.s32.totalorder %s23, 31
      %p258 = por %p256, %p257
      %p260 = scmp.ne.s32.totalorder %s245, %s259
      %p261 = scmp.eq.s32.totalorder %s23, 0
      %p262 = por %p260, %p261
      %s264 = sadd.s32 %s263, 1
      %p267 = scmp.eq.s32.totalorder %s17, 31
      %p268 = scmp.ne.s32.totalorder %s263, %s265
      %p269 = scmp.eq.s32.totalorder %s17, 0
      %p270 = por %p268, %p269
      %p271 = scmp.ne.s32.totalorder %s263, %s265
      %p272 = scmp.eq.s32.totalorder %s22, 31
      %p273 = por %p271, %p272
      %p274 = scmp.ne.s32.totalorder %s265, %s266
      %p275 = scmp.eq.s32.totalorder %s22, 0
      %p276 = por %p274, %p275
      %p277 = scmp.ne.s32.totalorder %s265, %s266
      %p278 = scmp.eq.s32.totalorder %s23, 31
      %p279 = por %p277, %p278
      %p281 = scmp.ne.s32.totalorder %s266, %s280
      %p282 = scmp.eq.s32.totalorder %s23, 0
      %p283 = por %p281, %p282
      %s284 = ssub.s32 %s24, %s43
      %s285 = ssub.s32 %s25, %s39
      %s286 = sor.u32 %s284, %s285
      %s287 = ssub.s32 %s26, %s35
      %s288 = sor.u32 %s286, %s287
      %p289 = scmp.eq.s32.totalorder %s288, 0
      %s291 = sadd.s32 %s290, 1
      %s292 = scalar_select %p289, %s290, %s291
      %p295 = pneg %p289
      %p296 = scmp.eq.s32.totalorder %s17, 31
      %p297 = por %p295, %p296
      %p298 = scmp.ne.s32.totalorder %s290, %s293
      %p299 = scmp.eq.s32.totalorder %s17, 0
      %p300 = por %p298, %p299
      %p301 = scmp.ne.s32.totalorder %s290, %s293
      %p302 = scmp.eq.s32.totalorder %s22, 31
      %p303 = por %p301, %p302
      %p304 = scmp.ne.s32.totalorder %s293, %s294
      %p305 = scmp.eq.s32.totalorder %s22, 0
      %p306 = por %p304, %p305
      %p307 = scmp.ne.s32.totalorder %s293, %s294
      %p308 = scmp.eq.s32.totalorder %s23, 31
      %p309 = por %p307, %p308
      %p311 = scmp.ne.s32.totalorder %s294, %s310
      %p312 = scmp.eq.s32.totalorder %s23, 0
      %p313 = por %p311, %p312
      %p314 = scmp.le.s32.totalorder 1, %s17
      %p315 = scmp.lt.s32.totalorder %s17, 33
      %p316 = pnand %p314, %p315
      %p317 = pneg %p316
      // Predicated region
      $region9: #{residual_split_head_multi_axis_gmlp.6} parent=5 // pred_check
        _
      $region10: #{residual_split_head_multi_axis_gmlp.6} parent=5 // pred_check_branch
        %319 = sbr.rel (%p316) target = $region12
      $region11: #{residual_split_head_multi_axis_gmlp.6} parent=5 // pred_region
        %s320 = ssub.s32 %s17, 1
        // Predicated region
        $region13: #{residual_split_head_multi_axis_gmlp.6} parent=11 // pred_check
          %p321 = pneg %p87
        $region14: #{residual_split_head_multi_axis_gmlp.6} parent=11 // pred_check_branch
          %323 = sbr.rel (%p321) target = $region16
        $region15: #{residual_split_head_multi_axis_gmlp.6} parent=11 // pred_region
          _
        $region16: #{residual_split_head_multi_axis_gmlp.6} parent=11 // pred_fallthru
          _
        // Predicated region
        $region17: #{residual_split_head_multi_axis_gmlp.6} parent=11 // pred_check
          %p324 = pneg %p108
        $region18: #{residual_split_head_multi_axis_gmlp.6} parent=11 // pred_check_branch
          %326 = sbr.rel (%p324) target = $region20
        $region19: #{residual_split_head_multi_axis_gmlp.6} parent=11 // pred_region
          _
        $region20: #{residual_split_head_multi_axis_gmlp.6} parent=11 // pred_fallthru
          _
        // Predicated region
        $region21: #{residual_split_head_multi_axis_gmlp.6} parent=11 // pred_check
          %p327 = pneg %p129
        $region22: #{residual_split_head_multi_axis_gmlp.6} parent=11 // pred_check_branch
          %329 = sbr.rel (%p327) target = $region24
        $region23: #{residual_split_head_multi_axis_gmlp.6} parent=11 // pred_region
          _
        $region24: #{residual_split_head_multi_axis_gmlp.6} parent=11 // pred_fallthru
          _
        // Predicated region
        $region25: #{residual_split_head_multi_axis_gmlp.6} parent=11 // pred_check
          %p330 = pneg %p150
        $region26: #{residual_split_head_multi_axis_gmlp.6} parent=11 // pred_check_branch
          %332 = sbr.rel (%p330) target = $region28
        $region27: #{residual_split_head_multi_axis_gmlp.6} parent=11 // pred_region
          _
        $region28: #{residual_split_head_multi_axis_gmlp.6} parent=11 // pred_fallthru
          _
        // Predicated region
        $region29: #{residual_split_head_multi_axis_gmlp.6} parent=11 // pred_check
          %p333 = pneg %p171
        $region30: #{residual_split_head_multi_axis_gmlp.6} parent=11 // pred_check_branch
          %335 = sbr.rel (%p333) target = $region32
        $region31: #{residual_split_head_multi_axis_gmlp.6} parent=11 // pred_region
          _
        $region32: #{residual_split_head_multi_axis_gmlp.6} parent=11 // pred_fallthru
          _
        // Predicated region
        $region33: #{residual_split_head_multi_axis_gmlp.6} parent=11 // pred_check
          %p336 = pneg %p192
        $region34: #{residual_split_head_multi_axis_gmlp.6} parent=11 // pred_check_branch
          %338 = sbr.rel (%p336) target = $region36
        $region35: #{residual_split_head_multi_axis_gmlp.6} parent=11 // pred_region
          _
        $region36: #{residual_split_head_multi_axis_gmlp.6} parent=11 // pred_fallthru
          _
        // Predicated region
        $region37: #{residual_split_head_multi_axis_gmlp.6} parent=11 // pred_check
          %p339 = pneg %p213
        $region38: #{residual_split_head_multi_axis_gmlp.6} parent=11 // pred_check_branch
          %341 = sbr.rel (%p339) target = $region40
        $region39: #{residual_split_head_multi_axis_gmlp.6} parent=11 // pred_region
          _
        $region40: #{residual_split_head_multi_axis_gmlp.6} parent=11 // pred_fallthru
          _
        // Predicated region
        $region41: #{residual_split_head_multi_axis_gmlp.6} parent=11 // pred_check
          %p342 = pneg %p234
        $region42: #{residual_split_head_multi_axis_gmlp.6} parent=11 // pred_check_branch
          %344 = sbr.rel (%p342) target = $region44
        $region43: #{residual_split_head_multi_axis_gmlp.6} parent=11 // pred_region
          _
        $region44: #{residual_split_head_multi_axis_gmlp.6} parent=11 // pred_fallthru
          _
        // Predicated region
        $region45: #{residual_split_head_multi_axis_gmlp.6} parent=11 // pred_check
          %p345 = pneg %p255
        $region46: #{residual_split_head_multi_axis_gmlp.6} parent=11 // pred_check_branch
          %347 = sbr.rel (%p345) target = $region48
        $region47: #{residual_split_head_multi_axis_gmlp.6} parent=11 // pred_region
          _
        $region48: #{residual_split_head_multi_axis_gmlp.6} parent=11 // pred_fallthru
          _
        // Predicated region
        $region49: #{residual_split_head_multi_axis_gmlp.6} parent=11 // pred_check
          %p348 = pneg %p276
        $region50: #{residual_split_head_multi_axis_gmlp.6} parent=11 // pred_check_branch
          %350 = sbr.rel (%p348) target = $region52
        $region51: #{residual_split_head_multi_axis_gmlp.6} parent=11 // pred_region
          _
        $region52: #{residual_split_head_multi_axis_gmlp.6} parent=11 // pred_fallthru
          _
      $region12: #{residual_split_head_multi_axis_gmlp.6} parent=5 // pred_fallthru
        _
      %p351 = scmp.lt.s32.totalorder %s17, 32
      // Predicated region
      $region53: #{residual_split_head_multi_axis_gmlp.6} parent=5 // pred_check
        %p352 = pneg %p351
      $region54: #{residual_split_head_multi_axis_gmlp.6} parent=5 // pred_check_branch
        %354 = sbr.rel (%p352) target = $region56
      $region55: #{residual_split_head_multi_axis_gmlp.6} parent=5 // pred_region
        // Predicated region
        $region57: #{residual_split_head_multi_axis_gmlp.6} parent=55 // pred_check
          %p355 = pneg %p60
        $region58: #{residual_split_head_multi_axis_gmlp.6} parent=55 // pred_check_branch
          %357 = sbr.rel (%p355) target = $region60
        $region59: #{residual_split_head_multi_axis_gmlp.6} parent=55 // pred_region
          %s358 = sand.u32 %s50, 1
          %s359 = sand.u32 %s50, 1
          %s360 = smul.addr %s359, 8
          %s361 = scalar_lea.vmem [#allocation2], %s360
          %s362 = smul.addr %s25, 16
          %s363 = sadd.s32 %s26, %s362
          %s364 = smul.addr %s24, 64
          %s365 = sadd.s32 %s363, %s364
          %s366 = smul.addr %s365, 2
          %s367 = scalar_lea.vmem %s0, %s366
          // Predicated region
          $region61: #{residual_split_head_multi_axis_gmlp.6} parent=59 // pred_check
            _
          $region62: #{residual_split_head_multi_axis_gmlp.6} parent=59 // pred_check_branch
            %369 = sbr.rel (0) target = $region64
          $region63: #{residual_split_head_multi_axis_gmlp.6} parent=59 // pred_region
            // Predicated region
            $region65: #{residual_split_head_multi_axis_gmlp.6} parent=63 // pred_check
              _
            $region66: #{residual_split_head_multi_axis_gmlp.6} parent=63 // pred_check_branch
              %371 = sbr.rel target = $region68
            $region67: #{residual_split_head_multi_axis_gmlp.6} parent=63 // pred_region
              // Predicated region
              $region80: #{residual_split_head_multi_axis_gmlp.6} parent=67 // pred_check
                _
              $region81: #{residual_split_head_multi_axis_gmlp.6} parent=67 // pred_check_branch
                %392 = sbr.rel (0) target = $region83
              $region82: #{residual_split_head_multi_axis_gmlp.6} parent=67 // pred_region
                loop: start=0, step=1, limit=1
                $region84: #{residual_split_head_multi_axis_gmlp.6} parent=82 // loop_pre_header
                  _
                $region85: #{residual_split_head_multi_axis_gmlp.6} parent=82 // loop_header
                  %s394 = sphi 0, %s398
                  %p395 = scmp.ge.s32.totalorder %s394, 1
                  %s399 = sphi %s367, %s367
                  %s400 = sphi %s361, %s361
                $region86: #{residual_split_head_multi_axis_gmlp.6} parent=82 // loop_header_branch
                  %397 = sbr.rel (%p395) target = $region90
                $region87: #{residual_split_head_multi_axis_gmlp.6} parent=82 // loop_body
                  _
                $region88: #{residual_split_head_multi_axis_gmlp.6} parent=82 // loop_footer
                  %s398 = sadd.s32 1, %s394
                $region89: #{residual_split_head_multi_axis_gmlp.6} parent=82 // loop_footer_branch
                  %393 = sbr.rel target = $region85
                $region90: #{residual_split_head_multi_axis_gmlp.6} parent=82 // loop_exit
                  _
                loop: start=0, step=1, limit=1
                $region91: #{residual_split_head_multi_axis_gmlp.6} parent=82 // loop_pre_header
                  _
                $region92: #{residual_split_head_multi_axis_gmlp.6} parent=82 // loop_header
                  %s403 = sphi 0, %s407
                  %p404 = scmp.ge.s32.totalorder %s403, 1
                  %s408 = sphi %s367, %s367
                  %s409 = sphi %s361, %s361
                $region93: #{residual_split_head_multi_axis_gmlp.6} parent=82 // loop_header_branch
                  %406 = sbr.rel (%p404) target = $region97
                $region94: #{residual_split_head_multi_axis_gmlp.6} parent=82 // loop_body
                  %v410 = vld [vmem:[%s408] sm:$0x3]
                  %411 = vst [vmem:[%s409] sm:$0x3] %v410
                  %v412 = vld [vmem:[%s408 + $0x8] sm:$0x3]
                  %413 = vst [vmem:[%s409 + $0x2] sm:$0x3] %v412
                  %v414 = vld [vmem:[%s408 + $0x10] sm:$0x3]
                  %415 = vst [vmem:[%s409 + $0x4] sm:$0x3] %v414
                  %v416 = vld [vmem:[%s408 + $0x18] sm:$0x3]
                  %417 = vst [vmem:[%s409 + $0x6] sm:$0x3] %v416
                $region95: #{residual_split_head_multi_axis_gmlp.6} parent=82 // loop_footer
                  %s407 = sadd.s32 1, %s403
                $region96: #{residual_split_head_multi_axis_gmlp.6} parent=82 // loop_footer_branch
                  %402 = sbr.rel target = $region92
                $region97: #{residual_split_head_multi_axis_gmlp.6} parent=82 // loop_exit
                  _
              $region83: #{residual_split_head_multi_axis_gmlp.6} parent=67 // pred_fallthru
                _
            $region68: #{residual_split_head_multi_axis_gmlp.6} parent=63 // pred_fallthru
              _
            // Predicated region
            $region69: #{residual_split_head_multi_axis_gmlp.6} parent=63 // pred_check
              _
            $region70: #{residual_split_head_multi_axis_gmlp.6} parent=63 // pred_check_branch
              %373 = sbr.rel (0) target = $region72
            $region71: #{residual_split_head_multi_axis_gmlp.6} parent=63 // pred_region
              loop: start=0, step=1, limit=1
              $region73: #{residual_split_head_multi_axis_gmlp.6} parent=71 // loop_pre_header
                _
              $region74: #{residual_split_head_multi_axis_gmlp.6} parent=71 // loop_header
                %s376 = sphi 0, %s380
                %p377 = scmp.ge.s32.totalorder %s376, 1
                %s381 = sphi %s367, %s367
                %s382 = sphi %s361, %s361
              $region75: #{residual_split_head_multi_axis_gmlp.6} parent=71 // loop_header_branch
                %379 = sbr.rel (%p377) target = $region79
              $region76: #{residual_split_head_multi_axis_gmlp.6} parent=71 // loop_body
                %v383 = vld [vmem:[%s381] sm:$0x3]
                %384 = vst [vmem:[%s382] sm:$0x3] %v383
                %v385 = vld [vmem:[%s381 + $0x8] sm:$0x3]
                %386 = vst [vmem:[%s382 + $0x2] sm:$0x3] %v385
                %v387 = vld [vmem:[%s381 + $0x10] sm:$0x3]
                %388 = vst [vmem:[%s382 + $0x4] sm:$0x3] %v387
                %v389 = vld [vmem:[%s381 + $0x18] sm:$0x3]
                %390 = vst [vmem:[%s382 + $0x6] sm:$0x3] %v389
              $region77: #{residual_split_head_multi_axis_gmlp.6} parent=71 // loop_footer
                %s380 = sadd.s32 1, %s376
              $region78: #{residual_split_head_multi_axis_gmlp.6} parent=71 // loop_footer_branch
                %375 = sbr.rel target = $region74
              $region79: #{residual_split_head_multi_axis_gmlp.6} parent=71 // loop_exit
                _
            $region72: #{residual_split_head_multi_axis_gmlp.6} parent=63 // pred_fallthru
              _
          $region64: #{residual_split_head_multi_axis_gmlp.6} parent=59 // pred_fallthru
            _
          %418 = vnop
        $region60: #{residual_split_head_multi_axis_gmlp.6} parent=55 // pred_fallthru
          _
      $region56: #{residual_split_head_multi_axis_gmlp.6} parent=5 // pred_fallthru
        _
      %p419 = scmp.le.s32.totalorder 1, %s17
      %p420 = scmp.lt.s32.totalorder %s17, 33
      %p421 = pnand %p419, %p420
      %p422 = pneg %p421
      // Predicated region
      $region98: #{residual_split_head_multi_axis_gmlp.6} parent=5 // pred_check
        _
      $region99: #{residual_split_head_multi_axis_gmlp.6} parent=5 // pred_check_branch
        %424 = sbr.rel (%p421) target = $region101
      $region100: #{residual_split_head_multi_axis_gmlp.6} parent=5 // pred_region
        %s425 = ssub.s32 %s17, 1
        %s426 = sand.u32 %s53, 1
        %s427 = sand.u32 %s53, 1
        %s428 = smul.addr %s427, 8
        %s429 = scalar_lea.vmem [#allocation2], %s428
        // Predicated region
        $region102: #{residual_split_head_multi_axis_gmlp.6} parent=100 // pred_check
          %p430 = pneg %p66
        $region103: #{residual_split_head_multi_axis_gmlp.6} parent=100 // pred_check_branch
          %432 = sbr.rel (%p430) target = $region105
        $region104: #{residual_split_head_multi_axis_gmlp.6} parent=100 // pred_region
          _
        $region105: #{residual_split_head_multi_axis_gmlp.6} parent=100 // pred_fallthru
          _
        %s433 = sand.u32 %s53, 1
        %s434 = sand.u32 %s53, 1
        %s435 = smul.addr %s434, 8
        %s436 = scalar_lea.vmem [#allocation2], %s435
        %p437 = pneg %p66
        %p438 = pneg %p63
        %p439 = pneg %p87
        %p440 = pneg %p84
        %p441 = pneg %p108
        %p442 = pneg %p105
        %p443 = pneg %p129
        %p444 = pneg %p126
        %p445 = pneg %p150
        %p446 = pneg %p147
        %p447 = pneg %p171
        %p448 = pneg %p168
        %p449 = pneg %p192
        %p450 = pneg %p189
        %p451 = pneg %p213
        %p452 = pneg %p210
        %p453 = pneg %p234
        %p454 = pneg %p231
        %p455 = pneg %p255
        %p456 = pneg %p252
        %p457 = pneg %p276
        %p458 = pneg %p273
        %p459 = pneg %p306
        %p460 = pneg %p303
        %s461 = sand.u32 %s293, 1
        %s462 = sand.u32 %s293, 1
        %s463 = smul.addr %s462, 8
        %s464 = scalar_lea.vmem [#allocation3], %s463
        %v466 = vld [vmem:[%s429] sm:$0x3]
        %v467 = vld [vmem:[%s429 + $0x2] sm:$0x3]
        %v468 = vld [vmem:[%s429 + $0x4] sm:$0x3]
        %v469 = vld [vmem:[%s429 + $0x6] sm:$0x3]
        %v470 = vunpack.c.l.bf16 %v466
        %v471 = vunpack.c.l.bf16 %v467
        %v472 = vunpack.c.l.bf16 %v468
        %v473 = vunpack.c.l.bf16 %v469
        %v478 = vcombine.low %v470, %v471
        %v479 = vcombine.low %v472, %v473
        %vm482 = vcmask 31744
        %v483 = vsel %vm482, %v478, 0.0
        %484 = vadd.xlane.f32.xlu0 %v483
        %v485 = vpop.xlane.xlu0 %484
        %v486 = vsel %vm482, %v479, 0.0
        %487 = vadd.xlane.f32.xlu0 %v486
        %v488 = vpop.xlane.xlu0 %487
        %v489 = vrcp.pop 4.0
        %v490 = vmul.f32 %v485, %v489
        %v491 = vmul.f32 %v488, %v489
        %v495 = vunpack.c.l.s4 839922192
        %v496 = vunpack.c.0.s8 %v495
        %v497 = vlaneseq
        %v498 = vshrl.u32 %v497, 7
        %v499 = vsub.s32 %v496, %v498
        %v500 = vrot.slane %v490, %v499
        %v502 = vunpack.c.l.s4 1985246804
        %v503 = vunpack.c.0.s8 %v502
        %v504 = vlaneseq
        %v505 = vshrl.u32 %v504, 7
        %v506 = vsub.s32 %v503, %v505
        %v507 = vrot.slane %v490, %v506
        %v509 = vunpack.c.l.s4 839922192
        %v510 = vunpack.c.0.s8 %v509
        %v511 = vlaneseq
        %v512 = vshrl.u32 %v511, 7
        %v513 = vsub.s32 %v510, %v512
        %v514 = vrot.slane %v491, %v513
        %v516 = vunpack.c.l.s4 1985246804
        %v517 = vunpack.c.0.s8 %v516
        %v518 = vlaneseq
        %v519 = vshrl.u32 %v518, 7
        %v520 = vsub.s32 %v517, %v519
        %v521 = vrot.slane %v491, %v520
        %v526 = vsub.f32 %v470, %v500
        %v527 = vsub.f32 %v471, %v507
        %v528 = vsub.f32 %v472, %v514
        %v529 = vsub.f32 %v473, %v521
        %v530 = vmul.f32 %v526, %v526
        %v531 = vmul.f32 %v527, %v527
        %v532 = vmul.f32 %v528, %v528
        %v533 = vmul.f32 %v529, %v529
        %v538 = vcombine.low %v530, %v531
        %v539 = vcombine.low %v532, %v533
        %v542 = vsel %vm482, %v538, 0.0
        %543 = vadd.xlane.f32.xlu0 %v542
        %v544 = vpop.xlane.xlu0 %543
        %v545 = vsel %vm482, %v539, 0.0
        %546 = vadd.xlane.f32.xlu0 %v545
        %v547 = vpop.xlane.xlu0 %546
        %v548 = vmul.f32 %v544, %v489
        %v549 = vmul.f32 %v547, %v489
        %v550 = vadd.f32 %v548, 1e-05
        %v551 = vadd.f32 %v549, 1e-05
        %v552 = vrsqrt.pop %v550
        %v553 = vrsqrt.pop %v551
        %v557 = vunpack.c.l.s4 839922192
        %v558 = vunpack.c.0.s8 %v557
        %v559 = vlaneseq
        %v560 = vshrl.u32 %v559, 7
        %v561 = vsub.s32 %v558, %v560
        %v562 = vrot.slane %v552, %v561
        %v564 = vunpack.c.l.s4 1985246804
        %v565 = vunpack.c.0.s8 %v564
        %v566 = vlaneseq
        %v567 = vshrl.u32 %v566, 7
        %v568 = vsub.s32 %v565, %v567
        %v569 = vrot.slane %v552, %v568
        %v571 = vunpack.c.l.s4 839922192
        %v572 = vunpack.c.0.s8 %v571
        %v573 = vlaneseq
        %v574 = vshrl.u32 %v573, 7
        %v575 = vsub.s32 %v572, %v574
        %v576 = vrot.slane %v553, %v575
        %v578 = vunpack.c.l.s4 1985246804
        %v579 = vunpack.c.0.s8 %v578
        %v580 = vlaneseq
        %v581 = vshrl.u32 %v580, 7
        %v582 = vsub.s32 %v579, %v581
        %v583 = vrot.slane %v553, %v582
        %v588 = vmul.f32 %v526, %v562
        %v589 = vmul.f32 %v527, %v569
        %v590 = vmul.f32 %v528, %v576
        %v591 = vmul.f32 %v529, %v583
        %v592 = vld [vmem:[%s1] sm:$0x3]
        %v593 = vld [vmem:[%s2] sm:$0x1]
        %v598 = vcombine.low %v588, %v589
        %v599 = vcombine.low %v590, %v591
        %v602 = vpack.c.bf16 %v599, %v598
        %v604 = vlaneseq
        %v605 = vshrl.u32 %v604, 7
        %v606 = vsub.s32 0, %v605
        %v607 = vrot.slane %v593, %v606
        %v610 = vsel %vm482, %v602, 0
        %vm612 = vcmask 1041408
        %v614 = vsel %vm612, %v592, 0
        %616 = vmatprep.subr.bf16.mxu0 0
        %617 = vmatpush1.bf16.msra.mxu0 %v614
        %618 = vmatprep.subr.bf16.mxu0 0
        %619 = vmatpush1.bf16.msra.mxu0 0
        %620 = vmatprep.subr.bf16.mxu0 0
        %621 = vmatpush1.bf16.msra.mxu0 0
        %622 = vmatprep.subr.bf16.mxu0 0
        %623 = vmatpush1.bf16.msra.mxu0 0
        %624 = vmatprep.subr.bf16.mxu0 0
        %625 = vmatpush1.bf16.msra.mxu0 0
        %626 = vmatprep.subr.bf16.mxu0 0
        %627 = vmatpush1.bf16.msra.mxu0 0
        %628 = vmatprep.subr.bf16.mxu0 0
        %629 = vmatpush1.bf16.msra.mxu0 0
        %630 = vmatprep.subr.bf16.mxu0 0
        %631 = vmatpush1.bf16.msra.mxu0 0
        %632 = vmatprep.subr.bf16.mxu0 0
        %633 = vmatpush1.bf16.msra.mxu0 0
        %634 = vmatprep.subr.bf16.mxu0 0
        %635 = vmatpush1.bf16.msra.mxu0 0
        %636 = vmatprep.subr.bf16.mxu0 0
        %637 = vmatpush1.bf16.msra.mxu0 0
        %638 = vmatprep.subr.bf16.mxu0 0
        %639 = vmatpush1.bf16.msra.mxu0 0
        %640 = vmatprep.subr.bf16.mxu0 0
        %641 = vmatpush1.bf16.msra.mxu0 0
        %642 = vmatprep.subr.bf16.mxu0 0
        %643 = vmatpush1.bf16.msra.mxu0 0
        %644 = vmatprep.subr.bf16.mxu0 0
        %645 = vmatpush1.bf16.msra.mxu0 0
        %646 = vmatprep.subr.bf16.mxu0 0
        %647 = vmatpush1.bf16.msra.mxu0 0
        %648 = vmatprep.mubr.bf16.mxu0 0
        %649 = vmatmul.mubr.bf16.gmra.mrb[0].mxu0 %v610
        %v650 = vpop.f32.mrb[0].mxu0
        %v651 = vadd.f32 %v607, %v650
        %v652 = vpop.f32.mrb[0].mxu0
        %v653 = vpop.f32.mrb[0].mxu0
        %v654 = vadd.f32 %v607, %v653
        %v655 = vpop.f32.mrb[0].mxu0
        %656 = vdwg.mxu0
        %v657 = vmul.f32 %v651, 0.5
        %v658 = vmul.f32 %v654, 0.5
        %v659 = vmul.f32 %v651, 0.70710677
        %v660 = vmul.f32 %v654, 0.70710677
        %v661 = verf.f32.pop %v659
        %v662 = verf.f32.pop %v660
        %v663 = vadd.f32 %v661, 1.0
        %v664 = vadd.f32 %v662, 1.0
        %v665 = vmul.f32 %v657, %v663
        %v666 = vmul.f32 %v658, %v664
        %vm667 = vcmask 64512
        %v668 = vsel %vm667, %v665, 0.0
        %v669 = vsel %vm667, %v666, 0.0
        %v670 = vadd.f32 %v668, %v669
        %v671 = vrot.slane %v670, 4
        %v672 = vadd.f32 %v670, %v671
        %v673 = vrot.slane %v672, 2
        %v674 = vadd.f32 %v672, %v673
        %v675 = vrot.slane %v674, 1
        %v676 = vadd.f32 %v674, %v675
        %v677 = vrcp.pop 16.0
        %v678 = vmul.f32 %v676, %v677
        %v679 = vsub.f32 %v665, %v678
        %v680 = vsub.f32 %v666, %v678
        %v681 = vmul.f32 %v679, %v679
        %v682 = vmul.f32 %v680, %v680
        %v683 = vsel %vm667, %v681, 0.0
        %v684 = vsel %vm667, %v682, 0.0
        %v685 = vadd.f32 %v683, %v684
        %v686 = vrot.slane %v685, 4
        %v687 = vadd.f32 %v685, %v686
        %v688 = vrot.slane %v687, 2
        %v689 = vadd.f32 %v687, %v688
        %v690 = vrot.slane %v689, 1
        %v691 = vadd.f32 %v689, %v690
        %v692 = vmul.f32 %v691, %v677
        %v693 = vadd.f32 %v692, 1e-05
        %v694 = vrsqrt.pop %v693
        %v695 = vmul.f32 %v679, %v694
        %v696 = vmul.f32 %v680, %v694
        %v697 = vld [vmem:[%s3] sm:$0xf]
        %v698 = vld [vmem:[%s4] sm:$0x1]
        %v699 = vpack.c.bf16 %v696, %v695
        %v701 = vlaneseq
        %v702 = vshrl.u32 %v701, 7
        %v703 = vsub.s32 0, %v702
        %v704 = vrot.slane %v698, %v703
        %v707 = vsel %vm667, %v699, 0
        %vm709 = vcmask 1043456
        %v711 = vsel %vm709, %v697, 0
        %713 = vmatprep.subr.bf16.mxu0 0
        %714 = vmatpush1.bf16.msra.mxu0 %v711
        %715 = vmatprep.subr.bf16.mxu0 0
        %716 = vmatpush1.bf16.msra.mxu0 0
        %717 = vmatprep.subr.bf16.mxu0 0
        %718 = vmatpush1.bf16.msra.mxu0 0
        %719 = vmatprep.subr.bf16.mxu0 0
        %720 = vmatpush1.bf16.msra.mxu0 0
        %721 = vmatprep.subr.bf16.mxu0 0
        %722 = vmatpush1.bf16.msra.mxu0 0
        %723 = vmatprep.subr.bf16.mxu0 0
        %724 = vmatpush1.bf16.msra.mxu0 0
        %725 = vmatprep.subr.bf16.mxu0 0
        %726 = vmatpush1.bf16.msra.mxu0 0
        %727 = vmatprep.subr.bf16.mxu0 0
        %728 = vmatpush1.bf16.msra.mxu0 0
        %729 = vmatprep.subr.bf16.mxu0 0
        %730 = vmatpush1.bf16.msra.mxu0 0
        %731 = vmatprep.subr.bf16.mxu0 0
        %732 = vmatpush1.bf16.msra.mxu0 0
        %733 = vmatprep.subr.bf16.mxu0 0
        %734 = vmatpush1.bf16.msra.mxu0 0
        %735 = vmatprep.subr.bf16.mxu0 0
        %736 = vmatpush1.bf16.msra.mxu0 0
        %737 = vmatprep.subr.bf16.mxu0 0
        %738 = vmatpush1.bf16.msra.mxu0 0
        %739 = vmatprep.subr.bf16.mxu0 0
        %740 = vmatpush1.bf16.msra.mxu0 0
        %741 = vmatprep.subr.bf16.mxu0 0
        %742 = vmatpush1.bf16.msra.mxu0 0
        %743 = vmatprep.subr.bf16.mxu0 0
        %744 = vmatpush1.bf16.msra.mxu0 0
        %745 = vmatprep.mubr.bf16.mxu0 0
        %746 = vmatmul.mubr.bf16.gmra.mrb[0].mxu0 %v707
        %v747 = vpop.f32.mrb[0].mxu0
        %v748 = vadd.f32 %v704, %v747
        %v749 = vpop.f32.mrb[0].mxu0
        %v750 = vpop.f32.mrb[0].mxu0
        %v751 = vadd.f32 %v704, %v750
        %v752 = vpop.f32.mrb[0].mxu0
        %753 = vdwg.mxu0
        %v754 = vadd.f32 %v748, 1.0
        %v755 = vadd.f32 %v751, 1.0
        %v756 = vmul.f32 %v665, %v754
        %v757 = vmul.f32 %v666, %v755
        %v758 = vrot.slane %v668, 4
        %v759 = vadd.f32 %v668, %v758
        %v760 = vrot.slane %v759, 2
        %v761 = vadd.f32 %v759, %v760
        %v762 = vrot.slane %v761, 1
        %v763 = vadd.f32 %v761, %v762
        %v764 = vrcp.pop 8.0
        %v765 = vmul.f32 %v763, %v764
        %v766 = vsub.f32 %v665, %v765
        %v767 = vmul.f32 %v766, %v766
        %v768 = vsel %vm667, %v767, 0.0
        %v769 = vrot.slane %v768, 4
        %v770 = vadd.f32 %v768, %v769
        %v771 = vrot.slane %v770, 2
        %v772 = vadd.f32 %v770, %v771
        %v773 = vrot.slane %v772, 1
        %v774 = vadd.f32 %v772, %v773
        %v775 = vmul.f32 %v774, %v764
        %v776 = vadd.f32 %v775, 1e-05
        %v777 = vrsqrt.pop %v776
        %v778 = vmul.f32 %v766, %v777
        %v779 = vrot.slane %v669, 4
        %v780 = vadd.f32 %v669, %v779
        %v781 = vrot.slane %v780, 2
        %v782 = vadd.f32 %v780, %v781
        %v783 = vrot.slane %v782, 1
        %v784 = vadd.f32 %v782, %v783
        %v785 = vmul.f32 %v784, %v764
        %v786 = vsub.f32 %v666, %v785
        %v787 = vmul.f32 %v786, %v786
        %v788 = vsel %vm667, %v787, 0.0
        %v789 = vrot.slane %v788, 4
        %v790 = vadd.f32 %v788, %v789
        %v791 = vrot.slane %v790, 2
        %v792 = vadd.f32 %v790, %v791
        %v793 = vrot.slane %v792, 1
        %v794 = vadd.f32 %v792, %v793
        %v795 = vmul.f32 %v794, %v764
        %v796 = vadd.f32 %v795, 1e-05
        %v797 = vrsqrt.pop %v796
        %v798 = vmul.f32 %v786, %v797
        %v799 = vld [vmem:[%s5] sm:$0xf]
        %v800 = vld [vmem:[%s6] sm:$0x1]
        %v801 = vpack.c.bf16 %v778, %v778
        %v803 = vlaneseq
        %v804 = vshrl.u32 %v803, 7
        %v805 = vsub.s32 0, %v804
        %v806 = vrot.slane %v800, %v805
        %v809 = vsel %vm667, %v801, 0
        %v812 = vsel %vm709, %v799, 0
        %814 = vmatprep.subr.bf16.mxu0 0
        %815 = vmatpush1.bf16.msra.mxu0 %v812
        %816 = vmatprep.subr.bf16.mxu0 0
        %817 = vmatpush1.bf16.msra.mxu0 0
        %818 = vmatprep.subr.bf16.mxu0 0
        %819 = vmatpush1.bf16.msra.mxu0 0
        %820 = vmatprep.subr.bf16.mxu0 0
        %821 = vmatpush1.bf16.msra.mxu0 0
        %822 = vmatprep.subr.bf16.mxu0 0
        %823 = vmatpush1.bf16.msra.mxu0 0
        %824 = vmatprep.subr.bf16.mxu0 0
        %825 = vmatpush1.bf16.msra.mxu0 0
        %826 = vmatprep.subr.bf16.mxu0 0
        %827 = vmatpush1.bf16.msra.mxu0 0
        %828 = vmatprep.subr.bf16.mxu0 0
        %829 = vmatpush1.bf16.msra.mxu0 0
        %830 = vmatprep.subr.bf16.mxu0 0
        %831 = vmatpush1.bf16.msra.mxu0 0
        %832 = vmatprep.subr.bf16.mxu0 0
        %833 = vmatpush1.bf16.msra.mxu0 0
        %834 = vmatprep.subr.bf16.mxu0 0
        %835 = vmatpush1.bf16.msra.mxu0 0
        %836 = vmatprep.subr.bf16.mxu0 0
        %837 = vmatpush1.bf16.msra.mxu0 0
        %838 = vmatprep.subr.bf16.mxu0 0
        %839 = vmatpush1.bf16.msra.mxu0 0
        %840 = vmatprep.subr.bf16.mxu0 0
        %841 = vmatpush1.bf16.msra.mxu0 0
        %842 = vmatprep.subr.bf16.mxu0 0
        %843 = vmatpush1.bf16.msra.mxu0 0
        %844 = vmatprep.subr.bf16.mxu0 0
        %845 = vmatpush1.bf16.msra.mxu0 0
        %846 = vmatprep.mubr.bf16.mxu0 0
        %847 = vmatmul.mubr.bf16.gmra.mrb[0].mxu0 %v809
        %v848 = vpop.f32.mrb[0].mxu0
        %v849 = vadd.f32 %v806, %v848
        %v850 = vpop.f32.mrb[0].mxu0
        %v851 = vpop.f32.mrb[0].mxu0
        %v852 = vpop.f32.mrb[0].mxu0
        %853 = vdwg.mxu0
        %v854 = vpack.c.bf16 %v798, %v798
        %v856 = vsel %vm667, %v854, 0
        %858 = vmatprep.subr.bf16.mxu0 0
        %859 = vmatpush1.bf16.msra.mxu0 %v812
        %860 = vmatprep.subr.bf16.mxu0 0
        %861 = vmatpush1.bf16.msra.mxu0 0
        %862 = vmatprep.subr.bf16.mxu0 0
        %863 = vmatpush1.bf16.msra.mxu0 0
        %864 = vmatprep.subr.bf16.mxu0 0
        %865 = vmatpush1.bf16.msra.mxu0 0
        %866 = vmatprep.subr.bf16.mxu0 0
        %867 = vmatpush1.bf16.msra.mxu0 0
        %868 = vmatprep.subr.bf16.mxu0 0
        %869 = vmatpush1.bf16.msra.mxu0 0
        %870 = vmatprep.subr.bf16.mxu0 0
        %871 = vmatpush1.bf16.msra.mxu0 0
        %872 = vmatprep.subr.bf16.mxu0 0
        %873 = vmatpush1.bf16.msra.mxu0 0
        %874 = vmatprep.subr.bf16.mxu0 0
        %875 = vmatpush1.bf16.msra.mxu0 0
        %876 = vmatprep.subr.bf16.mxu0 0
        %877 = vmatpush1.bf16.msra.mxu0 0
        %878 = vmatprep.subr.bf16.mxu0 0
        %879 = vmatpush1.bf16.msra.mxu0 0
        %880 = vmatprep.subr.bf16.mxu0 0
        %881 = vmatpush1.bf16.msra.mxu0 0
        %882 = vmatprep.subr.bf16.mxu0 0
        %883 = vmatpush1.bf16.msra.mxu0 0
        %884 = vmatprep.subr.bf16.mxu0 0
        %885 = vmatpush1.bf16.msra.mxu0 0
        %886 = vmatprep.subr.bf16.mxu0 0
        %887 = vmatpush1.bf16.msra.mxu0 0
        %888 = vmatprep.subr.bf16.mxu0 0
        %889 = vmatpush1.bf16.msra.mxu0 0
        %890 = vmatprep.mubr.bf16.mxu0 0
        %891 = vmatmul.mubr.bf16.gmra.mrb[0].mxu0 %v856
        %v892 = vpop.f32.mrb[0].mxu0
        %v893 = vadd.f32 %v806, %v892
        %v894 = vpop.f32.mrb[0].mxu0
        %v895 = vpop.f32.mrb[0].mxu0
        %v896 = vpop.f32.mrb[0].mxu0
        %897 = vdwg.mxu0
        %v898 = vadd.f32 %v893, 1.0
        %v899 = vmul.f32 %v778, %v898
        %v900 = vadd.f32 %v849, 1.0
        %v901 = vmul.f32 %v798, %v900
        %v902 = vld [vmem:[%s7] sm:$0xf]
        %v903 = vld [vmem:[%s8] sm:$0x1]
        %v904 = vpack.c.bf16 %v901, %v899
        %v906 = vlaneseq
        %v907 = vshrl.u32 %v906, 7
        %v908 = vsub.s32 0, %v907
        %v909 = vrot.slane %v903, %v908
        %v912 = vsel %vm667, %v904, 0
        %v915 = vsel %vm709, %v902, 0
        %917 = vmatprep.subr.bf16.mxu0 0
        %918 = vmatpush1.bf16.msra.mxu0 %v915
        %919 = vmatprep.subr.bf16.mxu0 0
        %920 = vmatpush1.bf16.msra.mxu0 0
        %921 = vmatprep.subr.bf16.mxu0 0
        %922 = vmatpush1.bf16.msra.mxu0 0
        %923 = vmatprep.subr.bf16.mxu0 0
        %924 = vmatpush1.bf16.msra.mxu0 0
        %925 = vmatprep.subr.bf16.mxu0 0
        %926 = vmatpush1.bf16.msra.mxu0 0
        %927 = vmatprep.subr.bf16.mxu0 0
        %928 = vmatpush1.bf16.msra.mxu0 0
        %929 = vmatprep.subr.bf16.mxu0 0
        %930 = vmatpush1.bf16.msra.mxu0 0
        %931 = vmatprep.subr.bf16.mxu0 0
        %932 = vmatpush1.bf16.msra.mxu0 0
        %933 = vmatprep.subr.bf16.mxu0 0
        %934 = vmatpush1.bf16.msra.mxu0 0
        %935 = vmatprep.subr.bf16.mxu0 0
        %936 = vmatpush1.bf16.msra.mxu0 0
        %937 = vmatprep.subr.bf16.mxu0 0
        %938 = vmatpush1.bf16.msra.mxu0 0
        %939 = vmatprep.subr.bf16.mxu0 0
        %940 = vmatpush1.bf16.msra.mxu0 0
        %941 = vmatprep.subr.bf16.mxu0 0
        %942 = vmatpush1.bf16.msra.mxu0 0
        %943 = vmatprep.subr.bf16.mxu0 0
        %944 = vmatpush1.bf16.msra.mxu0 0
        %945 = vmatprep.subr.bf16.mxu0 0
        %946 = vmatpush1.bf16.msra.mxu0 0
        %947 = vmatprep.subr.bf16.mxu0 0
        %948 = vmatpush1.bf16.msra.mxu0 0
        %949 = vmatprep.mubr.bf16.mxu0 0
        %950 = vmatmul.mubr.bf16.gmra.mrb[0].mxu0 %v912
        %v951 = vpop.f32.mrb[0].mxu0
        %v952 = vadd.f32 %v909, %v951
        %v953 = vpop.f32.mrb[0].mxu0
        %v954 = vpop.f32.mrb[0].mxu0
        %v955 = vadd.f32 %v909, %v954
        %v956 = vpop.f32.mrb[0].mxu0
        %957 = vdwg.mxu0
        %v958 = vadd.f32 %v756, %v952
        %v959 = vadd.f32 %v757, %v955
        %v960 = vld [vmem:[%s9] sm:$0x3]
        %v961 = vld [vmem:[%s10] sm:$0x1]
        %v962 = vpack.c.bf16 %v959, %v958
        %v964 = vlaneseq
        %v965 = vshrl.u32 %v964, 7
        %v966 = vsub.s32 0, %v965
        %v967 = vrot.slane %v961, %v966
        %v970 = vsel %vm482, %v962, 0
        %v973 = vsel %vm612, %v960, 0
        %975 = vmatprep.subr.bf16.mxu0 0
        %976 = vmatpush1.bf16.msra.mxu0 %v973
        %977 = vmatprep.subr.bf16.mxu0 0
        %978 = vmatpush1.bf16.msra.mxu0 0
        %979 = vmatprep.subr.bf16.mxu0 0
        %980 = vmatpush1.bf16.msra.mxu0 0
        %981 = vmatprep.subr.bf16.mxu0 0
        %982 = vmatpush1.bf16.msra.mxu0 0
        %983 = vmatprep.subr.bf16.mxu0 0
        %984 = vmatpush1.bf16.msra.mxu0 0
        %985 = vmatprep.subr.bf16.mxu0 0
        %986 = vmatpush1.bf16.msra.mxu0 0
        %987 = vmatprep.subr.bf16.mxu0 0
        %988 = vmatpush1.bf16.msra.mxu0 0
        %989 = vmatprep.subr.bf16.mxu0 0
        %990 = vmatpush1.bf16.msra.mxu0 0
        %991 = vmatprep.subr.bf16.mxu0 0
        %992 = vmatpush1.bf16.msra.mxu0 0
        %993 = vmatprep.subr.bf16.mxu0 0
        %994 = vmatpush1.bf16.msra.mxu0 0
        %995 = vmatprep.subr.bf16.mxu0 0
        %996 = vmatpush1.bf16.msra.mxu0 0
        %997 = vmatprep.subr.bf16.mxu0 0
        %998 = vmatpush1.bf16.msra.mxu0 0
        %999 = vmatprep.subr.bf16.mxu0 0
        %1000 = vmatpush1.bf16.msra.mxu0 0
        %1001 = vmatprep.subr.bf16.mxu0 0
        %1002 = vmatpush1.bf16.msra.mxu0 0
        %1003 = vmatprep.subr.bf16.mxu0 0
        %1004 = vmatpush1.bf16.msra.mxu0 0
        %1005 = vmatprep.subr.bf16.mxu0 0
        %1006 = vmatpush1.bf16.msra.mxu0 0
        %1007 = vmatprep.mubr.bf16.mxu0 0
        %1008 = vmatmul.mubr.bf16.gmra.mrb[0].mxu0 %v970
        %v1009 = vpop.f32.mrb[0].mxu0
        %v1010 = vadd.f32 %v967, %v1009
        %v1011 = vpop.f32.mrb[0].mxu0
        %v1012 = vpop.f32.mrb[0].mxu0
        %v1013 = vadd.f32 %v967, %v1012
        %v1014 = vpop.f32.mrb[0].mxu0
        %1015 = vdwg.mxu0
        %v1018 = vcombine.high %v1010, %v1010
        %v1019 = vcombine.high %v1013, %v1013
        %v1022 = vadd.f32 %v470, %v1010
        %v1023 = vadd.f32 %v471, %v1018
        %v1024 = vadd.f32 %v472, %v1013
        %v1025 = vadd.f32 %v473, %v1019
        %v1026 = vpack.c.bf16 %v1022, %v1022
        %v1027 = vpack.c.bf16 %v1023, %v1023
        %v1028 = vpack.c.bf16 %v1024, %v1024
        %v1029 = vpack.c.bf16 %v1025, %v1025
        %vm1030 = vcmask 25600
        %1031 = vst.msk [vmem:[%s464] sm:$0x3] %vm1030, %v1026
        %1032 = vst.msk [vmem:[%s464 + $0x2] sm:$0x3] %vm1030, %v1027
        %1033 = vst.msk [vmem:[%s464 + $0x4] sm:$0x3] %vm1030, %v1028
        %1034 = vst.msk [vmem:[%s464 + $0x6] sm:$0x3] %vm1030, %v1029
        %s1035 = sand.u32 %s293, 1
        %s1036 = sand.u32 %s293, 1
        %s1037 = smul.addr %s1036, 8
        %s1038 = scalar_lea.vmem [#allocation3], %s1037
        // Predicated region
        $region106: #{residual_split_head_multi_axis_gmlp.6} parent=100 // pred_check
          %p1039 = pneg %p303
        $region107: #{residual_split_head_multi_axis_gmlp.6} parent=100 // pred_check_branch
          %1041 = sbr.rel (%p1039) target = $region109
        $region108: #{residual_split_head_multi_axis_gmlp.6} parent=100 // pred_region
          %s1042 = smul.addr %s28, 16
          %s1043 = sadd.s32 %s29, %s1042
          %s1044 = smul.addr %s27, 64
          %s1045 = sadd.s32 %s1043, %s1044
          %s1046 = smul.addr %s1045, 2
          %s1047 = scalar_lea.vmem %s11, %s1046
          // Predicated region
          $region110: #{residual_split_head_multi_axis_gmlp.6} parent=108 // pred_check
            _
          $region111: #{residual_split_head_multi_axis_gmlp.6} parent=108 // pred_check_branch
            %1049 = sbr.rel (0) target = $region113
          $region112: #{residual_split_head_multi_axis_gmlp.6} parent=108 // pred_region
            // Predicated region
            $region114: #{residual_split_head_multi_axis_gmlp.6} parent=112 // pred_check
              _
            $region115: #{residual_split_head_multi_axis_gmlp.6} parent=112 // pred_check_branch
              %1051 = sbr.rel target = $region117
            $region116: #{residual_split_head_multi_axis_gmlp.6} parent=112 // pred_region
              // Predicated region
              $region129: #{residual_split_head_multi_axis_gmlp.6} parent=116 // pred_check
                _
              $region130: #{residual_split_head_multi_axis_gmlp.6} parent=116 // pred_check_branch
                %1072 = sbr.rel (0) target = $region132
              $region131: #{residual_split_head_multi_axis_gmlp.6} parent=116 // pred_region
                loop: start=0, step=1, limit=1
                $region133: #{residual_split_head_multi_axis_gmlp.6} parent=131 // loop_pre_header
                  _
                $region134: #{residual_split_head_multi_axis_gmlp.6} parent=131 // loop_header
                  %s1074 = sphi 0, %s1078
                  %p1075 = scmp.ge.s32.totalorder %s1074, 1
                  %s1079 = sphi %s1038, %s1038
                  %s1080 = sphi %s1047, %s1047
                $region135: #{residual_split_head_multi_axis_gmlp.6} parent=131 // loop_header_branch
                  %1077 = sbr.rel (%p1075) target = $region139
                $region136: #{residual_split_head_multi_axis_gmlp.6} parent=131 // loop_body
                  _
                $region137: #{residual_split_head_multi_axis_gmlp.6} parent=131 // loop_footer
                  %s1078 = sadd.s32 1, %s1074
                $region138: #{residual_split_head_multi_axis_gmlp.6} parent=131 // loop_footer_branch
                  %1073 = sbr.rel target = $region134
                $region139: #{residual_split_head_multi_axis_gmlp.6} parent=131 // loop_exit
                  _
                loop: start=0, step=1, limit=1
                $region140: #{residual_split_head_multi_axis_gmlp.6} parent=131 // loop_pre_header
                  _
                $region141: #{residual_split_head_multi_axis_gmlp.6} parent=131 // loop_header
                  %s1083 = sphi 0, %s1087
                  %p1084 = scmp.ge.s32.totalorder %s1083, 1
                  %s1088 = sphi %s1038, %s1038
                  %s1089 = sphi %s1047, %s1047
                $region142: #{residual_split_head_multi_axis_gmlp.6} parent=131 // loop_header_branch
                  %1086 = sbr.rel (%p1084) target = $region146
                $region143: #{residual_split_head_multi_axis_gmlp.6} parent=131 // loop_body
                  %v1090 = vld [vmem:[%s1088] sm:$0x3]
                  %1091 = vst [vmem:[%s1089] sm:$0x3] %v1090
                  %v1092 = vld [vmem:[%s1088 + $0x2] sm:$0x3]
                  %1093 = vst [vmem:[%s1089 + $0x8] sm:$0x3] %v1092
                  %v1094 = vld [vmem:[%s1088 + $0x4] sm:$0x3]
                  %1095 = vst [vmem:[%s1089 + $0x10] sm:$0x3] %v1094
                  %v1096 = vld [vmem:[%s1088 + $0x6] sm:$0x3]
                  %1097 = vst [vmem:[%s1089 + $0x18] sm:$0x3] %v1096
                $region144: #{residual_split_head_multi_axis_gmlp.6} parent=131 // loop_footer
                  %s1087 = sadd.s32 1, %s1083
                $region145: #{residual_split_head_multi_axis_gmlp.6} parent=131 // loop_footer_branch
                  %1082 = sbr.rel target = $region141
                $region146: #{residual_split_head_multi_axis_gmlp.6} parent=131 // loop_exit
                  _
              $region132: #{residual_split_head_multi_axis_gmlp.6} parent=116 // pred_fallthru
                _
            $region117: #{residual_split_head_multi_axis_gmlp.6} parent=112 // pred_fallthru
              _
            // Predicated region
            $region118: #{residual_split_head_multi_axis_gmlp.6} parent=112 // pred_check
              _
            $region119: #{residual_split_head_multi_axis_gmlp.6} parent=112 // pred_check_branch
              %1053 = sbr.rel (0) target = $region121
            $region120: #{residual_split_head_multi_axis_gmlp.6} parent=112 // pred_region
              loop: start=0, step=1, limit=1
              $region122: #{residual_split_head_multi_axis_gmlp.6} parent=120 // loop_pre_header
                _
              $region123: #{residual_split_head_multi_axis_gmlp.6} parent=120 // loop_header
                %s1056 = sphi 0, %s1060
                %p1057 = scmp.ge.s32.totalorder %s1056, 1
                %s1061 = sphi %s1038, %s1038
                %s1062 = sphi %s1047, %s1047
              $region124: #{residual_split_head_multi_axis_gmlp.6} parent=120 // loop_header_branch
                %1059 = sbr.rel (%p1057) target = $region128
              $region125: #{residual_split_head_multi_axis_gmlp.6} parent=120 // loop_body
                %v1063 = vld [vmem:[%s1061] sm:$0x3]
                %1064 = vst [vmem:[%s1062] sm:$0x3] %v1063
                %v1065 = vld [vmem:[%s1061 + $0x2] sm:$0x3]
                %1066 = vst [vmem:[%s1062 + $0x8] sm:$0x3] %v1065
                %v1067 = vld [vmem:[%s1061 + $0x4] sm:$0x3]
                %1068 = vst [vmem:[%s1062 + $0x10] sm:$0x3] %v1067
                %v1069 = vld [vmem:[%s1061 + $0x6] sm:$0x3]
                %1070 = vst [vmem:[%s1062 + $0x18] sm:$0x3] %v1069
              $region126: #{residual_split_head_multi_axis_gmlp.6} parent=120 // loop_footer
                %s1060 = sadd.s32 1, %s1056
              $region127: #{residual_split_head_multi_axis_gmlp.6} parent=120 // loop_footer_branch
                %1055 = sbr.rel target = $region123
              $region128: #{residual_split_head_multi_axis_gmlp.6} parent=120 // loop_exit
                _
            $region121: #{residual_split_head_multi_axis_gmlp.6} parent=112 // pred_fallthru
              _
          $region113: #{residual_split_head_multi_axis_gmlp.6} parent=108 // pred_fallthru
            _
          %1098 = vnop
        $region109: #{residual_split_head_multi_axis_gmlp.6} parent=100 // pred_fallthru
          _
      $region101: #{residual_split_head_multi_axis_gmlp.6} parent=5 // pred_fallthru
        _
      %p1099 = scmp.le.s32.totalorder 2, %s17
      // Predicated region
      $region147: #{residual_split_head_multi_axis_gmlp.6} parent=5 // pred_check
        %p1100 = pneg %p1099
      $region148: #{residual_split_head_multi_axis_gmlp.6} parent=5 // pred_check_branch
        %1102 = sbr.rel (%p1100) target = $region150
      $region149: #{residual_split_head_multi_axis_gmlp.6} parent=5 // pred_region
        %s1103 = ssub.s32 %s17, 2
        // Predicated region
        $region151: #{residual_split_head_multi_axis_gmlp.6} parent=149 // pred_check
          %p1104 = pneg %p309
        $region152: #{residual_split_head_multi_axis_gmlp.6} parent=149 // pred_check_branch
          %1106 = sbr.rel (%p1104) target = $region154
        $region153: #{residual_split_head_multi_axis_gmlp.6} parent=149 // pred_region
          %s1107 = sand.u32 %s294, 1
          %s1108 = sand.u32 %s294, 1
          %s1109 = smul.addr %s1108, 8
          %s1110 = scalar_lea.vmem [#allocation3], %s1109
        $region154: #{residual_split_head_multi_axis_gmlp.6} parent=149 // pred_fallthru
          _
      $region150: #{residual_split_head_multi_axis_gmlp.6} parent=5 // pred_fallthru
        _
    $region6: #{residual_split_head_multi_axis_gmlp.6} parent=1 // loop_footer
      %s21 = sadd.s32 1, %s17
    $region7: #{residual_split_head_multi_axis_gmlp.6} parent=1 // loop_footer_branch
      %16 = sbr.rel target = $region3
    $region8: #{residual_split_head_multi_axis_gmlp.6} parent=1 // loop_exit
      _

// kernel: residual_split_head_multi_axis_gmlp.4
$region0: #{residual_split_head_multi_axis_gmlp.4}
  #allocation0 [shape = 'u32[]', space=smem, size = 0x4, offset = 0x4, fixed_abs, tag = 'smem constant byte address 0x4 - core index']
  #allocation1 [shape = 'u32[144,128]{1,0:T(1,128)}', space=vmem, size = 0x12000, scoped, tag = 'internal scratch']
  %s0 = inlined_call_operand.vmem [shape: f32[2,16,16,4], index: 0, kind: input, shape index: {}]
  %s1 = inlined_call_operand.vmem [shape: bf16[4,4], index: 1, kind: input, shape index: {}]
  %s2 = inlined_call_operand.vmem [shape: bf16[4,4], index: 2, kind: input, shape index: {}]
  %s3 = inlined_call_operand.vmem [shape: f32[1,4], index: 3, kind: input, shape index: {}]
  %s4 = inlined_call_operand.vmem [shape: f32[1,4], index: 4, kind: input, shape index: {}]
  %s5 = inlined_call_operand.vmem [shape: bf16[2,16,16,4], index: 5, kind: output, shape index: {0}]
  %s6 = inlined_call_operand.vmem [shape: bf16[2,16,16,4], index: 6, kind: output, shape index: {1}]
  %7 = xla_tuple %s5, %s6
  %s8 = sld [smem:[#allocation0]]
  $region61: #{residual_split_head_multi_axis_gmlp.4} parent=0
    _
  %s10 = ssub.s32 1, %s8
  %s11 = scalar_select 0, %s10, %s8
  loop: start=0, step=1, limit=4
  $region2: #{residual_split_head_multi_axis_gmlp.4} parent=0 // loop_pre_header
    _
  $region3: #{residual_split_head_multi_axis_gmlp.4} parent=0 // loop_header
    %s13 = sphi 0, %s17
    %p14 = scmp.ge.s32.totalorder %s13, 4
    %s20 = sphi 0, %s32
    %s21 = sphi 0, %s28
    %s22 = sphi 0, %s20
    %s23 = sphi 0, %s21
    %s24 = sphi 0, %s22
    %s25 = sphi 0, %s23
    %s37 = sphi 0, %s39
    %s40 = sphi 0, %s37
    %s41 = sphi 0, %s40
    %s57 = sphi 0, %s41
    %s61 = sphi 0, %s61
    %s63 = sphi 0, %s61
    %s64 = sphi 0, %s63
    %s78 = sphi 0, %s64
    %s82 = sphi 0, %s82
    %s84 = sphi 0, %s82
    %s85 = sphi 0, %s84
    %s99 = sphi 0, %s85
    %s103 = sphi 0, %s103
    %s105 = sphi 0, %s103
    %s106 = sphi 0, %s105
    %s120 = sphi 0, %s106
    %s124 = sphi 0, %s124
    %s126 = sphi 0, %s124
    %s127 = sphi 0, %s126
    %s141 = sphi 0, %s127
    %s149 = sphi 0, %s151
    %s152 = sphi 0, %s149
    %s153 = sphi 0, %s152
    %s169 = sphi 0, %s153
    %s177 = sphi 0, %s179
    %s180 = sphi 0, %s177
    %s181 = sphi 0, %s180
    %s197 = sphi 0, %s181
  $region4: #{residual_split_head_multi_axis_gmlp.4} parent=0 // loop_header_branch
    %16 = sbr.rel (%p14) target = $region8
  $region5: #{residual_split_head_multi_axis_gmlp.4} parent=0 // loop_body
    %s18 = ssub.s32 %s13, 1
    %s19 = ssub.s32 %s13, 2
    %s26 = sadd.s32 1, %s21
    %p27 = scmp.ge.s32.totalorder %s26, 1
    %s28 = scalar_select %p27, 0, %s26
    %s29 = sadd.s32 1, %s20
    %s30 = scalar_select %p27, %s29, %s20
    %p31 = scmp.ge.s32.totalorder %s30, 2
    %s32 = scalar_select %p31, 0, %s30
    %s33 = ssub.s32 %s20, %s32
    %s34 = ssub.s32 %s21, %s28
    %s35 = sor.u32 %s33, %s34
    %p36 = scmp.eq.s32.totalorder %s35, 0
    %s38 = sadd.s32 %s37, 1
    %s39 = scalar_select %p36, %s37, %s38
    %p42 = pneg %p36
    %p43 = scmp.eq.s32.totalorder %s13, 1
    %p44 = por %p42, %p43
    %p45 = scmp.ne.s32.totalorder %s37, %s40
    %p46 = scmp.eq.s32.totalorder %s13, 0
    %p47 = por %p45, %p46
    %p48 = scmp.ne.s32.totalorder %s37, %s40
    %p49 = scmp.eq.s32.totalorder %s18, 1
    %p50 = por %p48, %p49
    %p51 = scmp.ne.s32.totalorder %s40, %s41
    %p52 = scmp.eq.s32.totalorder %s18, 0
    %p53 = por %p51, %p52
    %p54 = scmp.ne.s32.totalorder %s40, %s41
    %p55 = scmp.eq.s32.totalorder %s19, 1
    %p56 = por %p54, %p55
    %p58 = scmp.ne.s32.totalorder %s41, %s57
    %p59 = scmp.eq.s32.totalorder %s19, 0
    %p60 = por %p58, %p59
    %s62 = sadd.s32 %s61, 1
    %p65 = scmp.eq.s32.totalorder %s13, 1
    %p66 = scmp.ne.s32.totalorder %s61, %s63
    %p67 = scmp.eq.s32.totalorder %s13, 0
    %p68 = por %p66, %p67
    %p69 = scmp.ne.s32.totalorder %s61, %s63
    %p70 = scmp.eq.s32.totalorder %s18, 1
    %p71 = por %p69, %p70
    %p72 = scmp.ne.s32.totalorder %s63, %s64
    %p73 = scmp.eq.s32.totalorder %s18, 0
    %p74 = por %p72, %p73
    %p75 = scmp.ne.s32.totalorder %s63, %s64
    %p76 = scmp.eq.s32.totalorder %s19, 1
    %p77 = por %p75, %p76
    %p79 = scmp.ne.s32.totalorder %s64, %s78
    %p80 = scmp.eq.s32.totalorder %s19, 0
    %p81 = por %p79, %p80
    %s83 = sadd.s32 %s82, 1
    %p86 = scmp.eq.s32.totalorder %s13, 1
    %p87 = scmp.ne.s32.totalorder %s82, %s84
    %p88 = scmp.eq.s32.totalorder %s13, 0
    %p89 = por %p87, %p88
    %p90 = scmp.ne.s32.totalorder %s82, %s84
    %p91 = scmp.eq.s32.totalorder %s18, 1
    %p92 = por %p90, %p91
    %p93 = scmp.ne.s32.totalorder %s84, %s85
    %p94 = scmp.eq.s32.totalorder %s18, 0
    %p95 = por %p93, %p94
    %p96 = scmp.ne.s32.totalorder %s84, %s85
    %p97 = scmp.eq.s32.totalorder %s19, 1
    %p98 = por %p96, %p97
    %p100 = scmp.ne.s32.totalorder %s85, %s99
    %p101 = scmp.eq.s32.totalorder %s19, 0
    %p102 = por %p100, %p101
    %s104 = sadd.s32 %s103, 1
    %p107 = scmp.eq.s32.totalorder %s13, 1
    %p108 = scmp.ne.s32.totalorder %s103, %s105
    %p109 = scmp.eq.s32.totalorder %s13, 0
    %p110 = por %p108, %p109
    %p111 = scmp.ne.s32.totalorder %s103, %s105
    %p112 = scmp.eq.s32.totalorder %s18, 1
    %p113 = por %p111, %p112
    %p114 = scmp.ne.s32.totalorder %s105, %s106
    %p115 = scmp.eq.s32.totalorder %s18, 0
    %p116 = por %p114, %p115
    %p117 = scmp.ne.s32.totalorder %s105, %s106
    %p118 = scmp.eq.s32.totalorder %s19, 1
    %p119 = por %p117, %p118
    %p121 = scmp.ne.s32.totalorder %s106, %s120
    %p122 = scmp.eq.s32.totalorder %s19, 0
    %p123 = por %p121, %p122
    %s125 = sadd.s32 %s124, 1
    %p128 = scmp.eq.s32.totalorder %s13, 1
    %p129 = scmp.ne.s32.totalorder %s124, %s126
    %p130 = scmp.eq.s32.totalorder %s13, 0
    %p131 = por %p129, %p130
    %p132 = scmp.ne.s32.totalorder %s124, %s126
    %p133 = scmp.eq.s32.totalorder %s18, 1
    %p134 = por %p132, %p133
    %p135 = scmp.ne.s32.totalorder %s126, %s127
    %p136 = scmp.eq.s32.totalorder %s18, 0
    %p137 = por %p135, %p136
    %p138 = scmp.ne.s32.totalorder %s126, %s127
    %p139 = scmp.eq.s32.totalorder %s19, 1
    %p140 = por %p138, %p139
    %p142 = scmp.ne.s32.totalorder %s127, %s141
    %p143 = scmp.eq.s32.totalorder %s19, 0
    %p144 = por %p142, %p143
    %s145 = ssub.s32 %s20, %s32
    %s146 = ssub.s32 %s21, %s28
    %s147 = sor.u32 %s145, %s146
    %p148 = scmp.eq.s32.totalorder %s147, 0
    %s150 = sadd.s32 %s149, 1
    %s151 = scalar_select %p148, %s149, %s150
    %p154 = pneg %p148
    %p155 = scmp.eq.s32.totalorder %s13, 1
    %p156 = por %p154, %p155
    %p157 = scmp.ne.s32.totalorder %s149, %s152
    %p158 = scmp.eq.s32.totalorder %s13, 0
    %p159 = por %p157, %p158
    %p160 = scmp.ne.s32.totalorder %s149, %s152
    %p161 = scmp.eq.s32.totalorder %s18, 1
    %p162 = por %p160, %p161
    %p163 = scmp.ne.s32.totalorder %s152, %s153
    %p164 = scmp.eq.s32.totalorder %s18, 0
    %p165 = por %p163, %p164
    %p166 = scmp.ne.s32.totalorder %s152, %s153
    %p167 = scmp.eq.s32.totalorder %s19, 1
    %p168 = por %p166, %p167
    %p170 = scmp.ne.s32.totalorder %s153, %s169
    %p171 = scmp.eq.s32.totalorder %s19, 0
    %p172 = por %p170, %p171
    %s173 = ssub.s32 %s20, %s32
    %s174 = ssub.s32 %s21, %s28
    %s175 = sor.u32 %s173, %s174
    %p176 = scmp.eq.s32.totalorder %s175, 0
    %s178 = sadd.s32 %s177, 1
    %s179 = scalar_select %p176, %s177, %s178
    %p182 = pneg %p176
    %p183 = scmp.eq.s32.totalorder %s13, 1
    %p184 = por %p182, %p183
    %p185 = scmp.ne.s32.totalorder %s177, %s180
    %p186 = scmp.eq.s32.totalorder %s13, 0
    %p187 = por %p185, %p186
    %p188 = scmp.ne.s32.totalorder %s177, %s180
    %p189 = scmp.eq.s32.totalorder %s18, 1
    %p190 = por %p188, %p189
    %p191 = scmp.ne.s32.totalorder %s180, %s181
    %p192 = scmp.eq.s32.totalorder %s18, 0
    %p193 = por %p191, %p192
    %p194 = scmp.ne.s32.totalorder %s180, %s181
    %p195 = scmp.eq.s32.totalorder %s19, 1
    %p196 = por %p194, %p195
    %p198 = scmp.ne.s32.totalorder %s181, %s197
    %p199 = scmp.eq.s32.totalorder %s19, 0
    %p200 = por %p198, %p199
    %p201 = scmp.le.s32.totalorder 1, %s13
    %p202 = scmp.lt.s32.totalorder %s13, 3
    %p203 = pnand %p201, %p202
    %p204 = pneg %p203
    // Predicated region
    $region9: #{residual_split_head_multi_axis_gmlp.4} parent=5 // pred_check
      _
    $region10: #{residual_split_head_multi_axis_gmlp.4} parent=5 // pred_check_branch
      %206 = sbr.rel (%p203) target = $region12
    $region11: #{residual_split_head_multi_axis_gmlp.4} parent=5 // pred_region
      %s207 = ssub.s32 %s13, 1
      // Predicated region
      $region13: #{residual_split_head_multi_axis_gmlp.4} parent=11 // pred_check
        %p208 = pneg %p74
      $region14: #{residual_split_head_multi_axis_gmlp.4} parent=11 // pred_check_branch
        %210 = sbr.rel (%p208) target = $region16
      $region15: #{residual_split_head_multi_axis_gmlp.4} parent=11 // pred_region
        _
      $region16: #{residual_split_head_multi_axis_gmlp.4} parent=11 // pred_fallthru
        _
      // Predicated region
      $region17: #{residual_split_head_multi_axis_gmlp.4} parent=11 // pred_check
        %p211 = pneg %p95
      $region18: #{residual_split_head_multi_axis_gmlp.4} parent=11 // pred_check_branch
        %213 = sbr.rel (%p211) target = $region20
      $region19: #{residual_split_head_multi_axis_gmlp.4} parent=11 // pred_region
        _
      $region20: #{residual_split_head_multi_axis_gmlp.4} parent=11 // pred_fallthru
        _
      // Predicated region
      $region21: #{residual_split_head_multi_axis_gmlp.4} parent=11 // pred_check
        %p214 = pneg %p116
      $region22: #{residual_split_head_multi_axis_gmlp.4} parent=11 // pred_check_branch
        %216 = sbr.rel (%p214) target = $region24
      $region23: #{residual_split_head_multi_axis_gmlp.4} parent=11 // pred_region
        _
      $region24: #{residual_split_head_multi_axis_gmlp.4} parent=11 // pred_fallthru
        _
      // Predicated region
      $region25: #{residual_split_head_multi_axis_gmlp.4} parent=11 // pred_check
        %p217 = pneg %p137
      $region26: #{residual_split_head_multi_axis_gmlp.4} parent=11 // pred_check_branch
        %219 = sbr.rel (%p217) target = $region28
      $region27: #{residual_split_head_multi_axis_gmlp.4} parent=11 // pred_region
        _
      $region28: #{residual_split_head_multi_axis_gmlp.4} parent=11 // pred_fallthru
        _
    $region12: #{residual_split_head_multi_axis_gmlp.4} parent=5 // pred_fallthru
      _
    %p220 = scmp.lt.s32.totalorder %s13, 2
    // Predicated region
    $region29: #{residual_split_head_multi_axis_gmlp.4} parent=5 // pred_check
      %p221 = pneg %p220
    $region30: #{residual_split_head_multi_axis_gmlp.4} parent=5 // pred_check_branch
      %223 = sbr.rel (%p221) target = $region32
    $region31: #{residual_split_head_multi_axis_gmlp.4} parent=5 // pred_region
      // Predicated region
      $region33: #{residual_split_head_multi_axis_gmlp.4} parent=31 // pred_check
        %p224 = pneg %p47
      $region34: #{residual_split_head_multi_axis_gmlp.4} parent=31 // pred_check_branch
        %226 = sbr.rel (%p224) target = $region36
      $region35: #{residual_split_head_multi_axis_gmlp.4} parent=31 // pred_region
        %s227 = smul.u32 16, %s21
        %p228 = scmp.lt.s32.totalorder %s20, 1
        %s229 = scalar_select %p228, %s20, 1
        %p230 = scmp.lt.s32.totalorder %s227, 15
        %s231 = scalar_select %p230, %s227, 15
        %s232 = smul.addr %s231, 2
        %s233 = smul.addr %s229, 32
        %s234 = sadd.s32 %s232, %s233
        %s235 = smul.addr %s234, 8
        %s236 = scalar_lea.vmem %s0, %s235
        %s237 = smul.u32 16, %s21
      $region36: #{residual_split_head_multi_axis_gmlp.4} parent=31 // pred_fallthru
        _
    $region32: #{residual_split_head_multi_axis_gmlp.4} parent=5 // pred_fallthru
      _
    %p238 = scmp.le.s32.totalorder 1, %s13
    %p239 = scmp.lt.s32.totalorder %s13, 3
    %p240 = pnand %p238, %p239
    %p241 = pneg %p240
    // Predicated region
    $region37: #{residual_split_head_multi_axis_gmlp.4} parent=5 // pred_check
      _
    $region38: #{residual_split_head_multi_axis_gmlp.4} parent=5 // pred_check_branch
      %243 = sbr.rel (%p240) target = $region40
    $region39: #{residual_split_head_multi_axis_gmlp.4} parent=5 // pred_region
      %s244 = ssub.s32 %s13, 1
      %s245 = smul.u32 16, %s23
      %p246 = scmp.lt.s32.totalorder %s22, 1
      %s247 = scalar_select %p246, %s22, 1
      %p248 = scmp.lt.s32.totalorder %s245, 15
      %s249 = scalar_select %p248, %s245, 15
      %s250 = smul.addr %s249, 2
      %s251 = smul.addr %s247, 32
      %s252 = sadd.s32 %s250, %s251
      %s253 = smul.addr %s252, 8
      %s254 = scalar_lea.vmem %s0, %s253
      %p255 = pneg %p53
      %p256 = pneg %p50
      %p257 = pneg %p74
      %p258 = pneg %p71
      %p259 = pneg %p95
      %p260 = pneg %p92
      %p261 = pneg %p116
      %p262 = pneg %p113
      %p263 = pneg %p137
      %p264 = pneg %p134
      %p265 = pneg %p165
      %p266 = pneg %p162
      %s267 = smul.u32 16, %s23
      %p268 = scmp.lt.s32.totalorder %s22, 1
      %s269 = scalar_select %p268, %s22, 1
      %p270 = scmp.lt.s32.totalorder %s267, 15
      %s271 = scalar_select %p270, %s267, 15
      %s272 = smul.addr %s271, 2
      %s273 = smul.addr %s269, 32
      %s274 = sadd.s32 %s272, %s273
      %s275 = smul.addr %s274, 4
      %s276 = scalar_lea.vmem %s5, %s275
      %p277 = pneg %p193
      %p278 = pneg %p190
      %s279 = smul.u32 16, %s23
      %p280 = scmp.lt.s32.totalorder %s22, 1
      %s281 = scalar_select %p280, %s22, 1
      %p282 = scmp.lt.s32.totalorder %s279, 15
      %s283 = scalar_select %p282, %s279, 15
      %s284 = smul.addr %s283, 2
      %s285 = smul.addr %s281, 32
      %s286 = sadd.s32 %s284, %s285
      %s287 = smul.addr %s286, 4
      %s288 = scalar_lea.vmem %s6, %s287
      %s289 = smul.u32 16, %s23
      %p290 = scmp.lt.s32.totalorder %s22, 1
      %s291 = scalar_select %p290, %s22, 1
      %p292 = scmp.lt.s32.totalorder %s289, 15
      %s293 = scalar_select %p292, %s289, 15
      %s294 = smul.addr %s293, 2
      %s295 = smul.addr %s291, 32
      %s296 = sadd.s32 %s294, %s295
      %s297 = smul.addr %s296, 8
      %s298 = scalar_lea.vmem %s0, %s297
      %s299 = smul.u32 16, %s23
      %s300 = smul.u32 16, %s23
      %p301 = scmp.lt.s32.totalorder %s22, 1
      %s302 = scalar_select %p301, %s22, 1
      %p303 = scmp.lt.s32.totalorder %s300, 15
      %s304 = scalar_select %p303, %s300, 15
      %s305 = smul.addr %s304, 2
      %s306 = smul.addr %s302, 32
      %s307 = sadd.s32 %s305, %s306
      %s308 = smul.addr %s307, 4
      %s309 = scalar_lea.vmem %s5, %s308
      %s310 = smul.u32 16, %s23
      %s311 = smul.u32 16, %s23
      %p312 = scmp.lt.s32.totalorder %s22, 1
      %s313 = scalar_select %p312, %s22, 1
      %p314 = scmp.lt.s32.totalorder %s311, 15
      %s315 = scalar_select %p314, %s311, 15
      %s316 = smul.addr %s315, 2
      %s317 = smul.addr %s313, 32
      %s318 = sadd.s32 %s316, %s317
      %s319 = smul.addr %s318, 4
      %s320 = scalar_lea.vmem %s6, %s319
      %s321 = smul.u32 16, %s23
      %v323 = vld [vmem:[%s298] sm:$0xff]
      %v324 = vld [vmem:[%s298 + $0x8] sm:$0xff]
      %v325 = vld [vmem:[%s298 + $0x10] sm:$0xff]
      %v326 = vld [vmem:[%s298 + $0x18] sm:$0xff]
      %v327 = vld [vmem:[%s298 + $0x20] sm:$0xff]
      %v328 = vld [vmem:[%s298 + $0x28] sm:$0xff]
      %v329 = vld [vmem:[%s298 + $0x30] sm:$0xff]
      %v330 = vld [vmem:[%s298 + $0x38] sm:$0xff]
      %v331 = vld [vmem:[%s298 + $0x40] sm:$0xff]
      %v332 = vld [vmem:[%s298 + $0x48] sm:$0xff]
      %v333 = vld [vmem:[%s298 + $0x50] sm:$0xff]
      %v334 = vld [vmem:[%s298 + $0x58] sm:$0xff]
      %v335 = vld [vmem:[%s298 + $0x60] sm:$0xff]
      %v336 = vld [vmem:[%s298 + $0x68] sm:$0xff]
      %v337 = vld [vmem:[%s298 + $0x70] sm:$0xff]
      %v338 = vld [vmem:[%s298 + $0x78] sm:$0xff]
      %v339 = vld [vmem:[%s298 + $0x80] sm:$0xff]
      %v340 = vld [vmem:[%s298 + $0x88] sm:$0xff]
      %v341 = vld [vmem:[%s298 + $0x90] sm:$0xff]
      %v342 = vld [vmem:[%s298 + $0x98] sm:$0xff]
      %v343 = vld [vmem:[%s298 + $0xa0] sm:$0xff]
      %v344 = vld [vmem:[%s298 + $0xa8] sm:$0xff]
      %v345 = vld [vmem:[%s298 + $0xb0] sm:$0xff]
      %v346 = vld [vmem:[%s298 + $0xb8] sm:$0xff]
      %v347 = vld [vmem:[%s298 + $0xc0] sm:$0xff]
      %v348 = vld [vmem:[%s298 + $0xc8] sm:$0xff]
      %v349 = vld [vmem:[%s298 + $0xd0] sm:$0xff]
      %v350 = vld [vmem:[%s298 + $0xd8] sm:$0xff]
      %v351 = vld [vmem:[%s298 + $0xe0] sm:$0xff]
      %v352 = vld [vmem:[%s298 + $0xe8] sm:$0xff]
      %v353 = vld [vmem:[%s298 + $0xf0] sm:$0xff]
      %v354 = vld [vmem:[%s298 + $0xf8] sm:$0xff]
      %vm355 = vcmask 31744
      %v356 = vsel %vm355, %v323, 0.0
      %v357 = vsel %vm355, %v324, 0.0
      %v358 = vadd.f32 %v356, %v357
      %v359 = vrot.slane %v358, 4
      %v360 = vadd.f32 %v358, %v359
      %v361 = vrot.slane %v360, 2
      %v362 = vadd.f32 %v360, %v361
      %v363 = vrot.slane %v362, 1
      %v364 = vadd.f32 %v362, %v363
      %v365 = vsel %vm355, %v325, 0.0
      %v366 = vsel %vm355, %v326, 0.0
      %v367 = vadd.f32 %v365, %v366
      %v368 = vrot.slane %v367, 4
      %v369 = vadd.f32 %v367, %v368
      %v370 = vrot.slane %v369, 2
      %v371 = vadd.f32 %v369, %v370
      %v372 = vrot.slane %v371, 1
      %v373 = vadd.f32 %v371, %v372
      %v374 = vsel %vm355, %v327, 0.0
      %v375 = vsel %vm355, %v328, 0.0
      %v376 = vadd.f32 %v374, %v375
      %v377 = vrot.slane %v376, 4
      %v378 = vadd.f32 %v376, %v377
      %v379 = vrot.slane %v378, 2
      %v380 = vadd.f32 %v378, %v379
      %v381 = vrot.slane %v380, 1
      %v382 = vadd.f32 %v380, %v381
      %v383 = vsel %vm355, %v329, 0.0
      %v384 = vsel %vm355, %v330, 0.0
      %v385 = vadd.f32 %v383, %v384
      %v386 = vrot.slane %v385, 4
      %v387 = vadd.f32 %v385, %v386
      %v388 = vrot.slane %v387, 2
      %v389 = vadd.f32 %v387, %v388
      %v390 = vrot.slane %v389, 1
      %v391 = vadd.f32 %v389, %v390
      %v392 = vsel %vm355, %v331, 0.0
      %v393 = vsel %vm355, %v332, 0.0
      %v394 = vadd.f32 %v392, %v393
      %v395 = vrot.slane %v394, 4
      %v396 = vadd.f32 %v394, %v395
      %v397 = vrot.slane %v396, 2
      %v398 = vadd.f32 %v396, %v397
      %v399 = vrot.slane %v398, 1
      %v400 = vadd.f32 %v398, %v399
      %v401 = vsel %vm355, %v333, 0.0
      %v402 = vsel %vm355, %v334, 0.0
      %v403 = vadd.f32 %v401, %v402
      %v404 = vrot.slane %v403, 4
      %v405 = vadd.f32 %v403, %v404
      %v406 = vrot.slane %v405, 2
      %v407 = vadd.f32 %v405, %v406
      %v408 = vrot.slane %v407, 1
      %v409 = vadd.f32 %v407, %v408
      %v410 = vsel %vm355, %v335, 0.0
      %v411 = vsel %vm355, %v336, 0.0
      %v412 = vadd.f32 %v410, %v411
      %v413 = vrot.slane %v412, 4
      %v414 = vadd.f32 %v412, %v413
      %v415 = vrot.slane %v414, 2
      %v416 = vadd.f32 %v414, %v415
      %v417 = vrot.slane %v416, 1
      %v418 = vadd.f32 %v416, %v417
      %v419 = vsel %vm355, %v337, 0.0
      %v420 = vsel %vm355, %v338, 0.0
      %v421 = vadd.f32 %v419, %v420
      %v422 = vrot.slane %v421, 4
      %v423 = vadd.f32 %v421, %v422
      %v424 = vrot.slane %v423, 2
      %v425 = vadd.f32 %v423, %v424
      %v426 = vrot.slane %v425, 1
      %v427 = vadd.f32 %v425, %v426
      %v428 = vsel %vm355, %v339, 0.0
      %v429 = vsel %vm355, %v340, 0.0
      %v430 = vadd.f32 %v428, %v429
      %v431 = vrot.slane %v430, 4
      %v432 = vadd.f32 %v430, %v431
      %v433 = vrot.slane %v432, 2
      %v434 = vadd.f32 %v432, %v433
      %v435 = vrot.slane %v434, 1
      %v436 = vadd.f32 %v434, %v435
      %v437 = vsel %vm355, %v341, 0.0
      %v438 = vsel %vm355, %v342, 0.0
      %v439 = vadd.f32 %v437, %v438
      %v440 = vrot.slane %v439, 4
      %v441 = vadd.f32 %v439, %v440
      %v442 = vrot.slane %v441, 2
      %v443 = vadd.f32 %v441, %v442
      %v444 = vrot.slane %v443, 1
      %v445 = vadd.f32 %v443, %v444
      %v446 = vsel %vm355, %v343, 0.0
      %v447 = vsel %vm355, %v344, 0.0
      %v448 = vadd.f32 %v446, %v447
      %v449 = vrot.slane %v448, 4
      %v450 = vadd.f32 %v448, %v449
      %v451 = vrot.slane %v450, 2
      %v452 = vadd.f32 %v450, %v451
      %v453 = vrot.slane %v452, 1
      %v454 = vadd.f32 %v452, %v453
      %v455 = vsel %vm355, %v345, 0.0
      %v456 = vsel %vm355, %v346, 0.0
      %v457 = vadd.f32 %v455, %v456
      %v458 = vrot.slane %v457, 4
      %v459 = vadd.f32 %v457, %v458
      %v460 = vrot.slane %v459, 2
      %v461 = vadd.f32 %v459, %v460
      %v462 = vrot.slane %v461, 1
      %v463 = vadd.f32 %v461, %v462
      %v464 = vsel %vm355, %v347, 0.0
      %v465 = vsel %vm355, %v348, 0.0
      %v466 = vadd.f32 %v464, %v465
      %v467 = vrot.slane %v466, 4
      %v468 = vadd.f32 %v466, %v467
      %v469 = vrot.slane %v468, 2
      %v470 = vadd.f32 %v468, %v469
      %v471 = vrot.slane %v470, 1
      %v472 = vadd.f32 %v470, %v471
      %v473 = vsel %vm355, %v349, 0.0
      %v474 = vsel %vm355, %v350, 0.0
      %v475 = vadd.f32 %v473, %v474
      %v476 = vrot.slane %v475, 4
      %v477 = vadd.f32 %v475, %v476
      %v478 = vrot.slane %v477, 2
      %v479 = vadd.f32 %v477, %v478
      %v480 = vrot.slane %v479, 1
      %v481 = vadd.f32 %v479, %v480
      %v482 = vsel %vm355, %v351, 0.0
      %v483 = vsel %vm355, %v352, 0.0
      %v484 = vadd.f32 %v482, %v483
      %v485 = vrot.slane %v484, 4
      %v486 = vadd.f32 %v484, %v485
      %v487 = vrot.slane %v486, 2
      %v488 = vadd.f32 %v486, %v487
      %v489 = vrot.slane %v488, 1
      %v490 = vadd.f32 %v488, %v489
      %v491 = vsel %vm355, %v353, 0.0
      %v492 = vsel %vm355, %v354, 0.0
      %v493 = vadd.f32 %v491, %v492
      %v494 = vrot.slane %v493, 4
      %v495 = vadd.f32 %v493, %v494
      %v496 = vrot.slane %v495, 2
      %v497 = vadd.f32 %v495, %v496
      %v498 = vrot.slane %v497, 1
      %v499 = vadd.f32 %v497, %v498
      %v500 = vrcp.pop 16.0
      %v501 = vmul.f32 %v364, %v500
      %v502 = vmul.f32 %v373, %v500
      %v503 = vmul.f32 %v382, %v500
      %v504 = vmul.f32 %v391, %v500
      %v505 = vmul.f32 %v400, %v500
      %v506 = vmul.f32 %v409, %v500
      %v507 = vmul.f32 %v418, %v500
      %v508 = vmul.f32 %v427, %v500
      %v509 = vmul.f32 %v436, %v500
      %v510 = vmul.f32 %v445, %v500
      %v511 = vmul.f32 %v454, %v500
      %v512 = vmul.f32 %v463, %v500
      %v513 = vmul.f32 %v472, %v500
      %v514 = vmul.f32 %v481, %v500
      %v515 = vmul.f32 %v490, %v500
      %v516 = vmul.f32 %v499, %v500
      %v517 = vsub.f32 %v323, %v501
      %v518 = vsub.f32 %v324, %v501
      %v519 = vsub.f32 %v325, %v502
      %v520 = vsub.f32 %v326, %v502
      %v521 = vsub.f32 %v327, %v503
      %v522 = vsub.f32 %v328, %v503
      %v523 = vsub.f32 %v329, %v504
      %v524 = vsub.f32 %v330, %v504
      %v525 = vsub.f32 %v331, %v505
      %v526 = vsub.f32 %v332, %v505
      %v527 = vsub.f32 %v333, %v506
      %v528 = vsub.f32 %v334, %v506
      %v529 = vsub.f32 %v335, %v507
      %v530 = vsub.f32 %v336, %v507
      %v531 = vsub.f32 %v337, %v508
      %v532 = vsub.f32 %v338, %v508
      %v533 = vsub.f32 %v339, %v509
      %v534 = vsub.f32 %v340, %v509
      %v535 = vsub.f32 %v341, %v510
      %v536 = vsub.f32 %v342, %v510
      %v537 = vsub.f32 %v343, %v511
      %v538 = vsub.f32 %v344, %v511
      %v539 = vsub.f32 %v345, %v512
      %v540 = vsub.f32 %v346, %v512
      %v541 = vsub.f32 %v347, %v513
      %v542 = vsub.f32 %v348, %v513
      %v543 = vsub.f32 %v349, %v514
      %v544 = vsub.f32 %v350, %v514
      %v545 = vsub.f32 %v351, %v515
      %v546 = vsub.f32 %v352, %v515
      %v547 = vsub.f32 %v353, %v516
      %v548 = vsub.f32 %v354, %v516
      %v549 = vmul.f32 %v517, %v517
      %v550 = vmul.f32 %v518, %v518
      %v551 = vmul.f32 %v519, %v519
      %v552 = vmul.f32 %v520, %v520
      %v553 = vmul.f32 %v521, %v521
      %v554 = vmul.f32 %v522, %v522
      %v555 = vmul.f32 %v523, %v523
      %v556 = vmul.f32 %v524, %v524
      %v557 = vmul.f32 %v525, %v525
      %v558 = vmul.f32 %v526, %v526
      %v559 = vmul.f32 %v527, %v527
      %v560 = vmul.f32 %v528, %v528
      %v561 = vmul.f32 %v529, %v529
      %v562 = vmul.f32 %v530, %v530
      %v563 = vmul.f32 %v531, %v531
      %v564 = vmul.f32 %v532, %v532
      %v565 = vmul.f32 %v533, %v533
      %v566 = vmul.f32 %v534, %v534
      %v567 = vmul.f32 %v535, %v535
      %v568 = vmul.f32 %v536, %v536
      %v569 = vmul.f32 %v537, %v537
      %v570 = vmul.f32 %v538, %v538
      %v571 = vmul.f32 %v539, %v539
      %v572 = vmul.f32 %v540, %v540
      %v573 = vmul.f32 %v541, %v541
      %v574 = vmul.f32 %v542, %v542
      %v575 = vmul.f32 %v543, %v543
      %v576 = vmul.f32 %v544, %v544
      %v577 = vmul.f32 %v545, %v545
      %v578 = vmul.f32 %v546, %v546
      %v579 = vmul.f32 %v547, %v547
      %v580 = vmul.f32 %v548, %v548
      %v581 = vsel %vm355, %v549, 0.0
      %v582 = vsel %vm355, %v550, 0.0
      %v583 = vadd.f32 %v581, %v582
      %v584 = vrot.slane %v583, 4
      %v585 = vadd.f32 %v583, %v584
      %v586 = vrot.slane %v585, 2
      %v587 = vadd.f32 %v585, %v586
      %v588 = vrot.slane %v587, 1
      %v589 = vadd.f32 %v587, %v588
      %v590 = vsel %vm355, %v551, 0.0
      %v591 = vsel %vm355, %v552, 0.0
      %v592 = vadd.f32 %v590, %v591
      %v593 = vrot.slane %v592, 4
      %v594 = vadd.f32 %v592, %v593
      %v595 = vrot.slane %v594, 2
      %v596 = vadd.f32 %v594, %v595
      %v597 = vrot.slane %v596, 1
      %v598 = vadd.f32 %v596, %v597
      %v599 = vsel %vm355, %v553, 0.0
      %v600 = vsel %vm355, %v554, 0.0
      %v601 = vadd.f32 %v599, %v600
      %v602 = vrot.slane %v601, 4
      %v603 = vadd.f32 %v601, %v602
      %v604 = vrot.slane %v603, 2
      %v605 = vadd.f32 %v603, %v604
      %v606 = vrot.slane %v605, 1
      %v607 = vadd.f32 %v605, %v606
      %v608 = vsel %vm355, %v555, 0.0
      %v609 = vsel %vm355, %v556, 0.0
      %v610 = vadd.f32 %v608, %v609
      %v611 = vrot.slane %v610, 4
      %v612 = vadd.f32 %v610, %v611
      %v613 = vrot.slane %v612, 2
      %v614 = vadd.f32 %v612, %v613
      %v615 = vrot.slane %v614, 1
      %v616 = vadd.f32 %v614, %v615
      %v617 = vsel %vm355, %v557, 0.0
      %v618 = vsel %vm355, %v558, 0.0
      %v619 = vadd.f32 %v617, %v618
      %v620 = vrot.slane %v619, 4
      %v621 = vadd.f32 %v619, %v620
      %v622 = vrot.slane %v621, 2
      %v623 = vadd.f32 %v621, %v622
      %v624 = vrot.slane %v623, 1
      %v625 = vadd.f32 %v623, %v624
      %v626 = vsel %vm355, %v559, 0.0
      %v627 = vsel %vm355, %v560, 0.0
      %v628 = vadd.f32 %v626, %v627
      %v629 = vrot.slane %v628, 4
      %v630 = vadd.f32 %v628, %v629
      %v631 = vrot.slane %v630, 2
      %v632 = vadd.f32 %v630, %v631
      %v633 = vrot.slane %v632, 1
      %v634 = vadd.f32 %v632, %v633
      %v635 = vsel %vm355, %v561, 0.0
      %v636 = vsel %vm355, %v562, 0.0
      %v637 = vadd.f32 %v635, %v636
      %v638 = vrot.slane %v637, 4
      %v639 = vadd.f32 %v637, %v638
      %v640 = vrot.slane %v639, 2
      %v641 = vadd.f32 %v639, %v640
      %v642 = vrot.slane %v641, 1
      %v643 = vadd.f32 %v641, %v642
      %v644 = vsel %vm355, %v563, 0.0
      %v645 = vsel %vm355, %v564, 0.0
      %v646 = vadd.f32 %v644, %v645
      %v647 = vrot.slane %v646, 4
      %v648 = vadd.f32 %v646, %v647
      %v649 = vrot.slane %v648, 2
      %v650 = vadd.f32 %v648, %v649
      %v651 = vrot.slane %v650, 1
      %v652 = vadd.f32 %v650, %v651
      %v653 = vsel %vm355, %v565, 0.0
      %v654 = vsel %vm355, %v566, 0.0
      %v655 = vadd.f32 %v653, %v654
      %v656 = vrot.slane %v655, 4
      %v657 = vadd.f32 %v655, %v656
      %v658 = vrot.slane %v657, 2
      %v659 = vadd.f32 %v657, %v658
      %v660 = vrot.slane %v659, 1
      %v661 = vadd.f32 %v659, %v660
      %v662 = vsel %vm355, %v567, 0.0
      %v663 = vsel %vm355, %v568, 0.0
      %v664 = vadd.f32 %v662, %v663
      %v665 = vrot.slane %v664, 4
      %v666 = vadd.f32 %v664, %v665
      %v667 = vrot.slane %v666, 2
      %v668 = vadd.f32 %v666, %v667
      %v669 = vrot.slane %v668, 1
      %v670 = vadd.f32 %v668, %v669
      %v671 = vsel %vm355, %v569, 0.0
      %v672 = vsel %vm355, %v570, 0.0
      %v673 = vadd.f32 %v671, %v672
      %v674 = vrot.slane %v673, 4
      %v675 = vadd.f32 %v673, %v674
      %v676 = vrot.slane %v675, 2
      %v677 = vadd.f32 %v675, %v676
      %v678 = vrot.slane %v677, 1
      %v679 = vadd.f32 %v677, %v678
      %v680 = vsel %vm355, %v571, 0.0
      %v681 = vsel %vm355, %v572, 0.0
      %v682 = vadd.f32 %v680, %v681
      %v683 = vrot.slane %v682, 4
      %v684 = vadd.f32 %v682, %v683
      %v685 = vrot.slane %v684, 2
      %v686 = vadd.f32 %v684, %v685
      %v687 = vrot.slane %v686, 1
      %v688 = vadd.f32 %v686, %v687
      %v689 = vsel %vm355, %v573, 0.0
      %v690 = vsel %vm355, %v574, 0.0
      %v691 = vadd.f32 %v689, %v690
      %v692 = vrot.slane %v691, 4
      %v693 = vadd.f32 %v691, %v692
      %v694 = vrot.slane %v693, 2
      %v695 = vadd.f32 %v693, %v694
      %v696 = vrot.slane %v695, 1
      %v697 = vadd.f32 %v695, %v696
      %v698 = vsel %vm355, %v575, 0.0
      %v699 = vsel %vm355, %v576, 0.0
      %v700 = vadd.f32 %v698, %v699
      %v701 = vrot.slane %v700, 4
      %v702 = vadd.f32 %v700, %v701
      %v703 = vrot.slane %v702, 2
      %v704 = vadd.f32 %v702, %v703
      %v705 = vrot.slane %v704, 1
      %v706 = vadd.f32 %v704, %v705
      %v707 = vsel %vm355, %v577, 0.0
      %v708 = vsel %vm355, %v578, 0.0
      %v709 = vadd.f32 %v707, %v708
      %v710 = vrot.slane %v709, 4
      %v711 = vadd.f32 %v709, %v710
      %v712 = vrot.slane %v711, 2
      %v713 = vadd.f32 %v711, %v712
      %v714 = vrot.slane %v713, 1
      %v715 = vadd.f32 %v713, %v714
      %v716 = vsel %vm355, %v579, 0.0
      %v717 = vsel %vm355, %v580, 0.0
      %v718 = vadd.f32 %v716, %v717
      %v719 = vrot.slane %v718, 4
      %v720 = vadd.f32 %v718, %v719
      %v721 = vrot.slane %v720, 2
      %v722 = vadd.f32 %v720, %v721
      %v723 = vrot.slane %v722, 1
      %v724 = vadd.f32 %v722, %v723
      %v725 = vmul.f32 %v589, %v500
      %v726 = vmul.f32 %v598, %v500
      %v727 = vmul.f32 %v607, %v500
      %v728 = vmul.f32 %v616, %v500
      %v729 = vmul.f32 %v625, %v500
      %v730 = vmul.f32 %v634, %v500
      %v731 = vmul.f32 %v643, %v500
      %v732 = vmul.f32 %v652, %v500
      %v733 = vmul.f32 %v661, %v500
      %v734 = vmul.f32 %v670, %v500
      %v735 = vmul.f32 %v679, %v500
      %v736 = vmul.f32 %v688, %v500
      %v737 = vmul.f32 %v697, %v500
      %v738 = vmul.f32 %v706, %v500
      %v739 = vmul.f32 %v715, %v500
      %v740 = vmul.f32 %v724, %v500
      %v741 = vadd.f32 %v725, 1e-05
      %v742 = vadd.f32 %v726, 1e-05
      %v743 = vadd.f32 %v727, 1e-05
      %v744 = vadd.f32 %v728, 1e-05
      %v745 = vadd.f32 %v729, 1e-05
      %v746 = vadd.f32 %v730, 1e-05
      %v747 = vadd.f32 %v731, 1e-05
      %v748 = vadd.f32 %v732, 1e-05
      %v749 = vadd.f32 %v733, 1e-05
      %v750 = vadd.f32 %v734, 1e-05
      %v751 = vadd.f32 %v735, 1e-05
      %v752 = vadd.f32 %v736, 1e-05
      %v753 = vadd.f32 %v737, 1e-05
      %v754 = vadd.f32 %v738, 1e-05
      %v755 = vadd.f32 %v739, 1e-05
      %v756 = vadd.f32 %v740, 1e-05
      %v757 = vrsqrt.pop %v741
      %v758 = vrsqrt.pop %v742
      %v759 = vrsqrt.pop %v743
      %v760 = vrsqrt.pop %v744
      %v761 = vrsqrt.pop %v745
      %v762 = vrsqrt.pop %v746
      %v763 = vrsqrt.pop %v747
      %v764 = vrsqrt.pop %v748
      %v765 = vrsqrt.pop %v749
      %v766 = vrsqrt.pop %v750
      %v767 = vrsqrt.pop %v751
      %v768 = vrsqrt.pop %v752
      %v769 = vrsqrt.pop %v753
      %v770 = vrsqrt.pop %v754
      %v771 = vrsqrt.pop %v755
      %v772 = vrsqrt.pop %v756
      %v773 = vmul.f32 %v517, %v757
      %v774 = vmul.f32 %v518, %v757
      %v775 = vmul.f32 %v519, %v758
      %v776 = vmul.f32 %v520, %v758
      %v777 = vmul.f32 %v521, %v759
      %v778 = vmul.f32 %v522, %v759
      %v779 = vmul.f32 %v523, %v760
      %v780 = vmul.f32 %v524, %v760
      %v781 = vmul.f32 %v525, %v761
      %v782 = vmul.f32 %v526, %v761
      %v783 = vmul.f32 %v527, %v762
      %v784 = vmul.f32 %v528, %v762
      %v785 = vmul.f32 %v529, %v763
      %v786 = vmul.f32 %v530, %v763
      %v787 = vmul.f32 %v531, %v764
      %v788 = vmul.f32 %v532, %v764
      %v789 = vmul.f32 %v533, %v765
      %v790 = vmul.f32 %v534, %v765
      %v791 = vmul.f32 %v535, %v766
      %v792 = vmul.f32 %v536, %v766
      %v793 = vmul.f32 %v537, %v767
      %v794 = vmul.f32 %v538, %v767
      %v795 = vmul.f32 %v539, %v768
      %v796 = vmul.f32 %v540, %v768
      %v797 = vmul.f32 %v541, %v769
      %v798 = vmul.f32 %v542, %v769
      %v799 = vmul.f32 %v543, %v770
      %v800 = vmul.f32 %v544, %v770
      %v801 = vmul.f32 %v545, %v771
      %v802 = vmul.f32 %v546, %v771
      %v803 = vmul.f32 %v547, %v772
      %v804 = vmul.f32 %v548, %v772
      %v805 = vld [vmem:[%s1] sm:$0x3]
      %v806 = vld [vmem:[%s3] sm:$0x1]
      %v807 = vpack.c.bf16 %v774, %v773
      %v808 = vpack.c.bf16 %v776, %v775
      %v809 = vpack.c.bf16 %v778, %v777
      %v810 = vpack.c.bf16 %v780, %v779
      %v811 = vpack.c.bf16 %v782, %v781
      %v812 = vpack.c.bf16 %v784, %v783
      %v813 = vpack.c.bf16 %v786, %v785
      %v814 = vpack.c.bf16 %v788, %v787
      %v815 = vpack.c.bf16 %v790, %v789
      %v816 = vpack.c.bf16 %v792, %v791
      %v817 = vpack.c.bf16 %v794, %v793
      %v818 = vpack.c.bf16 %v796, %v795
      %v819 = vpack.c.bf16 %v798, %v797
      %v820 = vpack.c.bf16 %v800, %v799
      %v821 = vpack.c.bf16 %v802, %v801
      %v822 = vpack.c.bf16 %v804, %v803
      %v824 = vlaneseq
      %v825 = vshrl.u32 %v824, 7
      %v826 = vsub.s32 0, %v825
      %v827 = vrot.slane %v806, %v826
      %v830 = vsel %vm355, %v807, 0
      %v833 = vsel %vm355, %v808, 0
      %v836 = vsel %vm355, %v809, 0
      %v839 = vsel %vm355, %v810, 0
      %v842 = vsel %vm355, %v811, 0
      %v845 = vsel %vm355, %v812, 0
      %v848 = vsel %vm355, %v813, 0
      %v851 = vsel %vm355, %v814, 0
      %v854 = vsel %vm355, %v815, 0
      %v857 = vsel %vm355, %v816, 0
      %v860 = vsel %vm355, %v817, 0
      %v863 = vsel %vm355, %v818, 0
      %v866 = vsel %vm355, %v819, 0
      %v869 = vsel %vm355, %v820, 0
      %v872 = vsel %vm355, %v821, 0
      %v875 = vsel %vm355, %v822, 0
      %vm877 = vcmask 1041408
      %v879 = vsel %vm877, %v805, 0
      %881 = vmatprep.subr.bf16.mxu0 0
      %882 = vmatpush1.bf16.msra.mxu0 %v879
      %883 = vmatprep.subr.bf16.mxu0 0
      %884 = vmatpush1.bf16.msra.mxu0 0
      %885 = vmatprep.subr.bf16.mxu0 0
      %886 = vmatpush1.bf16.msra.mxu0 0
      %887 = vmatprep.subr.bf16.mxu0 0
      %888 = vmatpush1.bf16.msra.mxu0 0
      %889 = vmatprep.subr.bf16.mxu0 0
      %890 = vmatpush1.bf16.msra.mxu0 0
      %891 = vmatprep.subr.bf16.mxu0 0
      %892 = vmatpush1.bf16.msra.mxu0 0
      %893 = vmatprep.subr.bf16.mxu0 0
      %894 = vmatpush1.bf16.msra.mxu0 0
      %895 = vmatprep.subr.bf16.mxu0 0
      %896 = vmatpush1.bf16.msra.mxu0 0
      %897 = vmatprep.subr.bf16.mxu0 0
      %898 = vmatpush1.bf16.msra.mxu0 0
      %899 = vmatprep.subr.bf16.mxu0 0
      %900 = vmatpush1.bf16.msra.mxu0 0
      %901 = vmatprep.subr.bf16.mxu0 0
      %902 = vmatpush1.bf16.msra.mxu0 0
      %903 = vmatprep.subr.bf16.mxu0 0
      %904 = vmatpush1.bf16.msra.mxu0 0
      %905 = vmatprep.subr.bf16.mxu0 0
      %906 = vmatpush1.bf16.msra.mxu0 0
      %907 = vmatprep.subr.bf16.mxu0 0
      %908 = vmatpush1.bf16.msra.mxu0 0
      %909 = vmatprep.subr.bf16.mxu0 0
      %910 = vmatpush1.bf16.msra.mxu0 0
      %911 = vmatprep.subr.bf16.mxu0 0
      %912 = vmatpush1.bf16.msra.mxu0 0
      %913 = vmatprep.mubr.bf16.mxu0 0
      %914 = vmatmul.mubr.bf16.gmra.mrb[0].mxu0 %v830
      %v915 = vpop.f32.mrb[0].mxu0
      %v916 = vadd.f32 %v827, %v915
      %v917 = vpop.f32.mrb[0].mxu0
      %v918 = vpop.f32.mrb[0].mxu0
      %v919 = vadd.f32 %v827, %v918
      %v920 = vpop.f32.mrb[0].mxu0
      %921 = vmatprep.mubr.bf16.mxu0 0
      %922 = vmatmul.mubr.bf16.gmra.mrb[0].mxu0 %v833
      %v923 = vpop.f32.mrb[0].mxu0
      %v924 = vadd.f32 %v827, %v923
      %v925 = vpop.f32.mrb[0].mxu0
      %v926 = vpop.f32.mrb[0].mxu0
      %v927 = vadd.f32 %v827, %v926
      %v928 = vpop.f32.mrb[0].mxu0
      %929 = vmatprep.mubr.bf16.mxu0 0
      %930 = vmatmul.mubr.bf16.gmra.mrb[0].mxu0 %v836
      %v931 = vpop.f32.mrb[0].mxu0
      %v932 = vadd.f32 %v827, %v931
      %v933 = vpop.f32.mrb[0].mxu0
      %v934 = vpop.f32.mrb[0].mxu0
      %v935 = vadd.f32 %v827, %v934
      %v936 = vpop.f32.mrb[0].mxu0
      %937 = vmatprep.mubr.bf16.mxu0 0
      %938 = vmatmul.mubr.bf16.gmra.mrb[0].mxu0 %v839
      %v939 = vpop.f32.mrb[0].mxu0
      %v940 = vadd.f32 %v827, %v939
      %v941 = vpop.f32.mrb[0].mxu0
      %v942 = vpop.f32.mrb[0].mxu0
      %v943 = vadd.f32 %v827, %v942
      %v944 = vpop.f32.mrb[0].mxu0
      %945 = vmatprep.mubr.bf16.mxu0 0
      %946 = vmatmul.mubr.bf16.gmra.mrb[0].mxu0 %v842
      %v947 = vpop.f32.mrb[0].mxu0
      %v948 = vadd.f32 %v827, %v947
      %v949 = vpop.f32.mrb[0].mxu0
      %v950 = vpop.f32.mrb[0].mxu0
      %v951 = vadd.f32 %v827, %v950
      %v952 = vpop.f32.mrb[0].mxu0
      %953 = vmatprep.mubr.bf16.mxu0 0
      %954 = vmatmul.mubr.bf16.gmra.mrb[0].mxu0 %v845
      %v955 = vpop.f32.mrb[0].mxu0
      %v956 = vadd.f32 %v827, %v955
      %v957 = vpop.f32.mrb[0].mxu0
      %v958 = vpop.f32.mrb[0].mxu0
      %v959 = vadd.f32 %v827, %v958
      %v960 = vpop.f32.mrb[0].mxu0
      %961 = vmatprep.mubr.bf16.mxu0 0
      %962 = vmatmul.mubr.bf16.gmra.mrb[0].mxu0 %v848
      %v963 = vpop.f32.mrb[0].mxu0
      %v964 = vadd.f32 %v827, %v963
      %v965 = vpop.f32.mrb[0].mxu0
      %v966 = vpop.f32.mrb[0].mxu0
      %v967 = vadd.f32 %v827, %v966
      %v968 = vpop.f32.mrb[0].mxu0
      %969 = vmatprep.mubr.bf16.mxu0 0
      %970 = vmatmul.mubr.bf16.gmra.mrb[0].mxu0 %v851
      %v971 = vpop.f32.mrb[0].mxu0
      %v972 = vadd.f32 %v827, %v971
      %v973 = vpop.f32.mrb[0].mxu0
      %v974 = vpop.f32.mrb[0].mxu0
      %v975 = vadd.f32 %v827, %v974
      %v976 = vpop.f32.mrb[0].mxu0
      %977 = vmatprep.mubr.bf16.mxu0 0
      %978 = vmatmul.mubr.bf16.gmra.mrb[0].mxu0 %v854
      %v979 = vpop.f32.mrb[0].mxu0
      %v980 = vadd.f32 %v827, %v979
      %v981 = vpop.f32.mrb[0].mxu0
      %v982 = vpop.f32.mrb[0].mxu0
      %v983 = vadd.f32 %v827, %v982
      %v984 = vpop.f32.mrb[0].mxu0
      %985 = vmatprep.mubr.bf16.mxu0 0
      %986 = vmatmul.mubr.bf16.gmra.mrb[0].mxu0 %v857
      %v987 = vpop.f32.mrb[0].mxu0
      %v988 = vadd.f32 %v827, %v987
      %v989 = vpop.f32.mrb[0].mxu0
      %v990 = vpop.f32.mrb[0].mxu0
      %v991 = vadd.f32 %v827, %v990
      %v992 = vpop.f32.mrb[0].mxu0
      %993 = vmatprep.mubr.bf16.mxu0 0
      %994 = vmatmul.mubr.bf16.gmra.mrb[0].mxu0 %v860
      %v995 = vpop.f32.mrb[0].mxu0
      %v996 = vadd.f32 %v827, %v995
      %v997 = vpop.f32.mrb[0].mxu0
      %v998 = vpop.f32.mrb[0].mxu0
      %v999 = vadd.f32 %v827, %v998
      %v1000 = vpop.f32.mrb[0].mxu0
      %1001 = vmatprep.mubr.bf16.mxu0 0
      %1002 = vmatmul.mubr.bf16.gmra.mrb[0].mxu0 %v863
      %v1003 = vpop.f32.mrb[0].mxu0
      %v1004 = vadd.f32 %v827, %v1003
      %v1005 = vpop.f32.mrb[0].mxu0
      %v1006 = vpop.f32.mrb[0].mxu0
      %v1007 = vadd.f32 %v827, %v1006
      %v1008 = vpop.f32.mrb[0].mxu0
      %1009 = vmatprep.mubr.bf16.mxu0 0
      %1010 = vmatmul.mubr.bf16.gmra.mrb[0].mxu0 %v866
      %v1011 = vpop.f32.mrb[0].mxu0
      %v1012 = vadd.f32 %v827, %v1011
      %v1013 = vpop.f32.mrb[0].mxu0
      %v1014 = vpop.f32.mrb[0].mxu0
      %v1015 = vadd.f32 %v827, %v1014
      %v1016 = vpop.f32.mrb[0].mxu0
      %1017 = vmatprep.mubr.bf16.mxu0 0
      %1018 = vmatmul.mubr.bf16.gmra.mrb[0].mxu0 %v869
      %v1019 = vpop.f32.mrb[0].mxu0
      %v1020 = vadd.f32 %v827, %v1019
      %v1021 = vpop.f32.mrb[0].mxu0
      %v1022 = vpop.f32.mrb[0].mxu0
      %v1023 = vadd.f32 %v827, %v1022
      %v1024 = vpop.f32.mrb[0].mxu0
      %1025 = vmatprep.mubr.bf16.mxu0 0
      %1026 = vmatmul.mubr.bf16.gmra.mrb[0].mxu0 %v872
      %v1027 = vpop.f32.mrb[0].mxu0
      %v1028 = vadd.f32 %v827, %v1027
      %v1029 = vpop.f32.mrb[0].mxu0
      %v1030 = vpop.f32.mrb[0].mxu0
      %v1031 = vadd.f32 %v827, %v1030
      %v1032 = vpop.f32.mrb[0].mxu0
      %1033 = vmatprep.mubr.bf16.mxu0 0
      %1034 = vmatmul.mubr.bf16.gmra.mrb[0].mxu0 %v875
      %v1035 = vpop.f32.mrb[0].mxu0
      %v1036 = vadd.f32 %v827, %v1035
      %v1037 = vpop.f32.mrb[0].mxu0
      %v1038 = vpop.f32.mrb[0].mxu0
      %v1039 = vadd.f32 %v827, %v1038
      %v1040 = vpop.f32.mrb[0].mxu0
      %1041 = vdwg.mxu0
      %v1042 = vmul.f32 %v916, 0.5
      %v1043 = vmul.f32 %v919, 0.5
      %v1044 = vmul.f32 %v924, 0.5
      %v1045 = vmul.f32 %v927, 0.5
      %v1046 = vmul.f32 %v932, 0.5
      %v1047 = vmul.f32 %v935, 0.5
      %v1048 = vmul.f32 %v940, 0.5
      %v1049 = vmul.f32 %v943, 0.5
      %v1050 = vmul.f32 %v948, 0.5
      %v1051 = vmul.f32 %v951, 0.5
      %v1052 = vmul.f32 %v956, 0.5
      %v1053 = vmul.f32 %v959, 0.5
      %v1054 = vmul.f32 %v964, 0.5
      %v1055 = vmul.f32 %v967, 0.5
      %v1056 = vmul.f32 %v972, 0.5
      %v1057 = vmul.f32 %v975, 0.5
      %v1058 = vmul.f32 %v980, 0.5
      %v1059 = vmul.f32 %v983, 0.5
      %v1060 = vmul.f32 %v988, 0.5
      %v1061 = vmul.f32 %v991, 0.5
      %v1062 = vmul.f32 %v996, 0.5
      %v1063 = vmul.f32 %v999, 0.5
      %v1064 = vmul.f32 %v1004, 0.5
      %v1065 = vmul.f32 %v1007, 0.5
      %v1066 = vmul.f32 %v1012, 0.5
      %v1067 = vmul.f32 %v1015, 0.5
      %v1068 = vmul.f32 %v1020, 0.5
      %v1069 = vmul.f32 %v1023, 0.5
      %v1070 = vmul.f32 %v1028, 0.5
      %v1071 = vmul.f32 %v1031, 0.5
      %v1072 = vmul.f32 %v1036, 0.5
      %v1073 = vmul.f32 %v1039, 0.5
      %v1074 = vmul.f32 %v916, 0.70710677
      %v1075 = vmul.f32 %v919, 0.70710677
      %v1076 = vmul.f32 %v924, 0.70710677
      %v1077 = vmul.f32 %v927, 0.70710677
      %v1078 = vmul.f32 %v932, 0.70710677
      %v1079 = vmul.f32 %v935, 0.70710677
      %v1080 = vmul.f32 %v940, 0.70710677
      %v1081 = vmul.f32 %v943, 0.70710677
      %v1082 = vmul.f32 %v948, 0.70710677
      %v1083 = vmul.f32 %v951, 0.70710677
      %v1084 = vmul.f32 %v956, 0.70710677
      %v1085 = vmul.f32 %v959, 0.70710677
      %v1086 = vmul.f32 %v964, 0.70710677
      %v1087 = vmul.f32 %v967, 0.70710677
      %v1088 = vmul.f32 %v972, 0.70710677
      %v1089 = vmul.f32 %v975, 0.70710677
      %v1090 = vmul.f32 %v980, 0.70710677
      %v1091 = vmul.f32 %v983, 0.70710677
      %v1092 = vmul.f32 %v988, 0.70710677
      %v1093 = vmul.f32 %v991, 0.70710677
      %v1094 = vmul.f32 %v996, 0.70710677
      %v1095 = vmul.f32 %v999, 0.70710677
      %v1096 = vmul.f32 %v1004, 0.70710677
      %v1097 = vmul.f32 %v1007, 0.70710677
      %v1098 = vmul.f32 %v1012, 0.70710677
      %v1099 = vmul.f32 %v1015, 0.70710677
      %v1100 = vmul.f32 %v1020, 0.70710677
      %v1101 = vmul.f32 %v1023, 0.70710677
      %v1102 = vmul.f32 %v1028, 0.70710677
      %v1103 = vmul.f32 %v1031, 0.70710677
      %v1104 = vmul.f32 %v1036, 0.70710677
      %v1105 = vmul.f32 %v1039, 0.70710677
      %v1106 = verf.f32.pop %v1074
      %v1107 = verf.f32.pop %v1075
      %v1108 = verf.f32.pop %v1076
      %v1109 = verf.f32.pop %v1077
      %v1110 = verf.f32.pop %v1078
      %v1111 = verf.f32.pop %v1079
      %v1112 = verf.f32.pop %v1080
      %v1113 = verf.f32.pop %v1081
      %v1114 = verf.f32.pop %v1082
      %v1115 = verf.f32.pop %v1083
      %v1116 = verf.f32.pop %v1084
      %v1117 = verf.f32.pop %v1085
      %v1118 = verf.f32.pop %v1086
      %v1119 = verf.f32.pop %v1087
      %v1120 = verf.f32.pop %v1088
      %v1121 = verf.f32.pop %v1089
      %v1122 = verf.f32.pop %v1090
      %v1123 = verf.f32.pop %v1091
      %v1124 = verf.f32.pop %v1092
      %v1125 = verf.f32.pop %v1093
      %v1126 = verf.f32.pop %v1094
      %v1127 = verf.f32.pop %v1095
      %v1128 = verf.f32.pop %v1096
      %v1129 = verf.f32.pop %v1097
      %v1130 = verf.f32.pop %v1098
      %v1131 = verf.f32.pop %v1099
      %v1132 = verf.f32.pop %v1100
      %v1133 = verf.f32.pop %v1101
      %v1134 = verf.f32.pop %v1102
      %v1135 = verf.f32.pop %v1103
      %v1136 = verf.f32.pop %v1104
      %v1137 = verf.f32.pop %v1105
      %v1138 = vadd.f32 %v1106, 1.0
      %v1139 = vadd.f32 %v1107, 1.0
      %v1140 = vadd.f32 %v1108, 1.0
      %v1141 = vadd.f32 %v1109, 1.0
      %v1142 = vadd.f32 %v1110, 1.0
      %v1143 = vadd.f32 %v1111, 1.0
      %v1144 = vadd.f32 %v1112, 1.0
      %v1145 = vadd.f32 %v1113, 1.0
      %v1146 = vadd.f32 %v1114, 1.0
      %v1147 = vadd.f32 %v1115, 1.0
      %v1148 = vadd.f32 %v1116, 1.0
      %v1149 = vadd.f32 %v1117, 1.0
      %v1150 = vadd.f32 %v1118, 1.0
      %v1151 = vadd.f32 %v1119, 1.0
      %v1152 = vadd.f32 %v1120, 1.0
      %v1153 = vadd.f32 %v1121, 1.0
      %v1154 = vadd.f32 %v1122, 1.0
      %v1155 = vadd.f32 %v1123, 1.0
      %v1156 = vadd.f32 %v1124, 1.0
      %v1157 = vadd.f32 %v1125, 1.0
      %v1158 = vadd.f32 %v1126, 1.0
      %v1159 = vadd.f32 %v1127, 1.0
      %v1160 = vadd.f32 %v1128, 1.0
      %v1161 = vadd.f32 %v1129, 1.0
      %v1162 = vadd.f32 %v1130, 1.0
      %v1163 = vadd.f32 %v1131, 1.0
      %v1164 = vadd.f32 %v1132, 1.0
      %v1165 = vadd.f32 %v1133, 1.0
      %v1166 = vadd.f32 %v1134, 1.0
      %v1167 = vadd.f32 %v1135, 1.0
      %v1168 = vadd.f32 %v1136, 1.0
      %v1169 = vadd.f32 %v1137, 1.0
      %v1170 = vmul.f32 %v1042, %v1138
      %v1171 = vmul.f32 %v1043, %v1139
      %v1172 = vmul.f32 %v1044, %v1140
      %v1173 = vmul.f32 %v1045, %v1141
      %v1174 = vmul.f32 %v1046, %v1142
      %v1175 = vmul.f32 %v1047, %v1143
      %v1176 = vmul.f32 %v1048, %v1144
      %v1177 = vmul.f32 %v1049, %v1145
      %v1178 = vmul.f32 %v1050, %v1146
      %v1179 = vmul.f32 %v1051, %v1147
      %v1180 = vmul.f32 %v1052, %v1148
      %v1181 = vmul.f32 %v1053, %v1149
      %v1182 = vmul.f32 %v1054, %v1150
      %v1183 = vmul.f32 %v1055, %v1151
      %v1184 = vmul.f32 %v1056, %v1152
      %v1185 = vmul.f32 %v1057, %v1153
      %v1186 = vmul.f32 %v1058, %v1154
      %v1187 = vmul.f32 %v1059, %v1155
      %v1188 = vmul.f32 %v1060, %v1156
      %v1189 = vmul.f32 %v1061, %v1157
      %v1190 = vmul.f32 %v1062, %v1158
      %v1191 = vmul.f32 %v1063, %v1159
      %v1192 = vmul.f32 %v1064, %v1160
      %v1193 = vmul.f32 %v1065, %v1161
      %v1194 = vmul.f32 %v1066, %v1162
      %v1195 = vmul.f32 %v1067, %v1163
      %v1196 = vmul.f32 %v1068, %v1164
      %v1197 = vmul.f32 %v1069, %v1165
      %v1198 = vmul.f32 %v1070, %v1166
      %v1199 = vmul.f32 %v1071, %v1167
      %v1200 = vmul.f32 %v1072, %v1168
      %v1201 = vmul.f32 %v1073, %v1169
      %v1202 = vpack.c.bf16 %v1171, %v1170
      %v1203 = vpack.c.bf16 %v1173, %v1172
      %v1204 = vpack.c.bf16 %v1175, %v1174
      %v1205 = vpack.c.bf16 %v1177, %v1176
      %v1206 = vpack.c.bf16 %v1179, %v1178
      %v1207 = vpack.c.bf16 %v1181, %v1180
      %v1208 = vpack.c.bf16 %v1183, %v1182
      %v1209 = vpack.c.bf16 %v1185, %v1184
      %v1210 = vpack.c.bf16 %v1187, %v1186
      %v1211 = vpack.c.bf16 %v1189, %v1188
      %v1212 = vpack.c.bf16 %v1191, %v1190
      %v1213 = vpack.c.bf16 %v1193, %v1192
      %v1214 = vpack.c.bf16 %v1195, %v1194
      %v1215 = vpack.c.bf16 %v1197, %v1196
      %v1216 = vpack.c.bf16 %v1199, %v1198
      %v1217 = vpack.c.bf16 %v1201, %v1200
      %v1234 = vunpack.c.l.b16 %v1202
      %v1235 = vunpack.c.h.b16 %v1202
      %v1236 = vunpack.c.l.b16 %v1203
      %v1237 = vunpack.c.h.b16 %v1203
      %v1238 = vunpack.c.l.b16 %v1204
      %v1239 = vunpack.c.h.b16 %v1204
      %v1240 = vunpack.c.l.b16 %v1205
      %v1241 = vunpack.c.h.b16 %v1205
      %v1242 = vunpack.c.l.b16 %v1206
      %v1243 = vunpack.c.h.b16 %v1206
      %v1244 = vunpack.c.l.b16 %v1207
      %v1245 = vunpack.c.h.b16 %v1207
      %v1246 = vunpack.c.l.b16 %v1208
      %v1247 = vunpack.c.h.b16 %v1208
      %v1248 = vunpack.c.l.b16 %v1209
      %v1249 = vunpack.c.h.b16 %v1209
      %v1250 = vunpack.c.l.b16 %v1210
      %v1251 = vunpack.c.h.b16 %v1210
      %v1252 = vunpack.c.l.b16 %v1211
      %v1253 = vunpack.c.h.b16 %v1211
      %v1254 = vunpack.c.l.b16 %v1212
      %v1255 = vunpack.c.h.b16 %v1212
      %v1256 = vunpack.c.l.b16 %v1213
      %v1257 = vunpack.c.h.b16 %v1213
      %v1258 = vunpack.c.l.b16 %v1214
      %v1259 = vunpack.c.h.b16 %v1214
      %v1260 = vunpack.c.l.b16 %v1215
      %v1261 = vunpack.c.h.b16 %v1215
      %v1262 = vunpack.c.l.b16 %v1216
      %v1263 = vunpack.c.h.b16 %v1216
      %v1264 = vunpack.c.l.b16 %v1217
      %v1265 = vunpack.c.h.b16 %v1217
      %v1266 = vpack.c.b16 %v1234, %v1234
      %v1267 = vpack.c.b16 %v1235, %v1235
      %v1268 = vpack.c.b16 %v1236, %v1236
      %v1269 = vpack.c.b16 %v1237, %v1237
      %v1270 = vpack.c.b16 %v1238, %v1238
      %v1271 = vpack.c.b16 %v1239, %v1239
      %v1272 = vpack.c.b16 %v1240, %v1240
      %v1273 = vpack.c.b16 %v1241, %v1241
      %v1274 = vpack.c.b16 %v1242, %v1242
      %v1275 = vpack.c.b16 %v1243, %v1243
      %v1276 = vpack.c.b16 %v1244, %v1244
      %v1277 = vpack.c.b16 %v1245, %v1245
      %v1278 = vpack.c.b16 %v1246, %v1246
      %v1279 = vpack.c.b16 %v1247, %v1247
      %v1280 = vpack.c.b16 %v1248, %v1248
      %v1281 = vpack.c.b16 %v1249, %v1249
      %v1282 = vpack.c.b16 %v1250, %v1250
      %v1283 = vpack.c.b16 %v1251, %v1251
      %v1284 = vpack.c.b16 %v1252, %v1252
      %v1285 = vpack.c.b16 %v1253, %v1253
      %v1286 = vpack.c.b16 %v1254, %v1254
      %v1287 = vpack.c.b16 %v1255, %v1255
      %v1288 = vpack.c.b16 %v1256, %v1256
      %v1289 = vpack.c.b16 %v1257, %v1257
      %v1290 = vpack.c.b16 %v1258, %v1258
      %v1291 = vpack.c.b16 %v1259, %v1259
      %v1292 = vpack.c.b16 %v1260, %v1260
      %v1293 = vpack.c.b16 %v1261, %v1261
      %v1294 = vpack.c.b16 %v1262, %v1262
      %v1295 = vpack.c.b16 %v1263, %v1263
      %v1296 = vpack.c.b16 %v1264, %v1264
      %v1297 = vpack.c.b16 %v1265, %v1265
      %vm1330 = vcmask 27648
      %1331 = vst.msk [vmem:[%s309] sm:$0xf] %vm1330, %v1266
      %1332 = vst.msk [vmem:[%s309 + $0x4] sm:$0xf] %vm1330, %v1267
      %1333 = vst.msk [vmem:[%s309 + $0x8] sm:$0xf] %vm1330, %v1268
      %1334 = vst.msk [vmem:[%s309 + $0xc] sm:$0xf] %vm1330, %v1269
      %1335 = vst.msk [vmem:[%s309 + $0x10] sm:$0xf] %vm1330, %v1270
      %1336 = vst.msk [vmem:[%s309 + $0x14] sm:$0xf] %vm1330, %v1271
      %1337 = vst.msk [vmem:[%s309 + $0x18] sm:$0xf] %vm1330, %v1272
      %1338 = vst.msk [vmem:[%s309 + $0x1c] sm:$0xf] %vm1330, %v1273
      %1339 = vst.msk [vmem:[%s309 + $0x20] sm:$0xf] %vm1330, %v1274
      %1340 = vst.msk [vmem:[%s309 + $0x24] sm:$0xf] %vm1330, %v1275
      %1341 = vst.msk [vmem:[%s309 + $0x28] sm:$0xf] %vm1330, %v1276
      %1342 = vst.msk [vmem:[%s309 + $0x2c] sm:$0xf] %vm1330, %v1277
      %1343 = vst.msk [vmem:[%s309 + $0x30] sm:$0xf] %vm1330, %v1278
      %1344 = vst.msk [vmem:[%s309 + $0x34] sm:$0xf] %vm1330, %v1279
      %1345 = vst.msk [vmem:[%s309 + $0x38] sm:$0xf] %vm1330, %v1280
      %1346 = vst.msk [vmem:[%s309 + $0x3c] sm:$0xf] %vm1330, %v1281
      %1347 = vst.msk [vmem:[%s309 + $0x40] sm:$0xf] %vm1330, %v1282
      %1348 = vst.msk [vmem:[%s309 + $0x44] sm:$0xf] %vm1330, %v1283
      %1349 = vst.msk [vmem:[%s309 + $0x48] sm:$0xf] %vm1330, %v1284
      %1350 = vst.msk [vmem:[%s309 + $0x4c] sm:$0xf] %vm1330, %v1285
      %1351 = vst.msk [vmem:[%s309 + $0x50] sm:$0xf] %vm1330, %v1286
      %1352 = vst.msk [vmem:[%s309 + $0x54] sm:$0xf] %vm1330, %v1287
      %1353 = vst.msk [vmem:[%s309 + $0x58] sm:$0xf] %vm1330, %v1288
      %1354 = vst.msk [vmem:[%s309 + $0x5c] sm:$0xf] %vm1330, %v1289
      %1355 = vst.msk [vmem:[%s309 + $0x60] sm:$0xf] %vm1330, %v1290
      %1356 = vst.msk [vmem:[%s309 + $0x64] sm:$0xf] %vm1330, %v1291
      %1357 = vst.msk [vmem:[%s309 + $0x68] sm:$0xf] %vm1330, %v1292
      %1358 = vst.msk [vmem:[%s309 + $0x6c] sm:$0xf] %vm1330, %v1293
      %1359 = vst.msk [vmem:[%s309 + $0x70] sm:$0xf] %vm1330, %v1294
      %1360 = vst.msk [vmem:[%s309 + $0x74] sm:$0xf] %vm1330, %v1295
      %1361 = vst.msk [vmem:[%s309 + $0x78] sm:$0xf] %vm1330, %v1296
      %1362 = vst.msk [vmem:[%s309 + $0x7c] sm:$0xf] %vm1330, %v1297
      %v1363 = vld [vmem:[%s2] sm:$0x3]
      %v1364 = vld [vmem:[%s4] sm:$0x1]
      %v1366 = vlaneseq
      %v1367 = vshrl.u32 %v1366, 7
      %v1368 = vsub.s32 0, %v1367
      %v1369 = vrot.slane %v1364, %v1368
      %v1372 = vsel %vm877, %v1363, 0
      %1374 = vmatprep.subr.bf16.mxu0 0
      %1375 = vmatpush1.bf16.msra.mxu0 %v1372
      %1376 = vmatprep.subr.bf16.mxu0 0
      %1377 = vmatpush1.bf16.msra.mxu0 0
      %1378 = vmatprep.subr.bf16.mxu0 0
      %1379 = vmatpush1.bf16.msra.mxu0 0
      %1380 = vmatprep.subr.bf16.mxu0 0
      %1381 = vmatpush1.bf16.msra.mxu0 0
      %1382 = vmatprep.subr.bf16.mxu0 0
      %1383 = vmatpush1.bf16.msra.mxu0 0
      %1384 = vmatprep.subr.bf16.mxu0 0
      %1385 = vmatpush1.bf16.msra.mxu0 0
      %1386 = vmatprep.subr.bf16.mxu0 0
      %1387 = vmatpush1.bf16.msra.mxu0 0
      %1388 = vmatprep.subr.bf16.mxu0 0
      %1389 = vmatpush1.bf16.msra.mxu0 0
      %1390 = vmatprep.subr.bf16.mxu0 0
      %1391 = vmatpush1.bf16.msra.mxu0 0
      %1392 = vmatprep.subr.bf16.mxu0 0
      %1393 = vmatpush1.bf16.msra.mxu0 0
      %1394 = vmatprep.subr.bf16.mxu0 0
      %1395 = vmatpush1.bf16.msra.mxu0 0
      %1396 = vmatprep.subr.bf16.mxu0 0
      %1397 = vmatpush1.bf16.msra.mxu0 0
      %1398 = vmatprep.subr.bf16.mxu0 0
      %1399 = vmatpush1.bf16.msra.mxu0 0
      %1400 = vmatprep.subr.bf16.mxu0 0
      %1401 = vmatpush1.bf16.msra.mxu0 0
      %1402 = vmatprep.subr.bf16.mxu0 0
      %1403 = vmatpush1.bf16.msra.mxu0 0
      %1404 = vmatprep.subr.bf16.mxu0 0
      %1405 = vmatpush1.bf16.msra.mxu0 0
      %1406 = vmatprep.mubr.bf16.mxu0 0
      %1407 = vmatmul.mubr.bf16.gmra.mrb[0].mxu0 %v830
      %v1408 = vpop.f32.mrb[0].mxu0
      %v1409 = vadd.f32 %v1369, %v1408
      %v1410 = vpop.f32.mrb[0].mxu0
      %v1411 = vpop.f32.mrb[0].mxu0
      %v1412 = vadd.f32 %v1369, %v1411
      %v1413 = vpop.f32.mrb[0].mxu0
      %1414 = vmatprep.mubr.bf16.mxu0 0
      %1415 = vmatmul.mubr.bf16.gmra.mrb[0].mxu0 %v833
      %v1416 = vpop.f32.mrb[0].mxu0
      %v1417 = vadd.f32 %v1369, %v1416
      %v1418 = vpop.f32.mrb[0].mxu0
      %v1419 = vpop.f32.mrb[0].mxu0
      %v1420 = vadd.f32 %v1369, %v1419
      %v1421 = vpop.f32.mrb[0].mxu0
      %1422 = vmatprep.mubr.bf16.mxu0 0
      %1423 = vmatmul.mubr.bf16.gmra.mrb[0].mxu0 %v836
      %v1424 = vpop.f32.mrb[0].mxu0
      %v1425 = vadd.f32 %v1369, %v1424
      %v1426 = vpop.f32.mrb[0].mxu0
      %v1427 = vpop.f32.mrb[0].mxu0
      %v1428 = vadd.f32 %v1369, %v1427
      %v1429 = vpop.f32.mrb[0].mxu0
      %1430 = vmatprep.mubr.bf16.mxu0 0
      %1431 = vmatmul.mubr.bf16.gmra.mrb[0].mxu0 %v839
      %v1432 = vpop.f32.mrb[0].mxu0
      %v1433 = vadd.f32 %v1369, %v1432
      %v1434 = vpop.f32.mrb[0].mxu0
      %v1435 = vpop.f32.mrb[0].mxu0
      %v1436 = vadd.f32 %v1369, %v1435
      %v1437 = vpop.f32.mrb[0].mxu0
      %1438 = vmatprep.mubr.bf16.mxu0 0
      %1439 = vmatmul.mubr.bf16.gmra.mrb[0].mxu0 %v842
      %v1440 = vpop.f32.mrb[0].mxu0
      %v1441 = vadd.f32 %v1369, %v1440
      %v1442 = vpop.f32.mrb[0].mxu0
      %v1443 = vpop.f32.mrb[0].mxu0
      %v1444 = vadd.f32 %v1369, %v1443
      %v1445 = vpop.f32.mrb[0].mxu0
      %1446 = vmatprep.mubr.bf16.mxu0 0
      %1447 = vmatmul.mubr.bf16.gmra.mrb[0].mxu0 %v845
      %v1448 = vpop.f32.mrb[0].mxu0
      %v1449 = vadd.f32 %v1369, %v1448
      %v1450 = vpop.f32.mrb[0].mxu0
      %v1451 = vpop.f32.mrb[0].mxu0
      %v1452 = vadd.f32 %v1369, %v1451
      %v1453 = vpop.f32.mrb[0].mxu0
      %1454 = vmatprep.mubr.bf16.mxu0 0
      %1455 = vmatmul.mubr.bf16.gmra.mrb[0].mxu0 %v848
      %v1456 = vpop.f32.mrb[0].mxu0
      %v1457 = vadd.f32 %v1369, %v1456
      %v1458 = vpop.f32.mrb[0].mxu0
      %v1459 = vpop.f32.mrb[0].mxu0
      %v1460 = vadd.f32 %v1369, %v1459
      %v1461 = vpop.f32.mrb[0].mxu0
      %1462 = vmatprep.mubr.bf16.mxu0 0
      %1463 = vmatmul.mubr.bf16.gmra.mrb[0].mxu0 %v851
      %v1464 = vpop.f32.mrb[0].mxu0
      %v1465 = vadd.f32 %v1369, %v1464
      %v1466 = vpop.f32.mrb[0].mxu0
      %v1467 = vpop.f32.mrb[0].mxu0
      %v1468 = vadd.f32 %v1369, %v1467
      %v1469 = vpop.f32.mrb[0].mxu0
      %1470 = vmatprep.mubr.bf16.mxu0 0
      %1471 = vmatmul.mubr.bf16.gmra.mrb[0].mxu0 %v854
      %v1472 = vpop.f32.mrb[0].mxu0
      %v1473 = vadd.f32 %v1369, %v1472
      %v1474 = vpop.f32.mrb[0].mxu0
      %v1475 = vpop.f32.mrb[0].mxu0
      %v1476 = vadd.f32 %v1369, %v1475
      %v1477 = vpop.f32.mrb[0].mxu0
      %1478 = vmatprep.mubr.bf16.mxu0 0
      %1479 = vmatmul.mubr.bf16.gmra.mrb[0].mxu0 %v857
      %v1480 = vpop.f32.mrb[0].mxu0
      %v1481 = vadd.f32 %v1369, %v1480
      %v1482 = vpop.f32.mrb[0].mxu0
      %v1483 = vpop.f32.mrb[0].mxu0
      %v1484 = vadd.f32 %v1369, %v1483
      %v1485 = vpop.f32.mrb[0].mxu0
      %1486 = vmatprep.mubr.bf16.mxu0 0
      %1487 = vmatmul.mubr.bf16.gmra.mrb[0].mxu0 %v860
      %v1488 = vpop.f32.mrb[0].mxu0
      %v1489 = vadd.f32 %v1369, %v1488
      %v1490 = vpop.f32.mrb[0].mxu0
      %v1491 = vpop.f32.mrb[0].mxu0
      %v1492 = vadd.f32 %v1369, %v1491
      %v1493 = vpop.f32.mrb[0].mxu0
      %1494 = vmatprep.mubr.bf16.mxu0 0
      %1495 = vmatmul.mubr.bf16.gmra.mrb[0].mxu0 %v863
      %v1496 = vpop.f32.mrb[0].mxu0
      %v1497 = vadd.f32 %v1369, %v1496
      %v1498 = vpop.f32.mrb[0].mxu0
      %v1499 = vpop.f32.mrb[0].mxu0
      %v1500 = vadd.f32 %v1369, %v1499
      %v1501 = vpop.f32.mrb[0].mxu0
      %1502 = vmatprep.mubr.bf16.mxu0 0
      %1503 = vmatmul.mubr.bf16.gmra.mrb[0].mxu0 %v866
      %v1504 = vpop.f32.mrb[0].mxu0
      %v1505 = vadd.f32 %v1369, %v1504
      %v1506 = vpop.f32.mrb[0].mxu0
      %v1507 = vpop.f32.mrb[0].mxu0
      %v1508 = vadd.f32 %v1369, %v1507
      %v1509 = vpop.f32.mrb[0].mxu0
      %1510 = vmatprep.mubr.bf16.mxu0 0
      %1511 = vmatmul.mubr.bf16.gmra.mrb[0].mxu0 %v869
      %v1512 = vpop.f32.mrb[0].mxu0
      %v1513 = vadd.f32 %v1369, %v1512
      %v1514 = vpop.f32.mrb[0].mxu0
      %v1515 = vpop.f32.mrb[0].mxu0
      %v1516 = vadd.f32 %v1369, %v1515
      %v1517 = vpop.f32.mrb[0].mxu0
      %1518 = vmatprep.mubr.bf16.mxu0 0
      %1519 = vmatmul.mubr.bf16.gmra.mrb[0].mxu0 %v872
      %v1520 = vpop.f32.mrb[0].mxu0
      %v1521 = vadd.f32 %v1369, %v1520
      %v1522 = vpop.f32.mrb[0].mxu0
      %v1523 = vpop.f32.mrb[0].mxu0
      %v1524 = vadd.f32 %v1369, %v1523
      %v1525 = vpop.f32.mrb[0].mxu0
      %1526 = vmatprep.mubr.bf16.mxu0 0
      %1527 = vmatmul.mubr.bf16.gmra.mrb[0].mxu0 %v875
      %v1528 = vpop.f32.mrb[0].mxu0
      %v1529 = vadd.f32 %v1369, %v1528
      %v1530 = vpop.f32.mrb[0].mxu0
      %v1531 = vpop.f32.mrb[0].mxu0
      %v1532 = vadd.f32 %v1369, %v1531
      %v1533 = vpop.f32.mrb[0].mxu0
      %1534 = vdwg.mxu0
      %v1535 = vmul.f32 %v1409, 0.5
      %v1536 = vmul.f32 %v1412, 0.5
      %v1537 = vmul.f32 %v1417, 0.5
      %v1538 = vmul.f32 %v1420, 0.5
      %v1539 = vmul.f32 %v1425, 0.5
      %v1540 = vmul.f32 %v1428, 0.5
      %v1541 = vmul.f32 %v1433, 0.5
      %v1542 = vmul.f32 %v1436, 0.5
      %v1543 = vmul.f32 %v1441, 0.5
      %v1544 = vmul.f32 %v1444, 0.5
      %v1545 = vmul.f32 %v1449, 0.5
      %v1546 = vmul.f32 %v1452, 0.5
      %v1547 = vmul.f32 %v1457, 0.5
      %v1548 = vmul.f32 %v1460, 0.5
      %v1549 = vmul.f32 %v1465, 0.5
      %v1550 = vmul.f32 %v1468, 0.5
      %v1551 = vmul.f32 %v1473, 0.5
      %v1552 = vmul.f32 %v1476, 0.5
      %v1553 = vmul.f32 %v1481, 0.5
      %v1554 = vmul.f32 %v1484, 0.5
      %v1555 = vmul.f32 %v1489, 0.5
      %v1556 = vmul.f32 %v1492, 0.5
      %v1557 = vmul.f32 %v1497, 0.5
      %v1558 = vmul.f32 %v1500, 0.5
      %v1559 = vmul.f32 %v1505, 0.5
      %v1560 = vmul.f32 %v1508, 0.5
      %v1561 = vmul.f32 %v1513, 0.5
      %v1562 = vmul.f32 %v1516, 0.5
      %v1563 = vmul.f32 %v1521, 0.5
      %v1564 = vmul.f32 %v1524, 0.5
      %v1565 = vmul.f32 %v1529, 0.5
      %v1566 = vmul.f32 %v1532, 0.5
      %v1567 = vmul.f32 %v1409, 0.70710677
      %v1568 = vmul.f32 %v1412, 0.70710677
      %v1569 = vmul.f32 %v1417, 0.70710677
      %v1570 = vmul.f32 %v1420, 0.70710677
      %v1571 = vmul.f32 %v1425, 0.70710677
      %v1572 = vmul.f32 %v1428, 0.70710677
      %v1573 = vmul.f32 %v1433, 0.70710677
      %v1574 = vmul.f32 %v1436, 0.70710677
      %v1575 = vmul.f32 %v1441, 0.70710677
      %v1576 = vmul.f32 %v1444, 0.70710677
      %v1577 = vmul.f32 %v1449, 0.70710677
      %v1578 = vmul.f32 %v1452, 0.70710677
      %v1579 = vmul.f32 %v1457, 0.70710677
      %v1580 = vmul.f32 %v1460, 0.70710677
      %v1581 = vmul.f32 %v1465, 0.70710677
      %v1582 = vmul.f32 %v1468, 0.70710677
      %v1583 = vmul.f32 %v1473, 0.70710677
      %v1584 = vmul.f32 %v1476, 0.70710677
      %v1585 = vmul.f32 %v1481, 0.70710677
      %v1586 = vmul.f32 %v1484, 0.70710677
      %v1587 = vmul.f32 %v1489, 0.70710677
      %v1588 = vmul.f32 %v1492, 0.70710677
      %v1589 = vmul.f32 %v1497, 0.70710677
      %v1590 = vmul.f32 %v1500, 0.70710677
      %v1591 = vmul.f32 %v1505, 0.70710677
      %v1592 = vmul.f32 %v1508, 0.70710677
      %v1593 = vmul.f32 %v1513, 0.70710677
      %v1594 = vmul.f32 %v1516, 0.70710677
      %v1595 = vmul.f32 %v1521, 0.70710677
      %v1596 = vmul.f32 %v1524, 0.70710677
      %v1597 = vmul.f32 %v1529, 0.70710677
      %v1598 = vmul.f32 %v1532, 0.70710677
      %v1599 = verf.f32.pop %v1567
      %v1600 = verf.f32.pop %v1568
      %v1601 = verf.f32.pop %v1569
      %v1602 = verf.f32.pop %v1570
      %v1603 = verf.f32.pop %v1571
      %v1604 = verf.f32.pop %v1572
      %v1605 = verf.f32.pop %v1573
      %v1606 = verf.f32.pop %v1574
      %v1607 = verf.f32.pop %v1575
      %v1608 = verf.f32.pop %v1576
      %v1609 = verf.f32.pop %v1577
      %v1610 = verf.f32.pop %v1578
      %v1611 = verf.f32.pop %v1579
      %v1612 = verf.f32.pop %v1580
      %v1613 = verf.f32.pop %v1581
      %v1614 = verf.f32.pop %v1582
      %v1615 = verf.f32.pop %v1583
      %v1616 = verf.f32.pop %v1584
      %v1617 = verf.f32.pop %v1585
      %v1618 = verf.f32.pop %v1586
      %v1619 = verf.f32.pop %v1587
      %v1620 = verf.f32.pop %v1588
      %v1621 = verf.f32.pop %v1589
      %v1622 = verf.f32.pop %v1590
      %v1623 = verf.f32.pop %v1591
      %v1624 = verf.f32.pop %v1592
      %v1625 = verf.f32.pop %v1593
      %v1626 = verf.f32.pop %v1594
      %v1627 = verf.f32.pop %v1595
      %v1628 = verf.f32.pop %v1596
      %v1629 = verf.f32.pop %v1597
      %v1630 = verf.f32.pop %v1598
      %v1631 = vadd.f32 %v1599, 1.0
      %v1632 = vadd.f32 %v1600, 1.0
      %v1633 = vadd.f32 %v1601, 1.0
      %v1634 = vadd.f32 %v1602, 1.0
      %v1635 = vadd.f32 %v1603, 1.0
      %v1636 = vadd.f32 %v1604, 1.0
      %v1637 = vadd.f32 %v1605, 1.0
      %v1638 = vadd.f32 %v1606, 1.0
      %v1639 = vadd.f32 %v1607, 1.0
      %v1640 = vadd.f32 %v1608, 1.0
      %v1641 = vadd.f32 %v1609, 1.0
      %v1642 = vadd.f32 %v1610, 1.0
      %v1643 = vadd.f32 %v1611, 1.0
      %v1644 = vadd.f32 %v1612, 1.0
      %v1645 = vadd.f32 %v1613, 1.0
      %v1646 = vadd.f32 %v1614, 1.0
      %v1647 = vadd.f32 %v1615, 1.0
      %v1648 = vadd.f32 %v1616, 1.0
      %v1649 = vadd.f32 %v1617, 1.0
      %v1650 = vadd.f32 %v1618, 1.0
      %v1651 = vadd.f32 %v1619, 1.0
      %v1652 = vadd.f32 %v1620, 1.0
      %v1653 = vadd.f32 %v1621, 1.0
      %v1654 = vadd.f32 %v1622, 1.0
      %v1655 = vadd.f32 %v1623, 1.0
      %v1656 = vadd.f32 %v1624, 1.0
      %v1657 = vadd.f32 %v1625, 1.0
      %v1658 = vadd.f32 %v1626, 1.0
      %v1659 = vadd.f32 %v1627, 1.0
      %v1660 = vadd.f32 %v1628, 1.0
      %v1661 = vadd.f32 %v1629, 1.0
      %v1662 = vadd.f32 %v1630, 1.0
      %v1663 = vmul.f32 %v1535, %v1631
      %v1664 = vmul.f32 %v1536, %v1632
      %v1665 = vmul.f32 %v1537, %v1633
      %v1666 = vmul.f32 %v1538, %v1634
      %v1667 = vmul.f32 %v1539, %v1635
      %v1668 = vmul.f32 %v1540, %v1636
      %v1669 = vmul.f32 %v1541, %v1637
      %v1670 = vmul.f32 %v1542, %v1638
      %v1671 = vmul.f32 %v1543, %v1639
      %v1672 = vmul.f32 %v1544, %v1640
      %v1673 = vmul.f32 %v1545, %v1641
      %v1674 = vmul.f32 %v1546, %v1642
      %v1675 = vmul.f32 %v1547, %v1643
      %v1676 = vmul.f32 %v1548, %v1644
      %v1677 = vmul.f32 %v1549, %v1645
      %v1678 = vmul.f32 %v1550, %v1646
      %v1679 = vmul.f32 %v1551, %v1647
      %v1680 = vmul.f32 %v1552, %v1648
      %v1681 = vmul.f32 %v1553, %v1649
      %v1682 = vmul.f32 %v1554, %v1650
      %v1683 = vmul.f32 %v1555, %v1651
      %v1684 = vmul.f32 %v1556, %v1652
      %v1685 = vmul.f32 %v1557, %v1653
      %v1686 = vmul.f32 %v1558, %v1654
      %v1687 = vmul.f32 %v1559, %v1655
      %v1688 = vmul.f32 %v1560, %v1656
      %v1689 = vmul.f32 %v1561, %v1657
      %v1690 = vmul.f32 %v1562, %v1658
      %v1691 = vmul.f32 %v1563, %v1659
      %v1692 = vmul.f32 %v1564, %v1660
      %v1693 = vmul.f32 %v1565, %v1661
      %v1694 = vmul.f32 %v1566, %v1662
      %v1695 = vpack.c.bf16 %v1664, %v1663
      %v1696 = vpack.c.bf16 %v1666, %v1665
      %v1697 = vpack.c.bf16 %v1668, %v1667
      %v1698 = vpack.c.bf16 %v1670, %v1669
      %v1699 = vpack.c.bf16 %v1672, %v1671
      %v1700 = vpack.c.bf16 %v1674, %v1673
      %v1701 = vpack.c.bf16 %v1676, %v1675
      %v1702 = vpack.c.bf16 %v1678, %v1677
      %v1703 = vpack.c.bf16 %v1680, %v1679
      %v1704 = vpack.c.bf16 %v1682, %v1681
      %v1705 = vpack.c.bf16 %v1684, %v1683
      %v1706 = vpack.c.bf16 %v1686, %v1685
      %v1707 = vpack.c.bf16 %v1688, %v1687
      %v1708 = vpack.c.bf16 %v1690, %v1689
      %v1709 = vpack.c.bf16 %v1692, %v1691
      %v1710 = vpack.c.bf16 %v1694, %v1693
      %v1727 = vunpack.c.l.b16 %v1695
      %v1728 = vunpack.c.h.b16 %v1695
      %v1729 = vunpack.c.l.b16 %v1696
      %v1730 = vunpack.c.h.b16 %v1696
      %v1731 = vunpack.c.l.b16 %v1697
      %v1732 = vunpack.c.h.b16 %v1697
      %v1733 = vunpack.c.l.b16 %v1698
      %v1734 = vunpack.c.h.b16 %v1698
      %v1735 = vunpack.c.l.b16 %v1699
      %v1736 = vunpack.c.h.b16 %v1699
      %v1737 = vunpack.c.l.b16 %v1700
      %v1738 = vunpack.c.h.b16 %v1700
      %v1739 = vunpack.c.l.b16 %v1701
      %v1740 = vunpack.c.h.b16 %v1701
      %v1741 = vunpack.c.l.b16 %v1702
      %v1742 = vunpack.c.h.b16 %v1702
      %v1743 = vunpack.c.l.b16 %v1703
      %v1744 = vunpack.c.h.b16 %v1703
      %v1745 = vunpack.c.l.b16 %v1704
      %v1746 = vunpack.c.h.b16 %v1704
      %v1747 = vunpack.c.l.b16 %v1705
      %v1748 = vunpack.c.h.b16 %v1705
      %v1749 = vunpack.c.l.b16 %v1706
      %v1750 = vunpack.c.h.b16 %v1706
      %v1751 = vunpack.c.l.b16 %v1707
      %v1752 = vunpack.c.h.b16 %v1707
      %v1753 = vunpack.c.l.b16 %v1708
      %v1754 = vunpack.c.h.b16 %v1708
      %v1755 = vunpack.c.l.b16 %v1709
      %v1756 = vunpack.c.h.b16 %v1709
      %v1757 = vunpack.c.l.b16 %v1710
      %v1758 = vunpack.c.h.b16 %v1710
      %v1759 = vpack.c.b16 %v1727, %v1727
      %v1760 = vpack.c.b16 %v1728, %v1728
      %v1761 = vpack.c.b16 %v1729, %v1729
      %v1762 = vpack.c.b16 %v1730, %v1730
      %v1763 = vpack.c.b16 %v1731, %v1731
      %v1764 = vpack.c.b16 %v1732, %v1732
      %v1765 = vpack.c.b16 %v1733, %v1733
      %v1766 = vpack.c.b16 %v1734, %v1734
      %v1767 = vpack.c.b16 %v1735, %v1735
      %v1768 = vpack.c.b16 %v1736, %v1736
      %v1769 = vpack.c.b16 %v1737, %v1737
      %v1770 = vpack.c.b16 %v1738, %v1738
      %v1771 = vpack.c.b16 %v1739, %v1739
      %v1772 = vpack.c.b16 %v1740, %v1740
      %v1773 = vpack.c.b16 %v1741, %v1741
      %v1774 = vpack.c.b16 %v1742, %v1742
      %v1775 = vpack.c.b16 %v1743, %v1743
      %v1776 = vpack.c.b16 %v1744, %v1744
      %v1777 = vpack.c.b16 %v1745, %v1745
      %v1778 = vpack.c.b16 %v1746, %v1746
      %v1779 = vpack.c.b16 %v1747, %v1747
      %v1780 = vpack.c.b16 %v1748, %v1748
      %v1781 = vpack.c.b16 %v1749, %v1749
      %v1782 = vpack.c.b16 %v1750, %v1750
      %v1783 = vpack.c.b16 %v1751, %v1751
      %v1784 = vpack.c.b16 %v1752, %v1752
      %v1785 = vpack.c.b16 %v1753, %v1753
      %v1786 = vpack.c.b16 %v1754, %v1754
      %v1787 = vpack.c.b16 %v1755, %v1755
      %v1788 = vpack.c.b16 %v1756, %v1756
      %v1789 = vpack.c.b16 %v1757, %v1757
      %v1790 = vpack.c.b16 %v1758, %v1758
      %1823 = vst.msk [vmem:[%s320] sm:$0xf] %vm1330, %v1759
      %1824 = vst.msk [vmem:[%s320 + $0x4] sm:$0xf] %vm1330, %v1760
      %1825 = vst.msk [vmem:[%s320 + $0x8] sm:$0xf] %vm1330, %v1761
      %1826 = vst.msk [vmem:[%s320 + $0xc] sm:$0xf] %vm1330, %v1762
      %1827 = vst.msk [vmem:[%s320 + $0x10] sm:$0xf] %vm1330, %v1763
      %1828 = vst.msk [vmem:[%s320 + $0x14] sm:$0xf] %vm1330, %v1764
      %1829 = vst.msk [vmem:[%s320 + $0x18] sm:$0xf] %vm1330, %v1765
      %1830 = vst.msk [vmem:[%s320 + $0x1c] sm:$0xf] %vm1330, %v1766
      %1831 = vst.msk [vmem:[%s320 + $0x20] sm:$0xf] %vm1330, %v1767
      %1832 = vst.msk [vmem:[%s320 + $0x24] sm:$0xf] %vm1330, %v1768
      %1833 = vst.msk [vmem:[%s320 + $0x28] sm:$0xf] %vm1330, %v1769
      %1834 = vst.msk [vmem:[%s320 + $0x2c] sm:$0xf] %vm1330, %v1770
      %1835 = vst.msk [vmem:[%s320 + $0x30] sm:$0xf] %vm1330, %v1771
      %1836 = vst.msk [vmem:[%s320 + $0x34] sm:$0xf] %vm1330, %v1772
      %1837 = vst.msk [vmem:[%s320 + $0x38] sm:$0xf] %vm1330, %v1773
      %1838 = vst.msk [vmem:[%s320 + $0x3c] sm:$0xf] %vm1330, %v1774
      %1839 = vst.msk [vmem:[%s320 + $0x40] sm:$0xf] %vm1330, %v1775
      %1840 = vst.msk [vmem:[%s320 + $0x44] sm:$0xf] %vm1330, %v1776
      %1841 = vst.msk [vmem:[%s320 + $0x48] sm:$0xf] %vm1330, %v1777
      %1842 = vst.msk [vmem:[%s320 + $0x4c] sm:$0xf] %vm1330, %v1778
      %1843 = vst.msk [vmem:[%s320 + $0x50] sm:$0xf] %vm1330, %v1779
      %1844 = vst.msk [vmem:[%s320 + $0x54] sm:$0xf] %vm1330, %v1780
      %1845 = vst.msk [vmem:[%s320 + $0x58] sm:$0xf] %vm1330, %v1781
      %1846 = vst.msk [vmem:[%s320 + $0x5c] sm:$0xf] %vm1330, %v1782
      %1847 = vst.msk [vmem:[%s320 + $0x60] sm:$0xf] %vm1330, %v1783
      %1848 = vst.msk [vmem:[%s320 + $0x64] sm:$0xf] %vm1330, %v1784
      %1849 = vst.msk [vmem:[%s320 + $0x68] sm:$0xf] %vm1330, %v1785
      %1850 = vst.msk [vmem:[%s320 + $0x6c] sm:$0xf] %vm1330, %v1786
      %1851 = vst.msk [vmem:[%s320 + $0x70] sm:$0xf] %vm1330, %v1787
      %1852 = vst.msk [vmem:[%s320 + $0x74] sm:$0xf] %vm1330, %v1788
      %1853 = vst.msk [vmem:[%s320 + $0x78] sm:$0xf] %vm1330, %v1789
      %1854 = vst.msk [vmem:[%s320 + $0x7c] sm:$0xf] %vm1330, %v1790
      %s1855 = smul.u32 16, %s23
      %p1856 = scmp.lt.s32.totalorder %s22, 1
      %s1857 = scalar_select %p1856, %s22, 1
      %p1858 = scmp.lt.s32.totalorder %s1855, 15
      %s1859 = scalar_select %p1858, %s1855, 15
      %s1860 = smul.addr %s1859, 2
      %s1861 = smul.addr %s1857, 32
      %s1862 = sadd.s32 %s1860, %s1861
      %s1863 = smul.addr %s1862, 4
      %s1864 = scalar_lea.vmem %s5, %s1863
      %s1865 = smul.u32 16, %s23
      %p1866 = scmp.lt.s32.totalorder %s22, 1
      %s1867 = scalar_select %p1866, %s22, 1
      %p1868 = scmp.lt.s32.totalorder %s1865, 15
      %s1869 = scalar_select %p1868, %s1865, 15
      %s1870 = smul.addr %s1869, 2
      %s1871 = smul.addr %s1867, 32
      %s1872 = sadd.s32 %s1870, %s1871
      %s1873 = smul.addr %s1872, 4
      %s1874 = scalar_lea.vmem %s6, %s1873
      // Predicated region
      $region41: #{residual_split_head_multi_axis_gmlp.4} parent=39 // pred_check
        %p1875 = pneg %p162
      $region42: #{residual_split_head_multi_axis_gmlp.4} parent=39 // pred_check_branch
        %1877 = sbr.rel (%p1875) target = $region44
      $region43: #{residual_split_head_multi_axis_gmlp.4} parent=39 // pred_region
        %s1878 = smul.u32 16, %s23
      $region44: #{residual_split_head_multi_axis_gmlp.4} parent=39 // pred_fallthru
        _
      // Predicated region
      $region45: #{residual_split_head_multi_axis_gmlp.4} parent=39 // pred_check
        %p1879 = pneg %p190
      $region46: #{residual_split_head_multi_axis_gmlp.4} parent=39 // pred_check_branch
        %1881 = sbr.rel (%p1879) target = $region48
      $region47: #{residual_split_head_multi_axis_gmlp.4} parent=39 // pred_region
        %s1882 = smul.u32 16, %s23
      $region48: #{residual_split_head_multi_axis_gmlp.4} parent=39 // pred_fallthru
        _
    $region40: #{residual_split_head_multi_axis_gmlp.4} parent=5 // pred_fallthru
      _
    %p1883 = scmp.le.s32.totalorder 2, %s13
    // Predicated region
    $region49: #{residual_split_head_multi_axis_gmlp.4} parent=5 // pred_check
      %p1884 = pneg %p1883
    $region50: #{residual_split_head_multi_axis_gmlp.4} parent=5 // pred_check_branch
      %1886 = sbr.rel (%p1884) target = $region52
    $region51: #{residual_split_head_multi_axis_gmlp.4} parent=5 // pred_region
      %s1887 = ssub.s32 %s13, 2
      // Predicated region
      $region53: #{residual_split_head_multi_axis_gmlp.4} parent=51 // pred_check
        %p1888 = pneg %p168
      $region54: #{residual_split_head_multi_axis_gmlp.4} parent=51 // pred_check_branch
        %1890 = sbr.rel (%p1888) target = $region56
      $region55: #{residual_split_head_multi_axis_gmlp.4} parent=51 // pred_region
        %s1891 = smul.u32 16, %s25
        %p1892 = scmp.lt.s32.totalorder %s24, 1
        %s1893 = scalar_select %p1892, %s24, 1
        %p1894 = scmp.lt.s32.totalorder %s1891, 15
        %s1895 = scalar_select %p1894, %s1891, 15
        %s1896 = smul.addr %s1895, 2
        %s1897 = smul.addr %s1893, 32
        %s1898 = sadd.s32 %s1896, %s1897
        %s1899 = smul.addr %s1898, 4
        %s1900 = scalar_lea.vmem %s5, %s1899
      $region56: #{residual_split_head_multi_axis_gmlp.4} parent=51 // pred_fallthru
        _
      // Predicated region
      $region57: #{residual_split_head_multi_axis_gmlp.4} parent=51 // pred_check
        %p1901 = pneg %p196
      $region58: #{residual_split_head_multi_axis_gmlp.4} parent=51 // pred_check_branch
        %1903 = sbr.rel (%p1901) target = $region60
      $region59: #{residual_split_head_multi_axis_gmlp.4} parent=51 // pred_region
        %s1904 = smul.u32 16, %s25
        %p1905 = scmp.lt.s32.totalorder %s24, 1
        %s1906 = scalar_select %p1905, %s24, 1
        %p1907 = scmp.lt.s32.totalorder %s1904, 15
        %s1908 = scalar_select %p1907, %s1904, 15
        %s1909 = smul.addr %s1908, 2
        %s1910 = smul.addr %s1906, 32
        %s1911 = sadd.s32 %s1909, %s1910
        %s1912 = smul.addr %s1911, 4
        %s1913 = scalar_lea.vmem %s6, %s1912
      $region60: #{residual_split_head_multi_axis_gmlp.4} parent=51 // pred_fallthru
        _
    $region52: #{residual_split_head_multi_axis_gmlp.4} parent=5 // pred_fallthru
      _
  $region6: #{residual_split_head_multi_axis_gmlp.4} parent=0 // loop_footer
    %s17 = sadd.s32 1, %s13
  $region7: #{residual_split_head_multi_axis_gmlp.4} parent=0 // loop_footer_branch
    %12 = sbr.rel target = $region3
  $region8: #{residual_split_head_multi_axis_gmlp.4} parent=0 // loop_exit
    _

// kernel: residual_split_head_multi_axis_gmlp.5
$region0: #{residual_split_head_multi_axis_gmlp.5}
  #allocation0 [shape = 'u32[]', space=smem, size = 0x4, offset = 0x4, fixed_abs, tag = 'smem constant byte address 0x4 - core index']
  #allocation1 [shape = 'u32[144,128]{1,0:T(1,128)}', space=vmem, size = 0x12000, scoped, tag = 'internal scratch']
  %s0 = inlined_call_operand.vmem [shape: bf16[2,2,8,16,4], index: 0, kind: input, shape index: {}]
  %s1 = inlined_call_operand.vmem [shape: bf16[4,8], index: 1, kind: input, shape index: {}]
  %s2 = inlined_call_operand.vmem [shape: f32[1,8], index: 2, kind: input, shape index: {}]
  %s3 = inlined_call_operand.vmem [shape: bf16[8,4], index: 3, kind: input, shape index: {}]
  %s4 = inlined_call_operand.vmem [shape: f32[1,4], index: 4, kind: input, shape index: {}]
  %s5 = inlined_call_operand.vmem [shape: bf16[8,8], index: 5, kind: input, shape index: {}]
  %s6 = inlined_call_operand.vmem [shape: f32[1,8], index: 6, kind: input, shape index: {}]
  %s7 = inlined_call_operand.vmem [shape: bf16[8,4], index: 7, kind: input, shape index: {}]
  %s8 = inlined_call_operand.vmem [shape: f32[1,4], index: 8, kind: input, shape index: {}]
  %s9 = inlined_call_operand.vmem [shape: bf16[4,4], index: 9, kind: input, shape index: {}]
  %s10 = inlined_call_operand.vmem [shape: f32[1,4], index: 10, kind: input, shape index: {}]
  %s11 = inlined_call_operand.vmem [shape: bf16[2,2,8,16,4], index: 11, kind: output, shape index: {}]
  %s12 = sld [smem:[#allocation0]]
  $region77: #{residual_split_head_multi_axis_gmlp.5} parent=0
    _
  %s14 = ssub.s32 1, %s12
  %s15 = scalar_select 0, %s14, %s12
  loop: start=0, step=1, limit=4
  $region2: #{residual_split_head_multi_axis_gmlp.5} parent=0 // loop_pre_header
    _
  $region3: #{residual_split_head_multi_axis_gmlp.5} parent=0 // loop_header
    %s17 = sphi 0, %s21
    %p18 = scmp.ge.s32.totalorder %s17, 4
    %s24 = sphi 0, %s36
    %s25 = sphi 0, %s32
    %s26 = sphi 0, %s24
    %s27 = sphi 0, %s25
    %s28 = sphi 0, %s26
    %s29 = sphi 0, %s27
    %s41 = sphi 0, %s43
    %s44 = sphi 0, %s41
    %s45 = sphi 0, %s44
    %s61 = sphi 0, %s45
    %s65 = sphi 0, %s65
    %s67 = sphi 0, %s65
    %s68 = sphi 0, %s67
    %s82 = sphi 0, %s68
    %s86 = sphi 0, %s86
    %s88 = sphi 0, %s86
    %s89 = sphi 0, %s88
    %s103 = sphi 0, %s89
    %s107 = sphi 0, %s107
    %s109 = sphi 0, %s107
    %s110 = sphi 0, %s109
    %s124 = sphi 0, %s110
    %s128 = sphi 0, %s128
    %s130 = sphi 0, %s128
    %s131 = sphi 0, %s130
    %s145 = sphi 0, %s131
    %s149 = sphi 0, %s149
    %s151 = sphi 0, %s149
    %s152 = sphi 0, %s151
    %s166 = sphi 0, %s152
    %s170 = sphi 0, %s170
    %s172 = sphi 0, %s170
    %s173 = sphi 0, %s172
    %s187 = sphi 0, %s173
    %s191 = sphi 0, %s191
    %s193 = sphi 0, %s191
    %s194 = sphi 0, %s193
    %s208 = sphi 0, %s194
    %s212 = sphi 0, %s212
    %s214 = sphi 0, %s212
    %s215 = sphi 0, %s214
    %s229 = sphi 0, %s215
    %s233 = sphi 0, %s233
    %s235 = sphi 0, %s233
    %s236 = sphi 0, %s235
    %s250 = sphi 0, %s236
    %s254 = sphi 0, %s254
    %s256 = sphi 0, %s254
    %s257 = sphi 0, %s256
    %s271 = sphi 0, %s257
    %s279 = sphi 0, %s281
    %s282 = sphi 0, %s279
    %s283 = sphi 0, %s282
    %s299 = sphi 0, %s283
  $region4: #{residual_split_head_multi_axis_gmlp.5} parent=0 // loop_header_branch
    %20 = sbr.rel (%p18) target = $region8
  $region5: #{residual_split_head_multi_axis_gmlp.5} parent=0 // loop_body
    %s22 = ssub.s32 %s17, 1
    %s23 = ssub.s32 %s17, 2
    %s30 = sadd.s32 1, %s25
    %p31 = scmp.ge.s32.totalorder %s30, 1
    %s32 = scalar_select %p31, 0, %s30
    %s33 = sadd.s32 1, %s24
    %s34 = scalar_select %p31, %s33, %s24
    %p35 = scmp.ge.s32.totalorder %s34, 2
    %s36 = scalar_select %p35, 0, %s34
    %s37 = ssub.s32 %s24, %s36
    %s38 = ssub.s32 %s25, %s32
    %s39 = sor.u32 %s37, %s38
    %p40 = scmp.eq.s32.totalorder %s39, 0
    %s42 = sadd.s32 %s41, 1
    %s43 = scalar_select %p40, %s41, %s42
    %p46 = pneg %p40
    %p47 = scmp.eq.s32.totalorder %s17, 1
    %p48 = por %p46, %p47
    %p49 = scmp.ne.s32.totalorder %s41, %s44
    %p50 = scmp.eq.s32.totalorder %s17, 0
    %p51 = por %p49, %p50
    %p52 = scmp.ne.s32.totalorder %s41, %s44
    %p53 = scmp.eq.s32.totalorder %s22, 1
    %p54 = por %p52, %p53
    %p55 = scmp.ne.s32.totalorder %s44, %s45
    %p56 = scmp.eq.s32.totalorder %s22, 0
    %p57 = por %p55, %p56
    %p58 = scmp.ne.s32.totalorder %s44, %s45
    %p59 = scmp.eq.s32.totalorder %s23, 1
    %p60 = por %p58, %p59
    %p62 = scmp.ne.s32.totalorder %s45, %s61
    %p63 = scmp.eq.s32.totalorder %s23, 0
    %p64 = por %p62, %p63
    %s66 = sadd.s32 %s65, 1
    %p69 = scmp.eq.s32.totalorder %s17, 1
    %p70 = scmp.ne.s32.totalorder %s65, %s67
    %p71 = scmp.eq.s32.totalorder %s17, 0
    %p72 = por %p70, %p71
    %p73 = scmp.ne.s32.totalorder %s65, %s67
    %p74 = scmp.eq.s32.totalorder %s22, 1
    %p75 = por %p73, %p74
    %p76 = scmp.ne.s32.totalorder %s67, %s68
    %p77 = scmp.eq.s32.totalorder %s22, 0
    %p78 = por %p76, %p77
    %p79 = scmp.ne.s32.totalorder %s67, %s68
    %p80 = scmp.eq.s32.totalorder %s23, 1
    %p81 = por %p79, %p80
    %p83 = scmp.ne.s32.totalorder %s68, %s82
    %p84 = scmp.eq.s32.totalorder %s23, 0
    %p85 = por %p83, %p84
    %s87 = sadd.s32 %s86, 1
    %p90 = scmp.eq.s32.totalorder %s17, 1
    %p91 = scmp.ne.s32.totalorder %s86, %s88
    %p92 = scmp.eq.s32.totalorder %s17, 0
    %p93 = por %p91, %p92
    %p94 = scmp.ne.s32.totalorder %s86, %s88
    %p95 = scmp.eq.s32.totalorder %s22, 1
    %p96 = por %p94, %p95
    %p97 = scmp.ne.s32.totalorder %s88, %s89
    %p98 = scmp.eq.s32.totalorder %s22, 0
    %p99 = por %p97, %p98
    %p100 = scmp.ne.s32.totalorder %s88, %s89
    %p101 = scmp.eq.s32.totalorder %s23, 1
    %p102 = por %p100, %p101
    %p104 = scmp.ne.s32.totalorder %s89, %s103
    %p105 = scmp.eq.s32.totalorder %s23, 0
    %p106 = por %p104, %p105
    %s108 = sadd.s32 %s107, 1
    %p111 = scmp.eq.s32.totalorder %s17, 1
    %p112 = scmp.ne.s32.totalorder %s107, %s109
    %p113 = scmp.eq.s32.totalorder %s17, 0
    %p114 = por %p112, %p113
    %p115 = scmp.ne.s32.totalorder %s107, %s109
    %p116 = scmp.eq.s32.totalorder %s22, 1
    %p117 = por %p115, %p116
    %p118 = scmp.ne.s32.totalorder %s109, %s110
    %p119 = scmp.eq.s32.totalorder %s22, 0
    %p120 = por %p118, %p119
    %p121 = scmp.ne.s32.totalorder %s109, %s110
    %p122 = scmp.eq.s32.totalorder %s23, 1
    %p123 = por %p121, %p122
    %p125 = scmp.ne.s32.totalorder %s110, %s124
    %p126 = scmp.eq.s32.totalorder %s23, 0
    %p127 = por %p125, %p126
    %s129 = sadd.s32 %s128, 1
    %p132 = scmp.eq.s32.totalorder %s17, 1
    %p133 = scmp.ne.s32.totalorder %s128, %s130
    %p134 = scmp.eq.s32.totalorder %s17, 0
    %p135 = por %p133, %p134
    %p136 = scmp.ne.s32.totalorder %s128, %s130
    %p137 = scmp.eq.s32.totalorder %s22, 1
    %p138 = por %p136, %p137
    %p139 = scmp.ne.s32.totalorder %s130, %s131
    %p140 = scmp.eq.s32.totalorder %s22, 0
    %p141 = por %p139, %p140
    %p142 = scmp.ne.s32.totalorder %s130, %s131
    %p143 = scmp.eq.s32.totalorder %s23, 1
    %p144 = por %p142, %p143
    %p146 = scmp.ne.s32.totalorder %s131, %s145
    %p147 = scmp.eq.s32.totalorder %s23, 0
    %p148 = por %p146, %p147
    %s150 = sadd.s32 %s149, 1
    %p153 = scmp.eq.s32.totalorder %s17, 1
    %p154 = scmp.ne.s32.totalorder %s149, %s151
    %p155 = scmp.eq.s32.totalorder %s17, 0
    %p156 = por %p154, %p155
    %p157 = scmp.ne.s32.totalorder %s149, %s151
    %p158 = scmp.eq.s32.totalorder %s22, 1
    %p159 = por %p157, %p158
    %p160 = scmp.ne.s32.totalorder %s151, %s152
    %p161 = scmp.eq.s32.totalorder %s22, 0
    %p162 = por %p160, %p161
    %p163 = scmp.ne.s32.totalorder %s151, %s152
    %p164 = scmp.eq.s32.totalorder %s23, 1
    %p165 = por %p163, %p164
    %p167 = scmp.ne.s32.totalorder %s152, %s166
    %p168 = scmp.eq.s32.totalorder %s23, 0
    %p169 = por %p167, %p168
    %s171 = sadd.s32 %s170, 1
    %p174 = scmp.eq.s32.totalorder %s17, 1
    %p175 = scmp.ne.s32.totalorder %s170, %s172
    %p176 = scmp.eq.s32.totalorder %s17, 0
    %p177 = por %p175, %p176
    %p178 = scmp.ne.s32.totalorder %s170, %s172
    %p179 = scmp.eq.s32.totalorder %s22, 1
    %p180 = por %p178, %p179
    %p181 = scmp.ne.s32.totalorder %s172, %s173
    %p182 = scmp.eq.s32.totalorder %s22, 0
    %p183 = por %p181, %p182
    %p184 = scmp.ne.s32.totalorder %s172, %s173
    %p185 = scmp.eq.s32.totalorder %s23, 1
    %p186 = por %p184, %p185
    %p188 = scmp.ne.s32.totalorder %s173, %s187
    %p189 = scmp.eq.s32.totalorder %s23, 0
    %p190 = por %p188, %p189
    %s192 = sadd.s32 %s191, 1
    %p195 = scmp.eq.s32.totalorder %s17, 1
    %p196 = scmp.ne.s32.totalorder %s191, %s193
    %p197 = scmp.eq.s32.totalorder %s17, 0
    %p198 = por %p196, %p197
    %p199 = scmp.ne.s32.totalorder %s191, %s193
    %p200 = scmp.eq.s32.totalorder %s22, 1
    %p201 = por %p199, %p200
    %p202 = scmp.ne.s32.totalorder %s193, %s194
    %p203 = scmp.eq.s32.totalorder %s22, 0
    %p204 = por %p202, %p203
    %p205 = scmp.ne.s32.totalorder %s193, %s194
    %p206 = scmp.eq.s32.totalorder %s23, 1
    %p207 = por %p205, %p206
    %p209 = scmp.ne.s32.totalorder %s194, %s208
    %p210 = scmp.eq.s32.totalorder %s23, 0
    %p211 = por %p209, %p210
    %s213 = sadd.s32 %s212, 1
    %p216 = scmp.eq.s32.totalorder %s17, 1
    %p217 = scmp.ne.s32.totalorder %s212, %s214
    %p218 = scmp.eq.s32.totalorder %s17, 0
    %p219 = por %p217, %p218
    %p220 = scmp.ne.s32.totalorder %s212, %s214
    %p221 = scmp.eq.s32.totalorder %s22, 1
    %p222 = por %p220, %p221
    %p223 = scmp.ne.s32.totalorder %s214, %s215
    %p224 = scmp.eq.s32.totalorder %s22, 0
    %p225 = por %p223, %p224
    %p226 = scmp.ne.s32.totalorder %s214, %s215
    %p227 = scmp.eq.s32.totalorder %s23, 1
    %p228 = por %p226, %p227
    %p230 = scmp.ne.s32.totalorder %s215, %s229
    %p231 = scmp.eq.s32.totalorder %s23, 0
    %p232 = por %p230, %p231
    %s234 = sadd.s32 %s233, 1
    %p237 = scmp.eq.s32.totalorder %s17, 1
    %p238 = scmp.ne.s32.totalorder %s233, %s235
    %p239 = scmp.eq.s32.totalorder %s17, 0
    %p240 = por %p238, %p239
    %p241 = scmp.ne.s32.totalorder %s233, %s235
    %p242 = scmp.eq.s32.totalorder %s22, 1
    %p243 = por %p241, %p242
    %p244 = scmp.ne.s32.totalorder %s235, %s236
    %p245 = scmp.eq.s32.totalorder %s22, 0
    %p246 = por %p244, %p245
    %p247 = scmp.ne.s32.totalorder %s235, %s236
    %p248 = scmp.eq.s32.totalorder %s23, 1
    %p249 = por %p247, %p248
    %p251 = scmp.ne.s32.totalorder %s236, %s250
    %p252 = scmp.eq.s32.totalorder %s23, 0
    %p253 = por %p251, %p252
    %s255 = sadd.s32 %s254, 1
    %p258 = scmp.eq.s32.totalorder %s17, 1
    %p259 = scmp.ne.s32.totalorder %s254, %s256
    %p260 = scmp.eq.s32.totalorder %s17, 0
    %p261 = por %p259, %p260
    %p262 = scmp.ne.s32.totalorder %s254, %s256
    %p263 = scmp.eq.s32.totalorder %s22, 1
    %p264 = por %p262, %p263
    %p265 = scmp.ne.s32.totalorder %s256, %s257
    %p266 = scmp.eq.s32.totalorder %s22, 0
    %p267 = por %p265, %p266
    %p268 = scmp.ne.s32.totalorder %s256, %s257
    %p269 = scmp.eq.s32.totalorder %s23, 1
    %p270 = por %p268, %p269
    %p272 = scmp.ne.s32.totalorder %s257, %s271
    %p273 = scmp.eq.s32.totalorder %s23, 0
    %p274 = por %p272, %p273
    %s275 = ssub.s32 %s24, %s36
    %s276 = ssub.s32 %s25, %s32
    %s277 = sor.u32 %s275, %s276
    %p278 = scmp.eq.s32.totalorder %s277, 0
    %s280 = sadd.s32 %s279, 1
    %s281 = scalar_select %p278, %s279, %s280
    %p284 = pneg %p278
    %p285 = scmp.eq.s32.totalorder %s17, 1
    %p286 = por %p284, %p285
    %p287 = scmp.ne.s32.totalorder %s279, %s282
    %p288 = scmp.eq.s32.totalorder %s17, 0
    %p289 = por %p287, %p288
    %p290 = scmp.ne.s32.totalorder %s279, %s282
    %p291 = scmp.eq.s32.totalorder %s22, 1
    %p292 = por %p290, %p291
    %p293 = scmp.ne.s32.totalorder %s282, %s283
    %p294 = scmp.eq.s32.totalorder %s22, 0
    %p295 = por %p293, %p294
    %p296 = scmp.ne.s32.totalorder %s282, %s283
    %p297 = scmp.eq.s32.totalorder %s23, 1
    %p298 = por %p296, %p297
    %p300 = scmp.ne.s32.totalorder %s283, %s299
    %p301 = scmp.eq.s32.totalorder %s23, 0
    %p302 = por %p300, %p301
    %p303 = scmp.le.s32.totalorder 1, %s17
    %p304 = scmp.lt.s32.totalorder %s17, 3
    %p305 = pnand %p303, %p304
    %p306 = pneg %p305
    // Predicated region
    $region9: #{residual_split_head_multi_axis_gmlp.5} parent=5 // pred_check
      _
    $region10: #{residual_split_head_multi_axis_gmlp.5} parent=5 // pred_check_branch
      %308 = sbr.rel (%p305) target = $region12
    $region11: #{residual_split_head_multi_axis_gmlp.5} parent=5 // pred_region
      %s309 = ssub.s32 %s17, 1
      // Predicated region
      $region13: #{residual_split_head_multi_axis_gmlp.5} parent=11 // pred_check
        %p310 = pneg %p78
      $region14: #{residual_split_head_multi_axis_gmlp.5} parent=11 // pred_check_branch
        %312 = sbr.rel (%p310) target = $region16
      $region15: #{residual_split_head_multi_axis_gmlp.5} parent=11 // pred_region
        _
      $region16: #{residual_split_head_multi_axis_gmlp.5} parent=11 // pred_fallthru
        _
      // Predicated region
      $region17: #{residual_split_head_multi_axis_gmlp.5} parent=11 // pred_check
        %p313 = pneg %p99
      $region18: #{residual_split_head_multi_axis_gmlp.5} parent=11 // pred_check_branch
        %315 = sbr.rel (%p313) target = $region20
      $region19: #{residual_split_head_multi_axis_gmlp.5} parent=11 // pred_region
        _
      $region20: #{residual_split_head_multi_axis_gmlp.5} parent=11 // pred_fallthru
        _
      // Predicated region
      $region21: #{residual_split_head_multi_axis_gmlp.5} parent=11 // pred_check
        %p316 = pneg %p120
      $region22: #{residual_split_head_multi_axis_gmlp.5} parent=11 // pred_check_branch
        %318 = sbr.rel (%p316) target = $region24
      $region23: #{residual_split_head_multi_axis_gmlp.5} parent=11 // pred_region
        _
      $region24: #{residual_split_head_multi_axis_gmlp.5} parent=11 // pred_fallthru
        _
      // Predicated region
      $region25: #{residual_split_head_multi_axis_gmlp.5} parent=11 // pred_check
        %p319 = pneg %p141
      $region26: #{residual_split_head_multi_axis_gmlp.5} parent=11 // pred_check_branch
        %321 = sbr.rel (%p319) target = $region28
      $region27: #{residual_split_head_multi_axis_gmlp.5} parent=11 // pred_region
        _
      $region28: #{residual_split_head_multi_axis_gmlp.5} parent=11 // pred_fallthru
        _
      // Predicated region
      $region29: #{residual_split_head_multi_axis_gmlp.5} parent=11 // pred_check
        %p322 = pneg %p162
      $region30: #{residual_split_head_multi_axis_gmlp.5} parent=11 // pred_check_branch
        %324 = sbr.rel (%p322) target = $region32
      $region31: #{residual_split_head_multi_axis_gmlp.5} parent=11 // pred_region
        _
      $region32: #{residual_split_head_multi_axis_gmlp.5} parent=11 // pred_fallthru
        _
      // Predicated region
      $region33: #{residual_split_head_multi_axis_gmlp.5} parent=11 // pred_check
        %p325 = pneg %p183
      $region34: #{residual_split_head_multi_axis_gmlp.5} parent=11 // pred_check_branch
        %327 = sbr.rel (%p325) target = $region36
      $region35: #{residual_split_head_multi_axis_gmlp.5} parent=11 // pred_region
        _
      $region36: #{residual_split_head_multi_axis_gmlp.5} parent=11 // pred_fallthru
        _
      // Predicated region
      $region37: #{residual_split_head_multi_axis_gmlp.5} parent=11 // pred_check
        %p328 = pneg %p204
      $region38: #{residual_split_head_multi_axis_gmlp.5} parent=11 // pred_check_branch
        %330 = sbr.rel (%p328) target = $region40
      $region39: #{residual_split_head_multi_axis_gmlp.5} parent=11 // pred_region
        _
      $region40: #{residual_split_head_multi_axis_gmlp.5} parent=11 // pred_fallthru
        _
      // Predicated region
      $region41: #{residual_split_head_multi_axis_gmlp.5} parent=11 // pred_check
        %p331 = pneg %p225
      $region42: #{residual_split_head_multi_axis_gmlp.5} parent=11 // pred_check_branch
        %333 = sbr.rel (%p331) target = $region44
      $region43: #{residual_split_head_multi_axis_gmlp.5} parent=11 // pred_region
        _
      $region44: #{residual_split_head_multi_axis_gmlp.5} parent=11 // pred_fallthru
        _
      // Predicated region
      $region45: #{residual_split_head_multi_axis_gmlp.5} parent=11 // pred_check
        %p334 = pneg %p246
      $region46: #{residual_split_head_multi_axis_gmlp.5} parent=11 // pred_check_branch
        %336 = sbr.rel (%p334) target = $region48
      $region47: #{residual_split_head_multi_axis_gmlp.5} parent=11 // pred_region
        _
      $region48: #{residual_split_head_multi_axis_gmlp.5} parent=11 // pred_fallthru
        _
      // Predicated region
      $region49: #{residual_split_head_multi_axis_gmlp.5} parent=11 // pred_check
        %p337 = pneg %p267
      $region50: #{residual_split_head_multi_axis_gmlp.5} parent=11 // pred_check_branch
        %339 = sbr.rel (%p337) target = $region52
      $region51: #{residual_split_head_multi_axis_gmlp.5} parent=11 // pred_region
        _
      $region52: #{residual_split_head_multi_axis_gmlp.5} parent=11 // pred_fallthru
        _
    $region12: #{residual_split_head_multi_axis_gmlp.5} parent=5 // pred_fallthru
      _
    %p340 = scmp.lt.s32.totalorder %s17, 2
    // Predicated region
    $region53: #{residual_split_head_multi_axis_gmlp.5} parent=5 // pred_check
      %p341 = pneg %p340
    $region54: #{residual_split_head_multi_axis_gmlp.5} parent=5 // pred_check_branch
      %343 = sbr.rel (%p341) target = $region56
    $region55: #{residual_split_head_multi_axis_gmlp.5} parent=5 // pred_region
      // Predicated region
      $region57: #{residual_split_head_multi_axis_gmlp.5} parent=55 // pred_check
        %p344 = pneg %p51
      $region58: #{residual_split_head_multi_axis_gmlp.5} parent=55 // pred_check_branch
        %346 = sbr.rel (%p344) target = $region60
      $region59: #{residual_split_head_multi_axis_gmlp.5} parent=55 // pred_region
        %s347 = smul.u32 8, %s25
        %p348 = scmp.lt.s32.totalorder %s24, 1
        %s349 = scalar_select %p348, %s24, 1
        %p350 = scmp.lt.s32.totalorder %s347, 7
        %s351 = scalar_select %p350, %s347, 7
        %s352 = smul.addr %s351, 2
        %s353 = smul.addr %s349, 32
        %s354 = sadd.s32 %s352, %s353
        %s355 = smul.addr %s354, 4
        %s356 = scalar_lea.vmem %s0, %s355
        %s357 = smul.u32 8, %s25
      $region60: #{residual_split_head_multi_axis_gmlp.5} parent=55 // pred_fallthru
        _
    $region56: #{residual_split_head_multi_axis_gmlp.5} parent=5 // pred_fallthru
      _
    %p358 = scmp.le.s32.totalorder 1, %s17
    %p359 = scmp.lt.s32.totalorder %s17, 3
    %p360 = pnand %p358, %p359
    %p361 = pneg %p360
    // Predicated region
    $region61: #{residual_split_head_multi_axis_gmlp.5} parent=5 // pred_check
      _
    $region62: #{residual_split_head_multi_axis_gmlp.5} parent=5 // pred_check_branch
      %363 = sbr.rel (%p360) target = $region64
    $region63: #{residual_split_head_multi_axis_gmlp.5} parent=5 // pred_region
      %s364 = ssub.s32 %s17, 1
      %s365 = smul.u32 8, %s27
      %p366 = scmp.lt.s32.totalorder %s26, 1
      %s367 = scalar_select %p366, %s26, 1
      %p368 = scmp.lt.s32.totalorder %s365, 7
      %s369 = scalar_select %p368, %s365, 7
      %s370 = smul.addr %s369, 2
      %s371 = smul.addr %s367, 32
      %s372 = sadd.s32 %s370, %s371
      %s373 = smul.addr %s372, 4
      %s374 = scalar_lea.vmem %s0, %s373
      %p375 = pneg %p57
      %p376 = pneg %p54
      %p377 = pneg %p78
      %p378 = pneg %p75
      %p379 = pneg %p99
      %p380 = pneg %p96
      %p381 = pneg %p120
      %p382 = pneg %p117
      %p383 = pneg %p141
      %p384 = pneg %p138
      %p385 = pneg %p162
      %p386 = pneg %p159
      %p387 = pneg %p183
      %p388 = pneg %p180
      %p389 = pneg %p204
      %p390 = pneg %p201
      %p391 = pneg %p225
      %p392 = pneg %p222
      %p393 = pneg %p246
      %p394 = pneg %p243
      %p395 = pneg %p267
      %p396 = pneg %p264
      %p397 = pneg %p295
      %p398 = pneg %p292
      %s399 = smul.u32 8, %s27
      %p400 = scmp.lt.s32.totalorder %s26, 1
      %s401 = scalar_select %p400, %s26, 1
      %p402 = scmp.lt.s32.totalorder %s399, 7
      %s403 = scalar_select %p402, %s399, 7
      %s404 = smul.addr %s403, 2
      %s405 = smul.addr %s401, 32
      %s406 = sadd.s32 %s404, %s405
      %s407 = smul.addr %s406, 4
      %s408 = scalar_lea.vmem %s11, %s407
      %s409 = smul.u32 8, %s27
      %p410 = scmp.lt.s32.totalorder %s26, 1
      %s411 = scalar_select %p410, %s26, 1
      %p412 = scmp.lt.s32.totalorder %s409, 7
      %s413 = scalar_select %p412, %s409, 7
      %s414 = smul.addr %s413, 2
      %s415 = smul.addr %s411, 32
      %s416 = sadd.s32 %s414, %s415
      %s417 = smul.addr %s416, 4
      %s418 = scalar_lea.vmem %s0, %s417
      %s419 = smul.u32 8, %s27
      %s420 = smul.u32 8, %s27
      %p421 = scmp.lt.s32.totalorder %s26, 1
      %s422 = scalar_select %p421, %s26, 1
      %p423 = scmp.lt.s32.totalorder %s420, 7
      %s424 = scalar_select %p423, %s420, 7
      %s425 = smul.addr %s424, 2
      %s426 = smul.addr %s422, 32
      %s427 = sadd.s32 %s425, %s426
      %s428 = smul.addr %s427, 4
      %s429 = scalar_lea.vmem %s11, %s428
      %s430 = smul.u32 8, %s27
      %v432 = vld [vmem:[%s418] sm:$0xf]
      %v433 = vld [vmem:[%s418 + $0x4] sm:$0xf]
      %v434 = vld [vmem:[%s418 + $0x8] sm:$0xf]
      %v435 = vld [vmem:[%s418 + $0xc] sm:$0xf]
      %v436 = vld [vmem:[%s418 + $0x10] sm:$0xf]
      %v437 = vld [vmem:[%s418 + $0x14] sm:$0xf]
      %v438 = vld [vmem:[%s418 + $0x18] sm:$0xf]
      %v439 = vld [vmem:[%s418 + $0x1c] sm:$0xf]
      %v440 = vld [vmem:[%s418 + $0x20] sm:$0xf]
      %v441 = vld [vmem:[%s418 + $0x24] sm:$0xf]
      %v442 = vld [vmem:[%s418 + $0x28] sm:$0xf]
      %v443 = vld [vmem:[%s418 + $0x2c] sm:$0xf]
      %v444 = vld [vmem:[%s418 + $0x30] sm:$0xf]
      %v445 = vld [vmem:[%s418 + $0x34] sm:$0xf]
      %v446 = vld [vmem:[%s418 + $0x38] sm:$0xf]
      %v447 = vld [vmem:[%s418 + $0x3c] sm:$0xf]
      %v448 = vld [vmem:[%s418 + $0x40] sm:$0xf]
      %v449 = vld [vmem:[%s418 + $0x44] sm:$0xf]
      %v450 = vld [vmem:[%s418 + $0x48] sm:$0xf]
      %v451 = vld [vmem:[%s418 + $0x4c] sm:$0xf]
      %v452 = vld [vmem:[%s418 + $0x50] sm:$0xf]
      %v453 = vld [vmem:[%s418 + $0x54] sm:$0xf]
      %v454 = vld [vmem:[%s418 + $0x58] sm:$0xf]
      %v455 = vld [vmem:[%s418 + $0x5c] sm:$0xf]
      %v456 = vld [vmem:[%s418 + $0x60] sm:$0xf]
      %v457 = vld [vmem:[%s418 + $0x64] sm:$0xf]
      %v458 = vld [vmem:[%s418 + $0x68] sm:$0xf]
      %v459 = vld [vmem:[%s418 + $0x6c] sm:$0xf]
      %v460 = vld [vmem:[%s418 + $0x70] sm:$0xf]
      %v461 = vld [vmem:[%s418 + $0x74] sm:$0xf]
      %v462 = vld [vmem:[%s418 + $0x78] sm:$0xf]
      %v463 = vld [vmem:[%s418 + $0x7c] sm:$0xf]
      %v464 = vunpack.c.l.bf16 %v432
      %v465 = vunpack.c.l.bf16 %v433
      %v466 = vunpack.c.l.bf16 %v434
      %v467 = vunpack.c.l.bf16 %v435
      %v468 = vunpack.c.l.bf16 %v436
      %v469 = vunpack.c.l.bf16 %v437
      %v470 = vunpack.c.l.bf16 %v438
      %v471 = vunpack.c.l.bf16 %v439
      %v472 = vunpack.c.l.bf16 %v440
      %v473 = vunpack.c.l.bf16 %v441
      %v474 = vunpack.c.l.bf16 %v442
      %v475 = vunpack.c.l.bf16 %v443
      %v476 = vunpack.c.l.bf16 %v444
      %v477 = vunpack.c.l.bf16 %v445
      %v478 = vunpack.c.l.bf16 %v446
      %v479 = vunpack.c.l.bf16 %v447
      %v480 = vunpack.c.l.bf16 %v448
      %v481 = vunpack.c.l.bf16 %v449
      %v482 = vunpack.c.l.bf16 %v450
      %v483 = vunpack.c.l.bf16 %v451
      %v484 = vunpack.c.l.bf16 %v452
      %v485 = vunpack.c.l.bf16 %v453
      %v486 = vunpack.c.l.bf16 %v454
      %v487 = vunpack.c.l.bf16 %v455
      %v488 = vunpack.c.l.bf16 %v456
      %v489 = vunpack.c.l.bf16 %v457
      %v490 = vunpack.c.l.bf16 %v458
      %v491 = vunpack.c.l.bf16 %v459
      %v492 = vunpack.c.l.bf16 %v460
      %v493 = vunpack.c.l.bf16 %v461
      %v494 = vunpack.c.l.bf16 %v462
      %v495 = vunpack.c.l.bf16 %v463
      %vm496 = vcmask 31744
      %v497 = vsel %vm496, %v464, 0.0
      %498 = vadd.xlane.f32.xlu0 %v497
      %v499 = vpop.xlane.xlu0 %498
      %v500 = vsel %vm496, %v465, 0.0
      %501 = vadd.xlane.f32.xlu0 %v500
      %v502 = vpop.xlane.xlu0 %501
      %v503 = vsel %vm496, %v466, 0.0
      %504 = vadd.xlane.f32.xlu0 %v503
      %v505 = vpop.xlane.xlu0 %504
      %v506 = vsel %vm496, %v467, 0.0
      %507 = vadd.xlane.f32.xlu0 %v506
      %v508 = vpop.xlane.xlu0 %507
      %v509 = vsel %vm496, %v468, 0.0
      %510 = vadd.xlane.f32.xlu0 %v509
      %v511 = vpop.xlane.xlu0 %510
      %v512 = vsel %vm496, %v469, 0.0
      %513 = vadd.xlane.f32.xlu0 %v512
      %v514 = vpop.xlane.xlu0 %513
      %v515 = vsel %vm496, %v470, 0.0
      %516 = vadd.xlane.f32.xlu0 %v515
      %v517 = vpop.xlane.xlu0 %516
      %v518 = vsel %vm496, %v471, 0.0
      %519 = vadd.xlane.f32.xlu0 %v518
      %v520 = vpop.xlane.xlu0 %519
      %v521 = vsel %vm496, %v472, 0.0
      %522 = vadd.xlane.f32.xlu0 %v521
      %v523 = vpop.xlane.xlu0 %522
      %v524 = vsel %vm496, %v473, 0.0
      %525 = vadd.xlane.f32.xlu0 %v524
      %v526 = vpop.xlane.xlu0 %525
      %v527 = vsel %vm496, %v474, 0.0
      %528 = vadd.xlane.f32.xlu0 %v527
      %v529 = vpop.xlane.xlu0 %528
      %v530 = vsel %vm496, %v475, 0.0
      %531 = vadd.xlane.f32.xlu0 %v530
      %v532 = vpop.xlane.xlu0 %531
      %v533 = vsel %vm496, %v476, 0.0
      %534 = vadd.xlane.f32.xlu0 %v533
      %v535 = vpop.xlane.xlu0 %534
      %v536 = vsel %vm496, %v477, 0.0
      %537 = vadd.xlane.f32.xlu0 %v536
      %v538 = vpop.xlane.xlu0 %537
      %v539 = vsel %vm496, %v478, 0.0
      %540 = vadd.xlane.f32.xlu0 %v539
      %v541 = vpop.xlane.xlu0 %540
      %v542 = vsel %vm496, %v479, 0.0
      %543 = vadd.xlane.f32.xlu0 %v542
      %v544 = vpop.xlane.xlu0 %543
      %v545 = vsel %vm496, %v480, 0.0
      %546 = vadd.xlane.f32.xlu0 %v545
      %v547 = vpop.xlane.xlu0 %546
      %v548 = vsel %vm496, %v481, 0.0
      %549 = vadd.xlane.f32.xlu0 %v548
      %v550 = vpop.xlane.xlu0 %549
      %v551 = vsel %vm496, %v482, 0.0
      %552 = vadd.xlane.f32.xlu0 %v551
      %v553 = vpop.xlane.xlu0 %552
      %v554 = vsel %vm496, %v483, 0.0
      %555 = vadd.xlane.f32.xlu0 %v554
      %v556 = vpop.xlane.xlu0 %555
      %v557 = vsel %vm496, %v484, 0.0
      %558 = vadd.xlane.f32.xlu0 %v557
      %v559 = vpop.xlane.xlu0 %558
      %v560 = vsel %vm496, %v485, 0.0
      %561 = vadd.xlane.f32.xlu0 %v560
      %v562 = vpop.xlane.xlu0 %561
      %v563 = vsel %vm496, %v486, 0.0
      %564 = vadd.xlane.f32.xlu0 %v563
      %v565 = vpop.xlane.xlu0 %564
      %v566 = vsel %vm496, %v487, 0.0
      %567 = vadd.xlane.f32.xlu0 %v566
      %v568 = vpop.xlane.xlu0 %567
      %v569 = vsel %vm496, %v488, 0.0
      %570 = vadd.xlane.f32.xlu0 %v569
      %v571 = vpop.xlane.xlu0 %570
      %v572 = vsel %vm496, %v489, 0.0
      %573 = vadd.xlane.f32.xlu0 %v572
      %v574 = vpop.xlane.xlu0 %573
      %v575 = vsel %vm496, %v490, 0.0
      %576 = vadd.xlane.f32.xlu0 %v575
      %v577 = vpop.xlane.xlu0 %576
      %v578 = vsel %vm496, %v491, 0.0
      %579 = vadd.xlane.f32.xlu0 %v578
      %v580 = vpop.xlane.xlu0 %579
      %v581 = vsel %vm496, %v492, 0.0
      %582 = vadd.xlane.f32.xlu0 %v581
      %v583 = vpop.xlane.xlu0 %582
      %v584 = vsel %vm496, %v493, 0.0
      %585 = vadd.xlane.f32.xlu0 %v584
      %v586 = vpop.xlane.xlu0 %585
      %v587 = vsel %vm496, %v494, 0.0
      %588 = vadd.xlane.f32.xlu0 %v587
      %v589 = vpop.xlane.xlu0 %588
      %v590 = vsel %vm496, %v495, 0.0
      %591 = vadd.xlane.f32.xlu0 %v590
      %v592 = vpop.xlane.xlu0 %591
      %v593 = vrcp.pop 4.0
      %v594 = vmul.f32 %v499, %v593
      %v595 = vmul.f32 %v502, %v593
      %v596 = vmul.f32 %v505, %v593
      %v597 = vmul.f32 %v508, %v593
      %v598 = vmul.f32 %v511, %v593
      %v599 = vmul.f32 %v514, %v593
      %v600 = vmul.f32 %v517, %v593
      %v601 = vmul.f32 %v520, %v593
      %v602 = vmul.f32 %v523, %v593
      %v603 = vmul.f32 %v526, %v593
      %v604 = vmul.f32 %v529, %v593
      %v605 = vmul.f32 %v532, %v593
      %v606 = vmul.f32 %v535, %v593
      %v607 = vmul.f32 %v538, %v593
      %v608 = vmul.f32 %v541, %v593
      %v609 = vmul.f32 %v544, %v593
      %v610 = vmul.f32 %v547, %v593
      %v611 = vmul.f32 %v550, %v593
      %v612 = vmul.f32 %v553, %v593
      %v613 = vmul.f32 %v556, %v593
      %v614 = vmul.f32 %v559, %v593
      %v615 = vmul.f32 %v562, %v593
      %v616 = vmul.f32 %v565, %v593
      %v617 = vmul.f32 %v568, %v593
      %v618 = vmul.f32 %v571, %v593
      %v619 = vmul.f32 %v574, %v593
      %v620 = vmul.f32 %v577, %v593
      %v621 = vmul.f32 %v580, %v593
      %v622 = vmul.f32 %v583, %v593
      %v623 = vmul.f32 %v586, %v593
      %v624 = vmul.f32 %v589, %v593
      %v625 = vmul.f32 %v592, %v593
      %v626 = vsub.f32 %v464, %v594
      %v627 = vsub.f32 %v465, %v595
      %v628 = vsub.f32 %v466, %v596
      %v629 = vsub.f32 %v467, %v597
      %v630 = vsub.f32 %v468, %v598
      %v631 = vsub.f32 %v469, %v599
      %v632 = vsub.f32 %v470, %v600
      %v633 = vsub.f32 %v471, %v601
      %v634 = vsub.f32 %v472, %v602
      %v635 = vsub.f32 %v473, %v603
      %v636 = vsub.f32 %v474, %v604
      %v637 = vsub.f32 %v475, %v605
      %v638 = vsub.f32 %v476, %v606
      %v639 = vsub.f32 %v477, %v607
      %v640 = vsub.f32 %v478, %v608
      %v641 = vsub.f32 %v479, %v609
      %v642 = vsub.f32 %v480, %v610
      %v643 = vsub.f32 %v481, %v611
      %v644 = vsub.f32 %v482, %v612
      %v645 = vsub.f32 %v483, %v613
      %v646 = vsub.f32 %v484, %v614
      %v647 = vsub.f32 %v485, %v615
      %v648 = vsub.f32 %v486, %v616
      %v649 = vsub.f32 %v487, %v617
      %v650 = vsub.f32 %v488, %v618
      %v651 = vsub.f32 %v489, %v619
      %v652 = vsub.f32 %v490, %v620
      %v653 = vsub.f32 %v491, %v621
      %v654 = vsub.f32 %v492, %v622
      %v655 = vsub.f32 %v493, %v623
      %v656 = vsub.f32 %v494, %v624
      %v657 = vsub.f32 %v495, %v625
      %v658 = vmul.f32 %v626, %v626
      %v659 = vmul.f32 %v627, %v627
      %v660 = vmul.f32 %v628, %v628
      %v661 = vmul.f32 %v629, %v629
      %v662 = vmul.f32 %v630, %v630
      %v663 = vmul.f32 %v631, %v631
      %v664 = vmul.f32 %v632, %v632
      %v665 = vmul.f32 %v633, %v633
      %v666 = vmul.f32 %v634, %v634
      %v667 = vmul.f32 %v635, %v635
      %v668 = vmul.f32 %v636, %v636
      %v669 = vmul.f32 %v637, %v637
      %v670 = vmul.f32 %v638, %v638
      %v671 = vmul.f32 %v639, %v639
      %v672 = vmul.f32 %v640, %v640
      %v673 = vmul.f32 %v641, %v641
      %v674 = vmul.f32 %v642, %v642
      %v675 = vmul.f32 %v643, %v643
      %v676 = vmul.f32 %v644, %v644
      %v677 = vmul.f32 %v645, %v645
      %v678 = vmul.f32 %v646, %v646
      %v679 = vmul.f32 %v647, %v647
      %v680 = vmul.f32 %v648, %v648
      %v681 = vmul.f32 %v649, %v649
      %v682 = vmul.f32 %v650, %v650
      %v683 = vmul.f32 %v651, %v651
      %v684 = vmul.f32 %v652, %v652
      %v685 = vmul.f32 %v653, %v653
      %v686 = vmul.f32 %v654, %v654
      %v687 = vmul.f32 %v655, %v655
      %v688 = vmul.f32 %v656, %v656
      %v689 = vmul.f32 %v657, %v657
      %v690 = vsel %vm496, %v658, 0.0
      %691 = vadd.xlane.f32.xlu0 %v690
      %v692 = vpop.xlane.xlu0 %691
      %v693 = vsel %vm496, %v659, 0.0
      %694 = vadd.xlane.f32.xlu0 %v693
      %v695 = vpop.xlane.xlu0 %694
      %v696 = vsel %vm496, %v660, 0.0
      %697 = vadd.xlane.f32.xlu0 %v696
      %v698 = vpop.xlane.xlu0 %697
      %v699 = vsel %vm496, %v661, 0.0
      %700 = vadd.xlane.f32.xlu0 %v699
      %v701 = vpop.xlane.xlu0 %700
      %v702 = vsel %vm496, %v662, 0.0
      %703 = vadd.xlane.f32.xlu0 %v702
      %v704 = vpop.xlane.xlu0 %703
      %v705 = vsel %vm496, %v663, 0.0
      %706 = vadd.xlane.f32.xlu0 %v705
      %v707 = vpop.xlane.xlu0 %706
      %v708 = vsel %vm496, %v664, 0.0
      %709 = vadd.xlane.f32.xlu0 %v708
      %v710 = vpop.xlane.xlu0 %709
      %v711 = vsel %vm496, %v665, 0.0
      %712 = vadd.xlane.f32.xlu0 %v711
      %v713 = vpop.xlane.xlu0 %712
      %v714 = vsel %vm496, %v666, 0.0
      %715 = vadd.xlane.f32.xlu0 %v714
      %v716 = vpop.xlane.xlu0 %715
      %v717 = vsel %vm496, %v667, 0.0
      %718 = vadd.xlane.f32.xlu0 %v717
      %v719 = vpop.xlane.xlu0 %718
      %v720 = vsel %vm496, %v668, 0.0
      %721 = vadd.xlane.f32.xlu0 %v720
      %v722 = vpop.xlane.xlu0 %721
      %v723 = vsel %vm496, %v669, 0.0
      %724 = vadd.xlane.f32.xlu0 %v723
      %v725 = vpop.xlane.xlu0 %724
      %v726 = vsel %vm496, %v670, 0.0
      %727 = vadd.xlane.f32.xlu0 %v726
      %v728 = vpop.xlane.xlu0 %727
      %v729 = vsel %vm496, %v671, 0.0
      %730 = vadd.xlane.f32.xlu0 %v729
      %v731 = vpop.xlane.xlu0 %730
      %v732 = vsel %vm496, %v672, 0.0
      %733 = vadd.xlane.f32.xlu0 %v732
      %v734 = vpop.xlane.xlu0 %733
      %v735 = vsel %vm496, %v673, 0.0
      %736 = vadd.xlane.f32.xlu0 %v735
      %v737 = vpop.xlane.xlu0 %736
      %v738 = vsel %vm496, %v674, 0.0
      %739 = vadd.xlane.f32.xlu0 %v738
      %v740 = vpop.xlane.xlu0 %739
      %v741 = vsel %vm496, %v675, 0.0
      %742 = vadd.xlane.f32.xlu0 %v741
      %v743 = vpop.xlane.xlu0 %742
      %v744 = vsel %vm496, %v676, 0.0
      %745 = vadd.xlane.f32.xlu0 %v744
      %v746 = vpop.xlane.xlu0 %745
      %v747 = vsel %vm496, %v677, 0.0
      %748 = vadd.xlane.f32.xlu0 %v747
      %v749 = vpop.xlane.xlu0 %748
      %v750 = vsel %vm496, %v678, 0.0
      %751 = vadd.xlane.f32.xlu0 %v750
      %v752 = vpop.xlane.xlu0 %751
      %v753 = vsel %vm496, %v679, 0.0
      %754 = vadd.xlane.f32.xlu0 %v753
      %v755 = vpop.xlane.xlu0 %754
      %v756 = vsel %vm496, %v680, 0.0
      %757 = vadd.xlane.f32.xlu0 %v756
      %v758 = vpop.xlane.xlu0 %757
      %v759 = vsel %vm496, %v681, 0.0
      %760 = vadd.xlane.f32.xlu0 %v759
      %v761 = vpop.xlane.xlu0 %760
      %v762 = vsel %vm496, %v682, 0.0
      %763 = vadd.xlane.f32.xlu0 %v762
      %v764 = vpop.xlane.xlu0 %763
      %v765 = vsel %vm496, %v683, 0.0
      %766 = vadd.xlane.f32.xlu0 %v765
      %v767 = vpop.xlane.xlu0 %766
      %v768 = vsel %vm496, %v684, 0.0
      %769 = vadd.xlane.f32.xlu0 %v768
      %v770 = vpop.xlane.xlu0 %769
      %v771 = vsel %vm496, %v685, 0.0
      %772 = vadd.xlane.f32.xlu0 %v771
      %v773 = vpop.xlane.xlu0 %772
      %v774 = vsel %vm496, %v686, 0.0
      %775 = vadd.xlane.f32.xlu0 %v774
      %v776 = vpop.xlane.xlu0 %775
      %v777 = vsel %vm496, %v687, 0.0
      %778 = vadd.xlane.f32.xlu0 %v777
      %v779 = vpop.xlane.xlu0 %778
      %v780 = vsel %vm496, %v688, 0.0
      %781 = vadd.xlane.f32.xlu0 %v780
      %v782 = vpop.xlane.xlu0 %781
      %v783 = vsel %vm496, %v689, 0.0
      %784 = vadd.xlane.f32.xlu0 %v783
      %v785 = vpop.xlane.xlu0 %784
      %v786 = vmul.f32 %v692, %v593
      %v787 = vmul.f32 %v695, %v593
      %v788 = vmul.f32 %v698, %v593
      %v789 = vmul.f32 %v701, %v593
      %v790 = vmul.f32 %v704, %v593
      %v791 = vmul.f32 %v707, %v593
      %v792 = vmul.f32 %v710, %v593
      %v793 = vmul.f32 %v713, %v593
      %v794 = vmul.f32 %v716, %v593
      %v795 = vmul.f32 %v719, %v593
      %v796 = vmul.f32 %v722, %v593
      %v797 = vmul.f32 %v725, %v593
      %v798 = vmul.f32 %v728, %v593
      %v799 = vmul.f32 %v731, %v593
      %v800 = vmul.f32 %v734, %v593
      %v801 = vmul.f32 %v737, %v593
      %v802 = vmul.f32 %v740, %v593
      %v803 = vmul.f32 %v743, %v593
      %v804 = vmul.f32 %v746, %v593
      %v805 = vmul.f32 %v749, %v593
      %v806 = vmul.f32 %v752, %v593
      %v807 = vmul.f32 %v755, %v593
      %v808 = vmul.f32 %v758, %v593
      %v809 = vmul.f32 %v761, %v593
      %v810 = vmul.f32 %v764, %v593
      %v811 = vmul.f32 %v767, %v593
      %v812 = vmul.f32 %v770, %v593
      %v813 = vmul.f32 %v773, %v593
      %v814 = vmul.f32 %v776, %v593
      %v815 = vmul.f32 %v779, %v593
      %v816 = vmul.f32 %v782, %v593
      %v817 = vmul.f32 %v785, %v593
      %v818 = vadd.f32 %v786, 1e-05
      %v819 = vadd.f32 %v787, 1e-05
      %v820 = vadd.f32 %v788, 1e-05
      %v821 = vadd.f32 %v789, 1e-05
      %v822 = vadd.f32 %v790, 1e-05
      %v823 = vadd.f32 %v791, 1e-05
      %v824 = vadd.f32 %v792, 1e-05
      %v825 = vadd.f32 %v793, 1e-05
      %v826 = vadd.f32 %v794, 1e-05
      %v827 = vadd.f32 %v795, 1e-05
      %v828 = vadd.f32 %v796, 1e-05
      %v829 = vadd.f32 %v797, 1e-05
      %v830 = vadd.f32 %v798, 1e-05
      %v831 = vadd.f32 %v799, 1e-05
      %v832 = vadd.f32 %v800, 1e-05
      %v833 = vadd.f32 %v801, 1e-05
      %v834 = vadd.f32 %v802, 1e-05
      %v835 = vadd.f32 %v803, 1e-05
      %v836 = vadd.f32 %v804, 1e-05
      %v837 = vadd.f32 %v805, 1e-05
      %v838 = vadd.f32 %v806, 1e-05
      %v839 = vadd.f32 %v807, 1e-05
      %v840 = vadd.f32 %v808, 1e-05
      %v841 = vadd.f32 %v809, 1e-05
      %v842 = vadd.f32 %v810, 1e-05
      %v843 = vadd.f32 %v811, 1e-05
      %v844 = vadd.f32 %v812, 1e-05
      %v845 = vadd.f32 %v813, 1e-05
      %v846 = vadd.f32 %v814, 1e-05
      %v847 = vadd.f32 %v815, 1e-05
      %v848 = vadd.f32 %v816, 1e-05
      %v849 = vadd.f32 %v817, 1e-05
      %v850 = vrsqrt.pop %v818
      %v851 = vrsqrt.pop %v819
      %v852 = vrsqrt.pop %v820
      %v853 = vrsqrt.pop %v821
      %v854 = vrsqrt.pop %v822
      %v855 = vrsqrt.pop %v823
      %v856 = vrsqrt.pop %v824
      %v857 = vrsqrt.pop %v825
      %v858 = vrsqrt.pop %v826
      %v859 = vrsqrt.pop %v827
      %v860 = vrsqrt.pop %v828
      %v861 = vrsqrt.pop %v829
      %v862 = vrsqrt.pop %v830
      %v863 = vrsqrt.pop %v831
      %v864 = vrsqrt.pop %v832
      %v865 = vrsqrt.pop %v833
      %v866 = vrsqrt.pop %v834
      %v867 = vrsqrt.pop %v835
      %v868 = vrsqrt.pop %v836
      %v869 = vrsqrt.pop %v837
      %v870 = vrsqrt.pop %v838
      %v871 = vrsqrt.pop %v839
      %v872 = vrsqrt.pop %v840
      %v873 = vrsqrt.pop %v841
      %v874 = vrsqrt.pop %v842
      %v875 = vrsqrt.pop %v843
      %v876 = vrsqrt.pop %v844
      %v877 = vrsqrt.pop %v845
      %v878 = vrsqrt.pop %v846
      %v879 = vrsqrt.pop %v847
      %v880 = vrsqrt.pop %v848
      %v881 = vrsqrt.pop %v849
      %v882 = vmul.f32 %v626, %v850
      %v883 = vmul.f32 %v627, %v851
      %v884 = vmul.f32 %v628, %v852
      %v885 = vmul.f32 %v629, %v853
      %v886 = vmul.f32 %v630, %v854
      %v887 = vmul.f32 %v631, %v855
      %v888 = vmul.f32 %v632, %v856
      %v889 = vmul.f32 %v633, %v857
      %v890 = vmul.f32 %v634, %v858
      %v891 = vmul.f32 %v635, %v859
      %v892 = vmul.f32 %v636, %v860
      %v893 = vmul.f32 %v637, %v861
      %v894 = vmul.f32 %v638, %v862
      %v895 = vmul.f32 %v639, %v863
      %v896 = vmul.f32 %v640, %v864
      %v897 = vmul.f32 %v641, %v865
      %v898 = vmul.f32 %v642, %v866
      %v899 = vmul.f32 %v643, %v867
      %v900 = vmul.f32 %v644, %v868
      %v901 = vmul.f32 %v645, %v869
      %v902 = vmul.f32 %v646, %v870
      %v903 = vmul.f32 %v647, %v871
      %v904 = vmul.f32 %v648, %v872
      %v905 = vmul.f32 %v649, %v873
      %v906 = vmul.f32 %v650, %v874
      %v907 = vmul.f32 %v651, %v875
      %v908 = vmul.f32 %v652, %v876
      %v909 = vmul.f32 %v653, %v877
      %v910 = vmul.f32 %v654, %v878
      %v911 = vmul.f32 %v655, %v879
      %v912 = vmul.f32 %v656, %v880
      %v913 = vmul.f32 %v657, %v881
      %v914 = vld [vmem:[%s1] sm:$0x3]
      %v915 = vld [vmem:[%s2] sm:$0x1]
      %v916 = vpack.c.bf16 %v883, %v882
      %v917 = vpack.c.bf16 %v885, %v884
      %v918 = vpack.c.bf16 %v887, %v886
      %v919 = vpack.c.bf16 %v889, %v888
      %v920 = vpack.c.bf16 %v891, %v890
      %v921 = vpack.c.bf16 %v893, %v892
      %v922 = vpack.c.bf16 %v895, %v894
      %v923 = vpack.c.bf16 %v897, %v896
      %v924 = vpack.c.bf16 %v899, %v898
      %v925 = vpack.c.bf16 %v901, %v900
      %v926 = vpack.c.bf16 %v903, %v902
      %v927 = vpack.c.bf16 %v905, %v904
      %v928 = vpack.c.bf16 %v907, %v906
      %v929 = vpack.c.bf16 %v909, %v908
      %v930 = vpack.c.bf16 %v911, %v910
      %v931 = vpack.c.bf16 %v913, %v912
      %v933 = vlaneseq
      %v934 = vshrl.u32 %v933, 7
      %v935 = vsub.s32 0, %v934
      %v936 = vrot.slane %v915, %v935
      %v939 = vsel %vm496, %v916, 0
      %v942 = vsel %vm496, %v917, 0
      %v945 = vsel %vm496, %v918, 0
      %v948 = vsel %vm496, %v919, 0
      %v951 = vsel %vm496, %v920, 0
      %v954 = vsel %vm496, %v921, 0
      %v957 = vsel %vm496, %v922, 0
      %v960 = vsel %vm496, %v923, 0
      %v963 = vsel %vm496, %v924, 0
      %v966 = vsel %vm496, %v925, 0
      %v969 = vsel %vm496, %v926, 0
      %v972 = vsel %vm496, %v927, 0
      %v975 = vsel %vm496, %v928, 0
      %v978 = vsel %vm496, %v929, 0
      %v981 = vsel %vm496, %v930, 0
      %v984 = vsel %vm496, %v931, 0
      %vm986 = vcmask 1041408
      %v988 = vsel %vm986, %v914, 0
      %990 = vmatprep.subr.bf16.mxu0 0
      %991 = vmatpush1.bf16.msra.mxu0 %v988
      %992 = vmatprep.subr.bf16.mxu0 0
      %993 = vmatpush1.bf16.msra.mxu0 0
      %994 = vmatprep.subr.bf16.mxu0 0
      %995 = vmatpush1.bf16.msra.mxu0 0
      %996 = vmatprep.subr.bf16.mxu0 0
      %997 = vmatpush1.bf16.msra.mxu0 0
      %998 = vmatprep.subr.bf16.mxu0 0
      %999 = vmatpush1.bf16.msra.mxu0 0
      %1000 = vmatprep.subr.bf16.mxu0 0
      %1001 = vmatpush1.bf16.msra.mxu0 0
      %1002 = vmatprep.subr.bf16.mxu0 0
      %1003 = vmatpush1.bf16.msra.mxu0 0
      %1004 = vmatprep.subr.bf16.mxu0 0
      %1005 = vmatpush1.bf16.msra.mxu0 0
      %1006 = vmatprep.subr.bf16.mxu0 0
      %1007 = vmatpush1.bf16.msra.mxu0 0
      %1008 = vmatprep.subr.bf16.mxu0 0
      %1009 = vmatpush1.bf16.msra.mxu0 0
      %1010 = vmatprep.subr.bf16.mxu0 0
      %1011 = vmatpush1.bf16.msra.mxu0 0
      %1012 = vmatprep.subr.bf16.mxu0 0
      %1013 = vmatpush1.bf16.msra.mxu0 0
      %1014 = vmatprep.subr.bf16.mxu0 0
      %1015 = vmatpush1.bf16.msra.mxu0 0
      %1016 = vmatprep.subr.bf16.mxu0 0
      %1017 = vmatpush1.bf16.msra.mxu0 0
      %1018 = vmatprep.subr.bf16.mxu0 0
      %1019 = vmatpush1.bf16.msra.mxu0 0
      %1020 = vmatprep.subr.bf16.mxu0 0
      %1021 = vmatpush1.bf16.msra.mxu0 0
      %1022 = vmatprep.mubr.bf16.mxu0 0
      %1023 = vmatmul.mubr.bf16.gmra.mrb[0].mxu0 %v939
      %v1024 = vpop.f32.mrb[0].mxu0
      %v1025 = vadd.f32 %v936, %v1024
      %v1026 = vpop.f32.mrb[0].mxu0
      %v1027 = vpop.f32.mrb[0].mxu0
      %v1028 = vadd.f32 %v936, %v1027
      %v1029 = vpop.f32.mrb[0].mxu0
      %1030 = vmatprep.mubr.bf16.mxu0 0
      %1031 = vmatmul.mubr.bf16.gmra.mrb[0].mxu0 %v942
      %v1032 = vpop.f32.mrb[0].mxu0
      %v1033 = vadd.f32 %v936, %v1032
      %v1034 = vpop.f32.mrb[0].mxu0
      %v1035 = vpop.f32.mrb[0].mxu0
      %v1036 = vadd.f32 %v936, %v1035
      %v1037 = vpop.f32.mrb[0].mxu0
      %1038 = vmatprep.mubr.bf16.mxu0 0
      %1039 = vmatmul.mubr.bf16.gmra.mrb[0].mxu0 %v945
      %v1040 = vpop.f32.mrb[0].mxu0
      %v1041 = vadd.f32 %v936, %v1040
      %v1042 = vpop.f32.mrb[0].mxu0
      %v1043 = vpop.f32.mrb[0].mxu0
      %v1044 = vadd.f32 %v936, %v1043
      %v1045 = vpop.f32.mrb[0].mxu0
      %1046 = vmatprep.mubr.bf16.mxu0 0
      %1047 = vmatmul.mubr.bf16.gmra.mrb[0].mxu0 %v948
      %v1048 = vpop.f32.mrb[0].mxu0
      %v1049 = vadd.f32 %v936, %v1048
      %v1050 = vpop.f32.mrb[0].mxu0
      %v1051 = vpop.f32.mrb[0].mxu0
      %v1052 = vadd.f32 %v936, %v1051
      %v1053 = vpop.f32.mrb[0].mxu0
      %1054 = vmatprep.mubr.bf16.mxu0 0
      %1055 = vmatmul.mubr.bf16.gmra.mrb[0].mxu0 %v951
      %v1056 = vpop.f32.mrb[0].mxu0
      %v1057 = vadd.f32 %v936, %v1056
      %v1058 = vpop.f32.mrb[0].mxu0
      %v1059 = vpop.f32.mrb[0].mxu0
      %v1060 = vadd.f32 %v936, %v1059
      %v1061 = vpop.f32.mrb[0].mxu0
      %1062 = vmatprep.mubr.bf16.mxu0 0
      %1063 = vmatmul.mubr.bf16.gmra.mrb[0].mxu0 %v954
      %v1064 = vpop.f32.mrb[0].mxu0
      %v1065 = vadd.f32 %v936, %v1064
      %v1066 = vpop.f32.mrb[0].mxu0
      %v1067 = vpop.f32.mrb[0].mxu0
      %v1068 = vadd.f32 %v936, %v1067
      %v1069 = vpop.f32.mrb[0].mxu0
      %1070 = vmatprep.mubr.bf16.mxu0 0
      %1071 = vmatmul.mubr.bf16.gmra.mrb[0].mxu0 %v957
      %v1072 = vpop.f32.mrb[0].mxu0
      %v1073 = vadd.f32 %v936, %v1072
      %v1074 = vpop.f32.mrb[0].mxu0
      %v1075 = vpop.f32.mrb[0].mxu0
      %v1076 = vadd.f32 %v936, %v1075
      %v1077 = vpop.f32.mrb[0].mxu0
      %1078 = vmatprep.mubr.bf16.mxu0 0
      %1079 = vmatmul.mubr.bf16.gmra.mrb[0].mxu0 %v960
      %v1080 = vpop.f32.mrb[0].mxu0
      %v1081 = vadd.f32 %v936, %v1080
      %v1082 = vpop.f32.mrb[0].mxu0
      %v1083 = vpop.f32.mrb[0].mxu0
      %v1084 = vadd.f32 %v936, %v1083
      %v1085 = vpop.f32.mrb[0].mxu0
      %1086 = vmatprep.mubr.bf16.mxu0 0
      %1087 = vmatmul.mubr.bf16.gmra.mrb[0].mxu0 %v963
      %v1088 = vpop.f32.mrb[0].mxu0
      %v1089 = vadd.f32 %v936, %v1088
      %v1090 = vpop.f32.mrb[0].mxu0
      %v1091 = vpop.f32.mrb[0].mxu0
      %v1092 = vadd.f32 %v936, %v1091
      %v1093 = vpop.f32.mrb[0].mxu0
      %1094 = vmatprep.mubr.bf16.mxu0 0
      %1095 = vmatmul.mubr.bf16.gmra.mrb[0].mxu0 %v966
      %v1096 = vpop.f32.mrb[0].mxu0
      %v1097 = vadd.f32 %v936, %v1096
      %v1098 = vpop.f32.mrb[0].mxu0
      %v1099 = vpop.f32.mrb[0].mxu0
      %v1100 = vadd.f32 %v936, %v1099
      %v1101 = vpop.f32.mrb[0].mxu0
      %1102 = vmatprep.mubr.bf16.mxu0 0
      %1103 = vmatmul.mubr.bf16.gmra.mrb[0].mxu0 %v969
      %v1104 = vpop.f32.mrb[0].mxu0
      %v1105 = vadd.f32 %v936, %v1104
      %v1106 = vpop.f32.mrb[0].mxu0
      %v1107 = vpop.f32.mrb[0].mxu0
      %v1108 = vadd.f32 %v936, %v1107
      %v1109 = vpop.f32.mrb[0].mxu0
      %1110 = vmatprep.mubr.bf16.mxu0 0
      %1111 = vmatmul.mubr.bf16.gmra.mrb[0].mxu0 %v972
      %v1112 = vpop.f32.mrb[0].mxu0
      %v1113 = vadd.f32 %v936, %v1112
      %v1114 = vpop.f32.mrb[0].mxu0
      %v1115 = vpop.f32.mrb[0].mxu0
      %v1116 = vadd.f32 %v936, %v1115
      %v1117 = vpop.f32.mrb[0].mxu0
      %1118 = vmatprep.mubr.bf16.mxu0 0
      %1119 = vmatmul.mubr.bf16.gmra.mrb[0].mxu0 %v975
      %v1120 = vpop.f32.mrb[0].mxu0
      %v1121 = vadd.f32 %v936, %v1120
      %v1122 = vpop.f32.mrb[0].mxu0
      %v1123 = vpop.f32.mrb[0].mxu0
      %v1124 = vadd.f32 %v936, %v1123
      %v1125 = vpop.f32.mrb[0].mxu0
      %1126 = vmatprep.mubr.bf16.mxu0 0
      %1127 = vmatmul.mubr.bf16.gmra.mrb[0].mxu0 %v978
      %v1128 = vpop.f32.mrb[0].mxu0
      %v1129 = vadd.f32 %v936, %v1128
      %v1130 = vpop.f32.mrb[0].mxu0
      %v1131 = vpop.f32.mrb[0].mxu0
      %v1132 = vadd.f32 %v936, %v1131
      %v1133 = vpop.f32.mrb[0].mxu0
      %1134 = vmatprep.mubr.bf16.mxu0 0
      %1135 = vmatmul.mubr.bf16.gmra.mrb[0].mxu0 %v981
      %v1136 = vpop.f32.mrb[0].mxu0
      %v1137 = vadd.f32 %v936, %v1136
      %v1138 = vpop.f32.mrb[0].mxu0
      %v1139 = vpop.f32.mrb[0].mxu0
      %v1140 = vadd.f32 %v936, %v1139
      %v1141 = vpop.f32.mrb[0].mxu0
      %1142 = vmatprep.mubr.bf16.mxu0 0
      %1143 = vmatmul.mubr.bf16.gmra.mrb[0].mxu0 %v984
      %v1144 = vpop.f32.mrb[0].mxu0
      %v1145 = vadd.f32 %v936, %v1144
      %v1146 = vpop.f32.mrb[0].mxu0
      %v1147 = vpop.f32.mrb[0].mxu0
      %v1148 = vadd.f32 %v936, %v1147
      %v1149 = vpop.f32.mrb[0].mxu0
      %1150 = vdwg.mxu0
      %v1151 = vmul.f32 %v1025, 0.5
      %v1152 = vmul.f32 %v1028, 0.5
      %v1153 = vmul.f32 %v1033, 0.5
      %v1154 = vmul.f32 %v1036, 0.5
      %v1155 = vmul.f32 %v1041, 0.5
      %v1156 = vmul.f32 %v1044, 0.5
      %v1157 = vmul.f32 %v1049, 0.5
      %v1158 = vmul.f32 %v1052, 0.5
      %v1159 = vmul.f32 %v1057, 0.5
      %v1160 = vmul.f32 %v1060, 0.5
      %v1161 = vmul.f32 %v1065, 0.5
      %v1162 = vmul.f32 %v1068, 0.5
      %v1163 = vmul.f32 %v1073, 0.5
      %v1164 = vmul.f32 %v1076, 0.5
      %v1165 = vmul.f32 %v1081, 0.5
      %v1166 = vmul.f32 %v1084, 0.5
      %v1167 = vmul.f32 %v1089, 0.5
      %v1168 = vmul.f32 %v1092, 0.5
      %v1169 = vmul.f32 %v1097, 0.5
      %v1170 = vmul.f32 %v1100, 0.5
      %v1171 = vmul.f32 %v1105, 0.5
      %v1172 = vmul.f32 %v1108, 0.5
      %v1173 = vmul.f32 %v1113, 0.5
      %v1174 = vmul.f32 %v1116, 0.5
      %v1175 = vmul.f32 %v1121, 0.5
      %v1176 = vmul.f32 %v1124, 0.5
      %v1177 = vmul.f32 %v1129, 0.5
      %v1178 = vmul.f32 %v1132, 0.5
      %v1179 = vmul.f32 %v1137, 0.5
      %v1180 = vmul.f32 %v1140, 0.5
      %v1181 = vmul.f32 %v1145, 0.5
      %v1182 = vmul.f32 %v1148, 0.5
      %v1183 = vmul.f32 %v1025, 0.70710677
      %v1184 = vmul.f32 %v1028, 0.70710677
      %v1185 = vmul.f32 %v1033, 0.70710677
      %v1186 = vmul.f32 %v1036, 0.70710677
      %v1187 = vmul.f32 %v1041, 0.70710677
      %v1188 = vmul.f32 %v1044, 0.70710677
      %v1189 = vmul.f32 %v1049, 0.70710677
      %v1190 = vmul.f32 %v1052, 0.70710677
      %v1191 = vmul.f32 %v1057, 0.70710677
      %v1192 = vmul.f32 %v1060, 0.70710677
      %v1193 = vmul.f32 %v1065, 0.70710677
      %v1194 = vmul.f32 %v1068, 0.70710677
      %v1195 = vmul.f32 %v1073, 0.70710677
      %v1196 = vmul.f32 %v1076, 0.70710677
      %v1197 = vmul.f32 %v1081, 0.70710677
      %v1198 = vmul.f32 %v1084, 0.70710677
      %v1199 = vmul.f32 %v1089, 0.70710677
      %v1200 = vmul.f32 %v1092, 0.70710677
      %v1201 = vmul.f32 %v1097, 0.70710677
      %v1202 = vmul.f32 %v1100, 0.70710677
      %v1203 = vmul.f32 %v1105, 0.70710677
      %v1204 = vmul.f32 %v1108, 0.70710677
      %v1205 = vmul.f32 %v1113, 0.70710677
      %v1206 = vmul.f32 %v1116, 0.70710677
      %v1207 = vmul.f32 %v1121, 0.70710677
      %v1208 = vmul.f32 %v1124, 0.70710677
      %v1209 = vmul.f32 %v1129, 0.70710677
      %v1210 = vmul.f32 %v1132, 0.70710677
      %v1211 = vmul.f32 %v1137, 0.70710677
      %v1212 = vmul.f32 %v1140, 0.70710677
      %v1213 = vmul.f32 %v1145, 0.70710677
      %v1214 = vmul.f32 %v1148, 0.70710677
      %v1215 = verf.f32.pop %v1183
      %v1216 = verf.f32.pop %v1184
      %v1217 = verf.f32.pop %v1185
      %v1218 = verf.f32.pop %v1186
      %v1219 = verf.f32.pop %v1187
      %v1220 = verf.f32.pop %v1188
      %v1221 = verf.f32.pop %v1189
      %v1222 = verf.f32.pop %v1190
      %v1223 = verf.f32.pop %v1191
      %v1224 = verf.f32.pop %v1192
      %v1225 = verf.f32.pop %v1193
      %v1226 = verf.f32.pop %v1194
      %v1227 = verf.f32.pop %v1195
      %v1228 = verf.f32.pop %v1196
      %v1229 = verf.f32.pop %v1197
      %v1230 = verf.f32.pop %v1198
      %v1231 = verf.f32.pop %v1199
      %v1232 = verf.f32.pop %v1200
      %v1233 = verf.f32.pop %v1201
      %v1234 = verf.f32.pop %v1202
      %v1235 = verf.f32.pop %v1203
      %v1236 = verf.f32.pop %v1204
      %v1237 = verf.f32.pop %v1205
      %v1238 = verf.f32.pop %v1206
      %v1239 = verf.f32.pop %v1207
      %v1240 = verf.f32.pop %v1208
      %v1241 = verf.f32.pop %v1209
      %v1242 = verf.f32.pop %v1210
      %v1243 = verf.f32.pop %v1211
      %v1244 = verf.f32.pop %v1212
      %v1245 = verf.f32.pop %v1213
      %v1246 = verf.f32.pop %v1214
      %v1247 = vadd.f32 %v1215, 1.0
      %v1248 = vadd.f32 %v1216, 1.0
      %v1249 = vadd.f32 %v1217, 1.0
      %v1250 = vadd.f32 %v1218, 1.0
      %v1251 = vadd.f32 %v1219, 1.0
      %v1252 = vadd.f32 %v1220, 1.0
      %v1253 = vadd.f32 %v1221, 1.0
      %v1254 = vadd.f32 %v1222, 1.0
      %v1255 = vadd.f32 %v1223, 1.0
      %v1256 = vadd.f32 %v1224, 1.0
      %v1257 = vadd.f32 %v1225, 1.0
      %v1258 = vadd.f32 %v1226, 1.0
      %v1259 = vadd.f32 %v1227, 1.0
      %v1260 = vadd.f32 %v1228, 1.0
      %v1261 = vadd.f32 %v1229, 1.0
      %v1262 = vadd.f32 %v1230, 1.0
      %v1263 = vadd.f32 %v1231, 1.0
      %v1264 = vadd.f32 %v1232, 1.0
      %v1265 = vadd.f32 %v1233, 1.0
      %v1266 = vadd.f32 %v1234, 1.0
      %v1267 = vadd.f32 %v1235, 1.0
      %v1268 = vadd.f32 %v1236, 1.0
      %v1269 = vadd.f32 %v1237, 1.0
      %v1270 = vadd.f32 %v1238, 1.0
      %v1271 = vadd.f32 %v1239, 1.0
      %v1272 = vadd.f32 %v1240, 1.0
      %v1273 = vadd.f32 %v1241, 1.0
      %v1274 = vadd.f32 %v1242, 1.0
      %v1275 = vadd.f32 %v1243, 1.0
      %v1276 = vadd.f32 %v1244, 1.0
      %v1277 = vadd.f32 %v1245, 1.0
      %v1278 = vadd.f32 %v1246, 1.0
      %v1279 = vmul.f32 %v1151, %v1247
      %v1280 = vmul.f32 %v1152, %v1248
      %v1281 = vmul.f32 %v1153, %v1249
      %v1282 = vmul.f32 %v1154, %v1250
      %v1283 = vmul.f32 %v1155, %v1251
      %v1284 = vmul.f32 %v1156, %v1252
      %v1285 = vmul.f32 %v1157, %v1253
      %v1286 = vmul.f32 %v1158, %v1254
      %v1287 = vmul.f32 %v1159, %v1255
      %v1288 = vmul.f32 %v1160, %v1256
      %v1289 = vmul.f32 %v1161, %v1257
      %v1290 = vmul.f32 %v1162, %v1258
      %v1291 = vmul.f32 %v1163, %v1259
      %v1292 = vmul.f32 %v1164, %v1260
      %v1293 = vmul.f32 %v1165, %v1261
      %v1294 = vmul.f32 %v1166, %v1262
      %v1295 = vmul.f32 %v1167, %v1263
      %v1296 = vmul.f32 %v1168, %v1264
      %v1297 = vmul.f32 %v1169, %v1265
      %v1298 = vmul.f32 %v1170, %v1266
      %v1299 = vmul.f32 %v1171, %v1267
      %v1300 = vmul.f32 %v1172, %v1268
      %v1301 = vmul.f32 %v1173, %v1269
      %v1302 = vmul.f32 %v1174, %v1270
      %v1303 = vmul.f32 %v1175, %v1271
      %v1304 = vmul.f32 %v1176, %v1272
      %v1305 = vmul.f32 %v1177, %v1273
      %v1306 = vmul.f32 %v1178, %v1274
      %v1307 = vmul.f32 %v1179, %v1275
      %v1308 = vmul.f32 %v1180, %v1276
      %v1309 = vmul.f32 %v1181, %v1277
      %v1310 = vmul.f32 %v1182, %v1278
      %vm1311 = vcmask 64512
      %v1312 = vsel %vm1311, %v1279, 0.0
      %v1313 = vsel %vm1311, %v1280, 0.0
      %v1314 = vadd.f32 %v1312, %v1313
      %v1315 = vrot.slane %v1314, 4
      %v1316 = vadd.f32 %v1314, %v1315
      %v1317 = vrot.slane %v1316, 2
      %v1318 = vadd.f32 %v1316, %v1317
      %v1319 = vrot.slane %v1318, 1
      %v1320 = vadd.f32 %v1318, %v1319
      %v1321 = vsel %vm1311, %v1281, 0.0
      %v1322 = vsel %vm1311, %v1282, 0.0
      %v1323 = vadd.f32 %v1321, %v1322
      %v1324 = vrot.slane %v1323, 4
      %v1325 = vadd.f32 %v1323, %v1324
      %v1326 = vrot.slane %v1325, 2
      %v1327 = vadd.f32 %v1325, %v1326
      %v1328 = vrot.slane %v1327, 1
      %v1329 = vadd.f32 %v1327, %v1328
      %v1330 = vsel %vm1311, %v1283, 0.0
      %v1331 = vsel %vm1311, %v1284, 0.0
      %v1332 = vadd.f32 %v1330, %v1331
      %v1333 = vrot.slane %v1332, 4
      %v1334 = vadd.f32 %v1332, %v1333
      %v1335 = vrot.slane %v1334, 2
      %v1336 = vadd.f32 %v1334, %v1335
      %v1337 = vrot.slane %v1336, 1
      %v1338 = vadd.f32 %v1336, %v1337
      %v1339 = vsel %vm1311, %v1285, 0.0
      %v1340 = vsel %vm1311, %v1286, 0.0
      %v1341 = vadd.f32 %v1339, %v1340
      %v1342 = vrot.slane %v1341, 4
      %v1343 = vadd.f32 %v1341, %v1342
      %v1344 = vrot.slane %v1343, 2
      %v1345 = vadd.f32 %v1343, %v1344
      %v1346 = vrot.slane %v1345, 1
      %v1347 = vadd.f32 %v1345, %v1346
      %v1348 = vsel %vm1311, %v1287, 0.0
      %v1349 = vsel %vm1311, %v1288, 0.0
      %v1350 = vadd.f32 %v1348, %v1349
      %v1351 = vrot.slane %v1350, 4
      %v1352 = vadd.f32 %v1350, %v1351
      %v1353 = vrot.slane %v1352, 2
      %v1354 = vadd.f32 %v1352, %v1353
      %v1355 = vrot.slane %v1354, 1
      %v1356 = vadd.f32 %v1354, %v1355
      %v1357 = vsel %vm1311, %v1289, 0.0
      %v1358 = vsel %vm1311, %v1290, 0.0
      %v1359 = vadd.f32 %v1357, %v1358
      %v1360 = vrot.slane %v1359, 4
      %v1361 = vadd.f32 %v1359, %v1360
      %v1362 = vrot.slane %v1361, 2
      %v1363 = vadd.f32 %v1361, %v1362
      %v1364 = vrot.slane %v1363, 1
      %v1365 = vadd.f32 %v1363, %v1364
      %v1366 = vsel %vm1311, %v1291, 0.0
      %v1367 = vsel %vm1311, %v1292, 0.0
      %v1368 = vadd.f32 %v1366, %v1367
      %v1369 = vrot.slane %v1368, 4
      %v1370 = vadd.f32 %v1368, %v1369
      %v1371 = vrot.slane %v1370, 2
      %v1372 = vadd.f32 %v1370, %v1371
      %v1373 = vrot.slane %v1372, 1
      %v1374 = vadd.f32 %v1372, %v1373
      %v1375 = vsel %vm1311, %v1293, 0.0
      %v1376 = vsel %vm1311, %v1294, 0.0
      %v1377 = vadd.f32 %v1375, %v1376
      %v1378 = vrot.slane %v1377, 4
      %v1379 = vadd.f32 %v1377, %v1378
      %v1380 = vrot.slane %v1379, 2
      %v1381 = vadd.f32 %v1379, %v1380
      %v1382 = vrot.slane %v1381, 1
      %v1383 = vadd.f32 %v1381, %v1382
      %v1384 = vsel %vm1311, %v1295, 0.0
      %v1385 = vsel %vm1311, %v1296, 0.0
      %v1386 = vadd.f32 %v1384, %v1385
      %v1387 = vrot.slane %v1386, 4
      %v1388 = vadd.f32 %v1386, %v1387
      %v1389 = vrot.slane %v1388, 2
      %v1390 = vadd.f32 %v1388, %v1389
      %v1391 = vrot.slane %v1390, 1
      %v1392 = vadd.f32 %v1390, %v1391
      %v1393 = vsel %vm1311, %v1297, 0.0
      %v1394 = vsel %vm1311, %v1298, 0.0
      %v1395 = vadd.f32 %v1393, %v1394
      %v1396 = vrot.slane %v1395, 4
      %v1397 = vadd.f32 %v1395, %v1396
      %v1398 = vrot.slane %v1397, 2
      %v1399 = vadd.f32 %v1397, %v1398
      %v1400 = vrot.slane %v1399, 1
      %v1401 = vadd.f32 %v1399, %v1400
      %v1402 = vsel %vm1311, %v1299, 0.0
      %v1403 = vsel %vm1311, %v1300, 0.0
      %v1404 = vadd.f32 %v1402, %v1403
      %v1405 = vrot.slane %v1404, 4
      %v1406 = vadd.f32 %v1404, %v1405
      %v1407 = vrot.slane %v1406, 2
      %v1408 = vadd.f32 %v1406, %v1407
      %v1409 = vrot.slane %v1408, 1
      %v1410 = vadd.f32 %v1408, %v1409
      %v1411 = vsel %vm1311, %v1301, 0.0
      %v1412 = vsel %vm1311, %v1302, 0.0
      %v1413 = vadd.f32 %v1411, %v1412
      %v1414 = vrot.slane %v1413, 4
      %v1415 = vadd.f32 %v1413, %v1414
      %v1416 = vrot.slane %v1415, 2
      %v1417 = vadd.f32 %v1415, %v1416
      %v1418 = vrot.slane %v1417, 1
      %v1419 = vadd.f32 %v1417, %v1418
      %v1420 = vsel %vm1311, %v1303, 0.0
      %v1421 = vsel %vm1311, %v1304, 0.0
      %v1422 = vadd.f32 %v1420, %v1421
      %v1423 = vrot.slane %v1422, 4
      %v1424 = vadd.f32 %v1422, %v1423
      %v1425 = vrot.slane %v1424, 2
      %v1426 = vadd.f32 %v1424, %v1425
      %v1427 = vrot.slane %v1426, 1
      %v1428 = vadd.f32 %v1426, %v1427
      %v1429 = vsel %vm1311, %v1305, 0.0
      %v1430 = vsel %vm1311, %v1306, 0.0
      %v1431 = vadd.f32 %v1429, %v1430
      %v1432 = vrot.slane %v1431, 4
      %v1433 = vadd.f32 %v1431, %v1432
      %v1434 = vrot.slane %v1433, 2
      %v1435 = vadd.f32 %v1433, %v1434
      %v1436 = vrot.slane %v1435, 1
      %v1437 = vadd.f32 %v1435, %v1436
      %v1438 = vsel %vm1311, %v1307, 0.0
      %v1439 = vsel %vm1311, %v1308, 0.0
      %v1440 = vadd.f32 %v1438, %v1439
      %v1441 = vrot.slane %v1440, 4
      %v1442 = vadd.f32 %v1440, %v1441
      %v1443 = vrot.slane %v1442, 2
      %v1444 = vadd.f32 %v1442, %v1443
      %v1445 = vrot.slane %v1444, 1
      %v1446 = vadd.f32 %v1444, %v1445
      %v1447 = vsel %vm1311, %v1309, 0.0
      %v1448 = vsel %vm1311, %v1310, 0.0
      %v1449 = vadd.f32 %v1447, %v1448
      %v1450 = vrot.slane %v1449, 4
      %v1451 = vadd.f32 %v1449, %v1450
      %v1452 = vrot.slane %v1451, 2
      %v1453 = vadd.f32 %v1451, %v1452
      %v1454 = vrot.slane %v1453, 1
      %v1455 = vadd.f32 %v1453, %v1454
      %v1456 = vrcp.pop 16.0
      %v1457 = vmul.f32 %v1320, %v1456
      %v1458 = vmul.f32 %v1329, %v1456
      %v1459 = vmul.f32 %v1338, %v1456
      %v1460 = vmul.f32 %v1347, %v1456
      %v1461 = vmul.f32 %v1356, %v1456
      %v1462 = vmul.f32 %v1365, %v1456
      %v1463 = vmul.f32 %v1374, %v1456
      %v1464 = vmul.f32 %v1383, %v1456
      %v1465 = vmul.f32 %v1392, %v1456
      %v1466 = vmul.f32 %v1401, %v1456
      %v1467 = vmul.f32 %v1410, %v1456
      %v1468 = vmul.f32 %v1419, %v1456
      %v1469 = vmul.f32 %v1428, %v1456
      %v1470 = vmul.f32 %v1437, %v1456
      %v1471 = vmul.f32 %v1446, %v1456
      %v1472 = vmul.f32 %v1455, %v1456
      %v1473 = vsub.f32 %v1279, %v1457
      %v1474 = vsub.f32 %v1280, %v1457
      %v1475 = vsub.f32 %v1281, %v1458
      %v1476 = vsub.f32 %v1282, %v1458
      %v1477 = vsub.f32 %v1283, %v1459
      %v1478 = vsub.f32 %v1284, %v1459
      %v1479 = vsub.f32 %v1285, %v1460
      %v1480 = vsub.f32 %v1286, %v1460
      %v1481 = vsub.f32 %v1287, %v1461
      %v1482 = vsub.f32 %v1288, %v1461
      %v1483 = vsub.f32 %v1289, %v1462
      %v1484 = vsub.f32 %v1290, %v1462
      %v1485 = vsub.f32 %v1291, %v1463
      %v1486 = vsub.f32 %v1292, %v1463
      %v1487 = vsub.f32 %v1293, %v1464
      %v1488 = vsub.f32 %v1294, %v1464
      %v1489 = vsub.f32 %v1295, %v1465
      %v1490 = vsub.f32 %v1296, %v1465
      %v1491 = vsub.f32 %v1297, %v1466
      %v1492 = vsub.f32 %v1298, %v1466
      %v1493 = vsub.f32 %v1299, %v1467
      %v1494 = vsub.f32 %v1300, %v1467
      %v1495 = vsub.f32 %v1301, %v1468
      %v1496 = vsub.f32 %v1302, %v1468
      %v1497 = vsub.f32 %v1303, %v1469
      %v1498 = vsub.f32 %v1304, %v1469
      %v1499 = vsub.f32 %v1305, %v1470
      %v1500 = vsub.f32 %v1306, %v1470
      %v1501 = vsub.f32 %v1307, %v1471
      %v1502 = vsub.f32 %v1308, %v1471
      %v1503 = vsub.f32 %v1309, %v1472
      %v1504 = vsub.f32 %v1310, %v1472
      %v1505 = vmul.f32 %v1473, %v1473
      %v1506 = vmul.f32 %v1474, %v1474
      %v1507 = vmul.f32 %v1475, %v1475
      %v1508 = vmul.f32 %v1476, %v1476
      %v1509 = vmul.f32 %v1477, %v1477
      %v1510 = vmul.f32 %v1478, %v1478
      %v1511 = vmul.f32 %v1479, %v1479
      %v1512 = vmul.f32 %v1480, %v1480
      %v1513 = vmul.f32 %v1481, %v1481
      %v1514 = vmul.f32 %v1482, %v1482
      %v1515 = vmul.f32 %v1483, %v1483
      %v1516 = vmul.f32 %v1484, %v1484
      %v1517 = vmul.f32 %v1485, %v1485
      %v1518 = vmul.f32 %v1486, %v1486
      %v1519 = vmul.f32 %v1487, %v1487
      %v1520 = vmul.f32 %v1488, %v1488
      %v1521 = vmul.f32 %v1489, %v1489
      %v1522 = vmul.f32 %v1490, %v1490
      %v1523 = vmul.f32 %v1491, %v1491
      %v1524 = vmul.f32 %v1492, %v1492
      %v1525 = vmul.f32 %v1493, %v1493
      %v1526 = vmul.f32 %v1494, %v1494
      %v1527 = vmul.f32 %v1495, %v1495
      %v1528 = vmul.f32 %v1496, %v1496
      %v1529 = vmul.f32 %v1497, %v1497
      %v1530 = vmul.f32 %v1498, %v1498
      %v1531 = vmul.f32 %v1499, %v1499
      %v1532 = vmul.f32 %v1500, %v1500
      %v1533 = vmul.f32 %v1501, %v1501
      %v1534 = vmul.f32 %v1502, %v1502
      %v1535 = vmul.f32 %v1503, %v1503
      %v1536 = vmul.f32 %v1504, %v1504
      %v1537 = vsel %vm1311, %v1505, 0.0
      %v1538 = vsel %vm1311, %v1506, 0.0
      %v1539 = vadd.f32 %v1537, %v1538
      %v1540 = vrot.slane %v1539, 4
      %v1541 = vadd.f32 %v1539, %v1540
      %v1542 = vrot.slane %v1541, 2
      %v1543 = vadd.f32 %v1541, %v1542
      %v1544 = vrot.slane %v1543, 1
      %v1545 = vadd.f32 %v1543, %v1544
      %v1546 = vsel %vm1311, %v1507, 0.0
      %v1547 = vsel %vm1311, %v1508, 0.0
      %v1548 = vadd.f32 %v1546, %v1547
      %v1549 = vrot.slane %v1548, 4
      %v1550 = vadd.f32 %v1548, %v1549
      %v1551 = vrot.slane %v1550, 2
      %v1552 = vadd.f32 %v1550, %v1551
      %v1553 = vrot.slane %v1552, 1
      %v1554 = vadd.f32 %v1552, %v1553
      %v1555 = vsel %vm1311, %v1509, 0.0
      %v1556 = vsel %vm1311, %v1510, 0.0
      %v1557 = vadd.f32 %v1555, %v1556
      %v1558 = vrot.slane %v1557, 4
      %v1559 = vadd.f32 %v1557, %v1558
      %v1560 = vrot.slane %v1559, 2
      %v1561 = vadd.f32 %v1559, %v1560
      %v1562 = vrot.slane %v1561, 1
      %v1563 = vadd.f32 %v1561, %v1562
      %v1564 = vsel %vm1311, %v1511, 0.0
      %v1565 = vsel %vm1311, %v1512, 0.0
      %v1566 = vadd.f32 %v1564, %v1565
      %v1567 = vrot.slane %v1566, 4
      %v1568 = vadd.f32 %v1566, %v1567
      %v1569 = vrot.slane %v1568, 2
      %v1570 = vadd.f32 %v1568, %v1569
      %v1571 = vrot.slane %v1570, 1
      %v1572 = vadd.f32 %v1570, %v1571
      %v1573 = vsel %vm1311, %v1513, 0.0
      %v1574 = vsel %vm1311, %v1514, 0.0
      %v1575 = vadd.f32 %v1573, %v1574
      %v1576 = vrot.slane %v1575, 4
      %v1577 = vadd.f32 %v1575, %v1576
      %v1578 = vrot.slane %v1577, 2
      %v1579 = vadd.f32 %v1577, %v1578
      %v1580 = vrot.slane %v1579, 1
      %v1581 = vadd.f32 %v1579, %v1580
      %v1582 = vsel %vm1311, %v1515, 0.0
      %v1583 = vsel %vm1311, %v1516, 0.0
      %v1584 = vadd.f32 %v1582, %v1583
      %v1585 = vrot.slane %v1584, 4
      %v1586 = vadd.f32 %v1584, %v1585
      %v1587 = vrot.slane %v1586, 2
      %v1588 = vadd.f32 %v1586, %v1587
      %v1589 = vrot.slane %v1588, 1
      %v1590 = vadd.f32 %v1588, %v1589
      %v1591 = vsel %vm1311, %v1517, 0.0
      %v1592 = vsel %vm1311, %v1518, 0.0
      %v1593 = vadd.f32 %v1591, %v1592
      %v1594 = vrot.slane %v1593, 4
      %v1595 = vadd.f32 %v1593, %v1594
      %v1596 = vrot.slane %v1595, 2
      %v1597 = vadd.f32 %v1595, %v1596
      %v1598 = vrot.slane %v1597, 1
      %v1599 = vadd.f32 %v1597, %v1598
      %v1600 = vsel %vm1311, %v1519, 0.0
      %v1601 = vsel %vm1311, %v1520, 0.0
      %v1602 = vadd.f32 %v1600, %v1601
      %v1603 = vrot.slane %v1602, 4
      %v1604 = vadd.f32 %v1602, %v1603
      %v1605 = vrot.slane %v1604, 2
      %v1606 = vadd.f32 %v1604, %v1605
      %v1607 = vrot.slane %v1606, 1
      %v1608 = vadd.f32 %v1606, %v1607
      %v1609 = vsel %vm1311, %v1521, 0.0
      %v1610 = vsel %vm1311, %v1522, 0.0
      %v1611 = vadd.f32 %v1609, %v1610
      %v1612 = vrot.slane %v1611, 4
      %v1613 = vadd.f32 %v1611, %v1612
      %v1614 = vrot.slane %v1613, 2
      %v1615 = vadd.f32 %v1613, %v1614
      %v1616 = vrot.slane %v1615, 1
      %v1617 = vadd.f32 %v1615, %v1616
      %v1618 = vsel %vm1311, %v1523, 0.0
      %v1619 = vsel %vm1311, %v1524, 0.0
      %v1620 = vadd.f32 %v1618, %v1619
      %v1621 = vrot.slane %v1620, 4
      %v1622 = vadd.f32 %v1620, %v1621
      %v1623 = vrot.slane %v1622, 2
      %v1624 = vadd.f32 %v1622, %v1623
      %v1625 = vrot.slane %v1624, 1
      %v1626 = vadd.f32 %v1624, %v1625
      %v1627 = vsel %vm1311, %v1525, 0.0
      %v1628 = vsel %vm1311, %v1526, 0.0
      %v1629 = vadd.f32 %v1627, %v1628
      %v1630 = vrot.slane %v1629, 4
      %v1631 = vadd.f32 %v1629, %v1630
      %v1632 = vrot.slane %v1631, 2
      %v1633 = vadd.f32 %v1631, %v1632
      %v1634 = vrot.slane %v1633, 1
      %v1635 = vadd.f32 %v1633, %v1634
      %v1636 = vsel %vm1311, %v1527, 0.0
      %v1637 = vsel %vm1311, %v1528, 0.0
      %v1638 = vadd.f32 %v1636, %v1637
      %v1639 = vrot.slane %v1638, 4
      %v1640 = vadd.f32 %v1638, %v1639
      %v1641 = vrot.slane %v1640, 2
      %v1642 = vadd.f32 %v1640, %v1641
      %v1643 = vrot.slane %v1642, 1
      %v1644 = vadd.f32 %v1642, %v1643
      %v1645 = vsel %vm1311, %v1529, 0.0
      %v1646 = vsel %vm1311, %v1530, 0.0
      %v1647 = vadd.f32 %v1645, %v1646
      %v1648 = vrot.slane %v1647, 4
      %v1649 = vadd.f32 %v1647, %v1648
      %v1650 = vrot.slane %v1649, 2
      %v1651 = vadd.f32 %v1649, %v1650
      %v1652 = vrot.slane %v1651, 1
      %v1653 = vadd.f32 %v1651, %v1652
      %v1654 = vsel %vm1311, %v1531, 0.0
      %v1655 = vsel %vm1311, %v1532, 0.0
      %v1656 = vadd.f32 %v1654, %v1655
      %v1657 = vrot.slane %v1656, 4
      %v1658 = vadd.f32 %v1656, %v1657
      %v1659 = vrot.slane %v1658, 2
      %v1660 = vadd.f32 %v1658, %v1659
      %v1661 = vrot.slane %v1660, 1
      %v1662 = vadd.f32 %v1660, %v1661
      %v1663 = vsel %vm1311, %v1533, 0.0
      %v1664 = vsel %vm1311, %v1534, 0.0
      %v1665 = vadd.f32 %v1663, %v1664
      %v1666 = vrot.slane %v1665, 4
      %v1667 = vadd.f32 %v1665, %v1666
      %v1668 = vrot.slane %v1667, 2
      %v1669 = vadd.f32 %v1667, %v1668
      %v1670 = vrot.slane %v1669, 1
      %v1671 = vadd.f32 %v1669, %v1670
      %v1672 = vsel %vm1311, %v1535, 0.0
      %v1673 = vsel %vm1311, %v1536, 0.0
      %v1674 = vadd.f32 %v1672, %v1673
      %v1675 = vrot.slane %v1674, 4
      %v1676 = vadd.f32 %v1674, %v1675
      %v1677 = vrot.slane %v1676, 2
      %v1678 = vadd.f32 %v1676, %v1677
      %v1679 = vrot.slane %v1678, 1
      %v1680 = vadd.f32 %v1678, %v1679
      %v1681 = vmul.f32 %v1545, %v1456
      %v1682 = vmul.f32 %v1554, %v1456
      %v1683 = vmul.f32 %v1563, %v1456
      %v1684 = vmul.f32 %v1572, %v1456
      %v1685 = vmul.f32 %v1581, %v1456
      %v1686 = vmul.f32 %v1590, %v1456
      %v1687 = vmul.f32 %v1599, %v1456
      %v1688 = vmul.f32 %v1608, %v1456
      %v1689 = vmul.f32 %v1617, %v1456
      %v1690 = vmul.f32 %v1626, %v1456
      %v1691 = vmul.f32 %v1635, %v1456
      %v1692 = vmul.f32 %v1644, %v1456
      %v1693 = vmul.f32 %v1653, %v1456
      %v1694 = vmul.f32 %v1662, %v1456
      %v1695 = vmul.f32 %v1671, %v1456
      %v1696 = vmul.f32 %v1680, %v1456
      %v1697 = vadd.f32 %v1681, 1e-05
      %v1698 = vadd.f32 %v1682, 1e-05
      %v1699 = vadd.f32 %v1683, 1e-05
      %v1700 = vadd.f32 %v1684, 1e-05
      %v1701 = vadd.f32 %v1685, 1e-05
      %v1702 = vadd.f32 %v1686, 1e-05
      %v1703 = vadd.f32 %v1687, 1e-05
      %v1704 = vadd.f32 %v1688, 1e-05
      %v1705 = vadd.f32 %v1689, 1e-05
      %v1706 = vadd.f32 %v1690, 1e-05
      %v1707 = vadd.f32 %v1691, 1e-05
      %v1708 = vadd.f32 %v1692, 1e-05
      %v1709 = vadd.f32 %v1693, 1e-05
      %v1710 = vadd.f32 %v1694, 1e-05
      %v1711 = vadd.f32 %v1695, 1e-05
      %v1712 = vadd.f32 %v1696, 1e-05
      %v1713 = vrsqrt.pop %v1697
      %v1714 = vrsqrt.pop %v1698
      %v1715 = vrsqrt.pop %v1699
      %v1716 = vrsqrt.pop %v1700
      %v1717 = vrsqrt.pop %v1701
      %v1718 = vrsqrt.pop %v1702
      %v1719 = vrsqrt.pop %v1703
      %v1720 = vrsqrt.pop %v1704
      %v1721 = vrsqrt.pop %v1705
      %v1722 = vrsqrt.pop %v1706
      %v1723 = vrsqrt.pop %v1707
      %v1724 = vrsqrt.pop %v1708
      %v1725 = vrsqrt.pop %v1709
      %v1726 = vrsqrt.pop %v1710
      %v1727 = vrsqrt.pop %v1711
      %v1728 = vrsqrt.pop %v1712
      %v1729 = vmul.f32 %v1473, %v1713
      %v1730 = vmul.f32 %v1474, %v1713
      %v1731 = vmul.f32 %v1475, %v1714
      %v1732 = vmul.f32 %v1476, %v1714
      %v1733 = vmul.f32 %v1477, %v1715
      %v1734 = vmul.f32 %v1478, %v1715
      %v1735 = vmul.f32 %v1479, %v1716
      %v1736 = vmul.f32 %v1480, %v1716
      %v1737 = vmul.f32 %v1481, %v1717
      %v1738 = vmul.f32 %v1482, %v1717
      %v1739 = vmul.f32 %v1483, %v1718
      %v1740 = vmul.f32 %v1484, %v1718
      %v1741 = vmul.f32 %v1485, %v1719
      %v1742 = vmul.f32 %v1486, %v1719
      %v1743 = vmul.f32 %v1487, %v1720
      %v1744 = vmul.f32 %v1488, %v1720
      %v1745 = vmul.f32 %v1489, %v1721
      %v1746 = vmul.f32 %v1490, %v1721
      %v1747 = vmul.f32 %v1491, %v1722
      %v1748 = vmul.f32 %v1492, %v1722
      %v1749 = vmul.f32 %v1493, %v1723
      %v1750 = vmul.f32 %v1494, %v1723
      %v1751 = vmul.f32 %v1495, %v1724
      %v1752 = vmul.f32 %v1496, %v1724
      %v1753 = vmul.f32 %v1497, %v1725
      %v1754 = vmul.f32 %v1498, %v1725
      %v1755 = vmul.f32 %v1499, %v1726
      %v1756 = vmul.f32 %v1500, %v1726
      %v1757 = vmul.f32 %v1501, %v1727
      %v1758 = vmul.f32 %v1502, %v1727
      %v1759 = vmul.f32 %v1503, %v1728
      %v1760 = vmul.f32 %v1504, %v1728
      %v1761 = vld [vmem:[%s3] sm:$0xf]
      %v1762 = vld [vmem:[%s4] sm:$0x1]
      %v1763 = vpack.c.bf16 %v1730, %v1729
      %v1764 = vpack.c.bf16 %v1732, %v1731
      %v1765 = vpack.c.bf16 %v1734, %v1733
      %v1766 = vpack.c.bf16 %v1736, %v1735
      %v1767 = vpack.c.bf16 %v1738, %v1737
      %v1768 = vpack.c.bf16 %v1740, %v1739
      %v1769 = vpack.c.bf16 %v1742, %v1741
      %v1770 = vpack.c.bf16 %v1744, %v1743
      %v1771 = vpack.c.bf16 %v1746, %v1745
      %v1772 = vpack.c.bf16 %v1748, %v1747
      %v1773 = vpack.c.bf16 %v1750, %v1749
      %v1774 = vpack.c.bf16 %v1752, %v1751
      %v1775 = vpack.c.bf16 %v1754, %v1753
      %v1776 = vpack.c.bf16 %v1756, %v1755
      %v1777 = vpack.c.bf16 %v1758, %v1757
      %v1778 = vpack.c.bf16 %v1760, %v1759
      %v1780 = vlaneseq
      %v1781 = vshrl.u32 %v1780, 7
      %v1782 = vsub.s32 0, %v1781
      %v1783 = vrot.slane %v1762, %v1782
      %v1786 = vsel %vm1311, %v1763, 0
      %v1789 = vsel %vm1311, %v1764, 0
      %v1792 = vsel %vm1311, %v1765, 0
      %v1795 = vsel %vm1311, %v1766, 0
      %v1798 = vsel %vm1311, %v1767, 0
      %v1801 = vsel %vm1311, %v1768, 0
      %v1804 = vsel %vm1311, %v1769, 0
      %v1807 = vsel %vm1311, %v1770, 0
      %v1810 = vsel %vm1311, %v1771, 0
      %v1813 = vsel %vm1311, %v1772, 0
      %v1816 = vsel %vm1311, %v1773, 0
      %v1819 = vsel %vm1311, %v1774, 0
      %v1822 = vsel %vm1311, %v1775, 0
      %v1825 = vsel %vm1311, %v1776, 0
      %v1828 = vsel %vm1311, %v1777, 0
      %v1831 = vsel %vm1311, %v1778, 0
      %vm1833 = vcmask 1043456
      %v1835 = vsel %vm1833, %v1761, 0
      %1837 = vmatprep.subr.bf16.mxu0 0
      %1838 = vmatpush1.bf16.msra.mxu0 %v1835
      %1839 = vmatprep.subr.bf16.mxu0 0
      %1840 = vmatpush1.bf16.msra.mxu0 0
      %1841 = vmatprep.subr.bf16.mxu0 0
      %1842 = vmatpush1.bf16.msra.mxu0 0
      %1843 = vmatprep.subr.bf16.mxu0 0
      %1844 = vmatpush1.bf16.msra.mxu0 0
      %1845 = vmatprep.subr.bf16.mxu0 0
      %1846 = vmatpush1.bf16.msra.mxu0 0
      %1847 = vmatprep.subr.bf16.mxu0 0
      %1848 = vmatpush1.bf16.msra.mxu0 0
      %1849 = vmatprep.subr.bf16.mxu0 0
      %1850 = vmatpush1.bf16.msra.mxu0 0
      %1851 = vmatprep.subr.bf16.mxu0 0
      %1852 = vmatpush1.bf16.msra.mxu0 0
      %1853 = vmatprep.subr.bf16.mxu0 0
      %1854 = vmatpush1.bf16.msra.mxu0 0
      %1855 = vmatprep.subr.bf16.mxu0 0
      %1856 = vmatpush1.bf16.msra.mxu0 0
      %1857 = vmatprep.subr.bf16.mxu0 0
      %1858 = vmatpush1.bf16.msra.mxu0 0
      %1859 = vmatprep.subr.bf16.mxu0 0
      %1860 = vmatpush1.bf16.msra.mxu0 0
      %1861 = vmatprep.subr.bf16.mxu0 0
      %1862 = vmatpush1.bf16.msra.mxu0 0
      %1863 = vmatprep.subr.bf16.mxu0 0
      %1864 = vmatpush1.bf16.msra.mxu0 0
      %1865 = vmatprep.subr.bf16.mxu0 0
      %1866 = vmatpush1.bf16.msra.mxu0 0
      %1867 = vmatprep.subr.bf16.mxu0 0
      %1868 = vmatpush1.bf16.msra.mxu0 0
      %1869 = vmatprep.mubr.bf16.mxu0 0
      %1870 = vmatmul.mubr.bf16.gmra.mrb[0].mxu0 %v1786
      %v1871 = vpop.f32.mrb[0].mxu0
      %v1872 = vadd.f32 %v1783, %v1871
      %v1873 = vpop.f32.mrb[0].mxu0
      %v1874 = vpop.f32.mrb[0].mxu0
      %v1875 = vadd.f32 %v1783, %v1874
      %v1876 = vpop.f32.mrb[0].mxu0
      %1877 = vmatprep.mubr.bf16.mxu0 0
      %1878 = vmatmul.mubr.bf16.gmra.mrb[0].mxu0 %v1789
      %v1879 = vpop.f32.mrb[0].mxu0
      %v1880 = vadd.f32 %v1783, %v1879
      %v1881 = vpop.f32.mrb[0].mxu0
      %v1882 = vpop.f32.mrb[0].mxu0
      %v1883 = vadd.f32 %v1783, %v1882
      %v1884 = vpop.f32.mrb[0].mxu0
      %1885 = vmatprep.mubr.bf16.mxu0 0
      %1886 = vmatmul.mubr.bf16.gmra.mrb[0].mxu0 %v1792
      %v1887 = vpop.f32.mrb[0].mxu0
      %v1888 = vadd.f32 %v1783, %v1887
      %v1889 = vpop.f32.mrb[0].mxu0
      %v1890 = vpop.f32.mrb[0].mxu0
      %v1891 = vadd.f32 %v1783, %v1890
      %v1892 = vpop.f32.mrb[0].mxu0
      %1893 = vmatprep.mubr.bf16.mxu0 0
      %1894 = vmatmul.mubr.bf16.gmra.mrb[0].mxu0 %v1795
      %v1895 = vpop.f32.mrb[0].mxu0
      %v1896 = vadd.f32 %v1783, %v1895
      %v1897 = vpop.f32.mrb[0].mxu0
      %v1898 = vpop.f32.mrb[0].mxu0
      %v1899 = vadd.f32 %v1783, %v1898
      %v1900 = vpop.f32.mrb[0].mxu0
      %1901 = vmatprep.mubr.bf16.mxu0 0
      %1902 = vmatmul.mubr.bf16.gmra.mrb[0].mxu0 %v1798
      %v1903 = vpop.f32.mrb[0].mxu0
      %v1904 = vadd.f32 %v1783, %v1903
      %v1905 = vpop.f32.mrb[0].mxu0
      %v1906 = vpop.f32.mrb[0].mxu0
      %v1907 = vadd.f32 %v1783, %v1906
      %v1908 = vpop.f32.mrb[0].mxu0
      %1909 = vmatprep.mubr.bf16.mxu0 0
      %1910 = vmatmul.mubr.bf16.gmra.mrb[0].mxu0 %v1801
      %v1911 = vpop.f32.mrb[0].mxu0
      %v1912 = vadd.f32 %v1783, %v1911
      %v1913 = vpop.f32.mrb[0].mxu0
      %v1914 = vpop.f32.mrb[0].mxu0
      %v1915 = vadd.f32 %v1783, %v1914
      %v1916 = vpop.f32.mrb[0].mxu0
      %1917 = vmatprep.mubr.bf16.mxu0 0
      %1918 = vmatmul.mubr.bf16.gmra.mrb[0].mxu0 %v1804
      %v1919 = vpop.f32.mrb[0].mxu0
      %v1920 = vadd.f32 %v1783, %v1919
      %v1921 = vpop.f32.mrb[0].mxu0
      %v1922 = vpop.f32.mrb[0].mxu0
      %v1923 = vadd.f32 %v1783, %v1922
      %v1924 = vpop.f32.mrb[0].mxu0
      %1925 = vmatprep.mubr.bf16.mxu0 0
      %1926 = vmatmul.mubr.bf16.gmra.mrb[0].mxu0 %v1807
      %v1927 = vpop.f32.mrb[0].mxu0
      %v1928 = vadd.f32 %v1783, %v1927
      %v1929 = vpop.f32.mrb[0].mxu0
      %v1930 = vpop.f32.mrb[0].mxu0
      %v1931 = vadd.f32 %v1783, %v1930
      %v1932 = vpop.f32.mrb[0].mxu0
      %1933 = vmatprep.mubr.bf16.mxu0 0
      %1934 = vmatmul.mubr.bf16.gmra.mrb[0].mxu0 %v1810
      %v1935 = vpop.f32.mrb[0].mxu0
      %v1936 = vadd.f32 %v1783, %v1935
      %v1937 = vpop.f32.mrb[0].mxu0
      %v1938 = vpop.f32.mrb[0].mxu0
      %v1939 = vadd.f32 %v1783, %v1938
      %v1940 = vpop.f32.mrb[0].mxu0
      %1941 = vmatprep.mubr.bf16.mxu0 0
      %1942 = vmatmul.mubr.bf16.gmra.mrb[0].mxu0 %v1813
      %v1943 = vpop.f32.mrb[0].mxu0
      %v1944 = vadd.f32 %v1783, %v1943
      %v1945 = vpop.f32.mrb[0].mxu0
      %v1946 = vpop.f32.mrb[0].mxu0
      %v1947 = vadd.f32 %v1783, %v1946
      %v1948 = vpop.f32.mrb[0].mxu0
      %1949 = vmatprep.mubr.bf16.mxu0 0
      %1950 = vmatmul.mubr.bf16.gmra.mrb[0].mxu0 %v1816
      %v1951 = vpop.f32.mrb[0].mxu0
      %v1952 = vadd.f32 %v1783, %v1951
      %v1953 = vpop.f32.mrb[0].mxu0
      %v1954 = vpop.f32.mrb[0].mxu0
      %v1955 = vadd.f32 %v1783, %v1954
      %v1956 = vpop.f32.mrb[0].mxu0
      %1957 = vmatprep.mubr.bf16.mxu0 0
      %1958 = vmatmul.mubr.bf16.gmra.mrb[0].mxu0 %v1819
      %v1959 = vpop.f32.mrb[0].mxu0
      %v1960 = vadd.f32 %v1783, %v1959
      %v1961 = vpop.f32.mrb[0].mxu0
      %v1962 = vpop.f32.mrb[0].mxu0
      %v1963 = vadd.f32 %v1783, %v1962
      %v1964 = vpop.f32.mrb[0].mxu0
      %1965 = vmatprep.mubr.bf16.mxu0 0
      %1966 = vmatmul.mubr.bf16.gmra.mrb[0].mxu0 %v1822
      %v1967 = vpop.f32.mrb[0].mxu0
      %v1968 = vadd.f32 %v1783, %v1967
      %v1969 = vpop.f32.mrb[0].mxu0
      %v1970 = vpop.f32.mrb[0].mxu0
      %v1971 = vadd.f32 %v1783, %v1970
      %v1972 = vpop.f32.mrb[0].mxu0
      %1973 = vmatprep.mubr.bf16.mxu0 0
      %1974 = vmatmul.mubr.bf16.gmra.mrb[0].mxu0 %v1825
      %v1975 = vpop.f32.mrb[0].mxu0
      %v1976 = vadd.f32 %v1783, %v1975
      %v1977 = vpop.f32.mrb[0].mxu0
      %v1978 = vpop.f32.mrb[0].mxu0
      %v1979 = vadd.f32 %v1783, %v1978
      %v1980 = vpop.f32.mrb[0].mxu0
      %1981 = vmatprep.mubr.bf16.mxu0 0
      %1982 = vmatmul.mubr.bf16.gmra.mrb[0].mxu0 %v1828
      %v1983 = vpop.f32.mrb[0].mxu0
      %v1984 = vadd.f32 %v1783, %v1983
      %v1985 = vpop.f32.mrb[0].mxu0
      %v1986 = vpop.f32.mrb[0].mxu0
      %v1987 = vadd.f32 %v1783, %v1986
      %v1988 = vpop.f32.mrb[0].mxu0
      %1989 = vmatprep.mubr.bf16.mxu0 0
      %1990 = vmatmul.mubr.bf16.gmra.mrb[0].mxu0 %v1831
      %v1991 = vpop.f32.mrb[0].mxu0
      %v1992 = vadd.f32 %v1783, %v1991
      %v1993 = vpop.f32.mrb[0].mxu0
      %v1994 = vpop.f32.mrb[0].mxu0
      %v1995 = vadd.f32 %v1783, %v1994
      %v1996 = vpop.f32.mrb[0].mxu0
      %1997 = vdwg.mxu0
      %v1998 = vadd.f32 %v1872, 1.0
      %v1999 = vadd.f32 %v1875, 1.0
      %v2000 = vadd.f32 %v1880, 1.0
      %v2001 = vadd.f32 %v1883, 1.0
      %v2002 = vadd.f32 %v1888, 1.0
      %v2003 = vadd.f32 %v1891, 1.0
      %v2004 = vadd.f32 %v1896, 1.0
      %v2005 = vadd.f32 %v1899, 1.0
      %v2006 = vadd.f32 %v1904, 1.0
      %v2007 = vadd.f32 %v1907, 1.0
      %v2008 = vadd.f32 %v1912, 1.0
      %v2009 = vadd.f32 %v1915, 1.0
      %v2010 = vadd.f32 %v1920, 1.0
      %v2011 = vadd.f32 %v1923, 1.0
      %v2012 = vadd.f32 %v1928, 1.0
      %v2013 = vadd.f32 %v1931, 1.0
      %v2014 = vadd.f32 %v1936, 1.0
      %v2015 = vadd.f32 %v1939, 1.0
      %v2016 = vadd.f32 %v1944, 1.0
      %v2017 = vadd.f32 %v1947, 1.0
      %v2018 = vadd.f32 %v1952, 1.0
      %v2019 = vadd.f32 %v1955, 1.0
      %v2020 = vadd.f32 %v1960, 1.0
      %v2021 = vadd.f32 %v1963, 1.0
      %v2022 = vadd.f32 %v1968, 1.0
      %v2023 = vadd.f32 %v1971, 1.0
      %v2024 = vadd.f32 %v1976, 1.0
      %v2025 = vadd.f32 %v1979, 1.0
      %v2026 = vadd.f32 %v1984, 1.0
      %v2027 = vadd.f32 %v1987, 1.0
      %v2028 = vadd.f32 %v1992, 1.0
      %v2029 = vadd.f32 %v1995, 1.0
      %v2030 = vmul.f32 %v1279, %v1998
      %v2031 = vmul.f32 %v1280, %v1999
      %v2032 = vmul.f32 %v1281, %v2000
      %v2033 = vmul.f32 %v1282, %v2001
      %v2034 = vmul.f32 %v1283, %v2002
      %v2035 = vmul.f32 %v1284, %v2003
      %v2036 = vmul.f32 %v1285, %v2004
      %v2037 = vmul.f32 %v1286, %v2005
      %v2038 = vmul.f32 %v1287, %v2006
      %v2039 = vmul.f32 %v1288, %v2007
      %v2040 = vmul.f32 %v1289, %v2008
      %v2041 = vmul.f32 %v1290, %v2009
      %v2042 = vmul.f32 %v1291, %v2010
      %v2043 = vmul.f32 %v1292, %v2011
      %v2044 = vmul.f32 %v1293, %v2012
      %v2045 = vmul.f32 %v1294, %v2013
      %v2046 = vmul.f32 %v1295, %v2014
      %v2047 = vmul.f32 %v1296, %v2015
      %v2048 = vmul.f32 %v1297, %v2016
      %v2049 = vmul.f32 %v1298, %v2017
      %v2050 = vmul.f32 %v1299, %v2018
      %v2051 = vmul.f32 %v1300, %v2019
      %v2052 = vmul.f32 %v1301, %v2020
      %v2053 = vmul.f32 %v1302, %v2021
      %v2054 = vmul.f32 %v1303, %v2022
      %v2055 = vmul.f32 %v1304, %v2023
      %v2056 = vmul.f32 %v1305, %v2024
      %v2057 = vmul.f32 %v1306, %v2025
      %v2058 = vmul.f32 %v1307, %v2026
      %v2059 = vmul.f32 %v1308, %v2027
      %v2060 = vmul.f32 %v1309, %v2028
      %v2061 = vmul.f32 %v1310, %v2029
      %v2062 = vld [vmem:[%s5] sm:$0xf]
      %v2063 = vld [vmem:[%s6] sm:$0x1]
      %v2065 = vlaneseq
      %v2066 = vshrl.u32 %v2065, 7
      %v2067 = vsub.s32 0, %v2066
      %v2068 = vrot.slane %v2063, %v2067
      %v2071 = vsel %vm1833, %v2062, 0
      %2073 = vmatprep.subr.bf16.mxu0 0
      %2074 = vmatpush1.bf16.msra.mxu0 %v2071
      %2075 = vmatprep.subr.bf16.mxu0 0
      %2076 = vmatpush1.bf16.msra.mxu0 0
      %2077 = vmatprep.subr.bf16.mxu0 0
      %2078 = vmatpush1.bf16.msra.mxu0 0
      %2079 = vmatprep.subr.bf16.mxu0 0
      %2080 = vmatpush1.bf16.msra.mxu0 0
      %2081 = vmatprep.subr.bf16.mxu0 0
      %2082 = vmatpush1.bf16.msra.mxu0 0
      %2083 = vmatprep.subr.bf16.mxu0 0
      %2084 = vmatpush1.bf16.msra.mxu0 0
      %2085 = vmatprep.subr.bf16.mxu0 0
      %2086 = vmatpush1.bf16.msra.mxu0 0
      %2087 = vmatprep.subr.bf16.mxu0 0
      %2088 = vmatpush1.bf16.msra.mxu0 0
      %2089 = vmatprep.subr.bf16.mxu0 0
      %2090 = vmatpush1.bf16.msra.mxu0 0
      %2091 = vmatprep.subr.bf16.mxu0 0
      %2092 = vmatpush1.bf16.msra.mxu0 0
      %2093 = vmatprep.subr.bf16.mxu0 0
      %2094 = vmatpush1.bf16.msra.mxu0 0
      %2095 = vmatprep.subr.bf16.mxu0 0
      %2096 = vmatpush1.bf16.msra.mxu0 0
      %2097 = vmatprep.subr.bf16.mxu0 0
      %2098 = vmatpush1.bf16.msra.mxu0 0
      %2099 = vmatprep.subr.bf16.mxu0 0
      %2100 = vmatpush1.bf16.msra.mxu0 0
      %2101 = vmatprep.subr.bf16.mxu0 0
      %2102 = vmatpush1.bf16.msra.mxu0 0
      %2103 = vmatprep.subr.bf16.mxu0 0
      %2104 = vmatpush1.bf16.msra.mxu0 0
      %2105 = vmatprep.mubr.bf16.mxu0 0
      %2106 = vmatmul.mubr.bf16.gmra.mrb[0].mxu0 %v1810
      %v2107 = vpop.f32.mrb[0].mxu0
      %v2108 = vadd.f32 %v2068, %v2107
      %v2109 = vpop.f32.mrb[0].mxu0
      %v2110 = vpop.f32.mrb[0].mxu0
      %v2111 = vadd.f32 %v2068, %v2110
      %v2112 = vpop.f32.mrb[0].mxu0
      %2113 = vmatprep.mubr.bf16.mxu0 0
      %2114 = vmatmul.mubr.bf16.gmra.mrb[0].mxu0 %v1813
      %v2115 = vpop.f32.mrb[0].mxu0
      %v2116 = vadd.f32 %v2068, %v2115
      %v2117 = vpop.f32.mrb[0].mxu0
      %v2118 = vpop.f32.mrb[0].mxu0
      %v2119 = vadd.f32 %v2068, %v2118
      %v2120 = vpop.f32.mrb[0].mxu0
      %2121 = vmatprep.mubr.bf16.mxu0 0
      %2122 = vmatmul.mubr.bf16.gmra.mrb[0].mxu0 %v1816
      %v2123 = vpop.f32.mrb[0].mxu0
      %v2124 = vadd.f32 %v2068, %v2123
      %v2125 = vpop.f32.mrb[0].mxu0
      %v2126 = vpop.f32.mrb[0].mxu0
      %v2127 = vadd.f32 %v2068, %v2126
      %v2128 = vpop.f32.mrb[0].mxu0
      %2129 = vmatprep.mubr.bf16.mxu0 0
      %2130 = vmatmul.mubr.bf16.gmra.mrb[0].mxu0 %v1819
      %v2131 = vpop.f32.mrb[0].mxu0
      %v2132 = vadd.f32 %v2068, %v2131
      %v2133 = vpop.f32.mrb[0].mxu0
      %v2134 = vpop.f32.mrb[0].mxu0
      %v2135 = vadd.f32 %v2068, %v2134
      %v2136 = vpop.f32.mrb[0].mxu0
      %2137 = vmatprep.mubr.bf16.mxu0 0
      %2138 = vmatmul.mubr.bf16.gmra.mrb[0].mxu0 %v1822
      %v2139 = vpop.f32.mrb[0].mxu0
      %v2140 = vadd.f32 %v2068, %v2139
      %v2141 = vpop.f32.mrb[0].mxu0
      %v2142 = vpop.f32.mrb[0].mxu0
      %v2143 = vadd.f32 %v2068, %v2142
      %v2144 = vpop.f32.mrb[0].mxu0
      %2145 = vmatprep.mubr.bf16.mxu0 0
      %2146 = vmatmul.mubr.bf16.gmra.mrb[0].mxu0 %v1825
      %v2147 = vpop.f32.mrb[0].mxu0
      %v2148 = vadd.f32 %v2068, %v2147
      %v2149 = vpop.f32.mrb[0].mxu0
      %v2150 = vpop.f32.mrb[0].mxu0
      %v2151 = vadd.f32 %v2068, %v2150
      %v2152 = vpop.f32.mrb[0].mxu0
      %2153 = vmatprep.mubr.bf16.mxu0 0
      %2154 = vmatmul.mubr.bf16.gmra.mrb[0].mxu0 %v1828
      %v2155 = vpop.f32.mrb[0].mxu0
      %v2156 = vadd.f32 %v2068, %v2155
      %v2157 = vpop.f32.mrb[0].mxu0
      %v2158 = vpop.f32.mrb[0].mxu0
      %v2159 = vadd.f32 %v2068, %v2158
      %v2160 = vpop.f32.mrb[0].mxu0
      %2161 = vmatprep.mubr.bf16.mxu0 0
      %2162 = vmatmul.mubr.bf16.gmra.mrb[0].mxu0 %v1831
      %v2163 = vpop.f32.mrb[0].mxu0
      %v2164 = vadd.f32 %v2068, %v2163
      %v2165 = vpop.f32.mrb[0].mxu0
      %v2166 = vpop.f32.mrb[0].mxu0
      %v2167 = vadd.f32 %v2068, %v2166
      %v2168 = vpop.f32.mrb[0].mxu0
      %2169 = vdwg.mxu0
      %v2170 = vadd.f32 %v2108, 1.0
      %v2171 = vadd.f32 %v2111, 1.0
      %v2172 = vadd.f32 %v2116, 1.0
      %v2173 = vadd.f32 %v2119, 1.0
      %v2174 = vadd.f32 %v2124, 1.0
      %v2175 = vadd.f32 %v2127, 1.0
      %v2176 = vadd.f32 %v2132, 1.0
      %v2177 = vadd.f32 %v2135, 1.0
      %v2178 = vadd.f32 %v2140, 1.0
      %v2179 = vadd.f32 %v2143, 1.0
      %v2180 = vadd.f32 %v2148, 1.0
      %v2181 = vadd.f32 %v2151, 1.0
      %v2182 = vadd.f32 %v2156, 1.0
      %v2183 = vadd.f32 %v2159, 1.0
      %v2184 = vadd.f32 %v2164, 1.0
      %v2185 = vadd.f32 %v2167, 1.0
      %v2186 = vmul.f32 %v1729, %v2170
      %v2187 = vmul.f32 %v1730, %v2171
      %v2188 = vmul.f32 %v1731, %v2172
      %v2189 = vmul.f32 %v1732, %v2173
      %v2190 = vmul.f32 %v1733, %v2174
      %v2191 = vmul.f32 %v1734, %v2175
      %v2192 = vmul.f32 %v1735, %v2176
      %v2193 = vmul.f32 %v1736, %v2177
      %v2194 = vmul.f32 %v1737, %v2178
      %v2195 = vmul.f32 %v1738, %v2179
      %v2196 = vmul.f32 %v1739, %v2180
      %v2197 = vmul.f32 %v1740, %v2181
      %v2198 = vmul.f32 %v1741, %v2182
      %v2199 = vmul.f32 %v1742, %v2183
      %v2200 = vmul.f32 %v1743, %v2184
      %v2201 = vmul.f32 %v1744, %v2185
      %v2202 = vld [vmem:[%s7] sm:$0xf]
      %v2203 = vld [vmem:[%s8] sm:$0x1]
      %v2204 = vpack.c.bf16 %v2187, %v2186
      %v2205 = vpack.c.bf16 %v2189, %v2188
      %v2206 = vpack.c.bf16 %v2191, %v2190
      %v2207 = vpack.c.bf16 %v2193, %v2192
      %v2208 = vpack.c.bf16 %v2195, %v2194
      %v2209 = vpack.c.bf16 %v2197, %v2196
      %v2210 = vpack.c.bf16 %v2199, %v2198
      %v2211 = vpack.c.bf16 %v2201, %v2200
      %v2213 = vlaneseq
      %v2214 = vshrl.u32 %v2213, 7
      %v2215 = vsub.s32 0, %v2214
      %v2216 = vrot.slane %v2203, %v2215
      %v2219 = vsel %vm1311, %v2204, 0
      %v2222 = vsel %vm1311, %v2205, 0
      %v2225 = vsel %vm1311, %v2206, 0
      %v2228 = vsel %vm1311, %v2207, 0
      %v2231 = vsel %vm1311, %v2208, 0
      %v2234 = vsel %vm1311, %v2209, 0
      %v2237 = vsel %vm1311, %v2210, 0
      %v2240 = vsel %vm1311, %v2211, 0
      %v2243 = vsel %vm1833, %v2202, 0
      %2245 = vmatprep.subr.bf16.mxu0 0
      %2246 = vmatpush1.bf16.msra.mxu0 %v2243
      %2247 = vmatprep.subr.bf16.mxu0 0
      %2248 = vmatpush1.bf16.msra.mxu0 0
      %2249 = vmatprep.subr.bf16.mxu0 0
      %2250 = vmatpush1.bf16.msra.mxu0 0
      %2251 = vmatprep.subr.bf16.mxu0 0
      %2252 = vmatpush1.bf16.msra.mxu0 0
      %2253 = vmatprep.subr.bf16.mxu0 0
      %2254 = vmatpush1.bf16.msra.mxu0 0
      %2255 = vmatprep.subr.bf16.mxu0 0
      %2256 = vmatpush1.bf16.msra.mxu0 0
      %2257 = vmatprep.subr.bf16.mxu0 0
      %2258 = vmatpush1.bf16.msra.mxu0 0
      %2259 = vmatprep.subr.bf16.mxu0 0
      %2260 = vmatpush1.bf16.msra.mxu0 0
      %2261 = vmatprep.subr.bf16.mxu0 0
      %2262 = vmatpush1.bf16.msra.mxu0 0
      %2263 = vmatprep.subr.bf16.mxu0 0
      %2264 = vmatpush1.bf16.msra.mxu0 0
      %2265 = vmatprep.subr.bf16.mxu0 0
      %2266 = vmatpush1.bf16.msra.mxu0 0
      %2267 = vmatprep.subr.bf16.mxu0 0
      %2268 = vmatpush1.bf16.msra.mxu0 0
      %2269 = vmatprep.subr.bf16.mxu0 0
      %2270 = vmatpush1.bf16.msra.mxu0 0
      %2271 = vmatprep.subr.bf16.mxu0 0
      %2272 = vmatpush1.bf16.msra.mxu0 0
      %2273 = vmatprep.subr.bf16.mxu0 0
      %2274 = vmatpush1.bf16.msra.mxu0 0
      %2275 = vmatprep.subr.bf16.mxu0 0
      %2276 = vmatpush1.bf16.msra.mxu0 0
      %2277 = vmatprep.mubr.bf16.mxu0 0
      %2278 = vmatmul.mubr.bf16.gmra.mrb[0].mxu0 %v2219
      %v2279 = vpop.f32.mrb[0].mxu0
      %v2280 = vadd.f32 %v2216, %v2279
      %v2281 = vpop.f32.mrb[0].mxu0
      %v2282 = vpop.f32.mrb[0].mxu0
      %v2283 = vadd.f32 %v2216, %v2282
      %v2284 = vpop.f32.mrb[0].mxu0
      %2285 = vmatprep.mubr.bf16.mxu0 0
      %2286 = vmatmul.mubr.bf16.gmra.mrb[0].mxu0 %v2222
      %v2287 = vpop.f32.mrb[0].mxu0
      %v2288 = vadd.f32 %v2216, %v2287
      %v2289 = vpop.f32.mrb[0].mxu0
      %v2290 = vpop.f32.mrb[0].mxu0
      %v2291 = vadd.f32 %v2216, %v2290
      %v2292 = vpop.f32.mrb[0].mxu0
      %2293 = vmatprep.mubr.bf16.mxu0 0
      %2294 = vmatmul.mubr.bf16.gmra.mrb[0].mxu0 %v2225
      %v2295 = vpop.f32.mrb[0].mxu0
      %v2296 = vadd.f32 %v2216, %v2295
      %v2297 = vpop.f32.mrb[0].mxu0
      %v2298 = vpop.f32.mrb[0].mxu0
      %v2299 = vadd.f32 %v2216, %v2298
      %v2300 = vpop.f32.mrb[0].mxu0
      %2301 = vmatprep.mubr.bf16.mxu0 0
      %2302 = vmatmul.mubr.bf16.gmra.mrb[0].mxu0 %v2228
      %v2303 = vpop.f32.mrb[0].mxu0
      %v2304 = vadd.f32 %v2216, %v2303
      %v2305 = vpop.f32.mrb[0].mxu0
      %v2306 = vpop.f32.mrb[0].mxu0
      %v2307 = vadd.f32 %v2216, %v2306
      %v2308 = vpop.f32.mrb[0].mxu0
      %2309 = vmatprep.mubr.bf16.mxu0 0
      %2310 = vmatmul.mubr.bf16.gmra.mrb[0].mxu0 %v2231
      %v2311 = vpop.f32.mrb[0].mxu0
      %v2312 = vadd.f32 %v2216, %v2311
      %v2313 = vpop.f32.mrb[0].mxu0
      %v2314 = vpop.f32.mrb[0].mxu0
      %v2315 = vadd.f32 %v2216, %v2314
      %v2316 = vpop.f32.mrb[0].mxu0
      %2317 = vmatprep.mubr.bf16.mxu0 0
      %2318 = vmatmul.mubr.bf16.gmra.mrb[0].mxu0 %v2234
      %v2319 = vpop.f32.mrb[0].mxu0
      %v2320 = vadd.f32 %v2216, %v2319
      %v2321 = vpop.f32.mrb[0].mxu0
      %v2322 = vpop.f32.mrb[0].mxu0
      %v2323 = vadd.f32 %v2216, %v2322
      %v2324 = vpop.f32.mrb[0].mxu0
      %2325 = vmatprep.mubr.bf16.mxu0 0
      %2326 = vmatmul.mubr.bf16.gmra.mrb[0].mxu0 %v2237
      %v2327 = vpop.f32.mrb[0].mxu0
      %v2328 = vadd.f32 %v2216, %v2327
      %v2329 = vpop.f32.mrb[0].mxu0
      %v2330 = vpop.f32.mrb[0].mxu0
      %v2331 = vadd.f32 %v2216, %v2330
      %v2332 = vpop.f32.mrb[0].mxu0
      %2333 = vmatprep.mubr.bf16.mxu0 0
      %2334 = vmatmul.mubr.bf16.gmra.mrb[0].mxu0 %v2240
      %v2335 = vpop.f32.mrb[0].mxu0
      %v2336 = vadd.f32 %v2216, %v2335
      %v2337 = vpop.f32.mrb[0].mxu0
      %v2338 = vpop.f32.mrb[0].mxu0
      %v2339 = vadd.f32 %v2216, %v2338
      %v2340 = vpop.f32.mrb[0].mxu0
      %2341 = vdwg.mxu0
      %v2342 = vadd.f32 %v2030, %v2280
      %v2343 = vadd.f32 %v2031, %v2283
      %v2344 = vadd.f32 %v2032, %v2288
      %v2345 = vadd.f32 %v2033, %v2291
      %v2346 = vadd.f32 %v2034, %v2296
      %v2347 = vadd.f32 %v2035, %v2299
      %v2348 = vadd.f32 %v2036, %v2304
      %v2349 = vadd.f32 %v2037, %v2307
      %v2350 = vadd.f32 %v2038, %v2312
      %v2351 = vadd.f32 %v2039, %v2315
      %v2352 = vadd.f32 %v2040, %v2320
      %v2353 = vadd.f32 %v2041, %v2323
      %v2354 = vadd.f32 %v2042, %v2328
      %v2355 = vadd.f32 %v2043, %v2331
      %v2356 = vadd.f32 %v2044, %v2336
      %v2357 = vadd.f32 %v2045, %v2339
      %v2358 = vld [vmem:[%s9] sm:$0x3]
      %v2359 = vld [vmem:[%s10] sm:$0x1]
      %v2360 = vpack.c.bf16 %v2343, %v2342
      %v2361 = vpack.c.bf16 %v2345, %v2344
      %v2362 = vpack.c.bf16 %v2347, %v2346
      %v2363 = vpack.c.bf16 %v2349, %v2348
      %v2364 = vpack.c.bf16 %v2351, %v2350
      %v2365 = vpack.c.bf16 %v2353, %v2352
      %v2366 = vpack.c.bf16 %v2355, %v2354
      %v2367 = vpack.c.bf16 %v2357, %v2356
      %v2369 = vlaneseq
      %v2370 = vshrl.u32 %v2369, 7
      %v2371 = vsub.s32 0, %v2370
      %v2372 = vrot.slane %v2359, %v2371
      %v2375 = vsel %vm496, %v2360, 0
      %v2378 = vsel %vm496, %v2361, 0
      %v2381 = vsel %vm496, %v2362, 0
      %v2384 = vsel %vm496, %v2363, 0
      %v2387 = vsel %vm496, %v2364, 0
      %v2390 = vsel %vm496, %v2365, 0
      %v2393 = vsel %vm496, %v2366, 0
      %v2396 = vsel %vm496, %v2367, 0
      %v2399 = vsel %vm986, %v2358, 0
      %2401 = vmatprep.subr.bf16.mxu0 0
      %2402 = vmatpush1.bf16.msra.mxu0 %v2399
      %2403 = vmatprep.subr.bf16.mxu0 0
      %2404 = vmatpush1.bf16.msra.mxu0 0
      %2405 = vmatprep.subr.bf16.mxu0 0
      %2406 = vmatpush1.bf16.msra.mxu0 0
      %2407 = vmatprep.subr.bf16.mxu0 0
      %2408 = vmatpush1.bf16.msra.mxu0 0
      %2409 = vmatprep.subr.bf16.mxu0 0
      %2410 = vmatpush1.bf16.msra.mxu0 0
      %2411 = vmatprep.subr.bf16.mxu0 0
      %2412 = vmatpush1.bf16.msra.mxu0 0
      %2413 = vmatprep.subr.bf16.mxu0 0
      %2414 = vmatpush1.bf16.msra.mxu0 0
      %2415 = vmatprep.subr.bf16.mxu0 0
      %2416 = vmatpush1.bf16.msra.mxu0 0
      %2417 = vmatprep.subr.bf16.mxu0 0
      %2418 = vmatpush1.bf16.msra.mxu0 0
      %2419 = vmatprep.subr.bf16.mxu0 0
      %2420 = vmatpush1.bf16.msra.mxu0 0
      %2421 = vmatprep.subr.bf16.mxu0 0
      %2422 = vmatpush1.bf16.msra.mxu0 0
      %2423 = vmatprep.subr.bf16.mxu0 0
      %2424 = vmatpush1.bf16.msra.mxu0 0
      %2425 = vmatprep.subr.bf16.mxu0 0
      %2426 = vmatpush1.bf16.msra.mxu0 0
      %2427 = vmatprep.subr.bf16.mxu0 0
      %2428 = vmatpush1.bf16.msra.mxu0 0
      %2429 = vmatprep.subr.bf16.mxu0 0
      %2430 = vmatpush1.bf16.msra.mxu0 0
      %2431 = vmatprep.subr.bf16.mxu0 0
      %2432 = vmatpush1.bf16.msra.mxu0 0
      %2433 = vmatprep.mubr.bf16.mxu0 0
      %2434 = vmatmul.mubr.bf16.gmra.mrb[0].mxu0 %v2375
      %v2435 = vpop.f32.mrb[0].mxu0
      %v2436 = vadd.f32 %v2372, %v2435
      %v2437 = vpop.f32.mrb[0].mxu0
      %v2438 = vpop.f32.mrb[0].mxu0
      %v2439 = vadd.f32 %v2372, %v2438
      %v2440 = vpop.f32.mrb[0].mxu0
      %2441 = vmatprep.mubr.bf16.mxu0 0
      %2442 = vmatmul.mubr.bf16.gmra.mrb[0].mxu0 %v2378
      %v2443 = vpop.f32.mrb[0].mxu0
      %v2444 = vadd.f32 %v2372, %v2443
      %v2445 = vpop.f32.mrb[0].mxu0
      %v2446 = vpop.f32.mrb[0].mxu0
      %v2447 = vadd.f32 %v2372, %v2446
      %v2448 = vpop.f32.mrb[0].mxu0
      %2449 = vmatprep.mubr.bf16.mxu0 0
      %2450 = vmatmul.mubr.bf16.gmra.mrb[0].mxu0 %v2381
      %v2451 = vpop.f32.mrb[0].mxu0
      %v2452 = vadd.f32 %v2372, %v2451
      %v2453 = vpop.f32.mrb[0].mxu0
      %v2454 = vpop.f32.mrb[0].mxu0
      %v2455 = vadd.f32 %v2372, %v2454
      %v2456 = vpop.f32.mrb[0].mxu0
      %2457 = vmatprep.mubr.bf16.mxu0 0
      %2458 = vmatmul.mubr.bf16.gmra.mrb[0].mxu0 %v2384
      %v2459 = vpop.f32.mrb[0].mxu0
      %v2460 = vadd.f32 %v2372, %v2459
      %v2461 = vpop.f32.mrb[0].mxu0
      %v2462 = vpop.f32.mrb[0].mxu0
      %v2463 = vadd.f32 %v2372, %v2462
      %v2464 = vpop.f32.mrb[0].mxu0
      %2465 = vmatprep.mubr.bf16.mxu0 0
      %2466 = vmatmul.mubr.bf16.gmra.mrb[0].mxu0 %v2387
      %v2467 = vpop.f32.mrb[0].mxu0
      %v2468 = vadd.f32 %v2372, %v2467
      %v2469 = vpop.f32.mrb[0].mxu0
      %v2470 = vpop.f32.mrb[0].mxu0
      %v2471 = vadd.f32 %v2372, %v2470
      %v2472 = vpop.f32.mrb[0].mxu0
      %2473 = vmatprep.mubr.bf16.mxu0 0
      %2474 = vmatmul.mubr.bf16.gmra.mrb[0].mxu0 %v2390
      %v2475 = vpop.f32.mrb[0].mxu0
      %v2476 = vadd.f32 %v2372, %v2475
      %v2477 = vpop.f32.mrb[0].mxu0
      %v2478 = vpop.f32.mrb[0].mxu0
      %v2479 = vadd.f32 %v2372, %v2478
      %v2480 = vpop.f32.mrb[0].mxu0
      %2481 = vmatprep.mubr.bf16.mxu0 0
      %2482 = vmatmul.mubr.bf16.gmra.mrb[0].mxu0 %v2393
      %v2483 = vpop.f32.mrb[0].mxu0
      %v2484 = vadd.f32 %v2372, %v2483
      %v2485 = vpop.f32.mrb[0].mxu0
      %v2486 = vpop.f32.mrb[0].mxu0
      %v2487 = vadd.f32 %v2372, %v2486
      %v2488 = vpop.f32.mrb[0].mxu0
      %2489 = vmatprep.mubr.bf16.mxu0 0
      %2490 = vmatmul.mubr.bf16.gmra.mrb[0].mxu0 %v2396
      %v2491 = vpop.f32.mrb[0].mxu0
      %v2492 = vadd.f32 %v2372, %v2491
      %v2493 = vpop.f32.mrb[0].mxu0
      %v2494 = vpop.f32.mrb[0].mxu0
      %v2495 = vadd.f32 %v2372, %v2494
      %v2496 = vpop.f32.mrb[0].mxu0
      %2497 = vdwg.mxu0
      %v2498 = vadd.f32 %v464, %v2436
      %v2499 = vadd.f32 %v465, %v2439
      %v2500 = vadd.f32 %v466, %v2444
      %v2501 = vadd.f32 %v467, %v2447
      %v2502 = vadd.f32 %v468, %v2452
      %v2503 = vadd.f32 %v469, %v2455
      %v2504 = vadd.f32 %v470, %v2460
      %v2505 = vadd.f32 %v471, %v2463
      %v2506 = vadd.f32 %v472, %v2468
      %v2507 = vadd.f32 %v473, %v2471
      %v2508 = vadd.f32 %v474, %v2476
      %v2509 = vadd.f32 %v475, %v2479
      %v2510 = vadd.f32 %v476, %v2484
      %v2511 = vadd.f32 %v477, %v2487
      %v2512 = vadd.f32 %v478, %v2492
      %v2513 = vadd.f32 %v479, %v2495
      %v2514 = vpack.c.bf16 %v2499, %v2498
      %v2515 = vpack.c.bf16 %v2501, %v2500
      %v2516 = vpack.c.bf16 %v2503, %v2502
      %v2517 = vpack.c.bf16 %v2505, %v2504
      %v2518 = vpack.c.bf16 %v2507, %v2506
      %v2519 = vpack.c.bf16 %v2509, %v2508
      %v2520 = vpack.c.bf16 %v2511, %v2510
      %v2521 = vpack.c.bf16 %v2513, %v2512
      %v2530 = vunpack.c.l.b16 %v2514
      %v2531 = vunpack.c.h.b16 %v2514
      %v2532 = vunpack.c.l.b16 %v2515
      %v2533 = vunpack.c.h.b16 %v2515
      %v2534 = vunpack.c.l.b16 %v2516
      %v2535 = vunpack.c.h.b16 %v2516
      %v2536 = vunpack.c.l.b16 %v2517
      %v2537 = vunpack.c.h.b16 %v2517
      %v2538 = vunpack.c.l.b16 %v2518
      %v2539 = vunpack.c.h.b16 %v2518
      %v2540 = vunpack.c.l.b16 %v2519
      %v2541 = vunpack.c.h.b16 %v2519
      %v2542 = vunpack.c.l.b16 %v2520
      %v2543 = vunpack.c.h.b16 %v2520
      %v2544 = vunpack.c.l.b16 %v2521
      %v2545 = vunpack.c.h.b16 %v2521
      %v2546 = vpack.c.b16 %v2530, %v2530
      %v2547 = vpack.c.b16 %v2531, %v2531
      %v2548 = vpack.c.b16 %v2532, %v2532
      %v2549 = vpack.c.b16 %v2533, %v2533
      %v2550 = vpack.c.b16 %v2534, %v2534
      %v2551 = vpack.c.b16 %v2535, %v2535
      %v2552 = vpack.c.b16 %v2536, %v2536
      %v2553 = vpack.c.b16 %v2537, %v2537
      %v2554 = vpack.c.b16 %v2538, %v2538
      %v2555 = vpack.c.b16 %v2539, %v2539
      %v2556 = vpack.c.b16 %v2540, %v2540
      %v2557 = vpack.c.b16 %v2541, %v2541
      %v2558 = vpack.c.b16 %v2542, %v2542
      %v2559 = vpack.c.b16 %v2543, %v2543
      %v2560 = vpack.c.b16 %v2544, %v2544
      %v2561 = vpack.c.b16 %v2545, %v2545
      %vm2578 = vcmask 27648
      %2579 = vst.msk [vmem:[%s429] sm:$0xf] %vm2578, %v2546
      %2580 = vst.msk [vmem:[%s429 + $0x4] sm:$0xf] %vm2578, %v2547
      %2581 = vst.msk [vmem:[%s429 + $0x8] sm:$0xf] %vm2578, %v2548
      %2582 = vst.msk [vmem:[%s429 + $0xc] sm:$0xf] %vm2578, %v2549
      %2583 = vst.msk [vmem:[%s429 + $0x10] sm:$0xf] %vm2578, %v2550
      %2584 = vst.msk [vmem:[%s429 + $0x14] sm:$0xf] %vm2578, %v2551
      %2585 = vst.msk [vmem:[%s429 + $0x18] sm:$0xf] %vm2578, %v2552
      %2586 = vst.msk [vmem:[%s429 + $0x1c] sm:$0xf] %vm2578, %v2553
      %2587 = vst.msk [vmem:[%s429 + $0x20] sm:$0xf] %vm2578, %v2554
      %2588 = vst.msk [vmem:[%s429 + $0x24] sm:$0xf] %vm2578, %v2555
      %2589 = vst.msk [vmem:[%s429 + $0x28] sm:$0xf] %vm2578, %v2556
      %2590 = vst.msk [vmem:[%s429 + $0x2c] sm:$0xf] %vm2578, %v2557
      %2591 = vst.msk [vmem:[%s429 + $0x30] sm:$0xf] %vm2578, %v2558
      %2592 = vst.msk [vmem:[%s429 + $0x34] sm:$0xf] %vm2578, %v2559
      %2593 = vst.msk [vmem:[%s429 + $0x38] sm:$0xf] %vm2578, %v2560
      %2594 = vst.msk [vmem:[%s429 + $0x3c] sm:$0xf] %vm2578, %v2561
      %v2595 = vld [vmem:[%s5] sm:$0xf]
      %v2596 = vld [vmem:[%s6] sm:$0x1]
      %v2598 = vlaneseq
      %v2599 = vshrl.u32 %v2598, 7
      %v2600 = vsub.s32 0, %v2599
      %v2601 = vrot.slane %v2596, %v2600
      %v2604 = vsel %vm1833, %v2595, 0
      %2606 = vmatprep.subr.bf16.mxu0 0
      %2607 = vmatpush1.bf16.msra.mxu0 %v2604
      %2608 = vmatprep.subr.bf16.mxu0 0
      %2609 = vmatpush1.bf16.msra.mxu0 0
      %2610 = vmatprep.subr.bf16.mxu0 0
      %2611 = vmatpush1.bf16.msra.mxu0 0
      %2612 = vmatprep.subr.bf16.mxu0 0
      %2613 = vmatpush1.bf16.msra.mxu0 0
      %2614 = vmatprep.subr.bf16.mxu0 0
      %2615 = vmatpush1.bf16.msra.mxu0 0
      %2616 = vmatprep.subr.bf16.mxu0 0
      %2617 = vmatpush1.bf16.msra.mxu0 0
      %2618 = vmatprep.subr.bf16.mxu0 0
      %2619 = vmatpush1.bf16.msra.mxu0 0
      %2620 = vmatprep.subr.bf16.mxu0 0
      %2621 = vmatpush1.bf16.msra.mxu0 0
      %2622 = vmatprep.subr.bf16.mxu0 0
      %2623 = vmatpush1.bf16.msra.mxu0 0
      %2624 = vmatprep.subr.bf16.mxu0 0
      %2625 = vmatpush1.bf16.msra.mxu0 0
      %2626 = vmatprep.subr.bf16.mxu0 0
      %2627 = vmatpush1.bf16.msra.mxu0 0
      %2628 = vmatprep.subr.bf16.mxu0 0
      %2629 = vmatpush1.bf16.msra.mxu0 0
      %2630 = vmatprep.subr.bf16.mxu0 0
      %2631 = vmatpush1.bf16.msra.mxu0 0
      %2632 = vmatprep.subr.bf16.mxu0 0
      %2633 = vmatpush1.bf16.msra.mxu0 0
      %2634 = vmatprep.subr.bf16.mxu0 0
      %2635 = vmatpush1.bf16.msra.mxu0 0
      %2636 = vmatprep.subr.bf16.mxu0 0
      %2637 = vmatpush1.bf16.msra.mxu0 0
      %2638 = vmatprep.mubr.bf16.mxu0 0
      %2639 = vmatmul.mubr.bf16.gmra.mrb[0].mxu0 %v1786
      %v2640 = vpop.f32.mrb[0].mxu0
      %v2641 = vadd.f32 %v2601, %v2640
      %v2642 = vpop.f32.mrb[0].mxu0
      %v2643 = vpop.f32.mrb[0].mxu0
      %v2644 = vadd.f32 %v2601, %v2643
      %v2645 = vpop.f32.mrb[0].mxu0
      %2646 = vmatprep.mubr.bf16.mxu0 0
      %2647 = vmatmul.mubr.bf16.gmra.mrb[0].mxu0 %v1789
      %v2648 = vpop.f32.mrb[0].mxu0
      %v2649 = vadd.f32 %v2601, %v2648
      %v2650 = vpop.f32.mrb[0].mxu0
      %v2651 = vpop.f32.mrb[0].mxu0
      %v2652 = vadd.f32 %v2601, %v2651
      %v2653 = vpop.f32.mrb[0].mxu0
      %2654 = vmatprep.mubr.bf16.mxu0 0
      %2655 = vmatmul.mubr.bf16.gmra.mrb[0].mxu0 %v1792
      %v2656 = vpop.f32.mrb[0].mxu0
      %v2657 = vadd.f32 %v2601, %v2656
      %v2658 = vpop.f32.mrb[0].mxu0
      %v2659 = vpop.f32.mrb[0].mxu0
      %v2660 = vadd.f32 %v2601, %v2659
      %v2661 = vpop.f32.mrb[0].mxu0
      %2662 = vmatprep.mubr.bf16.mxu0 0
      %2663 = vmatmul.mubr.bf16.gmra.mrb[0].mxu0 %v1795
      %v2664 = vpop.f32.mrb[0].mxu0
      %v2665 = vadd.f32 %v2601, %v2664
      %v2666 = vpop.f32.mrb[0].mxu0
      %v2667 = vpop.f32.mrb[0].mxu0
      %v2668 = vadd.f32 %v2601, %v2667
      %v2669 = vpop.f32.mrb[0].mxu0
      %2670 = vmatprep.mubr.bf16.mxu0 0
      %2671 = vmatmul.mubr.bf16.gmra.mrb[0].mxu0 %v1798
      %v2672 = vpop.f32.mrb[0].mxu0
      %v2673 = vadd.f32 %v2601, %v2672
      %v2674 = vpop.f32.mrb[0].mxu0
      %v2675 = vpop.f32.mrb[0].mxu0
      %v2676 = vadd.f32 %v2601, %v2675
      %v2677 = vpop.f32.mrb[0].mxu0
      %2678 = vmatprep.mubr.bf16.mxu0 0
      %2679 = vmatmul.mubr.bf16.gmra.mrb[0].mxu0 %v1801
      %v2680 = vpop.f32.mrb[0].mxu0
      %v2681 = vadd.f32 %v2601, %v2680
      %v2682 = vpop.f32.mrb[0].mxu0
      %v2683 = vpop.f32.mrb[0].mxu0
      %v2684 = vadd.f32 %v2601, %v2683
      %v2685 = vpop.f32.mrb[0].mxu0
      %2686 = vmatprep.mubr.bf16.mxu0 0
      %2687 = vmatmul.mubr.bf16.gmra.mrb[0].mxu0 %v1804
      %v2688 = vpop.f32.mrb[0].mxu0
      %v2689 = vadd.f32 %v2601, %v2688
      %v2690 = vpop.f32.mrb[0].mxu0
      %v2691 = vpop.f32.mrb[0].mxu0
      %v2692 = vadd.f32 %v2601, %v2691
      %v2693 = vpop.f32.mrb[0].mxu0
      %2694 = vmatprep.mubr.bf16.mxu0 0
      %2695 = vmatmul.mubr.bf16.gmra.mrb[0].mxu0 %v1807
      %v2696 = vpop.f32.mrb[0].mxu0
      %v2697 = vadd.f32 %v2601, %v2696
      %v2698 = vpop.f32.mrb[0].mxu0
      %v2699 = vpop.f32.mrb[0].mxu0
      %v2700 = vadd.f32 %v2601, %v2699
      %v2701 = vpop.f32.mrb[0].mxu0
      %2702 = vdwg.mxu0
      %v2703 = vadd.f32 %v2641, 1.0
      %v2704 = vadd.f32 %v2644, 1.0
      %v2705 = vadd.f32 %v2649, 1.0
      %v2706 = vadd.f32 %v2652, 1.0
      %v2707 = vadd.f32 %v2657, 1.0
      %v2708 = vadd.f32 %v2660, 1.0
      %v2709 = vadd.f32 %v2665, 1.0
      %v2710 = vadd.f32 %v2668, 1.0
      %v2711 = vadd.f32 %v2673, 1.0
      %v2712 = vadd.f32 %v2676, 1.0
      %v2713 = vadd.f32 %v2681, 1.0
      %v2714 = vadd.f32 %v2684, 1.0
      %v2715 = vadd.f32 %v2689, 1.0
      %v2716 = vadd.f32 %v2692, 1.0
      %v2717 = vadd.f32 %v2697, 1.0
      %v2718 = vadd.f32 %v2700, 1.0
      %v2719 = vmul.f32 %v1745, %v2703
      %v2720 = vmul.f32 %v1746, %v2704
      %v2721 = vmul.f32 %v1747, %v2705
      %v2722 = vmul.f32 %v1748, %v2706
      %v2723 = vmul.f32 %v1749, %v2707
      %v2724 = vmul.f32 %v1750, %v2708
      %v2725 = vmul.f32 %v1751, %v2709
      %v2726 = vmul.f32 %v1752, %v2710
      %v2727 = vmul.f32 %v1753, %v2711
      %v2728 = vmul.f32 %v1754, %v2712
      %v2729 = vmul.f32 %v1755, %v2713
      %v2730 = vmul.f32 %v1756, %v2714
      %v2731 = vmul.f32 %v1757, %v2715
      %v2732 = vmul.f32 %v1758, %v2716
      %v2733 = vmul.f32 %v1759, %v2717
      %v2734 = vmul.f32 %v1760, %v2718
      %v2735 = vld [vmem:[%s7] sm:$0xf]
      %v2736 = vld [vmem:[%s8] sm:$0x1]
      %v2737 = vpack.c.bf16 %v2720, %v2719
      %v2738 = vpack.c.bf16 %v2722, %v2721
      %v2739 = vpack.c.bf16 %v2724, %v2723
      %v2740 = vpack.c.bf16 %v2726, %v2725
      %v2741 = vpack.c.bf16 %v2728, %v2727
      %v2742 = vpack.c.bf16 %v2730, %v2729
      %v2743 = vpack.c.bf16 %v2732, %v2731
      %v2744 = vpack.c.bf16 %v2734, %v2733
      %v2746 = vlaneseq
      %v2747 = vshrl.u32 %v2746, 7
      %v2748 = vsub.s32 0, %v2747
      %v2749 = vrot.slane %v2736, %v2748
      %v2752 = vsel %vm1311, %v2737, 0
      %v2755 = vsel %vm1311, %v2738, 0
      %v2758 = vsel %vm1311, %v2739, 0
      %v2761 = vsel %vm1311, %v2740, 0
      %v2764 = vsel %vm1311, %v2741, 0
      %v2767 = vsel %vm1311, %v2742, 0
      %v2770 = vsel %vm1311, %v2743, 0
      %v2773 = vsel %vm1311, %v2744, 0
      %v2776 = vsel %vm1833, %v2735, 0
      %2778 = vmatprep.subr.bf16.mxu0 0
      %2779 = vmatpush1.bf16.msra.mxu0 %v2776
      %2780 = vmatprep.subr.bf16.mxu0 0
      %2781 = vmatpush1.bf16.msra.mxu0 0
      %2782 = vmatprep.subr.bf16.mxu0 0
      %2783 = vmatpush1.bf16.msra.mxu0 0
      %2784 = vmatprep.subr.bf16.mxu0 0
      %2785 = vmatpush1.bf16.msra.mxu0 0
      %2786 = vmatprep.subr.bf16.mxu0 0
      %2787 = vmatpush1.bf16.msra.mxu0 0
      %2788 = vmatprep.subr.bf16.mxu0 0
      %2789 = vmatpush1.bf16.msra.mxu0 0
      %2790 = vmatprep.subr.bf16.mxu0 0
      %2791 = vmatpush1.bf16.msra.mxu0 0
      %2792 = vmatprep.subr.bf16.mxu0 0
      %2793 = vmatpush1.bf16.msra.mxu0 0
      %2794 = vmatprep.subr.bf16.mxu0 0
      %2795 = vmatpush1.bf16.msra.mxu0 0
      %2796 = vmatprep.subr.bf16.mxu0 0
      %2797 = vmatpush1.bf16.msra.mxu0 0
      %2798 = vmatprep.subr.bf16.mxu0 0
      %2799 = vmatpush1.bf16.msra.mxu0 0
      %2800 = vmatprep.subr.bf16.mxu0 0
      %2801 = vmatpush1.bf16.msra.mxu0 0
      %2802 = vmatprep.subr.bf16.mxu0 0
      %2803 = vmatpush1.bf16.msra.mxu0 0
      %2804 = vmatprep.subr.bf16.mxu0 0
      %2805 = vmatpush1.bf16.msra.mxu0 0
      %2806 = vmatprep.subr.bf16.mxu0 0
      %2807 = vmatpush1.bf16.msra.mxu0 0
      %2808 = vmatprep.subr.bf16.mxu0 0
      %2809 = vmatpush1.bf16.msra.mxu0 0
      %2810 = vmatprep.mubr.bf16.mxu0 0
      %2811 = vmatmul.mubr.bf16.gmra.mrb[0].mxu0 %v2752
      %v2812 = vpop.f32.mrb[0].mxu0
      %v2813 = vadd.f32 %v2749, %v2812
      %v2814 = vpop.f32.mrb[0].mxu0
      %v2815 = vpop.f32.mrb[0].mxu0
      %v2816 = vadd.f32 %v2749, %v2815
      %v2817 = vpop.f32.mrb[0].mxu0
      %2818 = vmatprep.mubr.bf16.mxu0 0
      %2819 = vmatmul.mubr.bf16.gmra.mrb[0].mxu0 %v2755
      %v2820 = vpop.f32.mrb[0].mxu0
      %v2821 = vadd.f32 %v2749, %v2820
      %v2822 = vpop.f32.mrb[0].mxu0
      %v2823 = vpop.f32.mrb[0].mxu0
      %v2824 = vadd.f32 %v2749, %v2823
      %v2825 = vpop.f32.mrb[0].mxu0
      %2826 = vmatprep.mubr.bf16.mxu0 0
      %2827 = vmatmul.mubr.bf16.gmra.mrb[0].mxu0 %v2758
      %v2828 = vpop.f32.mrb[0].mxu0
      %v2829 = vadd.f32 %v2749, %v2828
      %v2830 = vpop.f32.mrb[0].mxu0
      %v2831 = vpop.f32.mrb[0].mxu0
      %v2832 = vadd.f32 %v2749, %v2831
      %v2833 = vpop.f32.mrb[0].mxu0
      %2834 = vmatprep.mubr.bf16.mxu0 0
      %2835 = vmatmul.mubr.bf16.gmra.mrb[0].mxu0 %v2761
      %v2836 = vpop.f32.mrb[0].mxu0
      %v2837 = vadd.f32 %v2749, %v2836
      %v2838 = vpop.f32.mrb[0].mxu0
      %v2839 = vpop.f32.mrb[0].mxu0
      %v2840 = vadd.f32 %v2749, %v2839
      %v2841 = vpop.f32.mrb[0].mxu0
      %2842 = vmatprep.mubr.bf16.mxu0 0
      %2843 = vmatmul.mubr.bf16.gmra.mrb[0].mxu0 %v2764
      %v2844 = vpop.f32.mrb[0].mxu0
      %v2845 = vadd.f32 %v2749, %v2844
      %v2846 = vpop.f32.mrb[0].mxu0
      %v2847 = vpop.f32.mrb[0].mxu0
      %v2848 = vadd.f32 %v2749, %v2847
      %v2849 = vpop.f32.mrb[0].mxu0
      %2850 = vmatprep.mubr.bf16.mxu0 0
      %2851 = vmatmul.mubr.bf16.gmra.mrb[0].mxu0 %v2767
      %v2852 = vpop.f32.mrb[0].mxu0
      %v2853 = vadd.f32 %v2749, %v2852
      %v2854 = vpop.f32.mrb[0].mxu0
      %v2855 = vpop.f32.mrb[0].mxu0
      %v2856 = vadd.f32 %v2749, %v2855
      %v2857 = vpop.f32.mrb[0].mxu0
      %2858 = vmatprep.mubr.bf16.mxu0 0
      %2859 = vmatmul.mubr.bf16.gmra.mrb[0].mxu0 %v2770
      %v2860 = vpop.f32.mrb[0].mxu0
      %v2861 = vadd.f32 %v2749, %v2860
      %v2862 = vpop.f32.mrb[0].mxu0
      %v2863 = vpop.f32.mrb[0].mxu0
      %v2864 = vadd.f32 %v2749, %v2863
      %v2865 = vpop.f32.mrb[0].mxu0
      %2866 = vmatprep.mubr.bf16.mxu0 0
      %2867 = vmatmul.mubr.bf16.gmra.mrb[0].mxu0 %v2773
      %v2868 = vpop.f32.mrb[0].mxu0
      %v2869 = vadd.f32 %v2749, %v2868
      %v2870 = vpop.f32.mrb[0].mxu0
      %v2871 = vpop.f32.mrb[0].mxu0
      %v2872 = vadd.f32 %v2749, %v2871
      %v2873 = vpop.f32.mrb[0].mxu0
      %2874 = vdwg.mxu0
      %v2875 = vadd.f32 %v2046, %v2813
      %v2876 = vadd.f32 %v2047, %v2816
      %v2877 = vadd.f32 %v2048, %v2821
      %v2878 = vadd.f32 %v2049, %v2824
      %v2879 = vadd.f32 %v2050, %v2829
      %v2880 = vadd.f32 %v2051, %v2832
      %v2881 = vadd.f32 %v2052, %v2837
      %v2882 = vadd.f32 %v2053, %v2840
      %v2883 = vadd.f32 %v2054, %v2845
      %v2884 = vadd.f32 %v2055, %v2848
      %v2885 = vadd.f32 %v2056, %v2853
      %v2886 = vadd.f32 %v2057, %v2856
      %v2887 = vadd.f32 %v2058, %v2861
      %v2888 = vadd.f32 %v2059, %v2864
      %v2889 = vadd.f32 %v2060, %v2869
      %v2890 = vadd.f32 %v2061, %v2872
      %v2891 = vld [vmem:[%s9] sm:$0x3]
      %v2892 = vld [vmem:[%s10] sm:$0x1]
      %v2893 = vpack.c.bf16 %v2876, %v2875
      %v2894 = vpack.c.bf16 %v2878, %v2877
      %v2895 = vpack.c.bf16 %v2880, %v2879
      %v2896 = vpack.c.bf16 %v2882, %v2881
      %v2897 = vpack.c.bf16 %v2884, %v2883
      %v2898 = vpack.c.bf16 %v2886, %v2885
      %v2899 = vpack.c.bf16 %v2888, %v2887
      %v2900 = vpack.c.bf16 %v2890, %v2889
      %v2902 = vlaneseq
      %v2903 = vshrl.u32 %v2902, 7
      %v2904 = vsub.s32 0, %v2903
      %v2905 = vrot.slane %v2892, %v2904
      %v2908 = vsel %vm496, %v2893, 0
      %v2911 = vsel %vm496, %v2894, 0
      %v2914 = vsel %vm496, %v2895, 0
      %v2917 = vsel %vm496, %v2896, 0
      %v2920 = vsel %vm496, %v2897, 0
      %v2923 = vsel %vm496, %v2898, 0
      %v2926 = vsel %vm496, %v2899, 0
      %v2929 = vsel %vm496, %v2900, 0
      %v2932 = vsel %vm986, %v2891, 0
      %2934 = vmatprep.subr.bf16.mxu0 0
      %2935 = vmatpush1.bf16.msra.mxu0 %v2932
      %2936 = vmatprep.subr.bf16.mxu0 0
      %2937 = vmatpush1.bf16.msra.mxu0 0
      %2938 = vmatprep.subr.bf16.mxu0 0
      %2939 = vmatpush1.bf16.msra.mxu0 0
      %2940 = vmatprep.subr.bf16.mxu0 0
      %2941 = vmatpush1.bf16.msra.mxu0 0
      %2942 = vmatprep.subr.bf16.mxu0 0
      %2943 = vmatpush1.bf16.msra.mxu0 0
      %2944 = vmatprep.subr.bf16.mxu0 0
      %2945 = vmatpush1.bf16.msra.mxu0 0
      %2946 = vmatprep.subr.bf16.mxu0 0
      %2947 = vmatpush1.bf16.msra.mxu0 0
      %2948 = vmatprep.subr.bf16.mxu0 0
      %2949 = vmatpush1.bf16.msra.mxu0 0
      %2950 = vmatprep.subr.bf16.mxu0 0
      %2951 = vmatpush1.bf16.msra.mxu0 0
      %2952 = vmatprep.subr.bf16.mxu0 0
      %2953 = vmatpush1.bf16.msra.mxu0 0
      %2954 = vmatprep.subr.bf16.mxu0 0
      %2955 = vmatpush1.bf16.msra.mxu0 0
      %2956 = vmatprep.subr.bf16.mxu0 0
      %2957 = vmatpush1.bf16.msra.mxu0 0
      %2958 = vmatprep.subr.bf16.mxu0 0
      %2959 = vmatpush1.bf16.msra.mxu0 0
      %2960 = vmatprep.subr.bf16.mxu0 0
      %2961 = vmatpush1.bf16.msra.mxu0 0
      %2962 = vmatprep.subr.bf16.mxu0 0
      %2963 = vmatpush1.bf16.msra.mxu0 0
      %2964 = vmatprep.subr.bf16.mxu0 0
      %2965 = vmatpush1.bf16.msra.mxu0 0
      %2966 = vmatprep.mubr.bf16.mxu0 0
      %2967 = vmatmul.mubr.bf16.gmra.mrb[0].mxu0 %v2908
      %v2968 = vpop.f32.mrb[0].mxu0
      %v2969 = vadd.f32 %v2905, %v2968
      %v2970 = vpop.f32.mrb[0].mxu0
      %v2971 = vpop.f32.mrb[0].mxu0
      %v2972 = vadd.f32 %v2905, %v2971
      %v2973 = vpop.f32.mrb[0].mxu0
      %2974 = vmatprep.mubr.bf16.mxu0 0
      %2975 = vmatmul.mubr.bf16.gmra.mrb[0].mxu0 %v2911
      %v2976 = vpop.f32.mrb[0].mxu0
      %v2977 = vadd.f32 %v2905, %v2976
      %v2978 = vpop.f32.mrb[0].mxu0
      %v2979 = vpop.f32.mrb[0].mxu0
      %v2980 = vadd.f32 %v2905, %v2979
      %v2981 = vpop.f32.mrb[0].mxu0
      %2982 = vmatprep.mubr.bf16.mxu0 0
      %2983 = vmatmul.mubr.bf16.gmra.mrb[0].mxu0 %v2914
      %v2984 = vpop.f32.mrb[0].mxu0
      %v2985 = vadd.f32 %v2905, %v2984
      %v2986 = vpop.f32.mrb[0].mxu0
      %v2987 = vpop.f32.mrb[0].mxu0
      %v2988 = vadd.f32 %v2905, %v2987
      %v2989 = vpop.f32.mrb[0].mxu0
      %2990 = vmatprep.mubr.bf16.mxu0 0
      %2991 = vmatmul.mubr.bf16.gmra.mrb[0].mxu0 %v2917
      %v2992 = vpop.f32.mrb[0].mxu0
      %v2993 = vadd.f32 %v2905, %v2992
      %v2994 = vpop.f32.mrb[0].mxu0
      %v2995 = vpop.f32.mrb[0].mxu0
      %v2996 = vadd.f32 %v2905, %v2995
      %v2997 = vpop.f32.mrb[0].mxu0
      %2998 = vmatprep.mubr.bf16.mxu0 0
      %2999 = vmatmul.mubr.bf16.gmra.mrb[0].mxu0 %v2920
      %v3000 = vpop.f32.mrb[0].mxu0
      %v3001 = vadd.f32 %v2905, %v3000
      %v3002 = vpop.f32.mrb[0].mxu0
      %v3003 = vpop.f32.mrb[0].mxu0
      %v3004 = vadd.f32 %v2905, %v3003
      %v3005 = vpop.f32.mrb[0].mxu0
      %3006 = vmatprep.mubr.bf16.mxu0 0
      %3007 = vmatmul.mubr.bf16.gmra.mrb[0].mxu0 %v2923
      %v3008 = vpop.f32.mrb[0].mxu0
      %v3009 = vadd.f32 %v2905, %v3008
      %v3010 = vpop.f32.mrb[0].mxu0
      %v3011 = vpop.f32.mrb[0].mxu0
      %v3012 = vadd.f32 %v2905, %v3011
      %v3013 = vpop.f32.mrb[0].mxu0
      %3014 = vmatprep.mubr.bf16.mxu0 0
      %3015 = vmatmul.mubr.bf16.gmra.mrb[0].mxu0 %v2926
      %v3016 = vpop.f32.mrb[0].mxu0
      %v3017 = vadd.f32 %v2905, %v3016
      %v3018 = vpop.f32.mrb[0].mxu0
      %v3019 = vpop.f32.mrb[0].mxu0
      %v3020 = vadd.f32 %v2905, %v3019
      %v3021 = vpop.f32.mrb[0].mxu0
      %3022 = vmatprep.mubr.bf16.mxu0 0
      %3023 = vmatmul.mubr.bf16.gmra.mrb[0].mxu0 %v2929
      %v3024 = vpop.f32.mrb[0].mxu0
      %v3025 = vadd.f32 %v2905, %v3024
      %v3026 = vpop.f32.mrb[0].mxu0
      %v3027 = vpop.f32.mrb[0].mxu0
      %v3028 = vadd.f32 %v2905, %v3027
      %v3029 = vpop.f32.mrb[0].mxu0
      %3030 = vdwg.mxu0
      %v3031 = vadd.f32 %v480, %v2969
      %v3032 = vadd.f32 %v481, %v2972
      %v3033 = vadd.f32 %v482, %v2977
      %v3034 = vadd.f32 %v483, %v2980
      %v3035 = vadd.f32 %v484, %v2985
      %v3036 = vadd.f32 %v485, %v2988
      %v3037 = vadd.f32 %v486, %v2993
      %v3038 = vadd.f32 %v487, %v2996
      %v3039 = vadd.f32 %v488, %v3001
      %v3040 = vadd.f32 %v489, %v3004
      %v3041 = vadd.f32 %v490, %v3009
      %v3042 = vadd.f32 %v491, %v3012
      %v3043 = vadd.f32 %v492, %v3017
      %v3044 = vadd.f32 %v493, %v3020
      %v3045 = vadd.f32 %v494, %v3025
      %v3046 = vadd.f32 %v495, %v3028
      %v3047 = vpack.c.bf16 %v3032, %v3031
      %v3048 = vpack.c.bf16 %v3034, %v3033
      %v3049 = vpack.c.bf16 %v3036, %v3035
      %v3050 = vpack.c.bf16 %v3038, %v3037
      %v3051 = vpack.c.bf16 %v3040, %v3039
      %v3052 = vpack.c.bf16 %v3042, %v3041
      %v3053 = vpack.c.bf16 %v3044, %v3043
      %v3054 = vpack.c.bf16 %v3046, %v3045
      %v3063 = vunpack.c.l.b16 %v3047
      %v3064 = vunpack.c.h.b16 %v3047
      %v3065 = vunpack.c.l.b16 %v3048
      %v3066 = vunpack.c.h.b16 %v3048
      %v3067 = vunpack.c.l.b16 %v3049
      %v3068 = vunpack.c.h.b16 %v3049
      %v3069 = vunpack.c.l.b16 %v3050
      %v3070 = vunpack.c.h.b16 %v3050
      %v3071 = vunpack.c.l.b16 %v3051
      %v3072 = vunpack.c.h.b16 %v3051
      %v3073 = vunpack.c.l.b16 %v3052
      %v3074 = vunpack.c.h.b16 %v3052
      %v3075 = vunpack.c.l.b16 %v3053
      %v3076 = vunpack.c.h.b16 %v3053
      %v3077 = vunpack.c.l.b16 %v3054
      %v3078 = vunpack.c.h.b16 %v3054
      %v3079 = vpack.c.b16 %v3063, %v3063
      %v3080 = vpack.c.b16 %v3064, %v3064
      %v3081 = vpack.c.b16 %v3065, %v3065
      %v3082 = vpack.c.b16 %v3066, %v3066
      %v3083 = vpack.c.b16 %v3067, %v3067
      %v3084 = vpack.c.b16 %v3068, %v3068
      %v3085 = vpack.c.b16 %v3069, %v3069
      %v3086 = vpack.c.b16 %v3070, %v3070
      %v3087 = vpack.c.b16 %v3071, %v3071
      %v3088 = vpack.c.b16 %v3072, %v3072
      %v3089 = vpack.c.b16 %v3073, %v3073
      %v3090 = vpack.c.b16 %v3074, %v3074
      %v3091 = vpack.c.b16 %v3075, %v3075
      %v3092 = vpack.c.b16 %v3076, %v3076
      %v3093 = vpack.c.b16 %v3077, %v3077
      %v3094 = vpack.c.b16 %v3078, %v3078
      %s3111 = scalar_lea.vmem %s429, 64
      %3112 = vst.msk [vmem:[%s3111] sm:$0xf] %vm2578, %v3079
      %3113 = vst.msk [vmem:[%s3111 + $0x4] sm:$0xf] %vm2578, %v3080
      %3114 = vst.msk [vmem:[%s3111 + $0x8] sm:$0xf] %vm2578, %v3081
      %3115 = vst.msk [vmem:[%s3111 + $0xc] sm:$0xf] %vm2578, %v3082
      %3116 = vst.msk [vmem:[%s3111 + $0x10] sm:$0xf] %vm2578, %v3083
      %3117 = vst.msk [vmem:[%s3111 + $0x14] sm:$0xf] %vm2578, %v3084
      %3118 = vst.msk [vmem:[%s3111 + $0x18] sm:$0xf] %vm2578, %v3085
      %3119 = vst.msk [vmem:[%s3111 + $0x1c] sm:$0xf] %vm2578, %v3086
      %3120 = vst.msk [vmem:[%s3111 + $0x20] sm:$0xf] %vm2578, %v3087
      %3121 = vst.msk [vmem:[%s3111 + $0x24] sm:$0xf] %vm2578, %v3088
      %3122 = vst.msk [vmem:[%s3111 + $0x28] sm:$0xf] %vm2578, %v3089
      %3123 = vst.msk [vmem:[%s3111 + $0x2c] sm:$0xf] %vm2578, %v3090
      %3124 = vst.msk [vmem:[%s3111 + $0x30] sm:$0xf] %vm2578, %v3091
      %3125 = vst.msk [vmem:[%s3111 + $0x34] sm:$0xf] %vm2578, %v3092
      %3126 = vst.msk [vmem:[%s3111 + $0x38] sm:$0xf] %vm2578, %v3093
      %3127 = vst.msk [vmem:[%s3111 + $0x3c] sm:$0xf] %vm2578, %v3094
      %s3128 = smul.u32 8, %s27
      %p3129 = scmp.lt.s32.totalorder %s26, 1
      %s3130 = scalar_select %p3129, %s26, 1
      %p3131 = scmp.lt.s32.totalorder %s3128, 7
      %s3132 = scalar_select %p3131, %s3128, 7
      %s3133 = smul.addr %s3132, 2
      %s3134 = smul.addr %s3130, 32
      %s3135 = sadd.s32 %s3133, %s3134
      %s3136 = smul.addr %s3135, 4
      %s3137 = scalar_lea.vmem %s11, %s3136
      // Predicated region
      $region65: #{residual_split_head_multi_axis_gmlp.5} parent=63 // pred_check
        %p3138 = pneg %p292
      $region66: #{residual_split_head_multi_axis_gmlp.5} parent=63 // pred_check_branch
        %3140 = sbr.rel (%p3138) target = $region68
      $region67: #{residual_split_head_multi_axis_gmlp.5} parent=63 // pred_region
        %s3141 = smul.u32 8, %s27
      $region68: #{residual_split_head_multi_axis_gmlp.5} parent=63 // pred_fallthru
        _
    $region64: #{residual_split_head_multi_axis_gmlp.5} parent=5 // pred_fallthru
      _
    %p3142 = scmp.le.s32.totalorder 2, %s17
    // Predicated region
    $region69: #{residual_split_head_multi_axis_gmlp.5} parent=5 // pred_check
      %p3143 = pneg %p3142
    $region70: #{residual_split_head_multi_axis_gmlp.5} parent=5 // pred_check_branch
      %3145 = sbr.rel (%p3143) target = $region72
    $region71: #{residual_split_head_multi_axis_gmlp.5} parent=5 // pred_region
      %s3146 = ssub.s32 %s17, 2
      // Predicated region
      $region73: #{residual_split_head_multi_axis_gmlp.5} parent=71 // pred_check
        %p3147 = pneg %p298
      $region74: #{residual_split_head_multi_axis_gmlp.5} parent=71 // pred_check_branch
        %3149 = sbr.rel (%p3147) target = $region76
      $region75: #{residual_split_head_multi_axis_gmlp.5} parent=71 // pred_region
        %s3150 = smul.u32 8, %s29
        %p3151 = scmp.lt.s32.totalorder %s28, 1
        %s3152 = scalar_select %p3151, %s28, 1
        %p3153 = scmp.lt.s32.totalorder %s3150, 7
        %s3154 = scalar_select %p3153, %s3150, 7
        %s3155 = smul.addr %s3154, 2
        %s3156 = smul.addr %s3152, 32
        %s3157 = sadd.s32 %s3155, %s3156
        %s3158 = smul.addr %s3157, 4
        %s3159 = scalar_lea.vmem %s11, %s3158
      $region76: #{residual_split_head_multi_axis_gmlp.5} parent=71 // pred_fallthru
        _
    $region72: #{residual_split_head_multi_axis_gmlp.5} parent=5 // pred_fallthru
      _
  $region6: #{residual_split_head_multi_axis_gmlp.5} parent=0 // loop_footer
    %s21 = sadd.s32 1, %s17
  $region7: #{residual_split_head_multi_axis_gmlp.5} parent=0 // loop_footer_branch
    %16 = sbr.rel target = $region3
  $region8: #{residual_split_head_multi_axis_gmlp.5} parent=0 // loop_exit
    _

</llo_original>
